<compile_context>
chip_gen: v7x
topology: tpu7x:2x2x1
jax: 0.10.0
libtpu: 0.0.40
codegen_flags: <defaults>
</compile_context>

<pallas_src>
import functools

import jax
import jax.numpy as jnp
from jax import lax
from jax.experimental import pallas as pl
from jax.experimental.pallas import tpu as pltpu

_RGB_FILL = 0.4   # the reference fills rgb with 0.4
_LANE = 128


def _pick_chunk(n):
    for c in (512, 256, 128):
        if n % c == 0:
            return c
    return n


def _point_encoder_kernel(pts_ref, w1_ref, b1_ref, w2_ref, b2_ref, out_ref,
                          *, n_points, chunk):
    # pts_ref: (Bt, 3, N) f32 — channels-first, points lane-dense (NO transpose)
    # w1_ref:  (H, 3)  f32   — xyz rows of the fused 6-channel weight, transposed
    # b1_ref:  (H, 1)  f32   — bias with the constant-rgb term folded in
    # w2_ref:  (E_pad, H) bf16
    # b2_ref:  (E_pad, 1) f32
    # out_ref: (Bt, E_pad) f32
    bt = pts_ref.shape[0]
    e_pad = w2_ref.shape[0]
    n_chunks = n_points // chunk

    # Loop-invariant tiny operands hoisted once (columns, not full broadcasts,
    # to keep vreg pressure low).
    w1c = [w1_ref[:, c:c + 1] for c in range(3)]           # 3 x (H, 1)
    b1c = b1_ref[...]                                      # (H, 1)
    w2 = w2_ref[...]                                       # (E_pad, H) bf16
    b2c = b2_ref[...]                                      # (E_pad, 1)
    neg_inf = jnp.full((e_pad, 1), -jnp.inf, jnp.float32)

    cols = []
    for b in range(bt):                                    # static, tiny
        def chunk_body(ci, m, b=b):
            off = pl.multiple_of(ci * chunk, chunk)
            p = pts_ref[b, :, pl.ds(off, chunk)]           # (3, chunk) f32
            # Layer 1 (K = 3): broadcast FMAs on the VPU — keeps the MXU for
            # the well-shaped layer-2 matmul only.
            h = (w1c[0] * p[0:1, :]
                 + w1c[1] * p[1:2, :]
                 + w1c[2] * p[2:3, :]
                 + b1c)                                    # (H, chunk) f32
            h = jnp.maximum(h, 0.0)
            # Layer 2 on the MXU: K = H, bf16 operands, f32 accumulation.
            e = jnp.dot(w2, h.astype(jnp.bfloat16),
                        preferred_element_type=jnp.float32)  # (E_pad, chunk)
            # Fused running max over the point (lane) axis — no (N, E)
            # intermediate is ever materialized.
            return jnp.maximum(m, jnp.max(e, axis=1, keepdims=True))

        m_b = lax.fori_loop(0, n_chunks, chunk_body, neg_inf, unroll=True)
        cols.append(m_b + b2c)          # bias is lane-constant: add after max

    # (E_pad, Bt) column stack -> one XLU transpose -> single unmasked,
    # lane-dense store of the whole output block.
    out_ref[...] = jnp.transpose(jnp.concatenate(cols, axis=1))


def point_encoder_pallas(xyz, w1_t, b1_col, w2_t, b2_col, *, batch_tile=None):
    """xyz: [B, 3, N] exactly as the reference provides it (channels-first)."""
    B, C, N = xyz.shape
    assert C == 3
    H = w1_t.shape[0]
    E_pad = w2_t.shape[0]
    if batch_tile is None:
        # Single grid step: best on single-TensorCore v5e/v6e (no per-step
        # overhead).  A v7x caller can pass batch_tile=B//2 to feed both TCs.
        batch_tile = B
    assert B % batch_tile == 0
    num_steps = B // batch_tile
    chunk = _pick_chunk(N)

    kernel = functools.partial(_point_encoder_kernel, n_points=N, chunk=chunk)

    flops = 2 * B * N * H * (3 + E_pad)
    bytes_accessed = (xyz.size * xyz.dtype.itemsize
                      + w1_t.size * 4 + b1_col.size * 4
                      + w2_t.size * 2 + b2_col.size * 4
                      + B * E_pad * 4)

    return pl.pallas_call(
        kernel,
        out_shape=jax.ShapeDtypeStruct((B, E_pad), jnp.float32),
        grid_spec=pltpu.PrefetchScalarGridSpec(
            num_scalar_prefetch=0,
            grid=(num_steps,),
            in_specs=[
                # point cloud: the only per-step DMA, contiguous lane-dense rows
                pl.BlockSpec((batch_tile, 3, N), lambda s: (s, 0, 0)),
                # weights / biases: constant block index -> resident in VMEM
                pl.BlockSpec((H, 3), lambda s: (0, 0)),
                pl.BlockSpec((H, 1), lambda s: (0, 0)),
                pl.BlockSpec((E_pad, H), lambda s: (0, 0)),
                pl.BlockSpec((E_pad, 1), lambda s: (0, 0)),
            ],
            out_specs=pl.BlockSpec((batch_tile, E_pad), lambda s: (s, 0)),
        ),
        compiler_params=pltpu.CompilerParams(
            dimension_semantics=("parallel",)),
        cost_estimate=pl.CostEstimate(
            flops=flops, transcendentals=0, bytes_accessed=bytes_accessed),
    )(xyz, w1_t, b1_col, w2_t, b2_col)


def init_params(key, hidden=128, embed=64):
    k1, k2 = jax.random.split(key)
    return {
        # fused first-layer weight over the 6 input channels (xyz ++ rgb)
        "w1": jax.random.normal(k1, (6, hidden), jnp.float32) * 0.1,
        "b1": jnp.zeros((hidden,), jnp.float32),
        "w2": jax.random.normal(k2, (hidden, embed), jnp.float32) * 0.1,
        "b2": jnp.zeros((embed,), jnp.float32),
    }


def _pack_params(params, lane=_LANE):
    """Tiny one-time prep hoisted out of the kernel (channels-first layout)."""
    w1, b1, w2, b2 = params["w1"], params["b1"], params["w2"], params["b2"]
    hidden, embed = w2.shape
    # rgb is the constant 0.4 in the reference forward, so its contribution
    # (0.4 * column-sum of the rgb rows of the fused W1) folds into the bias:
    # the kernel never reads a color array at all.
    b1_eff = b1 + _RGB_FILL * jnp.sum(w1[3:], axis=0)                   # (H,)
    w1_t = jnp.transpose(w1[:3]).astype(jnp.float32)                    # (H, 3)
    b1_col = b1_eff[:, None].astype(jnp.float32)                        # (H, 1)
    # Pad the embedding dim to a full 128-lane tile (unmasked output stores);
    # the wrapper slices the pad off.  Padded rows of W2/b2 are zero.
    e_pad = ((embed + lane - 1) // lane) * lane
    w2_t = jnp.zeros((e_pad, hidden), jnp.float32).at[:embed, :].set(w2.T)
    w2_t = w2_t.astype(jnp.bfloat16)                                    # (E_pad, H)
    b2_col = jnp.zeros((e_pad, 1), jnp.float32).at[:embed, 0].set(b2)   # (E_pad, 1)
    return w1_t, b1_col, w2_t, b2_col


def point_uni3d_forward(params, xyz, *, batch_tile=None):
    """Point-cloud branch of PointUni3d.forward.

    xyz: [B, 3, N] (spec layout).  The reference builds rgb = full(0.4),
    concatenates to 6 channels and transposes to channels-last before the
    point encoder; here the constant-rgb term is folded into the first-layer
    bias and the kernel consumes xyz channels-first directly — no wrapper
    transpose, no color tensor, no extra copies.
    """
    w1_t, b1_col, w2_t, b2_col = _pack_params(params)
    embed = params["w2"].shape[1]
    pc_feat = point_encoder_pallas(xyz.astype(jnp.float32),
                                   w1_t, b1_col, w2_t, b2_col,
                                   batch_tile=batch_tile)
    # TODO(synk): text backbone / tokenizer / adapters / GPBlocks / fp1 decode
    # are external pretrained components and are not implemented here.
    return pc_feat[:, :embed]


if __name__ == "__main__":
    key = jax.random.PRNGKey(0)
    kp, kx = jax.random.split(key)

    B, N = 2, 2048          # spec: xyz is [B, 3, 2048]
    hidden, embed = 128, 64

    params = init_params(kp, hidden=hidden, embed=embed)
    xyz = jax.random.normal(kx, (B, 3, N), jnp.float32)

    fwd = jax.jit(point_uni3d_forward)
    pc_feat = fwd(params, xyz)
    jax.block_until_ready(pc_feat)

    # Pure-JAX f32 reference following the reference feature pipeline:
    # rgb = 0.4, feature = concat(xyz, rgb) channels-last, per-point MLP,
    # global max-pool over points.
    feat = jnp.concatenate(
        [jnp.transpose(xyz, (0, 2, 1)),
         jnp.full((B, N, 3), _RGB_FILL, jnp.float32)], axis=-1)          # (B, N, 6)
    h = jnp.maximum(feat @ params["w1"] + params["b1"], 0.0)
    ref = jnp.max(h @ params["w2"] + params["b2"], axis=1)               # (B, embed)

    assert pc_feat.shape == (B, embed), pc_feat.shape
    err = float(jnp.max(jnp.abs(pc_feat - ref)))
    assert err < 3e-2, f"max abs err {err}"   # bf16 layer-2 operands vs f32 ref
    print("KERNEL_OK")
</pallas_src>

<mosaic_0001>
module attributes {stable_mosaic.version = 11 : i64} {
  func.func @_point_encoder_kernel(%arg0: i32, %arg1: memref<2x3x2048xf32, #tpu.memory_space<vmem>>, %arg2: memref<128x3xf32, #tpu.memory_space<vmem>>, %arg3: memref<128x1xf32, #tpu.memory_space<vmem>>, %arg4: memref<128x128xbf16, #tpu.memory_space<vmem>>, %arg5: memref<128x1xf32, #tpu.memory_space<vmem>>, %arg6: memref<2x128xf32, #tpu.memory_space<vmem>>) attributes {dimension_semantics = [#tpu.dimension_semantics<parallel>], iteration_bounds = array<i64: 1>, scalar_prefetch = 0 : i64, scratch_operands = 0 : i64, tpu.core_type = #tpu.core_type<tc>, window_params = [{transform_indices = @transform_0, window_bounds = array<i64: 2, 3, 2048>}, {pipeline_mode = #tpu.pipeline_mode<synchronous>, transform_indices = @transform_1, window_bounds = array<i64: 128, 3>}, {pipeline_mode = #tpu.pipeline_mode<synchronous>, transform_indices = @transform_2, window_bounds = array<i64: 128, 1>}, {pipeline_mode = #tpu.pipeline_mode<synchronous>, transform_indices = @transform_3, window_bounds = array<i64: 128, 128>}, {pipeline_mode = #tpu.pipeline_mode<synchronous>, transform_indices = @transform_4, window_bounds = array<i64: 128, 1>}, {transform_indices = @transform_5, window_bounds = array<i64: 2, 128>}]} {
    %c0 = arith.constant 0 : index
    %c0_0 = arith.constant 0 : index
    %0 = vector.load %arg2[%c0, %c0_0] : memref<128x3xf32, #tpu.memory_space<vmem>>, vector<128x1xf32>
    %c0_1 = arith.constant 0 : index
    %c1 = arith.constant 1 : index
    %1 = vector.load %arg2[%c0_1, %c1] : memref<128x3xf32, #tpu.memory_space<vmem>>, vector<128x1xf32>
    %c0_2 = arith.constant 0 : index
    %c2 = arith.constant 2 : index
    %2 = vector.load %arg2[%c0_2, %c2] : memref<128x3xf32, #tpu.memory_space<vmem>>, vector<128x1xf32>
    %c0_3 = arith.constant 0 : index
    %c0_4 = arith.constant 0 : index
    %3 = vector.load %arg3[%c0_3, %c0_4] : memref<128x1xf32, #tpu.memory_space<vmem>>, vector<128x1xf32>
    %c0_5 = arith.constant 0 : index
    %c0_6 = arith.constant 0 : index
    %4 = vector.load %arg4[%c0_5, %c0_6] : memref<128x128xbf16, #tpu.memory_space<vmem>>, vector<128x128xbf16>
    %c0_7 = arith.constant 0 : index
    %c0_8 = arith.constant 0 : index
    %5 = vector.load %arg5[%c0_7, %c0_8] : memref<128x1xf32, #tpu.memory_space<vmem>>, vector<128x1xf32>
    %cst = arith.constant 0xFF800000 : f32
    %6 = vector.broadcast %cst : f32 to vector<128x1xf32>
    %c0_i32 = arith.constant 0 : i32
    %c512_i32 = arith.constant 512 : i32
    %7 = arith.muli %c0_i32, %c512_i32 : i32
    %8 = tpu.assume_multiple %7, 512 : i32
    %c0_9 = arith.constant 0 : index
    %c0_10 = arith.constant 0 : index
    %9 = arith.index_cast %8 : i32 to index
    %10 = vector.load %arg1[%c0_9, %c0_10, %9] : memref<2x3x2048xf32, #tpu.memory_space<vmem>>, vector<1x3x512xf32>
    %11 = vector.shape_cast %10 : vector<1x3x512xf32> to vector<3x512xf32>
    %12 = vector.extract_strided_slice %11 {offsets = [0, 0], sizes = [1, 512], strides = [1, 1]} : vector<3x512xf32> to vector<1x512xf32>
    %13 = vector.broadcast %0 : vector<128x1xf32> to vector<128x512xf32>
    %14 = vector.broadcast %12 : vector<1x512xf32> to vector<128x512xf32>
    %15 = arith.mulf %13, %14 : vector<128x512xf32>
    %16 = vector.extract_strided_slice %11 {offsets = [1, 0], sizes = [1, 512], strides = [1, 1]} : vector<3x512xf32> to vector<1x512xf32>
    %17 = vector.broadcast %1 : vector<128x1xf32> to vector<128x512xf32>
    %18 = vector.broadcast %16 : vector<1x512xf32> to vector<128x512xf32>
    %19 = arith.mulf %17, %18 : vector<128x512xf32>
    %20 = arith.addf %15, %19 : vector<128x512xf32>
    %21 = vector.extract_strided_slice %11 {offsets = [2, 0], sizes = [1, 512], strides = [1, 1]} : vector<3x512xf32> to vector<1x512xf32>
    %22 = vector.broadcast %2 : vector<128x1xf32> to vector<128x512xf32>
    %23 = vector.broadcast %21 : vector<1x512xf32> to vector<128x512xf32>
    %24 = arith.mulf %22, %23 : vector<128x512xf32>
    %25 = arith.addf %20, %24 : vector<128x512xf32>
    %26 = vector.broadcast %3 : vector<128x1xf32> to vector<128x512xf32>
    %27 = arith.addf %25, %26 : vector<128x512xf32>
    %cst_11 = arith.constant 0.000000e+00 : f32
    %28 = vector.broadcast %cst_11 : f32 to vector<128x512xf32>
    %29 = arith.maximumf %27, %28 : vector<128x512xf32>
    %30 = arith.truncf %29 : vector<128x512xf32> to vector<128x512xbf16>
    %cst_12 = arith.constant dense<0.000000e+00> : vector<128x512xf32>
    %31 = tpu.matmul %4, %30, %cst_12 {dimension_numbers = #tpu.dot_dimension_numbers<[1], [0], [0], [1], [0, 0, 1, 1], [], []>} : vector<128x128xbf16>, vector<128x512xbf16>, vector<128x512xf32> -> vector<128x512xf32>
    %cst_13 = arith.constant dense<0xFF800000> : vector<128xf32>
    %32 = vector.multi_reduction <maximumf>, %31, %cst_13 [1] : vector<128x512xf32> to vector<128xf32>
    %33 = vector.shape_cast %32 : vector<128xf32> to vector<128x1xf32>
    %34 = arith.maximumf %6, %33 : vector<128x1xf32>
    %c1_i32 = arith.constant 1 : i32
    %c512_i32_14 = arith.constant 512 : i32
    %35 = arith.muli %c1_i32, %c512_i32_14 : i32
    %36 = tpu.assume_multiple %35, 512 : i32
    %c0_15 = arith.constant 0 : index
    %c0_16 = arith.constant 0 : index
    %37 = arith.index_cast %36 : i32 to index
    %38 = vector.load %arg1[%c0_15, %c0_16, %37] : memref<2x3x2048xf32, #tpu.memory_space<vmem>>, vector<1x3x512xf32>
    %39 = vector.shape_cast %38 : vector<1x3x512xf32> to vector<3x512xf32>
    %40 = vector.extract_strided_slice %39 {offsets = [0, 0], sizes = [1, 512], strides = [1, 1]} : vector<3x512xf32> to vector<1x512xf32>
    %41 = vector.broadcast %0 : vector<128x1xf32> to vector<128x512xf32>
    %42 = vector.broadcast %40 : vector<1x512xf32> to vector<128x512xf32>
    %43 = arith.mulf %41, %42 : vector<128x512xf32>
    %44 = vector.extract_strided_slice %39 {offsets = [1, 0], sizes = [1, 512], strides = [1, 1]} : vector<3x512xf32> to vector<1x512xf32>
    %45 = vector.broadcast %1 : vector<128x1xf32> to vector<128x512xf32>
    %46 = vector.broadcast %44 : vector<1x512xf32> to vector<128x512xf32>
    %47 = arith.mulf %45, %46 : vector<128x512xf32>
    %48 = arith.addf %43, %47 : vector<128x512xf32>
    %49 = vector.extract_strided_slice %39 {offsets = [2, 0], sizes = [1, 512], strides = [1, 1]} : vector<3x512xf32> to vector<1x512xf32>
    %50 = vector.broadcast %2 : vector<128x1xf32> to vector<128x512xf32>
    %51 = vector.broadcast %49 : vector<1x512xf32> to vector<128x512xf32>
    %52 = arith.mulf %50, %51 : vector<128x512xf32>
    %53 = arith.addf %48, %52 : vector<128x512xf32>
    %54 = vector.broadcast %3 : vector<128x1xf32> to vector<128x512xf32>
    %55 = arith.addf %53, %54 : vector<128x512xf32>
    %cst_17 = arith.constant 0.000000e+00 : f32
    %56 = vector.broadcast %cst_17 : f32 to vector<128x512xf32>
    %57 = arith.maximumf %55, %56 : vector<128x512xf32>
    %58 = arith.truncf %57 : vector<128x512xf32> to vector<128x512xbf16>
    %cst_18 = arith.constant dense<0.000000e+00> : vector<128x512xf32>
    %59 = tpu.matmul %4, %58, %cst_18 {dimension_numbers = #tpu.dot_dimension_numbers<[1], [0], [0], [1], [0, 0, 1, 1], [], []>} : vector<128x128xbf16>, vector<128x512xbf16>, vector<128x512xf32> -> vector<128x512xf32>
    %cst_19 = arith.constant dense<0xFF800000> : vector<128xf32>
    %60 = vector.multi_reduction <maximumf>, %59, %cst_19 [1] : vector<128x512xf32> to vector<128xf32>
    %61 = vector.shape_cast %60 : vector<128xf32> to vector<128x1xf32>
    %62 = arith.maximumf %34, %61 : vector<128x1xf32>
    %c2_i32 = arith.constant 2 : i32
    %c512_i32_20 = arith.constant 512 : i32
    %63 = arith.muli %c2_i32, %c512_i32_20 : i32
    %64 = tpu.assume_multiple %63, 512 : i32
    %c0_21 = arith.constant 0 : index
    %c0_22 = arith.constant 0 : index
    %65 = arith.index_cast %64 : i32 to index
    %66 = vector.load %arg1[%c0_21, %c0_22, %65] : memref<2x3x2048xf32, #tpu.memory_space<vmem>>, vector<1x3x512xf32>
    %67 = vector.shape_cast %66 : vector<1x3x512xf32> to vector<3x512xf32>
    %68 = vector.extract_strided_slice %67 {offsets = [0, 0], sizes = [1, 512], strides = [1, 1]} : vector<3x512xf32> to vector<1x512xf32>
    %69 = vector.broadcast %0 : vector<128x1xf32> to vector<128x512xf32>
    %70 = vector.broadcast %68 : vector<1x512xf32> to vector<128x512xf32>
    %71 = arith.mulf %69, %70 : vector<128x512xf32>
    %72 = vector.extract_strided_slice %67 {offsets = [1, 0], sizes = [1, 512], strides = [1, 1]} : vector<3x512xf32> to vector<1x512xf32>
    %73 = vector.broadcast %1 : vector<128x1xf32> to vector<128x512xf32>
    %74 = vector.broadcast %72 : vector<1x512xf32> to vector<128x512xf32>
    %75 = arith.mulf %73, %74 : vector<128x512xf32>
    %76 = arith.addf %71, %75 : vector<128x512xf32>
    %77 = vector.extract_strided_slice %67 {offsets = [2, 0], sizes = [1, 512], strides = [1, 1]} : vector<3x512xf32> to vector<1x512xf32>
    %78 = vector.broadcast %2 : vector<128x1xf32> to vector<128x512xf32>
    %79 = vector.broadcast %77 : vector<1x512xf32> to vector<128x512xf32>
    %80 = arith.mulf %78, %79 : vector<128x512xf32>
    %81 = arith.addf %76, %80 : vector<128x512xf32>
    %82 = vector.broadcast %3 : vector<128x1xf32> to vector<128x512xf32>
    %83 = arith.addf %81, %82 : vector<128x512xf32>
    %cst_23 = arith.constant 0.000000e+00 : f32
    %84 = vector.broadcast %cst_23 : f32 to vector<128x512xf32>
    %85 = arith.maximumf %83, %84 : vector<128x512xf32>
    %86 = arith.truncf %85 : vector<128x512xf32> to vector<128x512xbf16>
    %cst_24 = arith.constant dense<0.000000e+00> : vector<128x512xf32>
    %87 = tpu.matmul %4, %86, %cst_24 {dimension_numbers = #tpu.dot_dimension_numbers<[1], [0], [0], [1], [0, 0, 1, 1], [], []>} : vector<128x128xbf16>, vector<128x512xbf16>, vector<128x512xf32> -> vector<128x512xf32>
    %cst_25 = arith.constant dense<0xFF800000> : vector<128xf32>
    %88 = vector.multi_reduction <maximumf>, %87, %cst_25 [1] : vector<128x512xf32> to vector<128xf32>
    %89 = vector.shape_cast %88 : vector<128xf32> to vector<128x1xf32>
    %90 = arith.maximumf %62, %89 : vector<128x1xf32>
    %c3_i32 = arith.constant 3 : i32
    %c512_i32_26 = arith.constant 512 : i32
    %91 = arith.muli %c3_i32, %c512_i32_26 : i32
    %92 = tpu.assume_multiple %91, 512 : i32
    %c0_27 = arith.constant 0 : index
    %c0_28 = arith.constant 0 : index
    %93 = arith.index_cast %92 : i32 to index
    %94 = vector.load %arg1[%c0_27, %c0_28, %93] : memref<2x3x2048xf32, #tpu.memory_space<vmem>>, vector<1x3x512xf32>
    %95 = vector.shape_cast %94 : vector<1x3x512xf32> to vector<3x512xf32>
    %96 = vector.extract_strided_slice %95 {offsets = [0, 0], sizes = [1, 512], strides = [1, 1]} : vector<3x512xf32> to vector<1x512xf32>
    %97 = vector.broadcast %0 : vector<128x1xf32> to vector<128x512xf32>
    %98 = vector.broadcast %96 : vector<1x512xf32> to vector<128x512xf32>
    %99 = arith.mulf %97, %98 : vector<128x512xf32>
    %100 = vector.extract_strided_slice %95 {offsets = [1, 0], sizes = [1, 512], strides = [1, 1]} : vector<3x512xf32> to vector<1x512xf32>
    %101 = vector.broadcast %1 : vector<128x1xf32> to vector<128x512xf32>
    %102 = vector.broadcast %100 : vector<1x512xf32> to vector<128x512xf32>
    %103 = arith.mulf %101, %102 : vector<128x512xf32>
    %104 = arith.addf %99, %103 : vector<128x512xf32>
    %105 = vector.extract_strided_slice %95 {offsets = [2, 0], sizes = [1, 512], strides = [1, 1]} : vector<3x512xf32> to vector<1x512xf32>
    %106 = vector.broadcast %2 : vector<128x1xf32> to vector<128x512xf32>
    %107 = vector.broadcast %105 : vector<1x512xf32> to vector<128x512xf32>
    %108 = arith.mulf %106, %107 : vector<128x512xf32>
    %109 = arith.addf %104, %108 : vector<128x512xf32>
    %110 = vector.broadcast %3 : vector<128x1xf32> to vector<128x512xf32>
    %111 = arith.addf %109, %110 : vector<128x512xf32>
    %cst_29 = arith.constant 0.000000e+00 : f32
    %112 = vector.broadcast %cst_29 : f32 to vector<128x512xf32>
    %113 = arith.maximumf %111, %112 : vector<128x512xf32>
    %114 = arith.truncf %113 : vector<128x512xf32> to vector<128x512xbf16>
    %cst_30 = arith.constant dense<0.000000e+00> : vector<128x512xf32>
    %115 = tpu.matmul %4, %114, %cst_30 {dimension_numbers = #tpu.dot_dimension_numbers<[1], [0], [0], [1], [0, 0, 1, 1], [], []>} : vector<128x128xbf16>, vector<128x512xbf16>, vector<128x512xf32> -> vector<128x512xf32>
    %cst_31 = arith.constant dense<0xFF800000> : vector<128xf32>
    %116 = vector.multi_reduction <maximumf>, %115, %cst_31 [1] : vector<128x512xf32> to vector<128xf32>
    %117 = vector.shape_cast %116 : vector<128xf32> to vector<128x1xf32>
    %118 = arith.maximumf %90, %117 : vector<128x1xf32>
    %c4_i32 = arith.constant 4 : i32
    %119 = arith.addf %118, %5 : vector<128x1xf32>
    %c0_i32_32 = arith.constant 0 : i32
    %c512_i32_33 = arith.constant 512 : i32
    %120 = arith.muli %c0_i32_32, %c512_i32_33 : i32
    %121 = tpu.assume_multiple %120, 512 : i32
    %c1_34 = arith.constant 1 : index
    %c0_35 = arith.constant 0 : index
    %122 = arith.index_cast %121 : i32 to index
    %123 = vector.load %arg1[%c1_34, %c0_35, %122] : memref<2x3x2048xf32, #tpu.memory_space<vmem>>, vector<1x3x512xf32>
    %124 = vector.shape_cast %123 : vector<1x3x512xf32> to vector<3x512xf32>
    %125 = vector.extract_strided_slice %124 {offsets = [0, 0], sizes = [1, 512], strides = [1, 1]} : vector<3x512xf32> to vector<1x512xf32>
    %126 = vector.broadcast %0 : vector<128x1xf32> to vector<128x512xf32>
    %127 = vector.broadcast %125 : vector<1x512xf32> to vector<128x512xf32>
    %128 = arith.mulf %126, %127 : vector<128x512xf32>
    %129 = vector.extract_strided_slice %124 {offsets = [1, 0], sizes = [1, 512], strides = [1, 1]} : vector<3x512xf32> to vector<1x512xf32>
    %130 = vector.broadcast %1 : vector<128x1xf32> to vector<128x512xf32>
    %131 = vector.broadcast %129 : vector<1x512xf32> to vector<128x512xf32>
    %132 = arith.mulf %130, %131 : vector<128x512xf32>
    %133 = arith.addf %128, %132 : vector<128x512xf32>
    %134 = vector.extract_strided_slice %124 {offsets = [2, 0], sizes = [1, 512], strides = [1, 1]} : vector<3x512xf32> to vector<1x512xf32>
    %135 = vector.broadcast %2 : vector<128x1xf32> to vector<128x512xf32>
    %136 = vector.broadcast %134 : vector<1x512xf32> to vector<128x512xf32>
    %137 = arith.mulf %135, %136 : vector<128x512xf32>
    %138 = arith.addf %133, %137 : vector<128x512xf32>
    %139 = vector.broadcast %3 : vector<128x1xf32> to vector<128x512xf32>
    %140 = arith.addf %138, %139 : vector<128x512xf32>
    %cst_36 = arith.constant 0.000000e+00 : f32
    %141 = vector.broadcast %cst_36 : f32 to vector<128x512xf32>
    %142 = arith.maximumf %140, %141 : vector<128x512xf32>
    %143 = arith.truncf %142 : vector<128x512xf32> to vector<128x512xbf16>
    %cst_37 = arith.constant dense<0.000000e+00> : vector<128x512xf32>
    %144 = tpu.matmul %4, %143, %cst_37 {dimension_numbers = #tpu.dot_dimension_numbers<[1], [0], [0], [1], [0, 0, 1, 1], [], []>} : vector<128x128xbf16>, vector<128x512xbf16>, vector<128x512xf32> -> vector<128x512xf32>
    %cst_38 = arith.constant dense<0xFF800000> : vector<128xf32>
    %145 = vector.multi_reduction <maximumf>, %144, %cst_38 [1] : vector<128x512xf32> to vector<128xf32>
    %146 = vector.shape_cast %145 : vector<128xf32> to vector<128x1xf32>
    %147 = arith.maximumf %6, %146 : vector<128x1xf32>
    %c1_i32_39 = arith.constant 1 : i32
    %c512_i32_40 = arith.constant 512 : i32
    %148 = arith.muli %c1_i32_39, %c512_i32_40 : i32
    %149 = tpu.assume_multiple %148, 512 : i32
    %c1_41 = arith.constant 1 : index
    %c0_42 = arith.constant 0 : index
    %150 = arith.index_cast %149 : i32 to index
    %151 = vector.load %arg1[%c1_41, %c0_42, %150] : memref<2x3x2048xf32, #tpu.memory_space<vmem>>, vector<1x3x512xf32>
    %152 = vector.shape_cast %151 : vector<1x3x512xf32> to vector<3x512xf32>
    %153 = vector.extract_strided_slice %152 {offsets = [0, 0], sizes = [1, 512], strides = [1, 1]} : vector<3x512xf32> to vector<1x512xf32>
    %154 = vector.broadcast %0 : vector<128x1xf32> to vector<128x512xf32>
    %155 = vector.broadcast %153 : vector<1x512xf32> to vector<128x512xf32>
    %156 = arith.mulf %154, %155 : vector<128x512xf32>
    %157 = vector.extract_strided_slice %152 {offsets = [1, 0], sizes = [1, 512], strides = [1, 1]} : vector<3x512xf32> to vector<1x512xf32>
    %158 = vector.broadcast %1 : vector<128x1xf32> to vector<128x512xf32>
    %159 = vector.broadcast %157 : vector<1x512xf32> to vector<128x512xf32>
    %160 = arith.mulf %158, %159 : vector<128x512xf32>
    %161 = arith.addf %156, %160 : vector<128x512xf32>
    %162 = vector.extract_strided_slice %152 {offsets = [2, 0], sizes = [1, 512], strides = [1, 1]} : vector<3x512xf32> to vector<1x512xf32>
    %163 = vector.broadcast %2 : vector<128x1xf32> to vector<128x512xf32>
    %164 = vector.broadcast %162 : vector<1x512xf32> to vector<128x512xf32>
    %165 = arith.mulf %163, %164 : vector<128x512xf32>
    %166 = arith.addf %161, %165 : vector<128x512xf32>
    %167 = vector.broadcast %3 : vector<128x1xf32> to vector<128x512xf32>
    %168 = arith.addf %166, %167 : vector<128x512xf32>
    %cst_43 = arith.constant 0.000000e+00 : f32
    %169 = vector.broadcast %cst_43 : f32 to vector<128x512xf32>
    %170 = arith.maximumf %168, %169 : vector<128x512xf32>
    %171 = arith.truncf %170 : vector<128x512xf32> to vector<128x512xbf16>
    %cst_44 = arith.constant dense<0.000000e+00> : vector<128x512xf32>
    %172 = tpu.matmul %4, %171, %cst_44 {dimension_numbers = #tpu.dot_dimension_numbers<[1], [0], [0], [1], [0, 0, 1, 1], [], []>} : vector<128x128xbf16>, vector<128x512xbf16>, vector<128x512xf32> -> vector<128x512xf32>
    %cst_45 = arith.constant dense<0xFF800000> : vector<128xf32>
    %173 = vector.multi_reduction <maximumf>, %172, %cst_45 [1] : vector<128x512xf32> to vector<128xf32>
    %174 = vector.shape_cast %173 : vector<128xf32> to vector<128x1xf32>
    %175 = arith.maximumf %147, %174 : vector<128x1xf32>
    %c2_i32_46 = arith.constant 2 : i32
    %c512_i32_47 = arith.constant 512 : i32
    %176 = arith.muli %c2_i32_46, %c512_i32_47 : i32
    %177 = tpu.assume_multiple %176, 512 : i32
    %c1_48 = arith.constant 1 : index
    %c0_49 = arith.constant 0 : index
    %178 = arith.index_cast %177 : i32 to index
    %179 = vector.load %arg1[%c1_48, %c0_49, %178] : memref<2x3x2048xf32, #tpu.memory_space<vmem>>, vector<1x3x512xf32>
    %180 = vector.shape_cast %179 : vector<1x3x512xf32> to vector<3x512xf32>
    %181 = vector.extract_strided_slice %180 {offsets = [0, 0], sizes = [1, 512], strides = [1, 1]} : vector<3x512xf32> to vector<1x512xf32>
    %182 = vector.broadcast %0 : vector<128x1xf32> to vector<128x512xf32>
    %183 = vector.broadcast %181 : vector<1x512xf32> to vector<128x512xf32>
    %184 = arith.mulf %182, %183 : vector<128x512xf32>
    %185 = vector.extract_strided_slice %180 {offsets = [1, 0], sizes = [1, 512], strides = [1, 1]} : vector<3x512xf32> to vector<1x512xf32>
    %186 = vector.broadcast %1 : vector<128x1xf32> to vector<128x512xf32>
    %187 = vector.broadcast %185 : vector<1x512xf32> to vector<128x512xf32>
    %188 = arith.mulf %186, %187 : vector<128x512xf32>
    %189 = arith.addf %184, %188 : vector<128x512xf32>
    %190 = vector.extract_strided_slice %180 {offsets = [2, 0], sizes = [1, 512], strides = [1, 1]} : vector<3x512xf32> to vector<1x512xf32>
    %191 = vector.broadcast %2 : vector<128x1xf32> to vector<128x512xf32>
    %192 = vector.broadcast %190 : vector<1x512xf32> to vector<128x512xf32>
    %193 = arith.mulf %191, %192 : vector<128x512xf32>
    %194 = arith.addf %189, %193 : vector<128x512xf32>
    %195 = vector.broadcast %3 : vector<128x1xf32> to vector<128x512xf32>
    %196 = arith.addf %194, %195 : vector<128x512xf32>
    %cst_50 = arith.constant 0.000000e+00 : f32
    %197 = vector.broadcast %cst_50 : f32 to vector<128x512xf32>
    %198 = arith.maximumf %196, %197 : vector<128x512xf32>
    %199 = arith.truncf %198 : vector<128x512xf32> to vector<128x512xbf16>
    %cst_51 = arith.constant dense<0.000000e+00> : vector<128x512xf32>
    %200 = tpu.matmul %4, %199, %cst_51 {dimension_numbers = #tpu.dot_dimension_numbers<[1], [0], [0], [1], [0, 0, 1, 1], [], []>} : vector<128x128xbf16>, vector<128x512xbf16>, vector<128x512xf32> -> vector<128x512xf32>
    %cst_52 = arith.constant dense<0xFF800000> : vector<128xf32>
    %201 = vector.multi_reduction <maximumf>, %200, %cst_52 [1] : vector<128x512xf32> to vector<128xf32>
    %202 = vector.shape_cast %201 : vector<128xf32> to vector<128x1xf32>
    %203 = arith.maximumf %175, %202 : vector<128x1xf32>
    %c3_i32_53 = arith.constant 3 : i32
    %c512_i32_54 = arith.constant 512 : i32
    %204 = arith.muli %c3_i32_53, %c512_i32_54 : i32
    %205 = tpu.assume_multiple %204, 512 : i32
    %c1_55 = arith.constant 1 : index
    %c0_56 = arith.constant 0 : index
    %206 = arith.index_cast %205 : i32 to index
    %207 = vector.load %arg1[%c1_55, %c0_56, %206] : memref<2x3x2048xf32, #tpu.memory_space<vmem>>, vector<1x3x512xf32>
    %208 = vector.shape_cast %207 : vector<1x3x512xf32> to vector<3x512xf32>
    %209 = vector.extract_strided_slice %208 {offsets = [0, 0], sizes = [1, 512], strides = [1, 1]} : vector<3x512xf32> to vector<1x512xf32>
    %210 = vector.broadcast %0 : vector<128x1xf32> to vector<128x512xf32>
    %211 = vector.broadcast %209 : vector<1x512xf32> to vector<128x512xf32>
    %212 = arith.mulf %210, %211 : vector<128x512xf32>
    %213 = vector.extract_strided_slice %208 {offsets = [1, 0], sizes = [1, 512], strides = [1, 1]} : vector<3x512xf32> to vector<1x512xf32>
    %214 = vector.broadcast %1 : vector<128x1xf32> to vector<128x512xf32>
    %215 = vector.broadcast %213 : vector<1x512xf32> to vector<128x512xf32>
    %216 = arith.mulf %214, %215 : vector<128x512xf32>
    %217 = arith.addf %212, %216 : vector<128x512xf32>
    %218 = vector.extract_strided_slice %208 {offsets = [2, 0], sizes = [1, 512], strides = [1, 1]} : vector<3x512xf32> to vector<1x512xf32>
    %219 = vector.broadcast %2 : vector<128x1xf32> to vector<128x512xf32>
    %220 = vector.broadcast %218 : vector<1x512xf32> to vector<128x512xf32>
    %221 = arith.mulf %219, %220 : vector<128x512xf32>
    %222 = arith.addf %217, %221 : vector<128x512xf32>
    %223 = vector.broadcast %3 : vector<128x1xf32> to vector<128x512xf32>
    %224 = arith.addf %222, %223 : vector<128x512xf32>
    %cst_57 = arith.constant 0.000000e+00 : f32
    %225 = vector.broadcast %cst_57 : f32 to vector<128x512xf32>
    %226 = arith.maximumf %224, %225 : vector<128x512xf32>
    %227 = arith.truncf %226 : vector<128x512xf32> to vector<128x512xbf16>
    %cst_58 = arith.constant dense<0.000000e+00> : vector<128x512xf32>
    %228 = tpu.matmul %4, %227, %cst_58 {dimension_numbers = #tpu.dot_dimension_numbers<[1], [0], [0], [1], [0, 0, 1, 1], [], []>} : vector<128x128xbf16>, vector<128x512xbf16>, vector<128x512xf32> -> vector<128x512xf32>
    %cst_59 = arith.constant dense<0xFF800000> : vector<128xf32>
    %229 = vector.multi_reduction <maximumf>, %228, %cst_59 [1] : vector<128x512xf32> to vector<128xf32>
    %230 = vector.shape_cast %229 : vector<128xf32> to vector<128x1xf32>
    %231 = arith.maximumf %203, %230 : vector<128x1xf32>
    %c4_i32_60 = arith.constant 4 : i32
    %232 = arith.addf %231, %5 : vector<128x1xf32>
    %233 = tpu.concatenate %119, %232 in 1 : vector<128x1xf32>, vector<128x1xf32> -> vector<128x2xf32>
    %234 = tpu.transpose %233, [1, 0] : vector<128x2xf32> -> vector<2x128xf32>
    %c0_61 = arith.constant 0 : index
    %c0_62 = arith.constant 0 : index
    %235 = vector.load %arg6[%c0_61, %c0_62] : memref<2x128xf32, #tpu.memory_space<vmem>>, vector<2x128xf32>
    tpu.vector_store %arg6[%c0_61, %c0_62], %234 {strides = array<i32>} : memref<2x128xf32, #tpu.memory_space<vmem>>, vector<2x128xf32>,
    return
  }
  func.func @transform_0(%arg0: i32) -> (i32, i32, i32) {
    %c0_i32 = arith.constant 0 : i32
    %c0_i32_0 = arith.constant 0 : i32
    %c0_i32_1 = arith.constant 0 : i32
    return %arg0, %c0_i32, %c0_i32_0 : i32, i32, i32
  }
  func.func @transform_1(%arg0: i32) -> (i32, i32) {
    %c0_i32 = arith.constant 0 : i32
    %c0_i32_0 = arith.constant 0 : i32
    %c0_i32_1 = arith.constant 0 : i32
    return %c0_i32, %c0_i32_0 : i32, i32
  }
  func.func @transform_2(%arg0: i32) -> (i32, i32) {
    %c0_i32 = arith.constant 0 : i32
    %c0_i32_0 = arith.constant 0 : i32
    %c0_i32_1 = arith.constant 0 : i32
    return %c0_i32, %c0_i32_0 : i32, i32
  }
  func.func @transform_3(%arg0: i32) -> (i32, i32) {
    %c0_i32 = arith.constant 0 : i32
    %c0_i32_0 = arith.constant 0 : i32
    %c0_i32_1 = arith.constant 0 : i32
    return %c0_i32, %c0_i32_0 : i32, i32
  }
  func.func @transform_4(%arg0: i32) -> (i32, i32) {
    %c0_i32 = arith.constant 0 : i32
    %c0_i32_0 = arith.constant 0 : i32
    %c0_i32_1 = arith.constant 0 : i32
    return %c0_i32, %c0_i32_0 : i32, i32
  }
  func.func @transform_5(%arg0: i32) -> (i32, i32) {
    %c0_i32 = arith.constant 0 : i32
    %c0_i32_0 = arith.constant 0 : i32
    return %arg0, %c0_i32 : i32, i32
  }
}

</mosaic_0001>

<llo_original>
// kernel: point_uni3d_forward.1
$region0: #{point_uni3d_forward.1}
  #allocation0 [shape = 'u32[]', space=smem, size = 0x4, offset = 0x4, fixed_abs, tag = 'smem constant byte address 0x4 - core index']
  #allocation1 [shape = 'u32[144,128]{1,0:T(1,128)}', space=vmem, size = 0x12000, scoped, tag = 'internal scratch']
  %s0 = inlined_call_operand.vmem [shape: f32[2,3,2048], index: 0, kind: input, shape index: {}]
  %s1 = inlined_call_operand.vmem [shape: f32[128,3], index: 1, kind: input, shape index: {}]
  %s2 = inlined_call_operand.vmem [shape: f32[128,1], index: 2, kind: input, shape index: {}]
  %s3 = inlined_call_operand.vmem [shape: bf16[128,128], index: 3, kind: input, shape index: {}]
  %s4 = inlined_call_operand.vmem [shape: f32[128,1], index: 4, kind: input, shape index: {}]
  %s5 = inlined_call_operand.hbm [shape: f32[2,128], index: 5, kind: output, shape index: {}]
  %s6 = sld [smem:[#allocation0]]
  $region30: #{point_uni3d_forward.1} parent=0
    _
  %s8 = ssub.s32 1, %s6
  %s9 = scalar_select 0, %s8, %s6
  $region1: #{point_uni3d_forward.1} parent=0
    #allocation2 [shape = 'u8[1024]{0}', space=vmem, size = 0x400, scoped, tag = 'output window, operand 0, single buffered']
    #allocation3 [shape = 's32[1]{0}', space=sflag, size = 0x4, scoped, tag = 'scoped memory for point_uni3d_forward.1']
    %10 = vsyncpa [#allocation3], 0
    // Predicated region
    $region2: #{point_uni3d_forward.1} parent=1 // pred_check
      _
    $region3: #{point_uni3d_forward.1} parent=1 // pred_check_branch
      %12 = sbr.rel (0) target = $region5
    $region4: #{point_uni3d_forward.1} parent=1 // pred_region
      _
    $region5: #{point_uni3d_forward.1} parent=1 // pred_fallthru
      _
    // Predicated region
    $region6: #{point_uni3d_forward.1} parent=1 // pred_check
      _
    $region7: #{point_uni3d_forward.1} parent=1 // pred_check_branch
      %14 = sbr.rel (0) target = $region9
    $region8: #{point_uni3d_forward.1} parent=1 // pred_region
      _
    $region9: #{point_uni3d_forward.1} parent=1 // pred_fallthru
      _
    // Predicated region
    $region10: #{point_uni3d_forward.1} parent=1 // pred_check
      _
    $region11: #{point_uni3d_forward.1} parent=1 // pred_check_branch
      %16 = sbr.rel (0) target = $region13
    $region12: #{point_uni3d_forward.1} parent=1 // pred_region
      _
    $region13: #{point_uni3d_forward.1} parent=1 // pred_fallthru
      _
    // Predicated region
    $region14: #{point_uni3d_forward.1} parent=1 // pred_check
      _
    $region15: #{point_uni3d_forward.1} parent=1 // pred_check_branch
      %18 = sbr.rel (0) target = $region17
    $region16: #{point_uni3d_forward.1} parent=1 // pred_region
      _
    $region17: #{point_uni3d_forward.1} parent=1 // pred_fallthru
      _
    // Predicated region
    $region18: #{point_uni3d_forward.1} parent=1 // pred_check
      _
    $region19: #{point_uni3d_forward.1} parent=1 // pred_check_branch
      %20 = sbr.rel (0) target = $region21
    $region20: #{point_uni3d_forward.1} parent=1 // pred_region
      _
    $region21: #{point_uni3d_forward.1} parent=1 // pred_fallthru
      _
    %v22 = vld [vmem:[%s1] sm:$0xff]
    %v23 = vld [vmem:[%s1 + $0x8] sm:$0xff]
    %v24 = vld [vmem:[%s1 + $0x10] sm:$0xff]
    %v25 = vld [vmem:[%s1 + $0x18] sm:$0xff]
    %v26 = vld [vmem:[%s1 + $0x20] sm:$0xff]
    %v27 = vld [vmem:[%s1 + $0x28] sm:$0xff]
    %v28 = vld [vmem:[%s1 + $0x30] sm:$0xff]
    %v29 = vld [vmem:[%s1 + $0x38] sm:$0xff]
    %v30 = vld [vmem:[%s1 + $0x40] sm:$0xff]
    %v31 = vld [vmem:[%s1 + $0x48] sm:$0xff]
    %v32 = vld [vmem:[%s1 + $0x50] sm:$0xff]
    %v33 = vld [vmem:[%s1 + $0x58] sm:$0xff]
    %v34 = vld [vmem:[%s1 + $0x60] sm:$0xff]
    %v35 = vld [vmem:[%s1 + $0x68] sm:$0xff]
    %v36 = vld [vmem:[%s1 + $0x70] sm:$0xff]
    %v37 = vld [vmem:[%s1 + $0x78] sm:$0xff]
    %v38 = vld [vmem:[%s2] sm:$0xff]
    %v39 = vld [vmem:[%s2 + $0x8] sm:$0xff]
    %v40 = vld [vmem:[%s2 + $0x10] sm:$0xff]
    %v41 = vld [vmem:[%s2 + $0x18] sm:$0xff]
    %v42 = vld [vmem:[%s2 + $0x20] sm:$0xff]
    %v43 = vld [vmem:[%s2 + $0x28] sm:$0xff]
    %v44 = vld [vmem:[%s2 + $0x30] sm:$0xff]
    %v45 = vld [vmem:[%s2 + $0x38] sm:$0xff]
    %v46 = vld [vmem:[%s2 + $0x40] sm:$0xff]
    %v47 = vld [vmem:[%s2 + $0x48] sm:$0xff]
    %v48 = vld [vmem:[%s2 + $0x50] sm:$0xff]
    %v49 = vld [vmem:[%s2 + $0x58] sm:$0xff]
    %v50 = vld [vmem:[%s2 + $0x60] sm:$0xff]
    %v51 = vld [vmem:[%s2 + $0x68] sm:$0xff]
    %v52 = vld [vmem:[%s2 + $0x70] sm:$0xff]
    %v53 = vld [vmem:[%s2 + $0x78] sm:$0xff]
    %v54 = vld [vmem:[%s3] sm:$0xf]
    %v55 = vld [vmem:[%s3 + $0x4] sm:$0xf]
    %v56 = vld [vmem:[%s3 + $0x8] sm:$0xf]
    %v57 = vld [vmem:[%s3 + $0xc] sm:$0xf]
    %v58 = vld [vmem:[%s3 + $0x10] sm:$0xf]
    %v59 = vld [vmem:[%s3 + $0x14] sm:$0xf]
    %v60 = vld [vmem:[%s3 + $0x18] sm:$0xf]
    %v61 = vld [vmem:[%s3 + $0x1c] sm:$0xf]
    %v62 = vld [vmem:[%s3 + $0x20] sm:$0xf]
    %v63 = vld [vmem:[%s3 + $0x24] sm:$0xf]
    %v64 = vld [vmem:[%s3 + $0x28] sm:$0xf]
    %v65 = vld [vmem:[%s3 + $0x2c] sm:$0xf]
    %v66 = vld [vmem:[%s3 + $0x30] sm:$0xf]
    %v67 = vld [vmem:[%s3 + $0x34] sm:$0xf]
    %v68 = vld [vmem:[%s3 + $0x38] sm:$0xf]
    %v69 = vld [vmem:[%s3 + $0x3c] sm:$0xf]
    %v70 = vld [vmem:[%s4] sm:$0xff]
    %v71 = vld [vmem:[%s4 + $0x8] sm:$0xff]
    %v72 = vld [vmem:[%s4 + $0x10] sm:$0xff]
    %v73 = vld [vmem:[%s4 + $0x18] sm:$0xff]
    %v74 = vld [vmem:[%s4 + $0x20] sm:$0xff]
    %v75 = vld [vmem:[%s4 + $0x28] sm:$0xff]
    %v76 = vld [vmem:[%s4 + $0x30] sm:$0xff]
    %v77 = vld [vmem:[%s4 + $0x38] sm:$0xff]
    %v78 = vld [vmem:[%s4 + $0x40] sm:$0xff]
    %v79 = vld [vmem:[%s4 + $0x48] sm:$0xff]
    %v80 = vld [vmem:[%s4 + $0x50] sm:$0xff]
    %v81 = vld [vmem:[%s4 + $0x58] sm:$0xff]
    %v82 = vld [vmem:[%s4 + $0x60] sm:$0xff]
    %v83 = vld [vmem:[%s4 + $0x68] sm:$0xff]
    %v84 = vld [vmem:[%s4 + $0x70] sm:$0xff]
    %v85 = vld [vmem:[%s4 + $0x78] sm:$0xff]
    %v86 = vld [vmem:[%s0] sm:$0x77]
    %v87 = vld [vmem:[%s0 + $0x8] sm:$0x77]
    %89 = vset.pattern.permute.xlu0 0
    %90 = vperm.xlu0 %89, %v22
    %v91 = vpop.permute.xlu0 %90
    %94 = vset.pattern.permute.xlu0 0
    %95 = vperm.xlu0 %94, %v23
    %v96 = vpop.permute.xlu0 %95
    %99 = vset.pattern.permute.xlu0 0
    %100 = vperm.xlu0 %99, %v24
    %v101 = vpop.permute.xlu0 %100
    %104 = vset.pattern.permute.xlu0 0
    %105 = vperm.xlu0 %104, %v25
    %v106 = vpop.permute.xlu0 %105
    %109 = vset.pattern.permute.xlu0 0
    %110 = vperm.xlu0 %109, %v26
    %v111 = vpop.permute.xlu0 %110
    %114 = vset.pattern.permute.xlu0 0
    %115 = vperm.xlu0 %114, %v27
    %v116 = vpop.permute.xlu0 %115
    %119 = vset.pattern.permute.xlu0 0
    %120 = vperm.xlu0 %119, %v28
    %v121 = vpop.permute.xlu0 %120
    %124 = vset.pattern.permute.xlu0 0
    %125 = vperm.xlu0 %124, %v29
    %v126 = vpop.permute.xlu0 %125
    %129 = vset.pattern.permute.xlu0 0
    %130 = vperm.xlu0 %129, %v30
    %v131 = vpop.permute.xlu0 %130
    %134 = vset.pattern.permute.xlu0 0
    %135 = vperm.xlu0 %134, %v31
    %v136 = vpop.permute.xlu0 %135
    %139 = vset.pattern.permute.xlu0 0
    %140 = vperm.xlu0 %139, %v32
    %v141 = vpop.permute.xlu0 %140
    %144 = vset.pattern.permute.xlu0 0
    %145 = vperm.xlu0 %144, %v33
    %v146 = vpop.permute.xlu0 %145
    %149 = vset.pattern.permute.xlu0 0
    %150 = vperm.xlu0 %149, %v34
    %v151 = vpop.permute.xlu0 %150
    %154 = vset.pattern.permute.xlu0 0
    %155 = vperm.xlu0 %154, %v35
    %v156 = vpop.permute.xlu0 %155
    %159 = vset.pattern.permute.xlu0 0
    %160 = vperm.xlu0 %159, %v36
    %v161 = vpop.permute.xlu0 %160
    %164 = vset.pattern.permute.xlu0 0
    %165 = vperm.xlu0 %164, %v37
    %v166 = vpop.permute.xlu0 %165
    %v170 = vlaneseq
    %v171 = vshrl.u32 %v170, 7
    %v172 = vsub.s32 0, %v171
    %v173 = vrot.slane %v86, %v172
    %v174 = vlaneseq
    %v175 = vshrl.u32 %v174, 7
    %v176 = vsub.s32 4, %v175
    %v177 = vrot.slane %v86, %v176
    %v178 = vlaneseq
    %v179 = vshrl.u32 %v178, 7
    %v180 = vsub.s32 0, %v179
    %v181 = vrot.slane %v87, %v180
    %v182 = vlaneseq
    %v183 = vshrl.u32 %v182, 7
    %v184 = vsub.s32 4, %v183
    %v185 = vrot.slane %v87, %v184
    %v190 = vlaneseq
    %v191 = vshrl.u32 %v190, 7
    %v192 = vsub.s32 0, %v191
    %v193 = vrot.slane %v173, %v192
    %v194 = vlaneseq
    %v195 = vshrl.u32 %v194, 7
    %v196 = vsub.s32 0, %v195
    %v197 = vrot.slane %v177, %v196
    %v198 = vlaneseq
    %v199 = vshrl.u32 %v198, 7
    %v200 = vsub.s32 0, %v199
    %v201 = vrot.slane %v181, %v200
    %v202 = vlaneseq
    %v203 = vshrl.u32 %v202, 7
    %v204 = vsub.s32 0, %v203
    %v205 = vrot.slane %v185, %v204
    %v206 = vmul.f32 %v91, %v193
    %v207 = vmul.f32 %v91, %v197
    %v208 = vmul.f32 %v91, %v201
    %v209 = vmul.f32 %v91, %v205
    %v210 = vmul.f32 %v96, %v193
    %v211 = vmul.f32 %v96, %v197
    %v212 = vmul.f32 %v96, %v201
    %v213 = vmul.f32 %v96, %v205
    %v214 = vmul.f32 %v101, %v193
    %v215 = vmul.f32 %v101, %v197
    %v216 = vmul.f32 %v101, %v201
    %v217 = vmul.f32 %v101, %v205
    %v218 = vmul.f32 %v106, %v193
    %v219 = vmul.f32 %v106, %v197
    %v220 = vmul.f32 %v106, %v201
    %v221 = vmul.f32 %v106, %v205
    %v222 = vmul.f32 %v111, %v193
    %v223 = vmul.f32 %v111, %v197
    %v224 = vmul.f32 %v111, %v201
    %v225 = vmul.f32 %v111, %v205
    %v226 = vmul.f32 %v116, %v193
    %v227 = vmul.f32 %v116, %v197
    %v228 = vmul.f32 %v116, %v201
    %v229 = vmul.f32 %v116, %v205
    %v230 = vmul.f32 %v121, %v193
    %v231 = vmul.f32 %v121, %v197
    %v232 = vmul.f32 %v121, %v201
    %v233 = vmul.f32 %v121, %v205
    %v234 = vmul.f32 %v126, %v193
    %v235 = vmul.f32 %v126, %v197
    %v236 = vmul.f32 %v126, %v201
    %v237 = vmul.f32 %v126, %v205
    %v238 = vmul.f32 %v131, %v193
    %v239 = vmul.f32 %v131, %v197
    %v240 = vmul.f32 %v131, %v201
    %v241 = vmul.f32 %v131, %v205
    %v242 = vmul.f32 %v136, %v193
    %v243 = vmul.f32 %v136, %v197
    %v244 = vmul.f32 %v136, %v201
    %v245 = vmul.f32 %v136, %v205
    %v246 = vmul.f32 %v141, %v193
    %v247 = vmul.f32 %v141, %v197
    %v248 = vmul.f32 %v141, %v201
    %v249 = vmul.f32 %v141, %v205
    %v250 = vmul.f32 %v146, %v193
    %v251 = vmul.f32 %v146, %v197
    %v252 = vmul.f32 %v146, %v201
    %v253 = vmul.f32 %v146, %v205
    %v254 = vmul.f32 %v151, %v193
    %v255 = vmul.f32 %v151, %v197
    %v256 = vmul.f32 %v151, %v201
    %v257 = vmul.f32 %v151, %v205
    %v258 = vmul.f32 %v156, %v193
    %v259 = vmul.f32 %v156, %v197
    %v260 = vmul.f32 %v156, %v201
    %v261 = vmul.f32 %v156, %v205
    %v262 = vmul.f32 %v161, %v193
    %v263 = vmul.f32 %v161, %v197
    %v264 = vmul.f32 %v161, %v201
    %v265 = vmul.f32 %v161, %v205
    %v266 = vmul.f32 %v166, %v193
    %v267 = vmul.f32 %v166, %v197
    %v268 = vmul.f32 %v166, %v201
    %v269 = vmul.f32 %v166, %v205
    %270 = vset.pattern.permute.xlu0 1
    %271 = vperm.xlu0 %270, %v22
    %v272 = vpop.permute.xlu0 %271
    %274 = vset.pattern.permute.xlu0 1
    %275 = vperm.xlu0 %274, %v23
    %v276 = vpop.permute.xlu0 %275
    %278 = vset.pattern.permute.xlu0 1
    %279 = vperm.xlu0 %278, %v24
    %v280 = vpop.permute.xlu0 %279
    %282 = vset.pattern.permute.xlu0 1
    %283 = vperm.xlu0 %282, %v25
    %v284 = vpop.permute.xlu0 %283
    %286 = vset.pattern.permute.xlu0 1
    %287 = vperm.xlu0 %286, %v26
    %v288 = vpop.permute.xlu0 %287
    %290 = vset.pattern.permute.xlu0 1
    %291 = vperm.xlu0 %290, %v27
    %v292 = vpop.permute.xlu0 %291
    %294 = vset.pattern.permute.xlu0 1
    %295 = vperm.xlu0 %294, %v28
    %v296 = vpop.permute.xlu0 %295
    %298 = vset.pattern.permute.xlu0 1
    %299 = vperm.xlu0 %298, %v29
    %v300 = vpop.permute.xlu0 %299
    %302 = vset.pattern.permute.xlu0 1
    %303 = vperm.xlu0 %302, %v30
    %v304 = vpop.permute.xlu0 %303
    %306 = vset.pattern.permute.xlu0 1
    %307 = vperm.xlu0 %306, %v31
    %v308 = vpop.permute.xlu0 %307
    %310 = vset.pattern.permute.xlu0 1
    %311 = vperm.xlu0 %310, %v32
    %v312 = vpop.permute.xlu0 %311
    %314 = vset.pattern.permute.xlu0 1
    %315 = vperm.xlu0 %314, %v33
    %v316 = vpop.permute.xlu0 %315
    %318 = vset.pattern.permute.xlu0 1
    %319 = vperm.xlu0 %318, %v34
    %v320 = vpop.permute.xlu0 %319
    %322 = vset.pattern.permute.xlu0 1
    %323 = vperm.xlu0 %322, %v35
    %v324 = vpop.permute.xlu0 %323
    %326 = vset.pattern.permute.xlu0 1
    %327 = vperm.xlu0 %326, %v36
    %v328 = vpop.permute.xlu0 %327
    %330 = vset.pattern.permute.xlu0 1
    %331 = vperm.xlu0 %330, %v37
    %v332 = vpop.permute.xlu0 %331
    %v334 = vlaneseq
    %v335 = vshrl.u32 %v334, 7
    %v336 = vsub.s32 1, %v335
    %v337 = vrot.slane %v86, %v336
    %v338 = vlaneseq
    %v339 = vshrl.u32 %v338, 7
    %v340 = vsub.s32 5, %v339
    %v341 = vrot.slane %v86, %v340
    %v342 = vlaneseq
    %v343 = vshrl.u32 %v342, 7
    %v344 = vsub.s32 1, %v343
    %v345 = vrot.slane %v87, %v344
    %v346 = vlaneseq
    %v347 = vshrl.u32 %v346, 7
    %v348 = vsub.s32 5, %v347
    %v349 = vrot.slane %v87, %v348
    %v354 = vlaneseq
    %v355 = vshrl.u32 %v354, 7
    %v356 = vsub.s32 1, %v355
    %v357 = vrot.slane %v337, %v356
    %v358 = vlaneseq
    %v359 = vshrl.u32 %v358, 7
    %v360 = vsub.s32 1, %v359
    %v361 = vrot.slane %v341, %v360
    %v362 = vlaneseq
    %v363 = vshrl.u32 %v362, 7
    %v364 = vsub.s32 1, %v363
    %v365 = vrot.slane %v345, %v364
    %v366 = vlaneseq
    %v367 = vshrl.u32 %v366, 7
    %v368 = vsub.s32 1, %v367
    %v369 = vrot.slane %v349, %v368
    %v370 = vmul.f32 %v272, %v357
    %v371 = vmul.f32 %v272, %v361
    %v372 = vmul.f32 %v272, %v365
    %v373 = vmul.f32 %v272, %v369
    %v374 = vmul.f32 %v276, %v357
    %v375 = vmul.f32 %v276, %v361
    %v376 = vmul.f32 %v276, %v365
    %v377 = vmul.f32 %v276, %v369
    %v378 = vmul.f32 %v280, %v357
    %v379 = vmul.f32 %v280, %v361
    %v380 = vmul.f32 %v280, %v365
    %v381 = vmul.f32 %v280, %v369
    %v382 = vmul.f32 %v284, %v357
    %v383 = vmul.f32 %v284, %v361
    %v384 = vmul.f32 %v284, %v365
    %v385 = vmul.f32 %v284, %v369
    %v386 = vmul.f32 %v288, %v357
    %v387 = vmul.f32 %v288, %v361
    %v388 = vmul.f32 %v288, %v365
    %v389 = vmul.f32 %v288, %v369
    %v390 = vmul.f32 %v292, %v357
    %v391 = vmul.f32 %v292, %v361
    %v392 = vmul.f32 %v292, %v365
    %v393 = vmul.f32 %v292, %v369
    %v394 = vmul.f32 %v296, %v357
    %v395 = vmul.f32 %v296, %v361
    %v396 = vmul.f32 %v296, %v365
    %v397 = vmul.f32 %v296, %v369
    %v398 = vmul.f32 %v300, %v357
    %v399 = vmul.f32 %v300, %v361
    %v400 = vmul.f32 %v300, %v365
    %v401 = vmul.f32 %v300, %v369
    %v402 = vmul.f32 %v304, %v357
    %v403 = vmul.f32 %v304, %v361
    %v404 = vmul.f32 %v304, %v365
    %v405 = vmul.f32 %v304, %v369
    %v406 = vmul.f32 %v308, %v357
    %v407 = vmul.f32 %v308, %v361
    %v408 = vmul.f32 %v308, %v365
    %v409 = vmul.f32 %v308, %v369
    %v410 = vmul.f32 %v312, %v357
    %v411 = vmul.f32 %v312, %v361
    %v412 = vmul.f32 %v312, %v365
    %v413 = vmul.f32 %v312, %v369
    %v414 = vmul.f32 %v316, %v357
    %v415 = vmul.f32 %v316, %v361
    %v416 = vmul.f32 %v316, %v365
    %v417 = vmul.f32 %v316, %v369
    %v418 = vmul.f32 %v320, %v357
    %v419 = vmul.f32 %v320, %v361
    %v420 = vmul.f32 %v320, %v365
    %v421 = vmul.f32 %v320, %v369
    %v422 = vmul.f32 %v324, %v357
    %v423 = vmul.f32 %v324, %v361
    %v424 = vmul.f32 %v324, %v365
    %v425 = vmul.f32 %v324, %v369
    %v426 = vmul.f32 %v328, %v357
    %v427 = vmul.f32 %v328, %v361
    %v428 = vmul.f32 %v328, %v365
    %v429 = vmul.f32 %v328, %v369
    %v430 = vmul.f32 %v332, %v357
    %v431 = vmul.f32 %v332, %v361
    %v432 = vmul.f32 %v332, %v365
    %v433 = vmul.f32 %v332, %v369
    %v434 = vadd.f32 %v206, %v370
    %v435 = vadd.f32 %v207, %v371
    %v436 = vadd.f32 %v208, %v372
    %v437 = vadd.f32 %v209, %v373
    %v438 = vadd.f32 %v210, %v374
    %v439 = vadd.f32 %v211, %v375
    %v440 = vadd.f32 %v212, %v376
    %v441 = vadd.f32 %v213, %v377
    %v442 = vadd.f32 %v214, %v378
    %v443 = vadd.f32 %v215, %v379
    %v444 = vadd.f32 %v216, %v380
    %v445 = vadd.f32 %v217, %v381
    %v446 = vadd.f32 %v218, %v382
    %v447 = vadd.f32 %v219, %v383
    %v448 = vadd.f32 %v220, %v384
    %v449 = vadd.f32 %v221, %v385
    %v450 = vadd.f32 %v222, %v386
    %v451 = vadd.f32 %v223, %v387
    %v452 = vadd.f32 %v224, %v388
    %v453 = vadd.f32 %v225, %v389
    %v454 = vadd.f32 %v226, %v390
    %v455 = vadd.f32 %v227, %v391
    %v456 = vadd.f32 %v228, %v392
    %v457 = vadd.f32 %v229, %v393
    %v458 = vadd.f32 %v230, %v394
    %v459 = vadd.f32 %v231, %v395
    %v460 = vadd.f32 %v232, %v396
    %v461 = vadd.f32 %v233, %v397
    %v462 = vadd.f32 %v234, %v398
    %v463 = vadd.f32 %v235, %v399
    %v464 = vadd.f32 %v236, %v400
    %v465 = vadd.f32 %v237, %v401
    %v466 = vadd.f32 %v238, %v402
    %v467 = vadd.f32 %v239, %v403
    %v468 = vadd.f32 %v240, %v404
    %v469 = vadd.f32 %v241, %v405
    %v470 = vadd.f32 %v242, %v406
    %v471 = vadd.f32 %v243, %v407
    %v472 = vadd.f32 %v244, %v408
    %v473 = vadd.f32 %v245, %v409
    %v474 = vadd.f32 %v246, %v410
    %v475 = vadd.f32 %v247, %v411
    %v476 = vadd.f32 %v248, %v412
    %v477 = vadd.f32 %v249, %v413
    %v478 = vadd.f32 %v250, %v414
    %v479 = vadd.f32 %v251, %v415
    %v480 = vadd.f32 %v252, %v416
    %v481 = vadd.f32 %v253, %v417
    %v482 = vadd.f32 %v254, %v418
    %v483 = vadd.f32 %v255, %v419
    %v484 = vadd.f32 %v256, %v420
    %v485 = vadd.f32 %v257, %v421
    %v486 = vadd.f32 %v258, %v422
    %v487 = vadd.f32 %v259, %v423
    %v488 = vadd.f32 %v260, %v424
    %v489 = vadd.f32 %v261, %v425
    %v490 = vadd.f32 %v262, %v426
    %v491 = vadd.f32 %v263, %v427
    %v492 = vadd.f32 %v264, %v428
    %v493 = vadd.f32 %v265, %v429
    %v494 = vadd.f32 %v266, %v430
    %v495 = vadd.f32 %v267, %v431
    %v496 = vadd.f32 %v268, %v432
    %v497 = vadd.f32 %v269, %v433
    %498 = vset.pattern.permute.xlu0 2
    %499 = vperm.xlu0 %498, %v22
    %v500 = vpop.permute.xlu0 %499
    %502 = vset.pattern.permute.xlu0 2
    %503 = vperm.xlu0 %502, %v23
    %v504 = vpop.permute.xlu0 %503
    %506 = vset.pattern.permute.xlu0 2
    %507 = vperm.xlu0 %506, %v24
    %v508 = vpop.permute.xlu0 %507
    %510 = vset.pattern.permute.xlu0 2
    %511 = vperm.xlu0 %510, %v25
    %v512 = vpop.permute.xlu0 %511
    %514 = vset.pattern.permute.xlu0 2
    %515 = vperm.xlu0 %514, %v26
    %v516 = vpop.permute.xlu0 %515
    %518 = vset.pattern.permute.xlu0 2
    %519 = vperm.xlu0 %518, %v27
    %v520 = vpop.permute.xlu0 %519
    %522 = vset.pattern.permute.xlu0 2
    %523 = vperm.xlu0 %522, %v28
    %v524 = vpop.permute.xlu0 %523
    %526 = vset.pattern.permute.xlu0 2
    %527 = vperm.xlu0 %526, %v29
    %v528 = vpop.permute.xlu0 %527
    %530 = vset.pattern.permute.xlu0 2
    %531 = vperm.xlu0 %530, %v30
    %v532 = vpop.permute.xlu0 %531
    %534 = vset.pattern.permute.xlu0 2
    %535 = vperm.xlu0 %534, %v31
    %v536 = vpop.permute.xlu0 %535
    %538 = vset.pattern.permute.xlu0 2
    %539 = vperm.xlu0 %538, %v32
    %v540 = vpop.permute.xlu0 %539
    %542 = vset.pattern.permute.xlu0 2
    %543 = vperm.xlu0 %542, %v33
    %v544 = vpop.permute.xlu0 %543
    %546 = vset.pattern.permute.xlu0 2
    %547 = vperm.xlu0 %546, %v34
    %v548 = vpop.permute.xlu0 %547
    %550 = vset.pattern.permute.xlu0 2
    %551 = vperm.xlu0 %550, %v35
    %v552 = vpop.permute.xlu0 %551
    %554 = vset.pattern.permute.xlu0 2
    %555 = vperm.xlu0 %554, %v36
    %v556 = vpop.permute.xlu0 %555
    %558 = vset.pattern.permute.xlu0 2
    %559 = vperm.xlu0 %558, %v37
    %v560 = vpop.permute.xlu0 %559
    %v562 = vlaneseq
    %v563 = vshrl.u32 %v562, 7
    %v564 = vsub.s32 2, %v563
    %v565 = vrot.slane %v86, %v564
    %v566 = vlaneseq
    %v567 = vshrl.u32 %v566, 7
    %v568 = vsub.s32 6, %v567
    %v569 = vrot.slane %v86, %v568
    %v570 = vlaneseq
    %v571 = vshrl.u32 %v570, 7
    %v572 = vsub.s32 2, %v571
    %v573 = vrot.slane %v87, %v572
    %v574 = vlaneseq
    %v575 = vshrl.u32 %v574, 7
    %v576 = vsub.s32 6, %v575
    %v577 = vrot.slane %v87, %v576
    %v582 = vlaneseq
    %v583 = vshrl.u32 %v582, 7
    %v584 = vsub.s32 2, %v583
    %v585 = vrot.slane %v565, %v584
    %v586 = vlaneseq
    %v587 = vshrl.u32 %v586, 7
    %v588 = vsub.s32 2, %v587
    %v589 = vrot.slane %v569, %v588
    %v590 = vlaneseq
    %v591 = vshrl.u32 %v590, 7
    %v592 = vsub.s32 2, %v591
    %v593 = vrot.slane %v573, %v592
    %v594 = vlaneseq
    %v595 = vshrl.u32 %v594, 7
    %v596 = vsub.s32 2, %v595
    %v597 = vrot.slane %v577, %v596
    %v598 = vmul.f32 %v500, %v585
    %v599 = vmul.f32 %v500, %v589
    %v600 = vmul.f32 %v500, %v593
    %v601 = vmul.f32 %v500, %v597
    %v602 = vmul.f32 %v504, %v585
    %v603 = vmul.f32 %v504, %v589
    %v604 = vmul.f32 %v504, %v593
    %v605 = vmul.f32 %v504, %v597
    %v606 = vmul.f32 %v508, %v585
    %v607 = vmul.f32 %v508, %v589
    %v608 = vmul.f32 %v508, %v593
    %v609 = vmul.f32 %v508, %v597
    %v610 = vmul.f32 %v512, %v585
    %v611 = vmul.f32 %v512, %v589
    %v612 = vmul.f32 %v512, %v593
    %v613 = vmul.f32 %v512, %v597
    %v614 = vmul.f32 %v516, %v585
    %v615 = vmul.f32 %v516, %v589
    %v616 = vmul.f32 %v516, %v593
    %v617 = vmul.f32 %v516, %v597
    %v618 = vmul.f32 %v520, %v585
    %v619 = vmul.f32 %v520, %v589
    %v620 = vmul.f32 %v520, %v593
    %v621 = vmul.f32 %v520, %v597
    %v622 = vmul.f32 %v524, %v585
    %v623 = vmul.f32 %v524, %v589
    %v624 = vmul.f32 %v524, %v593
    %v625 = vmul.f32 %v524, %v597
    %v626 = vmul.f32 %v528, %v585
    %v627 = vmul.f32 %v528, %v589
    %v628 = vmul.f32 %v528, %v593
    %v629 = vmul.f32 %v528, %v597
    %v630 = vmul.f32 %v532, %v585
    %v631 = vmul.f32 %v532, %v589
    %v632 = vmul.f32 %v532, %v593
    %v633 = vmul.f32 %v532, %v597
    %v634 = vmul.f32 %v536, %v585
    %v635 = vmul.f32 %v536, %v589
    %v636 = vmul.f32 %v536, %v593
    %v637 = vmul.f32 %v536, %v597
    %v638 = vmul.f32 %v540, %v585
    %v639 = vmul.f32 %v540, %v589
    %v640 = vmul.f32 %v540, %v593
    %v641 = vmul.f32 %v540, %v597
    %v642 = vmul.f32 %v544, %v585
    %v643 = vmul.f32 %v544, %v589
    %v644 = vmul.f32 %v544, %v593
    %v645 = vmul.f32 %v544, %v597
    %v646 = vmul.f32 %v548, %v585
    %v647 = vmul.f32 %v548, %v589
    %v648 = vmul.f32 %v548, %v593
    %v649 = vmul.f32 %v548, %v597
    %v650 = vmul.f32 %v552, %v585
    %v651 = vmul.f32 %v552, %v589
    %v652 = vmul.f32 %v552, %v593
    %v653 = vmul.f32 %v552, %v597
    %v654 = vmul.f32 %v556, %v585
    %v655 = vmul.f32 %v556, %v589
    %v656 = vmul.f32 %v556, %v593
    %v657 = vmul.f32 %v556, %v597
    %v658 = vmul.f32 %v560, %v585
    %v659 = vmul.f32 %v560, %v589
    %v660 = vmul.f32 %v560, %v593
    %v661 = vmul.f32 %v560, %v597
    %v662 = vadd.f32 %v434, %v598
    %v663 = vadd.f32 %v435, %v599
    %v664 = vadd.f32 %v436, %v600
    %v665 = vadd.f32 %v437, %v601
    %v666 = vadd.f32 %v438, %v602
    %v667 = vadd.f32 %v439, %v603
    %v668 = vadd.f32 %v440, %v604
    %v669 = vadd.f32 %v441, %v605
    %v670 = vadd.f32 %v442, %v606
    %v671 = vadd.f32 %v443, %v607
    %v672 = vadd.f32 %v444, %v608
    %v673 = vadd.f32 %v445, %v609
    %v674 = vadd.f32 %v446, %v610
    %v675 = vadd.f32 %v447, %v611
    %v676 = vadd.f32 %v448, %v612
    %v677 = vadd.f32 %v449, %v613
    %v678 = vadd.f32 %v450, %v614
    %v679 = vadd.f32 %v451, %v615
    %v680 = vadd.f32 %v452, %v616
    %v681 = vadd.f32 %v453, %v617
    %v682 = vadd.f32 %v454, %v618
    %v683 = vadd.f32 %v455, %v619
    %v684 = vadd.f32 %v456, %v620
    %v685 = vadd.f32 %v457, %v621
    %v686 = vadd.f32 %v458, %v622
    %v687 = vadd.f32 %v459, %v623
    %v688 = vadd.f32 %v460, %v624
    %v689 = vadd.f32 %v461, %v625
    %v690 = vadd.f32 %v462, %v626
    %v691 = vadd.f32 %v463, %v627
    %v692 = vadd.f32 %v464, %v628
    %v693 = vadd.f32 %v465, %v629
    %v694 = vadd.f32 %v466, %v630
    %v695 = vadd.f32 %v467, %v631
    %v696 = vadd.f32 %v468, %v632
    %v697 = vadd.f32 %v469, %v633
    %v698 = vadd.f32 %v470, %v634
    %v699 = vadd.f32 %v471, %v635
    %v700 = vadd.f32 %v472, %v636
    %v701 = vadd.f32 %v473, %v637
    %v702 = vadd.f32 %v474, %v638
    %v703 = vadd.f32 %v475, %v639
    %v704 = vadd.f32 %v476, %v640
    %v705 = vadd.f32 %v477, %v641
    %v706 = vadd.f32 %v478, %v642
    %v707 = vadd.f32 %v479, %v643
    %v708 = vadd.f32 %v480, %v644
    %v709 = vadd.f32 %v481, %v645
    %v710 = vadd.f32 %v482, %v646
    %v711 = vadd.f32 %v483, %v647
    %v712 = vadd.f32 %v484, %v648
    %v713 = vadd.f32 %v485, %v649
    %v714 = vadd.f32 %v486, %v650
    %v715 = vadd.f32 %v487, %v651
    %v716 = vadd.f32 %v488, %v652
    %v717 = vadd.f32 %v489, %v653
    %v718 = vadd.f32 %v490, %v654
    %v719 = vadd.f32 %v491, %v655
    %v720 = vadd.f32 %v492, %v656
    %v721 = vadd.f32 %v493, %v657
    %v722 = vadd.f32 %v494, %v658
    %v723 = vadd.f32 %v495, %v659
    %v724 = vadd.f32 %v496, %v660
    %v725 = vadd.f32 %v497, %v661
    %727 = vset.pattern.permute.xlu0 0
    %728 = vperm.xlu0 %727, %v38
    %v729 = vpop.permute.xlu0 %728
    %732 = vset.pattern.permute.xlu0 0
    %733 = vperm.xlu0 %732, %v39
    %v734 = vpop.permute.xlu0 %733
    %737 = vset.pattern.permute.xlu0 0
    %738 = vperm.xlu0 %737, %v40
    %v739 = vpop.permute.xlu0 %738
    %742 = vset.pattern.permute.xlu0 0
    %743 = vperm.xlu0 %742, %v41
    %v744 = vpop.permute.xlu0 %743
    %747 = vset.pattern.permute.xlu0 0
    %748 = vperm.xlu0 %747, %v42
    %v749 = vpop.permute.xlu0 %748
    %752 = vset.pattern.permute.xlu0 0
    %753 = vperm.xlu0 %752, %v43
    %v754 = vpop.permute.xlu0 %753
    %757 = vset.pattern.permute.xlu0 0
    %758 = vperm.xlu0 %757, %v44
    %v759 = vpop.permute.xlu0 %758
    %762 = vset.pattern.permute.xlu0 0
    %763 = vperm.xlu0 %762, %v45
    %v764 = vpop.permute.xlu0 %763
    %767 = vset.pattern.permute.xlu0 0
    %768 = vperm.xlu0 %767, %v46
    %v769 = vpop.permute.xlu0 %768
    %772 = vset.pattern.permute.xlu0 0
    %773 = vperm.xlu0 %772, %v47
    %v774 = vpop.permute.xlu0 %773
    %777 = vset.pattern.permute.xlu0 0
    %778 = vperm.xlu0 %777, %v48
    %v779 = vpop.permute.xlu0 %778
    %782 = vset.pattern.permute.xlu0 0
    %783 = vperm.xlu0 %782, %v49
    %v784 = vpop.permute.xlu0 %783
    %787 = vset.pattern.permute.xlu0 0
    %788 = vperm.xlu0 %787, %v50
    %v789 = vpop.permute.xlu0 %788
    %792 = vset.pattern.permute.xlu0 0
    %793 = vperm.xlu0 %792, %v51
    %v794 = vpop.permute.xlu0 %793
    %797 = vset.pattern.permute.xlu0 0
    %798 = vperm.xlu0 %797, %v52
    %v799 = vpop.permute.xlu0 %798
    %802 = vset.pattern.permute.xlu0 0
    %803 = vperm.xlu0 %802, %v53
    %v804 = vpop.permute.xlu0 %803
    %v806 = vadd.f32 %v662, %v729
    %v807 = vadd.f32 %v663, %v729
    %v808 = vadd.f32 %v664, %v729
    %v809 = vadd.f32 %v665, %v729
    %v810 = vadd.f32 %v666, %v734
    %v811 = vadd.f32 %v667, %v734
    %v812 = vadd.f32 %v668, %v734
    %v813 = vadd.f32 %v669, %v734
    %v814 = vadd.f32 %v670, %v739
    %v815 = vadd.f32 %v671, %v739
    %v816 = vadd.f32 %v672, %v739
    %v817 = vadd.f32 %v673, %v739
    %v818 = vadd.f32 %v674, %v744
    %v819 = vadd.f32 %v675, %v744
    %v820 = vadd.f32 %v676, %v744
    %v821 = vadd.f32 %v677, %v744
    %v822 = vadd.f32 %v678, %v749
    %v823 = vadd.f32 %v679, %v749
    %v824 = vadd.f32 %v680, %v749
    %v825 = vadd.f32 %v681, %v749
    %v826 = vadd.f32 %v682, %v754
    %v827 = vadd.f32 %v683, %v754
    %v828 = vadd.f32 %v684, %v754
    %v829 = vadd.f32 %v685, %v754
    %v830 = vadd.f32 %v686, %v759
    %v831 = vadd.f32 %v687, %v759
    %v832 = vadd.f32 %v688, %v759
    %v833 = vadd.f32 %v689, %v759
    %v834 = vadd.f32 %v690, %v764
    %v835 = vadd.f32 %v691, %v764
    %v836 = vadd.f32 %v692, %v764
    %v837 = vadd.f32 %v693, %v764
    %v838 = vadd.f32 %v694, %v769
    %v839 = vadd.f32 %v695, %v769
    %v840 = vadd.f32 %v696, %v769
    %v841 = vadd.f32 %v697, %v769
    %v842 = vadd.f32 %v698, %v774
    %v843 = vadd.f32 %v699, %v774
    %v844 = vadd.f32 %v700, %v774
    %v845 = vadd.f32 %v701, %v774
    %v846 = vadd.f32 %v702, %v779
    %v847 = vadd.f32 %v703, %v779
    %v848 = vadd.f32 %v704, %v779
    %v849 = vadd.f32 %v705, %v779
    %v850 = vadd.f32 %v706, %v784
    %v851 = vadd.f32 %v707, %v784
    %v852 = vadd.f32 %v708, %v784
    %v853 = vadd.f32 %v709, %v784
    %v854 = vadd.f32 %v710, %v789
    %v855 = vadd.f32 %v711, %v789
    %v856 = vadd.f32 %v712, %v789
    %v857 = vadd.f32 %v713, %v789
    %v858 = vadd.f32 %v714, %v794
    %v859 = vadd.f32 %v715, %v794
    %v860 = vadd.f32 %v716, %v794
    %v861 = vadd.f32 %v717, %v794
    %v862 = vadd.f32 %v718, %v799
    %v863 = vadd.f32 %v719, %v799
    %v864 = vadd.f32 %v720, %v799
    %v865 = vadd.f32 %v721, %v799
    %v866 = vadd.f32 %v722, %v804
    %v867 = vadd.f32 %v723, %v804
    %v868 = vadd.f32 %v724, %v804
    %v869 = vadd.f32 %v725, %v804
    %v870 = vmax.f32 %v806, 0.0
    %v871 = vmax.f32 %v807, 0.0
    %v872 = vmax.f32 %v808, 0.0
    %v873 = vmax.f32 %v809, 0.0
    %v874 = vmax.f32 %v810, 0.0
    %v875 = vmax.f32 %v811, 0.0
    %v876 = vmax.f32 %v812, 0.0
    %v877 = vmax.f32 %v813, 0.0
    %v878 = vmax.f32 %v814, 0.0
    %v879 = vmax.f32 %v815, 0.0
    %v880 = vmax.f32 %v816, 0.0
    %v881 = vmax.f32 %v817, 0.0
    %v882 = vmax.f32 %v818, 0.0
    %v883 = vmax.f32 %v819, 0.0
    %v884 = vmax.f32 %v820, 0.0
    %v885 = vmax.f32 %v821, 0.0
    %v886 = vmax.f32 %v822, 0.0
    %v887 = vmax.f32 %v823, 0.0
    %v888 = vmax.f32 %v824, 0.0
    %v889 = vmax.f32 %v825, 0.0
    %v890 = vmax.f32 %v826, 0.0
    %v891 = vmax.f32 %v827, 0.0
    %v892 = vmax.f32 %v828, 0.0
    %v893 = vmax.f32 %v829, 0.0
    %v894 = vmax.f32 %v830, 0.0
    %v895 = vmax.f32 %v831, 0.0
    %v896 = vmax.f32 %v832, 0.0
    %v897 = vmax.f32 %v833, 0.0
    %v898 = vmax.f32 %v834, 0.0
    %v899 = vmax.f32 %v835, 0.0
    %v900 = vmax.f32 %v836, 0.0
    %v901 = vmax.f32 %v837, 0.0
    %v902 = vmax.f32 %v838, 0.0
    %v903 = vmax.f32 %v839, 0.0
    %v904 = vmax.f32 %v840, 0.0
    %v905 = vmax.f32 %v841, 0.0
    %v906 = vmax.f32 %v842, 0.0
    %v907 = vmax.f32 %v843, 0.0
    %v908 = vmax.f32 %v844, 0.0
    %v909 = vmax.f32 %v845, 0.0
    %v910 = vmax.f32 %v846, 0.0
    %v911 = vmax.f32 %v847, 0.0
    %v912 = vmax.f32 %v848, 0.0
    %v913 = vmax.f32 %v849, 0.0
    %v914 = vmax.f32 %v850, 0.0
    %v915 = vmax.f32 %v851, 0.0
    %v916 = vmax.f32 %v852, 0.0
    %v917 = vmax.f32 %v853, 0.0
    %v918 = vmax.f32 %v854, 0.0
    %v919 = vmax.f32 %v855, 0.0
    %v920 = vmax.f32 %v856, 0.0
    %v921 = vmax.f32 %v857, 0.0
    %v922 = vmax.f32 %v858, 0.0
    %v923 = vmax.f32 %v859, 0.0
    %v924 = vmax.f32 %v860, 0.0
    %v925 = vmax.f32 %v861, 0.0
    %v926 = vmax.f32 %v862, 0.0
    %v927 = vmax.f32 %v863, 0.0
    %v928 = vmax.f32 %v864, 0.0
    %v929 = vmax.f32 %v865, 0.0
    %v930 = vmax.f32 %v866, 0.0
    %v931 = vmax.f32 %v867, 0.0
    %v932 = vmax.f32 %v868, 0.0
    %v933 = vmax.f32 %v869, 0.0
    %v934 = vpack.c.bf16 %v874, %v870
    %v935 = vpack.c.bf16 %v875, %v871
    %v936 = vpack.c.bf16 %v876, %v872
    %v937 = vpack.c.bf16 %v877, %v873
    %v938 = vpack.c.bf16 %v882, %v878
    %v939 = vpack.c.bf16 %v883, %v879
    %v940 = vpack.c.bf16 %v884, %v880
    %v941 = vpack.c.bf16 %v885, %v881
    %v942 = vpack.c.bf16 %v890, %v886
    %v943 = vpack.c.bf16 %v891, %v887
    %v944 = vpack.c.bf16 %v892, %v888
    %v945 = vpack.c.bf16 %v893, %v889
    %v946 = vpack.c.bf16 %v898, %v894
    %v947 = vpack.c.bf16 %v899, %v895
    %v948 = vpack.c.bf16 %v900, %v896
    %v949 = vpack.c.bf16 %v901, %v897
    %v950 = vpack.c.bf16 %v906, %v902
    %v951 = vpack.c.bf16 %v907, %v903
    %v952 = vpack.c.bf16 %v908, %v904
    %v953 = vpack.c.bf16 %v909, %v905
    %v954 = vpack.c.bf16 %v914, %v910
    %v955 = vpack.c.bf16 %v915, %v911
    %v956 = vpack.c.bf16 %v916, %v912
    %v957 = vpack.c.bf16 %v917, %v913
    %v958 = vpack.c.bf16 %v922, %v918
    %v959 = vpack.c.bf16 %v923, %v919
    %v960 = vpack.c.bf16 %v924, %v920
    %v961 = vpack.c.bf16 %v925, %v921
    %v962 = vpack.c.bf16 %v930, %v926
    %v963 = vpack.c.bf16 %v931, %v927
    %v964 = vpack.c.bf16 %v932, %v928
    %v965 = vpack.c.bf16 %v933, %v929
    %v982 = vunpack.c.l.b16 %v54
    %v983 = vunpack.c.l.b16 %v55
    %v984 = vunpack.c.l.b16 %v56
    %v985 = vunpack.c.l.b16 %v57
    %v986 = vunpack.c.l.b16 %v58
    %v987 = vunpack.c.l.b16 %v59
    %v988 = vunpack.c.l.b16 %v60
    %v989 = vunpack.c.l.b16 %v61
    %v990 = vunpack.c.l.b16 %v62
    %v991 = vunpack.c.l.b16 %v63
    %v992 = vunpack.c.l.b16 %v64
    %v993 = vunpack.c.l.b16 %v65
    %v994 = vunpack.c.l.b16 %v66
    %v995 = vunpack.c.l.b16 %v67
    %v996 = vunpack.c.l.b16 %v68
    %v997 = vunpack.c.l.b16 %v69
    %v998 = vpack.c.b16 %v983, %v982
    %v999 = vpack.c.b16 %v985, %v984
    %v1000 = vpack.c.b16 %v987, %v986
    %v1001 = vpack.c.b16 %v989, %v988
    %v1002 = vpack.c.b16 %v991, %v990
    %v1003 = vpack.c.b16 %v993, %v992
    %v1004 = vpack.c.b16 %v995, %v994
    %v1005 = vpack.c.b16 %v997, %v996
    %1014 = vmatprep.subr.bf16.mxu0 %v935
    %1015 = vmatpush1.bf16.msra.mxu0 %v934
    %1016 = vmatprep.subr.bf16.mxu0 %v939
    %1017 = vmatpush1.bf16.msra.mxu0 %v938
    %1018 = vmatprep.subr.bf16.mxu0 %v943
    %1019 = vmatpush1.bf16.msra.mxu0 %v942
    %1020 = vmatprep.subr.bf16.mxu0 %v947
    %1021 = vmatpush1.bf16.msra.mxu0 %v946
    %1022 = vmatprep.subr.bf16.mxu0 %v951
    %1023 = vmatpush1.bf16.msra.mxu0 %v950
    %1024 = vmatprep.subr.bf16.mxu0 %v955
    %1025 = vmatpush1.bf16.msra.mxu0 %v954
    %1026 = vmatprep.subr.bf16.mxu0 %v959
    %1027 = vmatpush1.bf16.msra.mxu0 %v958
    %1028 = vmatprep.subr.bf16.mxu0 %v963
    %1029 = vmatpush1.bf16.msra.mxu0 %v962
    %1030 = vmatprep.subr.bf16.mxu0 0
    %1031 = vmatpush1.bf16.msra.mxu0 0
    %1032 = vmatprep.subr.bf16.mxu0 0
    %1033 = vmatpush1.bf16.msra.mxu0 0
    %1034 = vmatprep.subr.bf16.mxu0 0
    %1035 = vmatpush1.bf16.msra.mxu0 0
    %1036 = vmatprep.subr.bf16.mxu0 0
    %1037 = vmatpush1.bf16.msra.mxu0 0
    %1038 = vmatprep.subr.bf16.mxu0 0
    %1039 = vmatpush1.bf16.msra.mxu0 0
    %1040 = vmatprep.subr.bf16.mxu0 0
    %1041 = vmatpush1.bf16.msra.mxu0 0
    %1042 = vmatprep.subr.bf16.mxu0 0
    %1043 = vmatpush1.bf16.msra.mxu0 0
    %1044 = vmatprep.subr.bf16.mxu0 0
    %1045 = vmatpush1.bf16.msra.mxu0 0
    %1046 = vmatprep.mubr.bf16.mxu0 0
    %1047 = vmatmul.mubr.bf16.gmra.mrb[0].mxu0 %v998
    %v1048 = vpop.f32.mrb[0].mxu0
    %v1049 = vadd.f32 0.0, %v1048
    %v1050 = vpop.f32.mrb[0].mxu0
    %v1051 = vadd.f32 0.0, %v1050
    %v1052 = vpop.f32.mrb[0].mxu0
    %v1053 = vadd.f32 0.0, %v1052
    %v1054 = vpop.f32.mrb[0].mxu0
    %v1055 = vadd.f32 0.0, %v1054
    %1056 = vmatprep.mubr.bf16.mxu0 0
    %1057 = vmatmul.mubr.bf16.gmra.mrb[0].mxu0 %v999
    %v1058 = vpop.f32.mrb[0].mxu0
    %v1059 = vadd.f32 0.0, %v1058
    %v1060 = vpop.f32.mrb[0].mxu0
    %v1061 = vadd.f32 0.0, %v1060
    %v1062 = vpop.f32.mrb[0].mxu0
    %v1063 = vadd.f32 0.0, %v1062
    %v1064 = vpop.f32.mrb[0].mxu0
    %v1065 = vadd.f32 0.0, %v1064
    %1066 = vmatprep.mubr.bf16.mxu0 0
    %1067 = vmatmul.mubr.bf16.gmra.mrb[0].mxu0 %v1000
    %v1068 = vpop.f32.mrb[0].mxu0
    %v1069 = vadd.f32 0.0, %v1068
    %v1070 = vpop.f32.mrb[0].mxu0
    %v1071 = vadd.f32 0.0, %v1070
    %v1072 = vpop.f32.mrb[0].mxu0
    %v1073 = vadd.f32 0.0, %v1072
    %v1074 = vpop.f32.mrb[0].mxu0
    %v1075 = vadd.f32 0.0, %v1074
    %1076 = vmatprep.mubr.bf16.mxu0 0
    %1077 = vmatmul.mubr.bf16.gmra.mrb[0].mxu0 %v1001
    %v1078 = vpop.f32.mrb[0].mxu0
    %v1079 = vadd.f32 0.0, %v1078
    %v1080 = vpop.f32.mrb[0].mxu0
    %v1081 = vadd.f32 0.0, %v1080
    %v1082 = vpop.f32.mrb[0].mxu0
    %v1083 = vadd.f32 0.0, %v1082
    %v1084 = vpop.f32.mrb[0].mxu0
    %v1085 = vadd.f32 0.0, %v1084
    %1086 = vmatprep.mubr.bf16.mxu0 0
    %1087 = vmatmul.mubr.bf16.gmra.mrb[0].mxu0 %v1002
    %v1088 = vpop.f32.mrb[0].mxu0
    %v1089 = vadd.f32 0.0, %v1088
    %v1090 = vpop.f32.mrb[0].mxu0
    %v1091 = vadd.f32 0.0, %v1090
    %v1092 = vpop.f32.mrb[0].mxu0
    %v1093 = vadd.f32 0.0, %v1092
    %v1094 = vpop.f32.mrb[0].mxu0
    %v1095 = vadd.f32 0.0, %v1094
    %1096 = vmatprep.mubr.bf16.mxu0 0
    %1097 = vmatmul.mubr.bf16.gmra.mrb[0].mxu0 %v1003
    %v1098 = vpop.f32.mrb[0].mxu0
    %v1099 = vadd.f32 0.0, %v1098
    %v1100 = vpop.f32.mrb[0].mxu0
    %v1101 = vadd.f32 0.0, %v1100
    %v1102 = vpop.f32.mrb[0].mxu0
    %v1103 = vadd.f32 0.0, %v1102
    %v1104 = vpop.f32.mrb[0].mxu0
    %v1105 = vadd.f32 0.0, %v1104
    %1106 = vmatprep.mubr.bf16.mxu0 0
    %1107 = vmatmul.mubr.bf16.gmra.mrb[0].mxu0 %v1004
    %v1108 = vpop.f32.mrb[0].mxu0
    %v1109 = vadd.f32 0.0, %v1108
    %v1110 = vpop.f32.mrb[0].mxu0
    %v1111 = vadd.f32 0.0, %v1110
    %v1112 = vpop.f32.mrb[0].mxu0
    %v1113 = vadd.f32 0.0, %v1112
    %v1114 = vpop.f32.mrb[0].mxu0
    %v1115 = vadd.f32 0.0, %v1114
    %1116 = vmatprep.mubr.bf16.mxu0 0
    %1117 = vmatmul.mubr.bf16.gmra.mrb[0].mxu0 %v1005
    %v1118 = vpop.f32.mrb[0].mxu0
    %v1119 = vadd.f32 0.0, %v1118
    %v1120 = vpop.f32.mrb[0].mxu0
    %v1121 = vadd.f32 0.0, %v1120
    %v1122 = vpop.f32.mrb[0].mxu0
    %v1123 = vadd.f32 0.0, %v1122
    %v1124 = vpop.f32.mrb[0].mxu0
    %v1125 = vadd.f32 0.0, %v1124
    %1126 = vdwg.mxu0
    %1127 = vmatprep.subr.bf16.mxu0 %v937
    %1128 = vmatpush1.bf16.msra.mxu0 %v936
    %1129 = vmatprep.subr.bf16.mxu0 %v941
    %1130 = vmatpush1.bf16.msra.mxu0 %v940
    %1131 = vmatprep.subr.bf16.mxu0 %v945
    %1132 = vmatpush1.bf16.msra.mxu0 %v944
    %1133 = vmatprep.subr.bf16.mxu0 %v949
    %1134 = vmatpush1.bf16.msra.mxu0 %v948
    %1135 = vmatprep.subr.bf16.mxu0 %v953
    %1136 = vmatpush1.bf16.msra.mxu0 %v952
    %1137 = vmatprep.subr.bf16.mxu0 %v957
    %1138 = vmatpush1.bf16.msra.mxu0 %v956
    %1139 = vmatprep.subr.bf16.mxu0 %v961
    %1140 = vmatpush1.bf16.msra.mxu0 %v960
    %1141 = vmatprep.subr.bf16.mxu0 %v965
    %1142 = vmatpush1.bf16.msra.mxu0 %v964
    %1143 = vmatprep.subr.bf16.mxu0 0
    %1144 = vmatpush1.bf16.msra.mxu0 0
    %1145 = vmatprep.subr.bf16.mxu0 0
    %1146 = vmatpush1.bf16.msra.mxu0 0
    %1147 = vmatprep.subr.bf16.mxu0 0
    %1148 = vmatpush1.bf16.msra.mxu0 0
    %1149 = vmatprep.subr.bf16.mxu0 0
    %1150 = vmatpush1.bf16.msra.mxu0 0
    %1151 = vmatprep.subr.bf16.mxu0 0
    %1152 = vmatpush1.bf16.msra.mxu0 0
    %1153 = vmatprep.subr.bf16.mxu0 0
    %1154 = vmatpush1.bf16.msra.mxu0 0
    %1155 = vmatprep.subr.bf16.mxu0 0
    %1156 = vmatpush1.bf16.msra.mxu0 0
    %1157 = vmatprep.subr.bf16.mxu0 0
    %1158 = vmatpush1.bf16.msra.mxu0 0
    %1159 = vmatprep.mubr.bf16.mxu0 0
    %1160 = vmatmul.mubr.bf16.gmra.mrb[0].mxu0 %v998
    %v1161 = vpop.f32.mrb[0].mxu0
    %v1162 = vadd.f32 0.0, %v1161
    %v1163 = vpop.f32.mrb[0].mxu0
    %v1164 = vadd.f32 0.0, %v1163
    %v1165 = vpop.f32.mrb[0].mxu0
    %v1166 = vadd.f32 0.0, %v1165
    %v1167 = vpop.f32.mrb[0].mxu0
    %v1168 = vadd.f32 0.0, %v1167
    %1169 = vmatprep.mubr.bf16.mxu0 0
    %1170 = vmatmul.mubr.bf16.gmra.mrb[0].mxu0 %v999
    %v1171 = vpop.f32.mrb[0].mxu0
    %v1172 = vadd.f32 0.0, %v1171
    %v1173 = vpop.f32.mrb[0].mxu0
    %v1174 = vadd.f32 0.0, %v1173
    %v1175 = vpop.f32.mrb[0].mxu0
    %v1176 = vadd.f32 0.0, %v1175
    %v1177 = vpop.f32.mrb[0].mxu0
    %v1178 = vadd.f32 0.0, %v1177
    %1179 = vmatprep.mubr.bf16.mxu0 0
    %1180 = vmatmul.mubr.bf16.gmra.mrb[0].mxu0 %v1000
    %v1181 = vpop.f32.mrb[0].mxu0
    %v1182 = vadd.f32 0.0, %v1181
    %v1183 = vpop.f32.mrb[0].mxu0
    %v1184 = vadd.f32 0.0, %v1183
    %v1185 = vpop.f32.mrb[0].mxu0
    %v1186 = vadd.f32 0.0, %v1185
    %v1187 = vpop.f32.mrb[0].mxu0
    %v1188 = vadd.f32 0.0, %v1187
    %1189 = vmatprep.mubr.bf16.mxu0 0
    %1190 = vmatmul.mubr.bf16.gmra.mrb[0].mxu0 %v1001
    %v1191 = vpop.f32.mrb[0].mxu0
    %v1192 = vadd.f32 0.0, %v1191
    %v1193 = vpop.f32.mrb[0].mxu0
    %v1194 = vadd.f32 0.0, %v1193
    %v1195 = vpop.f32.mrb[0].mxu0
    %v1196 = vadd.f32 0.0, %v1195
    %v1197 = vpop.f32.mrb[0].mxu0
    %v1198 = vadd.f32 0.0, %v1197
    %1199 = vmatprep.mubr.bf16.mxu0 0
    %1200 = vmatmul.mubr.bf16.gmra.mrb[0].mxu0 %v1002
    %v1201 = vpop.f32.mrb[0].mxu0
    %v1202 = vadd.f32 0.0, %v1201
    %v1203 = vpop.f32.mrb[0].mxu0
    %v1204 = vadd.f32 0.0, %v1203
    %v1205 = vpop.f32.mrb[0].mxu0
    %v1206 = vadd.f32 0.0, %v1205
    %v1207 = vpop.f32.mrb[0].mxu0
    %v1208 = vadd.f32 0.0, %v1207
    %1209 = vmatprep.mubr.bf16.mxu0 0
    %1210 = vmatmul.mubr.bf16.gmra.mrb[0].mxu0 %v1003
    %v1211 = vpop.f32.mrb[0].mxu0
    %v1212 = vadd.f32 0.0, %v1211
    %v1213 = vpop.f32.mrb[0].mxu0
    %v1214 = vadd.f32 0.0, %v1213
    %v1215 = vpop.f32.mrb[0].mxu0
    %v1216 = vadd.f32 0.0, %v1215
    %v1217 = vpop.f32.mrb[0].mxu0
    %v1218 = vadd.f32 0.0, %v1217
    %1219 = vmatprep.mubr.bf16.mxu0 0
    %1220 = vmatmul.mubr.bf16.gmra.mrb[0].mxu0 %v1004
    %v1221 = vpop.f32.mrb[0].mxu0
    %v1222 = vadd.f32 0.0, %v1221
    %v1223 = vpop.f32.mrb[0].mxu0
    %v1224 = vadd.f32 0.0, %v1223
    %v1225 = vpop.f32.mrb[0].mxu0
    %v1226 = vadd.f32 0.0, %v1225
    %v1227 = vpop.f32.mrb[0].mxu0
    %v1228 = vadd.f32 0.0, %v1227
    %1229 = vmatprep.mubr.bf16.mxu0 0
    %1230 = vmatmul.mubr.bf16.gmra.mrb[0].mxu0 %v1005
    %v1231 = vpop.f32.mrb[0].mxu0
    %v1232 = vadd.f32 0.0, %v1231
    %v1233 = vpop.f32.mrb[0].mxu0
    %v1234 = vadd.f32 0.0, %v1233
    %v1235 = vpop.f32.mrb[0].mxu0
    %v1236 = vadd.f32 0.0, %v1235
    %v1237 = vpop.f32.mrb[0].mxu0
    %v1238 = vadd.f32 0.0, %v1237
    %1239 = vdwg.mxu0
    %v1240 = vmax.f32 %v1049, %v1051
    %v1241 = vmax.f32 %v1240, %v1162
    %v1242 = vmax.f32 %v1241, %v1164
    %1243 = vmax.xlane.f32.xlu0 %v1242
    %v1244 = vpop.xlane.xlu0 %1243
    %v1245 = vmax.f32 %v1053, %v1055
    %v1246 = vmax.f32 %v1245, %v1166
    %v1247 = vmax.f32 %v1246, %v1168
    %1248 = vmax.xlane.f32.xlu0 %v1247
    %v1249 = vpop.xlane.xlu0 %1248
    %v1250 = vmax.f32 %v1059, %v1061
    %v1251 = vmax.f32 %v1250, %v1172
    %v1252 = vmax.f32 %v1251, %v1174
    %1253 = vmax.xlane.f32.xlu0 %v1252
    %v1254 = vpop.xlane.xlu0 %1253
    %v1255 = vmax.f32 %v1063, %v1065
    %v1256 = vmax.f32 %v1255, %v1176
    %v1257 = vmax.f32 %v1256, %v1178
    %1258 = vmax.xlane.f32.xlu0 %v1257
    %v1259 = vpop.xlane.xlu0 %1258
    %v1260 = vmax.f32 %v1069, %v1071
    %v1261 = vmax.f32 %v1260, %v1182
    %v1262 = vmax.f32 %v1261, %v1184
    %1263 = vmax.xlane.f32.xlu0 %v1262
    %v1264 = vpop.xlane.xlu0 %1263
    %v1265 = vmax.f32 %v1073, %v1075
    %v1266 = vmax.f32 %v1265, %v1186
    %v1267 = vmax.f32 %v1266, %v1188
    %1268 = vmax.xlane.f32.xlu0 %v1267
    %v1269 = vpop.xlane.xlu0 %1268
    %v1270 = vmax.f32 %v1079, %v1081
    %v1271 = vmax.f32 %v1270, %v1192
    %v1272 = vmax.f32 %v1271, %v1194
    %1273 = vmax.xlane.f32.xlu0 %v1272
    %v1274 = vpop.xlane.xlu0 %1273
    %v1275 = vmax.f32 %v1083, %v1085
    %v1276 = vmax.f32 %v1275, %v1196
    %v1277 = vmax.f32 %v1276, %v1198
    %1278 = vmax.xlane.f32.xlu0 %v1277
    %v1279 = vpop.xlane.xlu0 %1278
    %v1280 = vmax.f32 %v1089, %v1091
    %v1281 = vmax.f32 %v1280, %v1202
    %v1282 = vmax.f32 %v1281, %v1204
    %1283 = vmax.xlane.f32.xlu0 %v1282
    %v1284 = vpop.xlane.xlu0 %1283
    %v1285 = vmax.f32 %v1093, %v1095
    %v1286 = vmax.f32 %v1285, %v1206
    %v1287 = vmax.f32 %v1286, %v1208
    %1288 = vmax.xlane.f32.xlu0 %v1287
    %v1289 = vpop.xlane.xlu0 %1288
    %v1290 = vmax.f32 %v1099, %v1101
    %v1291 = vmax.f32 %v1290, %v1212
    %v1292 = vmax.f32 %v1291, %v1214
    %1293 = vmax.xlane.f32.xlu0 %v1292
    %v1294 = vpop.xlane.xlu0 %1293
    %v1295 = vmax.f32 %v1103, %v1105
    %v1296 = vmax.f32 %v1295, %v1216
    %v1297 = vmax.f32 %v1296, %v1218
    %1298 = vmax.xlane.f32.xlu0 %v1297
    %v1299 = vpop.xlane.xlu0 %1298
    %v1300 = vmax.f32 %v1109, %v1111
    %v1301 = vmax.f32 %v1300, %v1222
    %v1302 = vmax.f32 %v1301, %v1224
    %1303 = vmax.xlane.f32.xlu0 %v1302
    %v1304 = vpop.xlane.xlu0 %1303
    %v1305 = vmax.f32 %v1113, %v1115
    %v1306 = vmax.f32 %v1305, %v1226
    %v1307 = vmax.f32 %v1306, %v1228
    %1308 = vmax.xlane.f32.xlu0 %v1307
    %v1309 = vpop.xlane.xlu0 %1308
    %v1310 = vmax.f32 %v1119, %v1121
    %v1311 = vmax.f32 %v1310, %v1232
    %v1312 = vmax.f32 %v1311, %v1234
    %1313 = vmax.xlane.f32.xlu0 %v1312
    %v1314 = vpop.xlane.xlu0 %1313
    %v1315 = vmax.f32 %v1123, %v1125
    %v1316 = vmax.f32 %v1315, %v1236
    %v1317 = vmax.f32 %v1316, %v1238
    %1318 = vmax.xlane.f32.xlu0 %v1317
    %v1319 = vpop.xlane.xlu0 %1318
    %s1320 = scalar_lea.vmem %s0, 16
    %v1321 = vld [vmem:[%s1320] sm:$0x77]
    %v1322 = vld [vmem:[%s1320 + $0x8] sm:$0x77]
    %v1325 = vlaneseq
    %v1326 = vshrl.u32 %v1325, 7
    %v1327 = vsub.s32 0, %v1326
    %v1328 = vrot.slane %v1321, %v1327
    %v1329 = vlaneseq
    %v1330 = vshrl.u32 %v1329, 7
    %v1331 = vsub.s32 4, %v1330
    %v1332 = vrot.slane %v1321, %v1331
    %v1333 = vlaneseq
    %v1334 = vshrl.u32 %v1333, 7
    %v1335 = vsub.s32 0, %v1334
    %v1336 = vrot.slane %v1322, %v1335
    %v1337 = vlaneseq
    %v1338 = vshrl.u32 %v1337, 7
    %v1339 = vsub.s32 4, %v1338
    %v1340 = vrot.slane %v1322, %v1339
    %v1345 = vlaneseq
    %v1346 = vshrl.u32 %v1345, 7
    %v1347 = vsub.s32 0, %v1346
    %v1348 = vrot.slane %v1328, %v1347
    %v1349 = vlaneseq
    %v1350 = vshrl.u32 %v1349, 7
    %v1351 = vsub.s32 0, %v1350
    %v1352 = vrot.slane %v1332, %v1351
    %v1353 = vlaneseq
    %v1354 = vshrl.u32 %v1353, 7
    %v1355 = vsub.s32 0, %v1354
    %v1356 = vrot.slane %v1336, %v1355
    %v1357 = vlaneseq
    %v1358 = vshrl.u32 %v1357, 7
    %v1359 = vsub.s32 0, %v1358
    %v1360 = vrot.slane %v1340, %v1359
    %v1361 = vmul.f32 %v91, %v1348
    %v1362 = vmul.f32 %v91, %v1352
    %v1363 = vmul.f32 %v91, %v1356
    %v1364 = vmul.f32 %v91, %v1360
    %v1365 = vmul.f32 %v96, %v1348
    %v1366 = vmul.f32 %v96, %v1352
    %v1367 = vmul.f32 %v96, %v1356
    %v1368 = vmul.f32 %v96, %v1360
    %v1369 = vmul.f32 %v101, %v1348
    %v1370 = vmul.f32 %v101, %v1352
    %v1371 = vmul.f32 %v101, %v1356
    %v1372 = vmul.f32 %v101, %v1360
    %v1373 = vmul.f32 %v106, %v1348
    %v1374 = vmul.f32 %v106, %v1352
    %v1375 = vmul.f32 %v106, %v1356
    %v1376 = vmul.f32 %v106, %v1360
    %v1377 = vmul.f32 %v111, %v1348
    %v1378 = vmul.f32 %v111, %v1352
    %v1379 = vmul.f32 %v111, %v1356
    %v1380 = vmul.f32 %v111, %v1360
    %v1381 = vmul.f32 %v116, %v1348
    %v1382 = vmul.f32 %v116, %v1352
    %v1383 = vmul.f32 %v116, %v1356
    %v1384 = vmul.f32 %v116, %v1360
    %v1385 = vmul.f32 %v121, %v1348
    %v1386 = vmul.f32 %v121, %v1352
    %v1387 = vmul.f32 %v121, %v1356
    %v1388 = vmul.f32 %v121, %v1360
    %v1389 = vmul.f32 %v126, %v1348
    %v1390 = vmul.f32 %v126, %v1352
    %v1391 = vmul.f32 %v126, %v1356
    %v1392 = vmul.f32 %v126, %v1360
    %v1393 = vmul.f32 %v131, %v1348
    %v1394 = vmul.f32 %v131, %v1352
    %v1395 = vmul.f32 %v131, %v1356
    %v1396 = vmul.f32 %v131, %v1360
    %v1397 = vmul.f32 %v136, %v1348
    %v1398 = vmul.f32 %v136, %v1352
    %v1399 = vmul.f32 %v136, %v1356
    %v1400 = vmul.f32 %v136, %v1360
    %v1401 = vmul.f32 %v141, %v1348
    %v1402 = vmul.f32 %v141, %v1352
    %v1403 = vmul.f32 %v141, %v1356
    %v1404 = vmul.f32 %v141, %v1360
    %v1405 = vmul.f32 %v146, %v1348
    %v1406 = vmul.f32 %v146, %v1352
    %v1407 = vmul.f32 %v146, %v1356
    %v1408 = vmul.f32 %v146, %v1360
    %v1409 = vmul.f32 %v151, %v1348
    %v1410 = vmul.f32 %v151, %v1352
    %v1411 = vmul.f32 %v151, %v1356
    %v1412 = vmul.f32 %v151, %v1360
    %v1413 = vmul.f32 %v156, %v1348
    %v1414 = vmul.f32 %v156, %v1352
    %v1415 = vmul.f32 %v156, %v1356
    %v1416 = vmul.f32 %v156, %v1360
    %v1417 = vmul.f32 %v161, %v1348
    %v1418 = vmul.f32 %v161, %v1352
    %v1419 = vmul.f32 %v161, %v1356
    %v1420 = vmul.f32 %v161, %v1360
    %v1421 = vmul.f32 %v166, %v1348
    %v1422 = vmul.f32 %v166, %v1352
    %v1423 = vmul.f32 %v166, %v1356
    %v1424 = vmul.f32 %v166, %v1360
    %v1425 = vlaneseq
    %v1426 = vshrl.u32 %v1425, 7
    %v1427 = vsub.s32 1, %v1426
    %v1428 = vrot.slane %v1321, %v1427
    %v1429 = vlaneseq
    %v1430 = vshrl.u32 %v1429, 7
    %v1431 = vsub.s32 5, %v1430
    %v1432 = vrot.slane %v1321, %v1431
    %v1433 = vlaneseq
    %v1434 = vshrl.u32 %v1433, 7
    %v1435 = vsub.s32 1, %v1434
    %v1436 = vrot.slane %v1322, %v1435
    %v1437 = vlaneseq
    %v1438 = vshrl.u32 %v1437, 7
    %v1439 = vsub.s32 5, %v1438
    %v1440 = vrot.slane %v1322, %v1439
    %v1445 = vlaneseq
    %v1446 = vshrl.u32 %v1445, 7
    %v1447 = vsub.s32 1, %v1446
    %v1448 = vrot.slane %v1428, %v1447
    %v1449 = vlaneseq
    %v1450 = vshrl.u32 %v1449, 7
    %v1451 = vsub.s32 1, %v1450
    %v1452 = vrot.slane %v1432, %v1451
    %v1453 = vlaneseq
    %v1454 = vshrl.u32 %v1453, 7
    %v1455 = vsub.s32 1, %v1454
    %v1456 = vrot.slane %v1436, %v1455
    %v1457 = vlaneseq
    %v1458 = vshrl.u32 %v1457, 7
    %v1459 = vsub.s32 1, %v1458
    %v1460 = vrot.slane %v1440, %v1459
    %v1461 = vmul.f32 %v272, %v1448
    %v1462 = vmul.f32 %v272, %v1452
    %v1463 = vmul.f32 %v272, %v1456
    %v1464 = vmul.f32 %v272, %v1460
    %v1465 = vmul.f32 %v276, %v1448
    %v1466 = vmul.f32 %v276, %v1452
    %v1467 = vmul.f32 %v276, %v1456
    %v1468 = vmul.f32 %v276, %v1460
    %v1469 = vmul.f32 %v280, %v1448
    %v1470 = vmul.f32 %v280, %v1452
    %v1471 = vmul.f32 %v280, %v1456
    %v1472 = vmul.f32 %v280, %v1460
    %v1473 = vmul.f32 %v284, %v1448
    %v1474 = vmul.f32 %v284, %v1452
    %v1475 = vmul.f32 %v284, %v1456
    %v1476 = vmul.f32 %v284, %v1460
    %v1477 = vmul.f32 %v288, %v1448
    %v1478 = vmul.f32 %v288, %v1452
    %v1479 = vmul.f32 %v288, %v1456
    %v1480 = vmul.f32 %v288, %v1460
    %v1481 = vmul.f32 %v292, %v1448
    %v1482 = vmul.f32 %v292, %v1452
    %v1483 = vmul.f32 %v292, %v1456
    %v1484 = vmul.f32 %v292, %v1460
    %v1485 = vmul.f32 %v296, %v1448
    %v1486 = vmul.f32 %v296, %v1452
    %v1487 = vmul.f32 %v296, %v1456
    %v1488 = vmul.f32 %v296, %v1460
    %v1489 = vmul.f32 %v300, %v1448
    %v1490 = vmul.f32 %v300, %v1452
    %v1491 = vmul.f32 %v300, %v1456
    %v1492 = vmul.f32 %v300, %v1460
    %v1493 = vmul.f32 %v304, %v1448
    %v1494 = vmul.f32 %v304, %v1452
    %v1495 = vmul.f32 %v304, %v1456
    %v1496 = vmul.f32 %v304, %v1460
    %v1497 = vmul.f32 %v308, %v1448
    %v1498 = vmul.f32 %v308, %v1452
    %v1499 = vmul.f32 %v308, %v1456
    %v1500 = vmul.f32 %v308, %v1460
    %v1501 = vmul.f32 %v312, %v1448
    %v1502 = vmul.f32 %v312, %v1452
    %v1503 = vmul.f32 %v312, %v1456
    %v1504 = vmul.f32 %v312, %v1460
    %v1505 = vmul.f32 %v316, %v1448
    %v1506 = vmul.f32 %v316, %v1452
    %v1507 = vmul.f32 %v316, %v1456
    %v1508 = vmul.f32 %v316, %v1460
    %v1509 = vmul.f32 %v320, %v1448
    %v1510 = vmul.f32 %v320, %v1452
    %v1511 = vmul.f32 %v320, %v1456
    %v1512 = vmul.f32 %v320, %v1460
    %v1513 = vmul.f32 %v324, %v1448
    %v1514 = vmul.f32 %v324, %v1452
    %v1515 = vmul.f32 %v324, %v1456
    %v1516 = vmul.f32 %v324, %v1460
    %v1517 = vmul.f32 %v328, %v1448
    %v1518 = vmul.f32 %v328, %v1452
    %v1519 = vmul.f32 %v328, %v1456
    %v1520 = vmul.f32 %v328, %v1460
    %v1521 = vmul.f32 %v332, %v1448
    %v1522 = vmul.f32 %v332, %v1452
    %v1523 = vmul.f32 %v332, %v1456
    %v1524 = vmul.f32 %v332, %v1460
    %v1525 = vadd.f32 %v1361, %v1461
    %v1526 = vadd.f32 %v1362, %v1462
    %v1527 = vadd.f32 %v1363, %v1463
    %v1528 = vadd.f32 %v1364, %v1464
    %v1529 = vadd.f32 %v1365, %v1465
    %v1530 = vadd.f32 %v1366, %v1466
    %v1531 = vadd.f32 %v1367, %v1467
    %v1532 = vadd.f32 %v1368, %v1468
    %v1533 = vadd.f32 %v1369, %v1469
    %v1534 = vadd.f32 %v1370, %v1470
    %v1535 = vadd.f32 %v1371, %v1471
    %v1536 = vadd.f32 %v1372, %v1472
    %v1537 = vadd.f32 %v1373, %v1473
    %v1538 = vadd.f32 %v1374, %v1474
    %v1539 = vadd.f32 %v1375, %v1475
    %v1540 = vadd.f32 %v1376, %v1476
    %v1541 = vadd.f32 %v1377, %v1477
    %v1542 = vadd.f32 %v1378, %v1478
    %v1543 = vadd.f32 %v1379, %v1479
    %v1544 = vadd.f32 %v1380, %v1480
    %v1545 = vadd.f32 %v1381, %v1481
    %v1546 = vadd.f32 %v1382, %v1482
    %v1547 = vadd.f32 %v1383, %v1483
    %v1548 = vadd.f32 %v1384, %v1484
    %v1549 = vadd.f32 %v1385, %v1485
    %v1550 = vadd.f32 %v1386, %v1486
    %v1551 = vadd.f32 %v1387, %v1487
    %v1552 = vadd.f32 %v1388, %v1488
    %v1553 = vadd.f32 %v1389, %v1489
    %v1554 = vadd.f32 %v1390, %v1490
    %v1555 = vadd.f32 %v1391, %v1491
    %v1556 = vadd.f32 %v1392, %v1492
    %v1557 = vadd.f32 %v1393, %v1493
    %v1558 = vadd.f32 %v1394, %v1494
    %v1559 = vadd.f32 %v1395, %v1495
    %v1560 = vadd.f32 %v1396, %v1496
    %v1561 = vadd.f32 %v1397, %v1497
    %v1562 = vadd.f32 %v1398, %v1498
    %v1563 = vadd.f32 %v1399, %v1499
    %v1564 = vadd.f32 %v1400, %v1500
    %v1565 = vadd.f32 %v1401, %v1501
    %v1566 = vadd.f32 %v1402, %v1502
    %v1567 = vadd.f32 %v1403, %v1503
    %v1568 = vadd.f32 %v1404, %v1504
    %v1569 = vadd.f32 %v1405, %v1505
    %v1570 = vadd.f32 %v1406, %v1506
    %v1571 = vadd.f32 %v1407, %v1507
    %v1572 = vadd.f32 %v1408, %v1508
    %v1573 = vadd.f32 %v1409, %v1509
    %v1574 = vadd.f32 %v1410, %v1510
    %v1575 = vadd.f32 %v1411, %v1511
    %v1576 = vadd.f32 %v1412, %v1512
    %v1577 = vadd.f32 %v1413, %v1513
    %v1578 = vadd.f32 %v1414, %v1514
    %v1579 = vadd.f32 %v1415, %v1515
    %v1580 = vadd.f32 %v1416, %v1516
    %v1581 = vadd.f32 %v1417, %v1517
    %v1582 = vadd.f32 %v1418, %v1518
    %v1583 = vadd.f32 %v1419, %v1519
    %v1584 = vadd.f32 %v1420, %v1520
    %v1585 = vadd.f32 %v1421, %v1521
    %v1586 = vadd.f32 %v1422, %v1522
    %v1587 = vadd.f32 %v1423, %v1523
    %v1588 = vadd.f32 %v1424, %v1524
    %v1589 = vlaneseq
    %v1590 = vshrl.u32 %v1589, 7
    %v1591 = vsub.s32 2, %v1590
    %v1592 = vrot.slane %v1321, %v1591
    %v1593 = vlaneseq
    %v1594 = vshrl.u32 %v1593, 7
    %v1595 = vsub.s32 6, %v1594
    %v1596 = vrot.slane %v1321, %v1595
    %v1597 = vlaneseq
    %v1598 = vshrl.u32 %v1597, 7
    %v1599 = vsub.s32 2, %v1598
    %v1600 = vrot.slane %v1322, %v1599
    %v1601 = vlaneseq
    %v1602 = vshrl.u32 %v1601, 7
    %v1603 = vsub.s32 6, %v1602
    %v1604 = vrot.slane %v1322, %v1603
    %v1609 = vlaneseq
    %v1610 = vshrl.u32 %v1609, 7
    %v1611 = vsub.s32 2, %v1610
    %v1612 = vrot.slane %v1592, %v1611
    %v1613 = vlaneseq
    %v1614 = vshrl.u32 %v1613, 7
    %v1615 = vsub.s32 2, %v1614
    %v1616 = vrot.slane %v1596, %v1615
    %v1617 = vlaneseq
    %v1618 = vshrl.u32 %v1617, 7
    %v1619 = vsub.s32 2, %v1618
    %v1620 = vrot.slane %v1600, %v1619
    %v1621 = vlaneseq
    %v1622 = vshrl.u32 %v1621, 7
    %v1623 = vsub.s32 2, %v1622
    %v1624 = vrot.slane %v1604, %v1623
    %v1625 = vmul.f32 %v500, %v1612
    %v1626 = vmul.f32 %v500, %v1616
    %v1627 = vmul.f32 %v500, %v1620
    %v1628 = vmul.f32 %v500, %v1624
    %v1629 = vmul.f32 %v504, %v1612
    %v1630 = vmul.f32 %v504, %v1616
    %v1631 = vmul.f32 %v504, %v1620
    %v1632 = vmul.f32 %v504, %v1624
    %v1633 = vmul.f32 %v508, %v1612
    %v1634 = vmul.f32 %v508, %v1616
    %v1635 = vmul.f32 %v508, %v1620
    %v1636 = vmul.f32 %v508, %v1624
    %v1637 = vmul.f32 %v512, %v1612
    %v1638 = vmul.f32 %v512, %v1616
    %v1639 = vmul.f32 %v512, %v1620
    %v1640 = vmul.f32 %v512, %v1624
    %v1641 = vmul.f32 %v516, %v1612
    %v1642 = vmul.f32 %v516, %v1616
    %v1643 = vmul.f32 %v516, %v1620
    %v1644 = vmul.f32 %v516, %v1624
    %v1645 = vmul.f32 %v520, %v1612
    %v1646 = vmul.f32 %v520, %v1616
    %v1647 = vmul.f32 %v520, %v1620
    %v1648 = vmul.f32 %v520, %v1624
    %v1649 = vmul.f32 %v524, %v1612
    %v1650 = vmul.f32 %v524, %v1616
    %v1651 = vmul.f32 %v524, %v1620
    %v1652 = vmul.f32 %v524, %v1624
    %v1653 = vmul.f32 %v528, %v1612
    %v1654 = vmul.f32 %v528, %v1616
    %v1655 = vmul.f32 %v528, %v1620
    %v1656 = vmul.f32 %v528, %v1624
    %v1657 = vmul.f32 %v532, %v1612
    %v1658 = vmul.f32 %v532, %v1616
    %v1659 = vmul.f32 %v532, %v1620
    %v1660 = vmul.f32 %v532, %v1624
    %v1661 = vmul.f32 %v536, %v1612
    %v1662 = vmul.f32 %v536, %v1616
    %v1663 = vmul.f32 %v536, %v1620
    %v1664 = vmul.f32 %v536, %v1624
    %v1665 = vmul.f32 %v540, %v1612
    %v1666 = vmul.f32 %v540, %v1616
    %v1667 = vmul.f32 %v540, %v1620
    %v1668 = vmul.f32 %v540, %v1624
    %v1669 = vmul.f32 %v544, %v1612
    %v1670 = vmul.f32 %v544, %v1616
    %v1671 = vmul.f32 %v544, %v1620
    %v1672 = vmul.f32 %v544, %v1624
    %v1673 = vmul.f32 %v548, %v1612
    %v1674 = vmul.f32 %v548, %v1616
    %v1675 = vmul.f32 %v548, %v1620
    %v1676 = vmul.f32 %v548, %v1624
    %v1677 = vmul.f32 %v552, %v1612
    %v1678 = vmul.f32 %v552, %v1616
    %v1679 = vmul.f32 %v552, %v1620
    %v1680 = vmul.f32 %v552, %v1624
    %v1681 = vmul.f32 %v556, %v1612
    %v1682 = vmul.f32 %v556, %v1616
    %v1683 = vmul.f32 %v556, %v1620
    %v1684 = vmul.f32 %v556, %v1624
    %v1685 = vmul.f32 %v560, %v1612
    %v1686 = vmul.f32 %v560, %v1616
    %v1687 = vmul.f32 %v560, %v1620
    %v1688 = vmul.f32 %v560, %v1624
    %v1689 = vadd.f32 %v1525, %v1625
    %v1690 = vadd.f32 %v1526, %v1626
    %v1691 = vadd.f32 %v1527, %v1627
    %v1692 = vadd.f32 %v1528, %v1628
    %v1693 = vadd.f32 %v1529, %v1629
    %v1694 = vadd.f32 %v1530, %v1630
    %v1695 = vadd.f32 %v1531, %v1631
    %v1696 = vadd.f32 %v1532, %v1632
    %v1697 = vadd.f32 %v1533, %v1633
    %v1698 = vadd.f32 %v1534, %v1634
    %v1699 = vadd.f32 %v1535, %v1635
    %v1700 = vadd.f32 %v1536, %v1636
    %v1701 = vadd.f32 %v1537, %v1637
    %v1702 = vadd.f32 %v1538, %v1638
    %v1703 = vadd.f32 %v1539, %v1639
    %v1704 = vadd.f32 %v1540, %v1640
    %v1705 = vadd.f32 %v1541, %v1641
    %v1706 = vadd.f32 %v1542, %v1642
    %v1707 = vadd.f32 %v1543, %v1643
    %v1708 = vadd.f32 %v1544, %v1644
    %v1709 = vadd.f32 %v1545, %v1645
    %v1710 = vadd.f32 %v1546, %v1646
    %v1711 = vadd.f32 %v1547, %v1647
    %v1712 = vadd.f32 %v1548, %v1648
    %v1713 = vadd.f32 %v1549, %v1649
    %v1714 = vadd.f32 %v1550, %v1650
    %v1715 = vadd.f32 %v1551, %v1651
    %v1716 = vadd.f32 %v1552, %v1652
    %v1717 = vadd.f32 %v1553, %v1653
    %v1718 = vadd.f32 %v1554, %v1654
    %v1719 = vadd.f32 %v1555, %v1655
    %v1720 = vadd.f32 %v1556, %v1656
    %v1721 = vadd.f32 %v1557, %v1657
    %v1722 = vadd.f32 %v1558, %v1658
    %v1723 = vadd.f32 %v1559, %v1659
    %v1724 = vadd.f32 %v1560, %v1660
    %v1725 = vadd.f32 %v1561, %v1661
    %v1726 = vadd.f32 %v1562, %v1662
    %v1727 = vadd.f32 %v1563, %v1663
    %v1728 = vadd.f32 %v1564, %v1664
    %v1729 = vadd.f32 %v1565, %v1665
    %v1730 = vadd.f32 %v1566, %v1666
    %v1731 = vadd.f32 %v1567, %v1667
    %v1732 = vadd.f32 %v1568, %v1668
    %v1733 = vadd.f32 %v1569, %v1669
    %v1734 = vadd.f32 %v1570, %v1670
    %v1735 = vadd.f32 %v1571, %v1671
    %v1736 = vadd.f32 %v1572, %v1672
    %v1737 = vadd.f32 %v1573, %v1673
    %v1738 = vadd.f32 %v1574, %v1674
    %v1739 = vadd.f32 %v1575, %v1675
    %v1740 = vadd.f32 %v1576, %v1676
    %v1741 = vadd.f32 %v1577, %v1677
    %v1742 = vadd.f32 %v1578, %v1678
    %v1743 = vadd.f32 %v1579, %v1679
    %v1744 = vadd.f32 %v1580, %v1680
    %v1745 = vadd.f32 %v1581, %v1681
    %v1746 = vadd.f32 %v1582, %v1682
    %v1747 = vadd.f32 %v1583, %v1683
    %v1748 = vadd.f32 %v1584, %v1684
    %v1749 = vadd.f32 %v1585, %v1685
    %v1750 = vadd.f32 %v1586, %v1686
    %v1751 = vadd.f32 %v1587, %v1687
    %v1752 = vadd.f32 %v1588, %v1688
    %v1753 = vadd.f32 %v1689, %v729
    %v1754 = vadd.f32 %v1690, %v729
    %v1755 = vadd.f32 %v1691, %v729
    %v1756 = vadd.f32 %v1692, %v729
    %v1757 = vadd.f32 %v1693, %v734
    %v1758 = vadd.f32 %v1694, %v734
    %v1759 = vadd.f32 %v1695, %v734
    %v1760 = vadd.f32 %v1696, %v734
    %v1761 = vadd.f32 %v1697, %v739
    %v1762 = vadd.f32 %v1698, %v739
    %v1763 = vadd.f32 %v1699, %v739
    %v1764 = vadd.f32 %v1700, %v739
    %v1765 = vadd.f32 %v1701, %v744
    %v1766 = vadd.f32 %v1702, %v744
    %v1767 = vadd.f32 %v1703, %v744
    %v1768 = vadd.f32 %v1704, %v744
    %v1769 = vadd.f32 %v1705, %v749
    %v1770 = vadd.f32 %v1706, %v749
    %v1771 = vadd.f32 %v1707, %v749
    %v1772 = vadd.f32 %v1708, %v749
    %v1773 = vadd.f32 %v1709, %v754
    %v1774 = vadd.f32 %v1710, %v754
    %v1775 = vadd.f32 %v1711, %v754
    %v1776 = vadd.f32 %v1712, %v754
    %v1777 = vadd.f32 %v1713, %v759
    %v1778 = vadd.f32 %v1714, %v759
    %v1779 = vadd.f32 %v1715, %v759
    %v1780 = vadd.f32 %v1716, %v759
    %v1781 = vadd.f32 %v1717, %v764
    %v1782 = vadd.f32 %v1718, %v764
    %v1783 = vadd.f32 %v1719, %v764
    %v1784 = vadd.f32 %v1720, %v764
    %v1785 = vadd.f32 %v1721, %v769
    %v1786 = vadd.f32 %v1722, %v769
    %v1787 = vadd.f32 %v1723, %v769
    %v1788 = vadd.f32 %v1724, %v769
    %v1789 = vadd.f32 %v1725, %v774
    %v1790 = vadd.f32 %v1726, %v774
    %v1791 = vadd.f32 %v1727, %v774
    %v1792 = vadd.f32 %v1728, %v774
    %v1793 = vadd.f32 %v1729, %v779
    %v1794 = vadd.f32 %v1730, %v779
    %v1795 = vadd.f32 %v1731, %v779
    %v1796 = vadd.f32 %v1732, %v779
    %v1797 = vadd.f32 %v1733, %v784
    %v1798 = vadd.f32 %v1734, %v784
    %v1799 = vadd.f32 %v1735, %v784
    %v1800 = vadd.f32 %v1736, %v784
    %v1801 = vadd.f32 %v1737, %v789
    %v1802 = vadd.f32 %v1738, %v789
    %v1803 = vadd.f32 %v1739, %v789
    %v1804 = vadd.f32 %v1740, %v789
    %v1805 = vadd.f32 %v1741, %v794
    %v1806 = vadd.f32 %v1742, %v794
    %v1807 = vadd.f32 %v1743, %v794
    %v1808 = vadd.f32 %v1744, %v794
    %v1809 = vadd.f32 %v1745, %v799
    %v1810 = vadd.f32 %v1746, %v799
    %v1811 = vadd.f32 %v1747, %v799
    %v1812 = vadd.f32 %v1748, %v799
    %v1813 = vadd.f32 %v1749, %v804
    %v1814 = vadd.f32 %v1750, %v804
    %v1815 = vadd.f32 %v1751, %v804
    %v1816 = vadd.f32 %v1752, %v804
    %v1817 = vmax.f32 %v1753, 0.0
    %v1818 = vmax.f32 %v1754, 0.0
    %v1819 = vmax.f32 %v1755, 0.0
    %v1820 = vmax.f32 %v1756, 0.0
    %v1821 = vmax.f32 %v1757, 0.0
    %v1822 = vmax.f32 %v1758, 0.0
    %v1823 = vmax.f32 %v1759, 0.0
    %v1824 = vmax.f32 %v1760, 0.0
    %v1825 = vmax.f32 %v1761, 0.0
    %v1826 = vmax.f32 %v1762, 0.0
    %v1827 = vmax.f32 %v1763, 0.0
    %v1828 = vmax.f32 %v1764, 0.0
    %v1829 = vmax.f32 %v1765, 0.0
    %v1830 = vmax.f32 %v1766, 0.0
    %v1831 = vmax.f32 %v1767, 0.0
    %v1832 = vmax.f32 %v1768, 0.0
    %v1833 = vmax.f32 %v1769, 0.0
    %v1834 = vmax.f32 %v1770, 0.0
    %v1835 = vmax.f32 %v1771, 0.0
    %v1836 = vmax.f32 %v1772, 0.0
    %v1837 = vmax.f32 %v1773, 0.0
    %v1838 = vmax.f32 %v1774, 0.0
    %v1839 = vmax.f32 %v1775, 0.0
    %v1840 = vmax.f32 %v1776, 0.0
    %v1841 = vmax.f32 %v1777, 0.0
    %v1842 = vmax.f32 %v1778, 0.0
    %v1843 = vmax.f32 %v1779, 0.0
    %v1844 = vmax.f32 %v1780, 0.0
    %v1845 = vmax.f32 %v1781, 0.0
    %v1846 = vmax.f32 %v1782, 0.0
    %v1847 = vmax.f32 %v1783, 0.0
    %v1848 = vmax.f32 %v1784, 0.0
    %v1849 = vmax.f32 %v1785, 0.0
    %v1850 = vmax.f32 %v1786, 0.0
    %v1851 = vmax.f32 %v1787, 0.0
    %v1852 = vmax.f32 %v1788, 0.0
    %v1853 = vmax.f32 %v1789, 0.0
    %v1854 = vmax.f32 %v1790, 0.0
    %v1855 = vmax.f32 %v1791, 0.0
    %v1856 = vmax.f32 %v1792, 0.0
    %v1857 = vmax.f32 %v1793, 0.0
    %v1858 = vmax.f32 %v1794, 0.0
    %v1859 = vmax.f32 %v1795, 0.0
    %v1860 = vmax.f32 %v1796, 0.0
    %v1861 = vmax.f32 %v1797, 0.0
    %v1862 = vmax.f32 %v1798, 0.0
    %v1863 = vmax.f32 %v1799, 0.0
    %v1864 = vmax.f32 %v1800, 0.0
    %v1865 = vmax.f32 %v1801, 0.0
    %v1866 = vmax.f32 %v1802, 0.0
    %v1867 = vmax.f32 %v1803, 0.0
    %v1868 = vmax.f32 %v1804, 0.0
    %v1869 = vmax.f32 %v1805, 0.0
    %v1870 = vmax.f32 %v1806, 0.0
    %v1871 = vmax.f32 %v1807, 0.0
    %v1872 = vmax.f32 %v1808, 0.0
    %v1873 = vmax.f32 %v1809, 0.0
    %v1874 = vmax.f32 %v1810, 0.0
    %v1875 = vmax.f32 %v1811, 0.0
    %v1876 = vmax.f32 %v1812, 0.0
    %v1877 = vmax.f32 %v1813, 0.0
    %v1878 = vmax.f32 %v1814, 0.0
    %v1879 = vmax.f32 %v1815, 0.0
    %v1880 = vmax.f32 %v1816, 0.0
    %v1881 = vpack.c.bf16 %v1821, %v1817
    %v1882 = vpack.c.bf16 %v1822, %v1818
    %v1883 = vpack.c.bf16 %v1823, %v1819
    %v1884 = vpack.c.bf16 %v1824, %v1820
    %v1885 = vpack.c.bf16 %v1829, %v1825
    %v1886 = vpack.c.bf16 %v1830, %v1826
    %v1887 = vpack.c.bf16 %v1831, %v1827
    %v1888 = vpack.c.bf16 %v1832, %v1828
    %v1889 = vpack.c.bf16 %v1837, %v1833
    %v1890 = vpack.c.bf16 %v1838, %v1834
    %v1891 = vpack.c.bf16 %v1839, %v1835
    %v1892 = vpack.c.bf16 %v1840, %v1836
    %v1893 = vpack.c.bf16 %v1845, %v1841
    %v1894 = vpack.c.bf16 %v1846, %v1842
    %v1895 = vpack.c.bf16 %v1847, %v1843
    %v1896 = vpack.c.bf16 %v1848, %v1844
    %v1897 = vpack.c.bf16 %v1853, %v1849
    %v1898 = vpack.c.bf16 %v1854, %v1850
    %v1899 = vpack.c.bf16 %v1855, %v1851
    %v1900 = vpack.c.bf16 %v1856, %v1852
    %v1901 = vpack.c.bf16 %v1861, %v1857
    %v1902 = vpack.c.bf16 %v1862, %v1858
    %v1903 = vpack.c.bf16 %v1863, %v1859
    %v1904 = vpack.c.bf16 %v1864, %v1860
    %v1905 = vpack.c.bf16 %v1869, %v1865
    %v1906 = vpack.c.bf16 %v1870, %v1866
    %v1907 = vpack.c.bf16 %v1871, %v1867
    %v1908 = vpack.c.bf16 %v1872, %v1868
    %v1909 = vpack.c.bf16 %v1877, %v1873
    %v1910 = vpack.c.bf16 %v1878, %v1874
    %v1911 = vpack.c.bf16 %v1879, %v1875
    %v1912 = vpack.c.bf16 %v1880, %v1876
    %1913 = vmatprep.subr.bf16.mxu0 %v1882
    %1914 = vmatpush1.bf16.msra.mxu0 %v1881
    %1915 = vmatprep.subr.bf16.mxu0 %v1886
    %1916 = vmatpush1.bf16.msra.mxu0 %v1885
    %1917 = vmatprep.subr.bf16.mxu0 %v1890
    %1918 = vmatpush1.bf16.msra.mxu0 %v1889
    %1919 = vmatprep.subr.bf16.mxu0 %v1894
    %1920 = vmatpush1.bf16.msra.mxu0 %v1893
    %1921 = vmatprep.subr.bf16.mxu0 %v1898
    %1922 = vmatpush1.bf16.msra.mxu0 %v1897
    %1923 = vmatprep.subr.bf16.mxu0 %v1902
    %1924 = vmatpush1.bf16.msra.mxu0 %v1901
    %1925 = vmatprep.subr.bf16.mxu0 %v1906
    %1926 = vmatpush1.bf16.msra.mxu0 %v1905
    %1927 = vmatprep.subr.bf16.mxu0 %v1910
    %1928 = vmatpush1.bf16.msra.mxu0 %v1909
    %1929 = vmatprep.subr.bf16.mxu0 0
    %1930 = vmatpush1.bf16.msra.mxu0 0
    %1931 = vmatprep.subr.bf16.mxu0 0
    %1932 = vmatpush1.bf16.msra.mxu0 0
    %1933 = vmatprep.subr.bf16.mxu0 0
    %1934 = vmatpush1.bf16.msra.mxu0 0
    %1935 = vmatprep.subr.bf16.mxu0 0
    %1936 = vmatpush1.bf16.msra.mxu0 0
    %1937 = vmatprep.subr.bf16.mxu0 0
    %1938 = vmatpush1.bf16.msra.mxu0 0
    %1939 = vmatprep.subr.bf16.mxu0 0
    %1940 = vmatpush1.bf16.msra.mxu0 0
    %1941 = vmatprep.subr.bf16.mxu0 0
    %1942 = vmatpush1.bf16.msra.mxu0 0
    %1943 = vmatprep.subr.bf16.mxu0 0
    %1944 = vmatpush1.bf16.msra.mxu0 0
    %1945 = vmatprep.mubr.bf16.mxu0 0
    %1946 = vmatmul.mubr.bf16.gmra.mrb[0].mxu0 %v998
    %v1947 = vpop.f32.mrb[0].mxu0
    %v1948 = vadd.f32 0.0, %v1947
    %v1949 = vpop.f32.mrb[0].mxu0
    %v1950 = vadd.f32 0.0, %v1949
    %v1951 = vpop.f32.mrb[0].mxu0
    %v1952 = vadd.f32 0.0, %v1951
    %v1953 = vpop.f32.mrb[0].mxu0
    %v1954 = vadd.f32 0.0, %v1953
    %1955 = vmatprep.mubr.bf16.mxu0 0
    %1956 = vmatmul.mubr.bf16.gmra.mrb[0].mxu0 %v999
    %v1957 = vpop.f32.mrb[0].mxu0
    %v1958 = vadd.f32 0.0, %v1957
    %v1959 = vpop.f32.mrb[0].mxu0
    %v1960 = vadd.f32 0.0, %v1959
    %v1961 = vpop.f32.mrb[0].mxu0
    %v1962 = vadd.f32 0.0, %v1961
    %v1963 = vpop.f32.mrb[0].mxu0
    %v1964 = vadd.f32 0.0, %v1963
    %1965 = vmatprep.mubr.bf16.mxu0 0
    %1966 = vmatmul.mubr.bf16.gmra.mrb[0].mxu0 %v1000
    %v1967 = vpop.f32.mrb[0].mxu0
    %v1968 = vadd.f32 0.0, %v1967
    %v1969 = vpop.f32.mrb[0].mxu0
    %v1970 = vadd.f32 0.0, %v1969
    %v1971 = vpop.f32.mrb[0].mxu0
    %v1972 = vadd.f32 0.0, %v1971
    %v1973 = vpop.f32.mrb[0].mxu0
    %v1974 = vadd.f32 0.0, %v1973
    %1975 = vmatprep.mubr.bf16.mxu0 0
    %1976 = vmatmul.mubr.bf16.gmra.mrb[0].mxu0 %v1001
    %v1977 = vpop.f32.mrb[0].mxu0
    %v1978 = vadd.f32 0.0, %v1977
    %v1979 = vpop.f32.mrb[0].mxu0
    %v1980 = vadd.f32 0.0, %v1979
    %v1981 = vpop.f32.mrb[0].mxu0
    %v1982 = vadd.f32 0.0, %v1981
    %v1983 = vpop.f32.mrb[0].mxu0
    %v1984 = vadd.f32 0.0, %v1983
    %1985 = vmatprep.mubr.bf16.mxu0 0
    %1986 = vmatmul.mubr.bf16.gmra.mrb[0].mxu0 %v1002
    %v1987 = vpop.f32.mrb[0].mxu0
    %v1988 = vadd.f32 0.0, %v1987
    %v1989 = vpop.f32.mrb[0].mxu0
    %v1990 = vadd.f32 0.0, %v1989
    %v1991 = vpop.f32.mrb[0].mxu0
    %v1992 = vadd.f32 0.0, %v1991
    %v1993 = vpop.f32.mrb[0].mxu0
    %v1994 = vadd.f32 0.0, %v1993
    %1995 = vmatprep.mubr.bf16.mxu0 0
    %1996 = vmatmul.mubr.bf16.gmra.mrb[0].mxu0 %v1003
    %v1997 = vpop.f32.mrb[0].mxu0
    %v1998 = vadd.f32 0.0, %v1997
    %v1999 = vpop.f32.mrb[0].mxu0
    %v2000 = vadd.f32 0.0, %v1999
    %v2001 = vpop.f32.mrb[0].mxu0
    %v2002 = vadd.f32 0.0, %v2001
    %v2003 = vpop.f32.mrb[0].mxu0
    %v2004 = vadd.f32 0.0, %v2003
    %2005 = vmatprep.mubr.bf16.mxu0 0
    %2006 = vmatmul.mubr.bf16.gmra.mrb[0].mxu0 %v1004
    %v2007 = vpop.f32.mrb[0].mxu0
    %v2008 = vadd.f32 0.0, %v2007
    %v2009 = vpop.f32.mrb[0].mxu0
    %v2010 = vadd.f32 0.0, %v2009
    %v2011 = vpop.f32.mrb[0].mxu0
    %v2012 = vadd.f32 0.0, %v2011
    %v2013 = vpop.f32.mrb[0].mxu0
    %v2014 = vadd.f32 0.0, %v2013
    %2015 = vmatprep.mubr.bf16.mxu0 0
    %2016 = vmatmul.mubr.bf16.gmra.mrb[0].mxu0 %v1005
    %v2017 = vpop.f32.mrb[0].mxu0
    %v2018 = vadd.f32 0.0, %v2017
    %v2019 = vpop.f32.mrb[0].mxu0
    %v2020 = vadd.f32 0.0, %v2019
    %v2021 = vpop.f32.mrb[0].mxu0
    %v2022 = vadd.f32 0.0, %v2021
    %v2023 = vpop.f32.mrb[0].mxu0
    %v2024 = vadd.f32 0.0, %v2023
    %2025 = vdwg.mxu0
    %2026 = vmatprep.subr.bf16.mxu0 %v1884
    %2027 = vmatpush1.bf16.msra.mxu0 %v1883
    %2028 = vmatprep.subr.bf16.mxu0 %v1888
    %2029 = vmatpush1.bf16.msra.mxu0 %v1887
    %2030 = vmatprep.subr.bf16.mxu0 %v1892
    %2031 = vmatpush1.bf16.msra.mxu0 %v1891
    %2032 = vmatprep.subr.bf16.mxu0 %v1896
    %2033 = vmatpush1.bf16.msra.mxu0 %v1895
    %2034 = vmatprep.subr.bf16.mxu0 %v1900
    %2035 = vmatpush1.bf16.msra.mxu0 %v1899
    %2036 = vmatprep.subr.bf16.mxu0 %v1904
    %2037 = vmatpush1.bf16.msra.mxu0 %v1903
    %2038 = vmatprep.subr.bf16.mxu0 %v1908
    %2039 = vmatpush1.bf16.msra.mxu0 %v1907
    %2040 = vmatprep.subr.bf16.mxu0 %v1912
    %2041 = vmatpush1.bf16.msra.mxu0 %v1911
    %2042 = vmatprep.subr.bf16.mxu0 0
    %2043 = vmatpush1.bf16.msra.mxu0 0
    %2044 = vmatprep.subr.bf16.mxu0 0
    %2045 = vmatpush1.bf16.msra.mxu0 0
    %2046 = vmatprep.subr.bf16.mxu0 0
    %2047 = vmatpush1.bf16.msra.mxu0 0
    %2048 = vmatprep.subr.bf16.mxu0 0
    %2049 = vmatpush1.bf16.msra.mxu0 0
    %2050 = vmatprep.subr.bf16.mxu0 0
    %2051 = vmatpush1.bf16.msra.mxu0 0
    %2052 = vmatprep.subr.bf16.mxu0 0
    %2053 = vmatpush1.bf16.msra.mxu0 0
    %2054 = vmatprep.subr.bf16.mxu0 0
    %2055 = vmatpush1.bf16.msra.mxu0 0
    %2056 = vmatprep.subr.bf16.mxu0 0
    %2057 = vmatpush1.bf16.msra.mxu0 0
    %2058 = vmatprep.mubr.bf16.mxu0 0
    %2059 = vmatmul.mubr.bf16.gmra.mrb[0].mxu0 %v998
    %v2060 = vpop.f32.mrb[0].mxu0
    %v2061 = vadd.f32 0.0, %v2060
    %v2062 = vpop.f32.mrb[0].mxu0
    %v2063 = vadd.f32 0.0, %v2062
    %v2064 = vpop.f32.mrb[0].mxu0
    %v2065 = vadd.f32 0.0, %v2064
    %v2066 = vpop.f32.mrb[0].mxu0
    %v2067 = vadd.f32 0.0, %v2066
    %2068 = vmatprep.mubr.bf16.mxu0 0
    %2069 = vmatmul.mubr.bf16.gmra.mrb[0].mxu0 %v999
    %v2070 = vpop.f32.mrb[0].mxu0
    %v2071 = vadd.f32 0.0, %v2070
    %v2072 = vpop.f32.mrb[0].mxu0
    %v2073 = vadd.f32 0.0, %v2072
    %v2074 = vpop.f32.mrb[0].mxu0
    %v2075 = vadd.f32 0.0, %v2074
    %v2076 = vpop.f32.mrb[0].mxu0
    %v2077 = vadd.f32 0.0, %v2076
    %2078 = vmatprep.mubr.bf16.mxu0 0
    %2079 = vmatmul.mubr.bf16.gmra.mrb[0].mxu0 %v1000
    %v2080 = vpop.f32.mrb[0].mxu0
    %v2081 = vadd.f32 0.0, %v2080
    %v2082 = vpop.f32.mrb[0].mxu0
    %v2083 = vadd.f32 0.0, %v2082
    %v2084 = vpop.f32.mrb[0].mxu0
    %v2085 = vadd.f32 0.0, %v2084
    %v2086 = vpop.f32.mrb[0].mxu0
    %v2087 = vadd.f32 0.0, %v2086
    %2088 = vmatprep.mubr.bf16.mxu0 0
    %2089 = vmatmul.mubr.bf16.gmra.mrb[0].mxu0 %v1001
    %v2090 = vpop.f32.mrb[0].mxu0
    %v2091 = vadd.f32 0.0, %v2090
    %v2092 = vpop.f32.mrb[0].mxu0
    %v2093 = vadd.f32 0.0, %v2092
    %v2094 = vpop.f32.mrb[0].mxu0
    %v2095 = vadd.f32 0.0, %v2094
    %v2096 = vpop.f32.mrb[0].mxu0
    %v2097 = vadd.f32 0.0, %v2096
    %2098 = vmatprep.mubr.bf16.mxu0 0
    %2099 = vmatmul.mubr.bf16.gmra.mrb[0].mxu0 %v1002
    %v2100 = vpop.f32.mrb[0].mxu0
    %v2101 = vadd.f32 0.0, %v2100
    %v2102 = vpop.f32.mrb[0].mxu0
    %v2103 = vadd.f32 0.0, %v2102
    %v2104 = vpop.f32.mrb[0].mxu0
    %v2105 = vadd.f32 0.0, %v2104
    %v2106 = vpop.f32.mrb[0].mxu0
    %v2107 = vadd.f32 0.0, %v2106
    %2108 = vmatprep.mubr.bf16.mxu0 0
    %2109 = vmatmul.mubr.bf16.gmra.mrb[0].mxu0 %v1003
    %v2110 = vpop.f32.mrb[0].mxu0
    %v2111 = vadd.f32 0.0, %v2110
    %v2112 = vpop.f32.mrb[0].mxu0
    %v2113 = vadd.f32 0.0, %v2112
    %v2114 = vpop.f32.mrb[0].mxu0
    %v2115 = vadd.f32 0.0, %v2114
    %v2116 = vpop.f32.mrb[0].mxu0
    %v2117 = vadd.f32 0.0, %v2116
    %2118 = vmatprep.mubr.bf16.mxu0 0
    %2119 = vmatmul.mubr.bf16.gmra.mrb[0].mxu0 %v1004
    %v2120 = vpop.f32.mrb[0].mxu0
    %v2121 = vadd.f32 0.0, %v2120
    %v2122 = vpop.f32.mrb[0].mxu0
    %v2123 = vadd.f32 0.0, %v2122
    %v2124 = vpop.f32.mrb[0].mxu0
    %v2125 = vadd.f32 0.0, %v2124
    %v2126 = vpop.f32.mrb[0].mxu0
    %v2127 = vadd.f32 0.0, %v2126
    %2128 = vmatprep.mubr.bf16.mxu0 0
    %2129 = vmatmul.mubr.bf16.gmra.mrb[0].mxu0 %v1005
    %v2130 = vpop.f32.mrb[0].mxu0
    %v2131 = vadd.f32 0.0, %v2130
    %v2132 = vpop.f32.mrb[0].mxu0
    %v2133 = vadd.f32 0.0, %v2132
    %v2134 = vpop.f32.mrb[0].mxu0
    %v2135 = vadd.f32 0.0, %v2134
    %v2136 = vpop.f32.mrb[0].mxu0
    %v2137 = vadd.f32 0.0, %v2136
    %2138 = vdwg.mxu0
    %v2139 = vmax.f32 %v1948, %v1950
    %v2140 = vmax.f32 %v2139, %v2061
    %v2141 = vmax.f32 %v2140, %v2063
    %2142 = vmax.xlane.f32.xlu0 %v2141
    %v2143 = vpop.xlane.xlu0 %2142
    %v2144 = vmax.f32 %v1952, %v1954
    %v2145 = vmax.f32 %v2144, %v2065
    %v2146 = vmax.f32 %v2145, %v2067
    %2147 = vmax.xlane.f32.xlu0 %v2146
    %v2148 = vpop.xlane.xlu0 %2147
    %v2149 = vmax.f32 %v1958, %v1960
    %v2150 = vmax.f32 %v2149, %v2071
    %v2151 = vmax.f32 %v2150, %v2073
    %2152 = vmax.xlane.f32.xlu0 %v2151
    %v2153 = vpop.xlane.xlu0 %2152
    %v2154 = vmax.f32 %v1962, %v1964
    %v2155 = vmax.f32 %v2154, %v2075
    %v2156 = vmax.f32 %v2155, %v2077
    %2157 = vmax.xlane.f32.xlu0 %v2156
    %v2158 = vpop.xlane.xlu0 %2157
    %v2159 = vmax.f32 %v1968, %v1970
    %v2160 = vmax.f32 %v2159, %v2081
    %v2161 = vmax.f32 %v2160, %v2083
    %2162 = vmax.xlane.f32.xlu0 %v2161
    %v2163 = vpop.xlane.xlu0 %2162
    %v2164 = vmax.f32 %v1972, %v1974
    %v2165 = vmax.f32 %v2164, %v2085
    %v2166 = vmax.f32 %v2165, %v2087
    %2167 = vmax.xlane.f32.xlu0 %v2166
    %v2168 = vpop.xlane.xlu0 %2167
    %v2169 = vmax.f32 %v1978, %v1980
    %v2170 = vmax.f32 %v2169, %v2091
    %v2171 = vmax.f32 %v2170, %v2093
    %2172 = vmax.xlane.f32.xlu0 %v2171
    %v2173 = vpop.xlane.xlu0 %2172
    %v2174 = vmax.f32 %v1982, %v1984
    %v2175 = vmax.f32 %v2174, %v2095
    %v2176 = vmax.f32 %v2175, %v2097
    %2177 = vmax.xlane.f32.xlu0 %v2176
    %v2178 = vpop.xlane.xlu0 %2177
    %v2179 = vmax.f32 %v1988, %v1990
    %v2180 = vmax.f32 %v2179, %v2101
    %v2181 = vmax.f32 %v2180, %v2103
    %2182 = vmax.xlane.f32.xlu0 %v2181
    %v2183 = vpop.xlane.xlu0 %2182
    %v2184 = vmax.f32 %v1992, %v1994
    %v2185 = vmax.f32 %v2184, %v2105
    %v2186 = vmax.f32 %v2185, %v2107
    %2187 = vmax.xlane.f32.xlu0 %v2186
    %v2188 = vpop.xlane.xlu0 %2187
    %v2189 = vmax.f32 %v1998, %v2000
    %v2190 = vmax.f32 %v2189, %v2111
    %v2191 = vmax.f32 %v2190, %v2113
    %2192 = vmax.xlane.f32.xlu0 %v2191
    %v2193 = vpop.xlane.xlu0 %2192
    %v2194 = vmax.f32 %v2002, %v2004
    %v2195 = vmax.f32 %v2194, %v2115
    %v2196 = vmax.f32 %v2195, %v2117
    %2197 = vmax.xlane.f32.xlu0 %v2196
    %v2198 = vpop.xlane.xlu0 %2197
    %v2199 = vmax.f32 %v2008, %v2010
    %v2200 = vmax.f32 %v2199, %v2121
    %v2201 = vmax.f32 %v2200, %v2123
    %2202 = vmax.xlane.f32.xlu0 %v2201
    %v2203 = vpop.xlane.xlu0 %2202
    %v2204 = vmax.f32 %v2012, %v2014
    %v2205 = vmax.f32 %v2204, %v2125
    %v2206 = vmax.f32 %v2205, %v2127
    %2207 = vmax.xlane.f32.xlu0 %v2206
    %v2208 = vpop.xlane.xlu0 %2207
    %v2209 = vmax.f32 %v2018, %v2020
    %v2210 = vmax.f32 %v2209, %v2131
    %v2211 = vmax.f32 %v2210, %v2133
    %2212 = vmax.xlane.f32.xlu0 %v2211
    %v2213 = vpop.xlane.xlu0 %2212
    %v2214 = vmax.f32 %v2022, %v2024
    %v2215 = vmax.f32 %v2214, %v2135
    %v2216 = vmax.f32 %v2215, %v2137
    %2217 = vmax.xlane.f32.xlu0 %v2216
    %v2218 = vpop.xlane.xlu0 %2217
    %v2219 = vmax.f32 %v1244, %v2143
    %v2220 = vmax.f32 %v1249, %v2148
    %v2221 = vmax.f32 %v1254, %v2153
    %v2222 = vmax.f32 %v1259, %v2158
    %v2223 = vmax.f32 %v1264, %v2163
    %v2224 = vmax.f32 %v1269, %v2168
    %v2225 = vmax.f32 %v1274, %v2173
    %v2226 = vmax.f32 %v1279, %v2178
    %v2227 = vmax.f32 %v1284, %v2183
    %v2228 = vmax.f32 %v1289, %v2188
    %v2229 = vmax.f32 %v1294, %v2193
    %v2230 = vmax.f32 %v1299, %v2198
    %v2231 = vmax.f32 %v1304, %v2203
    %v2232 = vmax.f32 %v1309, %v2208
    %v2233 = vmax.f32 %v1314, %v2213
    %v2234 = vmax.f32 %v1319, %v2218
    %s2235 = scalar_lea.vmem %s0, 32
    %v2236 = vld [vmem:[%s2235] sm:$0x77]
    %v2237 = vld [vmem:[%s2235 + $0x8] sm:$0x77]
    %v2240 = vlaneseq
    %v2241 = vshrl.u32 %v2240, 7
    %v2242 = vsub.s32 0, %v2241
    %v2243 = vrot.slane %v2236, %v2242
    %v2244 = vlaneseq
    %v2245 = vshrl.u32 %v2244, 7
    %v2246 = vsub.s32 4, %v2245
    %v2247 = vrot.slane %v2236, %v2246
    %v2248 = vlaneseq
    %v2249 = vshrl.u32 %v2248, 7
    %v2250 = vsub.s32 0, %v2249
    %v2251 = vrot.slane %v2237, %v2250
    %v2252 = vlaneseq
    %v2253 = vshrl.u32 %v2252, 7
    %v2254 = vsub.s32 4, %v2253
    %v2255 = vrot.slane %v2237, %v2254
    %v2260 = vlaneseq
    %v2261 = vshrl.u32 %v2260, 7
    %v2262 = vsub.s32 0, %v2261
    %v2263 = vrot.slane %v2243, %v2262
    %v2264 = vlaneseq
    %v2265 = vshrl.u32 %v2264, 7
    %v2266 = vsub.s32 0, %v2265
    %v2267 = vrot.slane %v2247, %v2266
    %v2268 = vlaneseq
    %v2269 = vshrl.u32 %v2268, 7
    %v2270 = vsub.s32 0, %v2269
    %v2271 = vrot.slane %v2251, %v2270
    %v2272 = vlaneseq
    %v2273 = vshrl.u32 %v2272, 7
    %v2274 = vsub.s32 0, %v2273
    %v2275 = vrot.slane %v2255, %v2274
    %v2276 = vmul.f32 %v91, %v2263
    %v2277 = vmul.f32 %v91, %v2267
    %v2278 = vmul.f32 %v91, %v2271
    %v2279 = vmul.f32 %v91, %v2275
    %v2280 = vmul.f32 %v96, %v2263
    %v2281 = vmul.f32 %v96, %v2267
    %v2282 = vmul.f32 %v96, %v2271
    %v2283 = vmul.f32 %v96, %v2275
    %v2284 = vmul.f32 %v101, %v2263
    %v2285 = vmul.f32 %v101, %v2267
    %v2286 = vmul.f32 %v101, %v2271
    %v2287 = vmul.f32 %v101, %v2275
    %v2288 = vmul.f32 %v106, %v2263
    %v2289 = vmul.f32 %v106, %v2267
    %v2290 = vmul.f32 %v106, %v2271
    %v2291 = vmul.f32 %v106, %v2275
    %v2292 = vmul.f32 %v111, %v2263
    %v2293 = vmul.f32 %v111, %v2267
    %v2294 = vmul.f32 %v111, %v2271
    %v2295 = vmul.f32 %v111, %v2275
    %v2296 = vmul.f32 %v116, %v2263
    %v2297 = vmul.f32 %v116, %v2267
    %v2298 = vmul.f32 %v116, %v2271
    %v2299 = vmul.f32 %v116, %v2275
    %v2300 = vmul.f32 %v121, %v2263
    %v2301 = vmul.f32 %v121, %v2267
    %v2302 = vmul.f32 %v121, %v2271
    %v2303 = vmul.f32 %v121, %v2275
    %v2304 = vmul.f32 %v126, %v2263
    %v2305 = vmul.f32 %v126, %v2267
    %v2306 = vmul.f32 %v126, %v2271
    %v2307 = vmul.f32 %v126, %v2275
    %v2308 = vmul.f32 %v131, %v2263
    %v2309 = vmul.f32 %v131, %v2267
    %v2310 = vmul.f32 %v131, %v2271
    %v2311 = vmul.f32 %v131, %v2275
    %v2312 = vmul.f32 %v136, %v2263
    %v2313 = vmul.f32 %v136, %v2267
    %v2314 = vmul.f32 %v136, %v2271
    %v2315 = vmul.f32 %v136, %v2275
    %v2316 = vmul.f32 %v141, %v2263
    %v2317 = vmul.f32 %v141, %v2267
    %v2318 = vmul.f32 %v141, %v2271
    %v2319 = vmul.f32 %v141, %v2275
    %v2320 = vmul.f32 %v146, %v2263
    %v2321 = vmul.f32 %v146, %v2267
    %v2322 = vmul.f32 %v146, %v2271
    %v2323 = vmul.f32 %v146, %v2275
    %v2324 = vmul.f32 %v151, %v2263
    %v2325 = vmul.f32 %v151, %v2267
    %v2326 = vmul.f32 %v151, %v2271
    %v2327 = vmul.f32 %v151, %v2275
    %v2328 = vmul.f32 %v156, %v2263
    %v2329 = vmul.f32 %v156, %v2267
    %v2330 = vmul.f32 %v156, %v2271
    %v2331 = vmul.f32 %v156, %v2275
    %v2332 = vmul.f32 %v161, %v2263
    %v2333 = vmul.f32 %v161, %v2267
    %v2334 = vmul.f32 %v161, %v2271
    %v2335 = vmul.f32 %v161, %v2275
    %v2336 = vmul.f32 %v166, %v2263
    %v2337 = vmul.f32 %v166, %v2267
    %v2338 = vmul.f32 %v166, %v2271
    %v2339 = vmul.f32 %v166, %v2275
    %v2340 = vlaneseq
    %v2341 = vshrl.u32 %v2340, 7
    %v2342 = vsub.s32 1, %v2341
    %v2343 = vrot.slane %v2236, %v2342
    %v2344 = vlaneseq
    %v2345 = vshrl.u32 %v2344, 7
    %v2346 = vsub.s32 5, %v2345
    %v2347 = vrot.slane %v2236, %v2346
    %v2348 = vlaneseq
    %v2349 = vshrl.u32 %v2348, 7
    %v2350 = vsub.s32 1, %v2349
    %v2351 = vrot.slane %v2237, %v2350
    %v2352 = vlaneseq
    %v2353 = vshrl.u32 %v2352, 7
    %v2354 = vsub.s32 5, %v2353
    %v2355 = vrot.slane %v2237, %v2354
    %v2360 = vlaneseq
    %v2361 = vshrl.u32 %v2360, 7
    %v2362 = vsub.s32 1, %v2361
    %v2363 = vrot.slane %v2343, %v2362
    %v2364 = vlaneseq
    %v2365 = vshrl.u32 %v2364, 7
    %v2366 = vsub.s32 1, %v2365
    %v2367 = vrot.slane %v2347, %v2366
    %v2368 = vlaneseq
    %v2369 = vshrl.u32 %v2368, 7
    %v2370 = vsub.s32 1, %v2369
    %v2371 = vrot.slane %v2351, %v2370
    %v2372 = vlaneseq
    %v2373 = vshrl.u32 %v2372, 7
    %v2374 = vsub.s32 1, %v2373
    %v2375 = vrot.slane %v2355, %v2374
    %v2376 = vmul.f32 %v272, %v2363
    %v2377 = vmul.f32 %v272, %v2367
    %v2378 = vmul.f32 %v272, %v2371
    %v2379 = vmul.f32 %v272, %v2375
    %v2380 = vmul.f32 %v276, %v2363
    %v2381 = vmul.f32 %v276, %v2367
    %v2382 = vmul.f32 %v276, %v2371
    %v2383 = vmul.f32 %v276, %v2375
    %v2384 = vmul.f32 %v280, %v2363
    %v2385 = vmul.f32 %v280, %v2367
    %v2386 = vmul.f32 %v280, %v2371
    %v2387 = vmul.f32 %v280, %v2375
    %v2388 = vmul.f32 %v284, %v2363
    %v2389 = vmul.f32 %v284, %v2367
    %v2390 = vmul.f32 %v284, %v2371
    %v2391 = vmul.f32 %v284, %v2375
    %v2392 = vmul.f32 %v288, %v2363
    %v2393 = vmul.f32 %v288, %v2367
    %v2394 = vmul.f32 %v288, %v2371
    %v2395 = vmul.f32 %v288, %v2375
    %v2396 = vmul.f32 %v292, %v2363
    %v2397 = vmul.f32 %v292, %v2367
    %v2398 = vmul.f32 %v292, %v2371
    %v2399 = vmul.f32 %v292, %v2375
    %v2400 = vmul.f32 %v296, %v2363
    %v2401 = vmul.f32 %v296, %v2367
    %v2402 = vmul.f32 %v296, %v2371
    %v2403 = vmul.f32 %v296, %v2375
    %v2404 = vmul.f32 %v300, %v2363
    %v2405 = vmul.f32 %v300, %v2367
    %v2406 = vmul.f32 %v300, %v2371
    %v2407 = vmul.f32 %v300, %v2375
    %v2408 = vmul.f32 %v304, %v2363
    %v2409 = vmul.f32 %v304, %v2367
    %v2410 = vmul.f32 %v304, %v2371
    %v2411 = vmul.f32 %v304, %v2375
    %v2412 = vmul.f32 %v308, %v2363
    %v2413 = vmul.f32 %v308, %v2367
    %v2414 = vmul.f32 %v308, %v2371
    %v2415 = vmul.f32 %v308, %v2375
    %v2416 = vmul.f32 %v312, %v2363
    %v2417 = vmul.f32 %v312, %v2367
    %v2418 = vmul.f32 %v312, %v2371
    %v2419 = vmul.f32 %v312, %v2375
    %v2420 = vmul.f32 %v316, %v2363
    %v2421 = vmul.f32 %v316, %v2367
    %v2422 = vmul.f32 %v316, %v2371
    %v2423 = vmul.f32 %v316, %v2375
    %v2424 = vmul.f32 %v320, %v2363
    %v2425 = vmul.f32 %v320, %v2367
    %v2426 = vmul.f32 %v320, %v2371
    %v2427 = vmul.f32 %v320, %v2375
    %v2428 = vmul.f32 %v324, %v2363
    %v2429 = vmul.f32 %v324, %v2367
    %v2430 = vmul.f32 %v324, %v2371
    %v2431 = vmul.f32 %v324, %v2375
    %v2432 = vmul.f32 %v328, %v2363
    %v2433 = vmul.f32 %v328, %v2367
    %v2434 = vmul.f32 %v328, %v2371
    %v2435 = vmul.f32 %v328, %v2375
    %v2436 = vmul.f32 %v332, %v2363
    %v2437 = vmul.f32 %v332, %v2367
    %v2438 = vmul.f32 %v332, %v2371
    %v2439 = vmul.f32 %v332, %v2375
    %v2440 = vadd.f32 %v2276, %v2376
    %v2441 = vadd.f32 %v2277, %v2377
    %v2442 = vadd.f32 %v2278, %v2378
    %v2443 = vadd.f32 %v2279, %v2379
    %v2444 = vadd.f32 %v2280, %v2380
    %v2445 = vadd.f32 %v2281, %v2381
    %v2446 = vadd.f32 %v2282, %v2382
    %v2447 = vadd.f32 %v2283, %v2383
    %v2448 = vadd.f32 %v2284, %v2384
    %v2449 = vadd.f32 %v2285, %v2385
    %v2450 = vadd.f32 %v2286, %v2386
    %v2451 = vadd.f32 %v2287, %v2387
    %v2452 = vadd.f32 %v2288, %v2388
    %v2453 = vadd.f32 %v2289, %v2389
    %v2454 = vadd.f32 %v2290, %v2390
    %v2455 = vadd.f32 %v2291, %v2391
    %v2456 = vadd.f32 %v2292, %v2392
    %v2457 = vadd.f32 %v2293, %v2393
    %v2458 = vadd.f32 %v2294, %v2394
    %v2459 = vadd.f32 %v2295, %v2395
    %v2460 = vadd.f32 %v2296, %v2396
    %v2461 = vadd.f32 %v2297, %v2397
    %v2462 = vadd.f32 %v2298, %v2398
    %v2463 = vadd.f32 %v2299, %v2399
    %v2464 = vadd.f32 %v2300, %v2400
    %v2465 = vadd.f32 %v2301, %v2401
    %v2466 = vadd.f32 %v2302, %v2402
    %v2467 = vadd.f32 %v2303, %v2403
    %v2468 = vadd.f32 %v2304, %v2404
    %v2469 = vadd.f32 %v2305, %v2405
    %v2470 = vadd.f32 %v2306, %v2406
    %v2471 = vadd.f32 %v2307, %v2407
    %v2472 = vadd.f32 %v2308, %v2408
    %v2473 = vadd.f32 %v2309, %v2409
    %v2474 = vadd.f32 %v2310, %v2410
    %v2475 = vadd.f32 %v2311, %v2411
    %v2476 = vadd.f32 %v2312, %v2412
    %v2477 = vadd.f32 %v2313, %v2413
    %v2478 = vadd.f32 %v2314, %v2414
    %v2479 = vadd.f32 %v2315, %v2415
    %v2480 = vadd.f32 %v2316, %v2416
    %v2481 = vadd.f32 %v2317, %v2417
    %v2482 = vadd.f32 %v2318, %v2418
    %v2483 = vadd.f32 %v2319, %v2419
    %v2484 = vadd.f32 %v2320, %v2420
    %v2485 = vadd.f32 %v2321, %v2421
    %v2486 = vadd.f32 %v2322, %v2422
    %v2487 = vadd.f32 %v2323, %v2423
    %v2488 = vadd.f32 %v2324, %v2424
    %v2489 = vadd.f32 %v2325, %v2425
    %v2490 = vadd.f32 %v2326, %v2426
    %v2491 = vadd.f32 %v2327, %v2427
    %v2492 = vadd.f32 %v2328, %v2428
    %v2493 = vadd.f32 %v2329, %v2429
    %v2494 = vadd.f32 %v2330, %v2430
    %v2495 = vadd.f32 %v2331, %v2431
    %v2496 = vadd.f32 %v2332, %v2432
    %v2497 = vadd.f32 %v2333, %v2433
    %v2498 = vadd.f32 %v2334, %v2434
    %v2499 = vadd.f32 %v2335, %v2435
    %v2500 = vadd.f32 %v2336, %v2436
    %v2501 = vadd.f32 %v2337, %v2437
    %v2502 = vadd.f32 %v2338, %v2438
    %v2503 = vadd.f32 %v2339, %v2439
    %v2504 = vlaneseq
    %v2505 = vshrl.u32 %v2504, 7
    %v2506 = vsub.s32 2, %v2505
    %v2507 = vrot.slane %v2236, %v2506
    %v2508 = vlaneseq
    %v2509 = vshrl.u32 %v2508, 7
    %v2510 = vsub.s32 6, %v2509
    %v2511 = vrot.slane %v2236, %v2510
    %v2512 = vlaneseq
    %v2513 = vshrl.u32 %v2512, 7
    %v2514 = vsub.s32 2, %v2513
    %v2515 = vrot.slane %v2237, %v2514
    %v2516 = vlaneseq
    %v2517 = vshrl.u32 %v2516, 7
    %v2518 = vsub.s32 6, %v2517
    %v2519 = vrot.slane %v2237, %v2518
    %v2524 = vlaneseq
    %v2525 = vshrl.u32 %v2524, 7
    %v2526 = vsub.s32 2, %v2525
    %v2527 = vrot.slane %v2507, %v2526
    %v2528 = vlaneseq
    %v2529 = vshrl.u32 %v2528, 7
    %v2530 = vsub.s32 2, %v2529
    %v2531 = vrot.slane %v2511, %v2530
    %v2532 = vlaneseq
    %v2533 = vshrl.u32 %v2532, 7
    %v2534 = vsub.s32 2, %v2533
    %v2535 = vrot.slane %v2515, %v2534
    %v2536 = vlaneseq
    %v2537 = vshrl.u32 %v2536, 7
    %v2538 = vsub.s32 2, %v2537
    %v2539 = vrot.slane %v2519, %v2538
    %v2540 = vmul.f32 %v500, %v2527
    %v2541 = vmul.f32 %v500, %v2531
    %v2542 = vmul.f32 %v500, %v2535
    %v2543 = vmul.f32 %v500, %v2539
    %v2544 = vmul.f32 %v504, %v2527
    %v2545 = vmul.f32 %v504, %v2531
    %v2546 = vmul.f32 %v504, %v2535
    %v2547 = vmul.f32 %v504, %v2539
    %v2548 = vmul.f32 %v508, %v2527
    %v2549 = vmul.f32 %v508, %v2531
    %v2550 = vmul.f32 %v508, %v2535
    %v2551 = vmul.f32 %v508, %v2539
    %v2552 = vmul.f32 %v512, %v2527
    %v2553 = vmul.f32 %v512, %v2531
    %v2554 = vmul.f32 %v512, %v2535
    %v2555 = vmul.f32 %v512, %v2539
    %v2556 = vmul.f32 %v516, %v2527
    %v2557 = vmul.f32 %v516, %v2531
    %v2558 = vmul.f32 %v516, %v2535
    %v2559 = vmul.f32 %v516, %v2539
    %v2560 = vmul.f32 %v520, %v2527
    %v2561 = vmul.f32 %v520, %v2531
    %v2562 = vmul.f32 %v520, %v2535
    %v2563 = vmul.f32 %v520, %v2539
    %v2564 = vmul.f32 %v524, %v2527
    %v2565 = vmul.f32 %v524, %v2531
    %v2566 = vmul.f32 %v524, %v2535
    %v2567 = vmul.f32 %v524, %v2539
    %v2568 = vmul.f32 %v528, %v2527
    %v2569 = vmul.f32 %v528, %v2531
    %v2570 = vmul.f32 %v528, %v2535
    %v2571 = vmul.f32 %v528, %v2539
    %v2572 = vmul.f32 %v532, %v2527
    %v2573 = vmul.f32 %v532, %v2531
    %v2574 = vmul.f32 %v532, %v2535
    %v2575 = vmul.f32 %v532, %v2539
    %v2576 = vmul.f32 %v536, %v2527
    %v2577 = vmul.f32 %v536, %v2531
    %v2578 = vmul.f32 %v536, %v2535
    %v2579 = vmul.f32 %v536, %v2539
    %v2580 = vmul.f32 %v540, %v2527
    %v2581 = vmul.f32 %v540, %v2531
    %v2582 = vmul.f32 %v540, %v2535
    %v2583 = vmul.f32 %v540, %v2539
    %v2584 = vmul.f32 %v544, %v2527
    %v2585 = vmul.f32 %v544, %v2531
    %v2586 = vmul.f32 %v544, %v2535
    %v2587 = vmul.f32 %v544, %v2539
    %v2588 = vmul.f32 %v548, %v2527
    %v2589 = vmul.f32 %v548, %v2531
    %v2590 = vmul.f32 %v548, %v2535
    %v2591 = vmul.f32 %v548, %v2539
    %v2592 = vmul.f32 %v552, %v2527
    %v2593 = vmul.f32 %v552, %v2531
    %v2594 = vmul.f32 %v552, %v2535
    %v2595 = vmul.f32 %v552, %v2539
    %v2596 = vmul.f32 %v556, %v2527
    %v2597 = vmul.f32 %v556, %v2531
    %v2598 = vmul.f32 %v556, %v2535
    %v2599 = vmul.f32 %v556, %v2539
    %v2600 = vmul.f32 %v560, %v2527
    %v2601 = vmul.f32 %v560, %v2531
    %v2602 = vmul.f32 %v560, %v2535
    %v2603 = vmul.f32 %v560, %v2539
    %v2604 = vadd.f32 %v2440, %v2540
    %v2605 = vadd.f32 %v2441, %v2541
    %v2606 = vadd.f32 %v2442, %v2542
    %v2607 = vadd.f32 %v2443, %v2543
    %v2608 = vadd.f32 %v2444, %v2544
    %v2609 = vadd.f32 %v2445, %v2545
    %v2610 = vadd.f32 %v2446, %v2546
    %v2611 = vadd.f32 %v2447, %v2547
    %v2612 = vadd.f32 %v2448, %v2548
    %v2613 = vadd.f32 %v2449, %v2549
    %v2614 = vadd.f32 %v2450, %v2550
    %v2615 = vadd.f32 %v2451, %v2551
    %v2616 = vadd.f32 %v2452, %v2552
    %v2617 = vadd.f32 %v2453, %v2553
    %v2618 = vadd.f32 %v2454, %v2554
    %v2619 = vadd.f32 %v2455, %v2555
    %v2620 = vadd.f32 %v2456, %v2556
    %v2621 = vadd.f32 %v2457, %v2557
    %v2622 = vadd.f32 %v2458, %v2558
    %v2623 = vadd.f32 %v2459, %v2559
    %v2624 = vadd.f32 %v2460, %v2560
    %v2625 = vadd.f32 %v2461, %v2561
    %v2626 = vadd.f32 %v2462, %v2562
    %v2627 = vadd.f32 %v2463, %v2563
    %v2628 = vadd.f32 %v2464, %v2564
    %v2629 = vadd.f32 %v2465, %v2565
    %v2630 = vadd.f32 %v2466, %v2566
    %v2631 = vadd.f32 %v2467, %v2567
    %v2632 = vadd.f32 %v2468, %v2568
    %v2633 = vadd.f32 %v2469, %v2569
    %v2634 = vadd.f32 %v2470, %v2570
    %v2635 = vadd.f32 %v2471, %v2571
    %v2636 = vadd.f32 %v2472, %v2572
    %v2637 = vadd.f32 %v2473, %v2573
    %v2638 = vadd.f32 %v2474, %v2574
    %v2639 = vadd.f32 %v2475, %v2575
    %v2640 = vadd.f32 %v2476, %v2576
    %v2641 = vadd.f32 %v2477, %v2577
    %v2642 = vadd.f32 %v2478, %v2578
    %v2643 = vadd.f32 %v2479, %v2579
    %v2644 = vadd.f32 %v2480, %v2580
    %v2645 = vadd.f32 %v2481, %v2581
    %v2646 = vadd.f32 %v2482, %v2582
    %v2647 = vadd.f32 %v2483, %v2583
    %v2648 = vadd.f32 %v2484, %v2584
    %v2649 = vadd.f32 %v2485, %v2585
    %v2650 = vadd.f32 %v2486, %v2586
    %v2651 = vadd.f32 %v2487, %v2587
    %v2652 = vadd.f32 %v2488, %v2588
    %v2653 = vadd.f32 %v2489, %v2589
    %v2654 = vadd.f32 %v2490, %v2590
    %v2655 = vadd.f32 %v2491, %v2591
    %v2656 = vadd.f32 %v2492, %v2592
    %v2657 = vadd.f32 %v2493, %v2593
    %v2658 = vadd.f32 %v2494, %v2594
    %v2659 = vadd.f32 %v2495, %v2595
    %v2660 = vadd.f32 %v2496, %v2596
    %v2661 = vadd.f32 %v2497, %v2597
    %v2662 = vadd.f32 %v2498, %v2598
    %v2663 = vadd.f32 %v2499, %v2599
    %v2664 = vadd.f32 %v2500, %v2600
    %v2665 = vadd.f32 %v2501, %v2601
    %v2666 = vadd.f32 %v2502, %v2602
    %v2667 = vadd.f32 %v2503, %v2603
    %v2668 = vadd.f32 %v2604, %v729
    %v2669 = vadd.f32 %v2605, %v729
    %v2670 = vadd.f32 %v2606, %v729
    %v2671 = vadd.f32 %v2607, %v729
    %v2672 = vadd.f32 %v2608, %v734
    %v2673 = vadd.f32 %v2609, %v734
    %v2674 = vadd.f32 %v2610, %v734
    %v2675 = vadd.f32 %v2611, %v734
    %v2676 = vadd.f32 %v2612, %v739
    %v2677 = vadd.f32 %v2613, %v739
    %v2678 = vadd.f32 %v2614, %v739
    %v2679 = vadd.f32 %v2615, %v739
    %v2680 = vadd.f32 %v2616, %v744
    %v2681 = vadd.f32 %v2617, %v744
    %v2682 = vadd.f32 %v2618, %v744
    %v2683 = vadd.f32 %v2619, %v744
    %v2684 = vadd.f32 %v2620, %v749
    %v2685 = vadd.f32 %v2621, %v749
    %v2686 = vadd.f32 %v2622, %v749
    %v2687 = vadd.f32 %v2623, %v749
    %v2688 = vadd.f32 %v2624, %v754
    %v2689 = vadd.f32 %v2625, %v754
    %v2690 = vadd.f32 %v2626, %v754
    %v2691 = vadd.f32 %v2627, %v754
    %v2692 = vadd.f32 %v2628, %v759
    %v2693 = vadd.f32 %v2629, %v759
    %v2694 = vadd.f32 %v2630, %v759
    %v2695 = vadd.f32 %v2631, %v759
    %v2696 = vadd.f32 %v2632, %v764
    %v2697 = vadd.f32 %v2633, %v764
    %v2698 = vadd.f32 %v2634, %v764
    %v2699 = vadd.f32 %v2635, %v764
    %v2700 = vadd.f32 %v2636, %v769
    %v2701 = vadd.f32 %v2637, %v769
    %v2702 = vadd.f32 %v2638, %v769
    %v2703 = vadd.f32 %v2639, %v769
    %v2704 = vadd.f32 %v2640, %v774
    %v2705 = vadd.f32 %v2641, %v774
    %v2706 = vadd.f32 %v2642, %v774
    %v2707 = vadd.f32 %v2643, %v774
    %v2708 = vadd.f32 %v2644, %v779
    %v2709 = vadd.f32 %v2645, %v779
    %v2710 = vadd.f32 %v2646, %v779
    %v2711 = vadd.f32 %v2647, %v779
    %v2712 = vadd.f32 %v2648, %v784
    %v2713 = vadd.f32 %v2649, %v784
    %v2714 = vadd.f32 %v2650, %v784
    %v2715 = vadd.f32 %v2651, %v784
    %v2716 = vadd.f32 %v2652, %v789
    %v2717 = vadd.f32 %v2653, %v789
    %v2718 = vadd.f32 %v2654, %v789
    %v2719 = vadd.f32 %v2655, %v789
    %v2720 = vadd.f32 %v2656, %v794
    %v2721 = vadd.f32 %v2657, %v794
    %v2722 = vadd.f32 %v2658, %v794
    %v2723 = vadd.f32 %v2659, %v794
    %v2724 = vadd.f32 %v2660, %v799
    %v2725 = vadd.f32 %v2661, %v799
    %v2726 = vadd.f32 %v2662, %v799
    %v2727 = vadd.f32 %v2663, %v799
    %v2728 = vadd.f32 %v2664, %v804
    %v2729 = vadd.f32 %v2665, %v804
    %v2730 = vadd.f32 %v2666, %v804
    %v2731 = vadd.f32 %v2667, %v804
    %v2732 = vmax.f32 %v2668, 0.0
    %v2733 = vmax.f32 %v2669, 0.0
    %v2734 = vmax.f32 %v2670, 0.0
    %v2735 = vmax.f32 %v2671, 0.0
    %v2736 = vmax.f32 %v2672, 0.0
    %v2737 = vmax.f32 %v2673, 0.0
    %v2738 = vmax.f32 %v2674, 0.0
    %v2739 = vmax.f32 %v2675, 0.0
    %v2740 = vmax.f32 %v2676, 0.0
    %v2741 = vmax.f32 %v2677, 0.0
    %v2742 = vmax.f32 %v2678, 0.0
    %v2743 = vmax.f32 %v2679, 0.0
    %v2744 = vmax.f32 %v2680, 0.0
    %v2745 = vmax.f32 %v2681, 0.0
    %v2746 = vmax.f32 %v2682, 0.0
    %v2747 = vmax.f32 %v2683, 0.0
    %v2748 = vmax.f32 %v2684, 0.0
    %v2749 = vmax.f32 %v2685, 0.0
    %v2750 = vmax.f32 %v2686, 0.0
    %v2751 = vmax.f32 %v2687, 0.0
    %v2752 = vmax.f32 %v2688, 0.0
    %v2753 = vmax.f32 %v2689, 0.0
    %v2754 = vmax.f32 %v2690, 0.0
    %v2755 = vmax.f32 %v2691, 0.0
    %v2756 = vmax.f32 %v2692, 0.0
    %v2757 = vmax.f32 %v2693, 0.0
    %v2758 = vmax.f32 %v2694, 0.0
    %v2759 = vmax.f32 %v2695, 0.0
    %v2760 = vmax.f32 %v2696, 0.0
    %v2761 = vmax.f32 %v2697, 0.0
    %v2762 = vmax.f32 %v2698, 0.0
    %v2763 = vmax.f32 %v2699, 0.0
    %v2764 = vmax.f32 %v2700, 0.0
    %v2765 = vmax.f32 %v2701, 0.0
    %v2766 = vmax.f32 %v2702, 0.0
    %v2767 = vmax.f32 %v2703, 0.0
    %v2768 = vmax.f32 %v2704, 0.0
    %v2769 = vmax.f32 %v2705, 0.0
    %v2770 = vmax.f32 %v2706, 0.0
    %v2771 = vmax.f32 %v2707, 0.0
    %v2772 = vmax.f32 %v2708, 0.0
    %v2773 = vmax.f32 %v2709, 0.0
    %v2774 = vmax.f32 %v2710, 0.0
    %v2775 = vmax.f32 %v2711, 0.0
    %v2776 = vmax.f32 %v2712, 0.0
    %v2777 = vmax.f32 %v2713, 0.0
    %v2778 = vmax.f32 %v2714, 0.0
    %v2779 = vmax.f32 %v2715, 0.0
    %v2780 = vmax.f32 %v2716, 0.0
    %v2781 = vmax.f32 %v2717, 0.0
    %v2782 = vmax.f32 %v2718, 0.0
    %v2783 = vmax.f32 %v2719, 0.0
    %v2784 = vmax.f32 %v2720, 0.0
    %v2785 = vmax.f32 %v2721, 0.0
    %v2786 = vmax.f32 %v2722, 0.0
    %v2787 = vmax.f32 %v2723, 0.0
    %v2788 = vmax.f32 %v2724, 0.0
    %v2789 = vmax.f32 %v2725, 0.0
    %v2790 = vmax.f32 %v2726, 0.0
    %v2791 = vmax.f32 %v2727, 0.0
    %v2792 = vmax.f32 %v2728, 0.0
    %v2793 = vmax.f32 %v2729, 0.0
    %v2794 = vmax.f32 %v2730, 0.0
    %v2795 = vmax.f32 %v2731, 0.0
    %v2796 = vpack.c.bf16 %v2736, %v2732
    %v2797 = vpack.c.bf16 %v2737, %v2733
    %v2798 = vpack.c.bf16 %v2738, %v2734
    %v2799 = vpack.c.bf16 %v2739, %v2735
    %v2800 = vpack.c.bf16 %v2744, %v2740
    %v2801 = vpack.c.bf16 %v2745, %v2741
    %v2802 = vpack.c.bf16 %v2746, %v2742
    %v2803 = vpack.c.bf16 %v2747, %v2743
    %v2804 = vpack.c.bf16 %v2752, %v2748
    %v2805 = vpack.c.bf16 %v2753, %v2749
    %v2806 = vpack.c.bf16 %v2754, %v2750
    %v2807 = vpack.c.bf16 %v2755, %v2751
    %v2808 = vpack.c.bf16 %v2760, %v2756
    %v2809 = vpack.c.bf16 %v2761, %v2757
    %v2810 = vpack.c.bf16 %v2762, %v2758
    %v2811 = vpack.c.bf16 %v2763, %v2759
    %v2812 = vpack.c.bf16 %v2768, %v2764
    %v2813 = vpack.c.bf16 %v2769, %v2765
    %v2814 = vpack.c.bf16 %v2770, %v2766
    %v2815 = vpack.c.bf16 %v2771, %v2767
    %v2816 = vpack.c.bf16 %v2776, %v2772
    %v2817 = vpack.c.bf16 %v2777, %v2773
    %v2818 = vpack.c.bf16 %v2778, %v2774
    %v2819 = vpack.c.bf16 %v2779, %v2775
    %v2820 = vpack.c.bf16 %v2784, %v2780
    %v2821 = vpack.c.bf16 %v2785, %v2781
    %v2822 = vpack.c.bf16 %v2786, %v2782
    %v2823 = vpack.c.bf16 %v2787, %v2783
    %v2824 = vpack.c.bf16 %v2792, %v2788
    %v2825 = vpack.c.bf16 %v2793, %v2789
    %v2826 = vpack.c.bf16 %v2794, %v2790
    %v2827 = vpack.c.bf16 %v2795, %v2791
    %2828 = vmatprep.subr.bf16.mxu0 %v2797
    %2829 = vmatpush1.bf16.msra.mxu0 %v2796
    %2830 = vmatprep.subr.bf16.mxu0 %v2801
    %2831 = vmatpush1.bf16.msra.mxu0 %v2800
    %2832 = vmatprep.subr.bf16.mxu0 %v2805
    %2833 = vmatpush1.bf16.msra.mxu0 %v2804
    %2834 = vmatprep.subr.bf16.mxu0 %v2809
    %2835 = vmatpush1.bf16.msra.mxu0 %v2808
    %2836 = vmatprep.subr.bf16.mxu0 %v2813
    %2837 = vmatpush1.bf16.msra.mxu0 %v2812
    %2838 = vmatprep.subr.bf16.mxu0 %v2817
    %2839 = vmatpush1.bf16.msra.mxu0 %v2816
    %2840 = vmatprep.subr.bf16.mxu0 %v2821
    %2841 = vmatpush1.bf16.msra.mxu0 %v2820
    %2842 = vmatprep.subr.bf16.mxu0 %v2825
    %2843 = vmatpush1.bf16.msra.mxu0 %v2824
    %2844 = vmatprep.subr.bf16.mxu0 0
    %2845 = vmatpush1.bf16.msra.mxu0 0
    %2846 = vmatprep.subr.bf16.mxu0 0
    %2847 = vmatpush1.bf16.msra.mxu0 0
    %2848 = vmatprep.subr.bf16.mxu0 0
    %2849 = vmatpush1.bf16.msra.mxu0 0
    %2850 = vmatprep.subr.bf16.mxu0 0
    %2851 = vmatpush1.bf16.msra.mxu0 0
    %2852 = vmatprep.subr.bf16.mxu0 0
    %2853 = vmatpush1.bf16.msra.mxu0 0
    %2854 = vmatprep.subr.bf16.mxu0 0
    %2855 = vmatpush1.bf16.msra.mxu0 0
    %2856 = vmatprep.subr.bf16.mxu0 0
    %2857 = vmatpush1.bf16.msra.mxu0 0
    %2858 = vmatprep.subr.bf16.mxu0 0
    %2859 = vmatpush1.bf16.msra.mxu0 0
    %2860 = vmatprep.mubr.bf16.mxu0 0
    %2861 = vmatmul.mubr.bf16.gmra.mrb[0].mxu0 %v998
    %v2862 = vpop.f32.mrb[0].mxu0
    %v2863 = vadd.f32 0.0, %v2862
    %v2864 = vpop.f32.mrb[0].mxu0
    %v2865 = vadd.f32 0.0, %v2864
    %v2866 = vpop.f32.mrb[0].mxu0
    %v2867 = vadd.f32 0.0, %v2866
    %v2868 = vpop.f32.mrb[0].mxu0
    %v2869 = vadd.f32 0.0, %v2868
    %2870 = vmatprep.mubr.bf16.mxu0 0
    %2871 = vmatmul.mubr.bf16.gmra.mrb[0].mxu0 %v999
    %v2872 = vpop.f32.mrb[0].mxu0
    %v2873 = vadd.f32 0.0, %v2872
    %v2874 = vpop.f32.mrb[0].mxu0
    %v2875 = vadd.f32 0.0, %v2874
    %v2876 = vpop.f32.mrb[0].mxu0
    %v2877 = vadd.f32 0.0, %v2876
    %v2878 = vpop.f32.mrb[0].mxu0
    %v2879 = vadd.f32 0.0, %v2878
    %2880 = vmatprep.mubr.bf16.mxu0 0
    %2881 = vmatmul.mubr.bf16.gmra.mrb[0].mxu0 %v1000
    %v2882 = vpop.f32.mrb[0].mxu0
    %v2883 = vadd.f32 0.0, %v2882
    %v2884 = vpop.f32.mrb[0].mxu0
    %v2885 = vadd.f32 0.0, %v2884
    %v2886 = vpop.f32.mrb[0].mxu0
    %v2887 = vadd.f32 0.0, %v2886
    %v2888 = vpop.f32.mrb[0].mxu0
    %v2889 = vadd.f32 0.0, %v2888
    %2890 = vmatprep.mubr.bf16.mxu0 0
    %2891 = vmatmul.mubr.bf16.gmra.mrb[0].mxu0 %v1001
    %v2892 = vpop.f32.mrb[0].mxu0
    %v2893 = vadd.f32 0.0, %v2892
    %v2894 = vpop.f32.mrb[0].mxu0
    %v2895 = vadd.f32 0.0, %v2894
    %v2896 = vpop.f32.mrb[0].mxu0
    %v2897 = vadd.f32 0.0, %v2896
    %v2898 = vpop.f32.mrb[0].mxu0
    %v2899 = vadd.f32 0.0, %v2898
    %2900 = vmatprep.mubr.bf16.mxu0 0
    %2901 = vmatmul.mubr.bf16.gmra.mrb[0].mxu0 %v1002
    %v2902 = vpop.f32.mrb[0].mxu0
    %v2903 = vadd.f32 0.0, %v2902
    %v2904 = vpop.f32.mrb[0].mxu0
    %v2905 = vadd.f32 0.0, %v2904
    %v2906 = vpop.f32.mrb[0].mxu0
    %v2907 = vadd.f32 0.0, %v2906
    %v2908 = vpop.f32.mrb[0].mxu0
    %v2909 = vadd.f32 0.0, %v2908
    %2910 = vmatprep.mubr.bf16.mxu0 0
    %2911 = vmatmul.mubr.bf16.gmra.mrb[0].mxu0 %v1003
    %v2912 = vpop.f32.mrb[0].mxu0
    %v2913 = vadd.f32 0.0, %v2912
    %v2914 = vpop.f32.mrb[0].mxu0
    %v2915 = vadd.f32 0.0, %v2914
    %v2916 = vpop.f32.mrb[0].mxu0
    %v2917 = vadd.f32 0.0, %v2916
    %v2918 = vpop.f32.mrb[0].mxu0
    %v2919 = vadd.f32 0.0, %v2918
    %2920 = vmatprep.mubr.bf16.mxu0 0
    %2921 = vmatmul.mubr.bf16.gmra.mrb[0].mxu0 %v1004
    %v2922 = vpop.f32.mrb[0].mxu0
    %v2923 = vadd.f32 0.0, %v2922
    %v2924 = vpop.f32.mrb[0].mxu0
    %v2925 = vadd.f32 0.0, %v2924
    %v2926 = vpop.f32.mrb[0].mxu0
    %v2927 = vadd.f32 0.0, %v2926
    %v2928 = vpop.f32.mrb[0].mxu0
    %v2929 = vadd.f32 0.0, %v2928
    %2930 = vmatprep.mubr.bf16.mxu0 0
    %2931 = vmatmul.mubr.bf16.gmra.mrb[0].mxu0 %v1005
    %v2932 = vpop.f32.mrb[0].mxu0
    %v2933 = vadd.f32 0.0, %v2932
    %v2934 = vpop.f32.mrb[0].mxu0
    %v2935 = vadd.f32 0.0, %v2934
    %v2936 = vpop.f32.mrb[0].mxu0
    %v2937 = vadd.f32 0.0, %v2936
    %v2938 = vpop.f32.mrb[0].mxu0
    %v2939 = vadd.f32 0.0, %v2938
    %2940 = vdwg.mxu0
    %2941 = vmatprep.subr.bf16.mxu0 %v2799
    %2942 = vmatpush1.bf16.msra.mxu0 %v2798
    %2943 = vmatprep.subr.bf16.mxu0 %v2803
    %2944 = vmatpush1.bf16.msra.mxu0 %v2802
    %2945 = vmatprep.subr.bf16.mxu0 %v2807
    %2946 = vmatpush1.bf16.msra.mxu0 %v2806
    %2947 = vmatprep.subr.bf16.mxu0 %v2811
    %2948 = vmatpush1.bf16.msra.mxu0 %v2810
    %2949 = vmatprep.subr.bf16.mxu0 %v2815
    %2950 = vmatpush1.bf16.msra.mxu0 %v2814
    %2951 = vmatprep.subr.bf16.mxu0 %v2819
    %2952 = vmatpush1.bf16.msra.mxu0 %v2818
    %2953 = vmatprep.subr.bf16.mxu0 %v2823
    %2954 = vmatpush1.bf16.msra.mxu0 %v2822
    %2955 = vmatprep.subr.bf16.mxu0 %v2827
    %2956 = vmatpush1.bf16.msra.mxu0 %v2826
    %2957 = vmatprep.subr.bf16.mxu0 0
    %2958 = vmatpush1.bf16.msra.mxu0 0
    %2959 = vmatprep.subr.bf16.mxu0 0
    %2960 = vmatpush1.bf16.msra.mxu0 0
    %2961 = vmatprep.subr.bf16.mxu0 0
    %2962 = vmatpush1.bf16.msra.mxu0 0
    %2963 = vmatprep.subr.bf16.mxu0 0
    %2964 = vmatpush1.bf16.msra.mxu0 0
    %2965 = vmatprep.subr.bf16.mxu0 0
    %2966 = vmatpush1.bf16.msra.mxu0 0
    %2967 = vmatprep.subr.bf16.mxu0 0
    %2968 = vmatpush1.bf16.msra.mxu0 0
    %2969 = vmatprep.subr.bf16.mxu0 0
    %2970 = vmatpush1.bf16.msra.mxu0 0
    %2971 = vmatprep.subr.bf16.mxu0 0
    %2972 = vmatpush1.bf16.msra.mxu0 0
    %2973 = vmatprep.mubr.bf16.mxu0 0
    %2974 = vmatmul.mubr.bf16.gmra.mrb[0].mxu0 %v998
    %v2975 = vpop.f32.mrb[0].mxu0
    %v2976 = vadd.f32 0.0, %v2975
    %v2977 = vpop.f32.mrb[0].mxu0
    %v2978 = vadd.f32 0.0, %v2977
    %v2979 = vpop.f32.mrb[0].mxu0
    %v2980 = vadd.f32 0.0, %v2979
    %v2981 = vpop.f32.mrb[0].mxu0
    %v2982 = vadd.f32 0.0, %v2981
    %2983 = vmatprep.mubr.bf16.mxu0 0
    %2984 = vmatmul.mubr.bf16.gmra.mrb[0].mxu0 %v999
    %v2985 = vpop.f32.mrb[0].mxu0
    %v2986 = vadd.f32 0.0, %v2985
    %v2987 = vpop.f32.mrb[0].mxu0
    %v2988 = vadd.f32 0.0, %v2987
    %v2989 = vpop.f32.mrb[0].mxu0
    %v2990 = vadd.f32 0.0, %v2989
    %v2991 = vpop.f32.mrb[0].mxu0
    %v2992 = vadd.f32 0.0, %v2991
    %2993 = vmatprep.mubr.bf16.mxu0 0
    %2994 = vmatmul.mubr.bf16.gmra.mrb[0].mxu0 %v1000
    %v2995 = vpop.f32.mrb[0].mxu0
    %v2996 = vadd.f32 0.0, %v2995
    %v2997 = vpop.f32.mrb[0].mxu0
    %v2998 = vadd.f32 0.0, %v2997
    %v2999 = vpop.f32.mrb[0].mxu0
    %v3000 = vadd.f32 0.0, %v2999
    %v3001 = vpop.f32.mrb[0].mxu0
    %v3002 = vadd.f32 0.0, %v3001
    %3003 = vmatprep.mubr.bf16.mxu0 0
    %3004 = vmatmul.mubr.bf16.gmra.mrb[0].mxu0 %v1001
    %v3005 = vpop.f32.mrb[0].mxu0
    %v3006 = vadd.f32 0.0, %v3005
    %v3007 = vpop.f32.mrb[0].mxu0
    %v3008 = vadd.f32 0.0, %v3007
    %v3009 = vpop.f32.mrb[0].mxu0
    %v3010 = vadd.f32 0.0, %v3009
    %v3011 = vpop.f32.mrb[0].mxu0
    %v3012 = vadd.f32 0.0, %v3011
    %3013 = vmatprep.mubr.bf16.mxu0 0
    %3014 = vmatmul.mubr.bf16.gmra.mrb[0].mxu0 %v1002
    %v3015 = vpop.f32.mrb[0].mxu0
    %v3016 = vadd.f32 0.0, %v3015
    %v3017 = vpop.f32.mrb[0].mxu0
    %v3018 = vadd.f32 0.0, %v3017
    %v3019 = vpop.f32.mrb[0].mxu0
    %v3020 = vadd.f32 0.0, %v3019
    %v3021 = vpop.f32.mrb[0].mxu0
    %v3022 = vadd.f32 0.0, %v3021
    %3023 = vmatprep.mubr.bf16.mxu0 0
    %3024 = vmatmul.mubr.bf16.gmra.mrb[0].mxu0 %v1003
    %v3025 = vpop.f32.mrb[0].mxu0
    %v3026 = vadd.f32 0.0, %v3025
    %v3027 = vpop.f32.mrb[0].mxu0
    %v3028 = vadd.f32 0.0, %v3027
    %v3029 = vpop.f32.mrb[0].mxu0
    %v3030 = vadd.f32 0.0, %v3029
    %v3031 = vpop.f32.mrb[0].mxu0
    %v3032 = vadd.f32 0.0, %v3031
    %3033 = vmatprep.mubr.bf16.mxu0 0
    %3034 = vmatmul.mubr.bf16.gmra.mrb[0].mxu0 %v1004
    %v3035 = vpop.f32.mrb[0].mxu0
    %v3036 = vadd.f32 0.0, %v3035
    %v3037 = vpop.f32.mrb[0].mxu0
    %v3038 = vadd.f32 0.0, %v3037
    %v3039 = vpop.f32.mrb[0].mxu0
    %v3040 = vadd.f32 0.0, %v3039
    %v3041 = vpop.f32.mrb[0].mxu0
    %v3042 = vadd.f32 0.0, %v3041
    %3043 = vmatprep.mubr.bf16.mxu0 0
    %3044 = vmatmul.mubr.bf16.gmra.mrb[0].mxu0 %v1005
    %v3045 = vpop.f32.mrb[0].mxu0
    %v3046 = vadd.f32 0.0, %v3045
    %v3047 = vpop.f32.mrb[0].mxu0
    %v3048 = vadd.f32 0.0, %v3047
    %v3049 = vpop.f32.mrb[0].mxu0
    %v3050 = vadd.f32 0.0, %v3049
    %v3051 = vpop.f32.mrb[0].mxu0
    %v3052 = vadd.f32 0.0, %v3051
    %3053 = vdwg.mxu0
    %v3054 = vmax.f32 %v2863, %v2865
    %v3055 = vmax.f32 %v3054, %v2976
    %v3056 = vmax.f32 %v3055, %v2978
    %3057 = vmax.xlane.f32.xlu0 %v3056
    %v3058 = vpop.xlane.xlu0 %3057
    %v3059 = vmax.f32 %v2867, %v2869
    %v3060 = vmax.f32 %v3059, %v2980
    %v3061 = vmax.f32 %v3060, %v2982
    %3062 = vmax.xlane.f32.xlu0 %v3061
    %v3063 = vpop.xlane.xlu0 %3062
    %v3064 = vmax.f32 %v2873, %v2875
    %v3065 = vmax.f32 %v3064, %v2986
    %v3066 = vmax.f32 %v3065, %v2988
    %3067 = vmax.xlane.f32.xlu0 %v3066
    %v3068 = vpop.xlane.xlu0 %3067
    %v3069 = vmax.f32 %v2877, %v2879
    %v3070 = vmax.f32 %v3069, %v2990
    %v3071 = vmax.f32 %v3070, %v2992
    %3072 = vmax.xlane.f32.xlu0 %v3071
    %v3073 = vpop.xlane.xlu0 %3072
    %v3074 = vmax.f32 %v2883, %v2885
    %v3075 = vmax.f32 %v3074, %v2996
    %v3076 = vmax.f32 %v3075, %v2998
    %3077 = vmax.xlane.f32.xlu0 %v3076
    %v3078 = vpop.xlane.xlu0 %3077
    %v3079 = vmax.f32 %v2887, %v2889
    %v3080 = vmax.f32 %v3079, %v3000
    %v3081 = vmax.f32 %v3080, %v3002
    %3082 = vmax.xlane.f32.xlu0 %v3081
    %v3083 = vpop.xlane.xlu0 %3082
    %v3084 = vmax.f32 %v2893, %v2895
    %v3085 = vmax.f32 %v3084, %v3006
    %v3086 = vmax.f32 %v3085, %v3008
    %3087 = vmax.xlane.f32.xlu0 %v3086
    %v3088 = vpop.xlane.xlu0 %3087
    %v3089 = vmax.f32 %v2897, %v2899
    %v3090 = vmax.f32 %v3089, %v3010
    %v3091 = vmax.f32 %v3090, %v3012
    %3092 = vmax.xlane.f32.xlu0 %v3091
    %v3093 = vpop.xlane.xlu0 %3092
    %v3094 = vmax.f32 %v2903, %v2905
    %v3095 = vmax.f32 %v3094, %v3016
    %v3096 = vmax.f32 %v3095, %v3018
    %3097 = vmax.xlane.f32.xlu0 %v3096
    %v3098 = vpop.xlane.xlu0 %3097
    %v3099 = vmax.f32 %v2907, %v2909
    %v3100 = vmax.f32 %v3099, %v3020
    %v3101 = vmax.f32 %v3100, %v3022
    %3102 = vmax.xlane.f32.xlu0 %v3101
    %v3103 = vpop.xlane.xlu0 %3102
    %v3104 = vmax.f32 %v2913, %v2915
    %v3105 = vmax.f32 %v3104, %v3026
    %v3106 = vmax.f32 %v3105, %v3028
    %3107 = vmax.xlane.f32.xlu0 %v3106
    %v3108 = vpop.xlane.xlu0 %3107
    %v3109 = vmax.f32 %v2917, %v2919
    %v3110 = vmax.f32 %v3109, %v3030
    %v3111 = vmax.f32 %v3110, %v3032
    %3112 = vmax.xlane.f32.xlu0 %v3111
    %v3113 = vpop.xlane.xlu0 %3112
    %v3114 = vmax.f32 %v2923, %v2925
    %v3115 = vmax.f32 %v3114, %v3036
    %v3116 = vmax.f32 %v3115, %v3038
    %3117 = vmax.xlane.f32.xlu0 %v3116
    %v3118 = vpop.xlane.xlu0 %3117
    %v3119 = vmax.f32 %v2927, %v2929
    %v3120 = vmax.f32 %v3119, %v3040
    %v3121 = vmax.f32 %v3120, %v3042
    %3122 = vmax.xlane.f32.xlu0 %v3121
    %v3123 = vpop.xlane.xlu0 %3122
    %v3124 = vmax.f32 %v2933, %v2935
    %v3125 = vmax.f32 %v3124, %v3046
    %v3126 = vmax.f32 %v3125, %v3048
    %3127 = vmax.xlane.f32.xlu0 %v3126
    %v3128 = vpop.xlane.xlu0 %3127
    %v3129 = vmax.f32 %v2937, %v2939
    %v3130 = vmax.f32 %v3129, %v3050
    %v3131 = vmax.f32 %v3130, %v3052
    %3132 = vmax.xlane.f32.xlu0 %v3131
    %v3133 = vpop.xlane.xlu0 %3132
    %v3134 = vmax.f32 %v2219, %v3058
    %v3135 = vmax.f32 %v2220, %v3063
    %v3136 = vmax.f32 %v2221, %v3068
    %v3137 = vmax.f32 %v2222, %v3073
    %v3138 = vmax.f32 %v2223, %v3078
    %v3139 = vmax.f32 %v2224, %v3083
    %v3140 = vmax.f32 %v2225, %v3088
    %v3141 = vmax.f32 %v2226, %v3093
    %v3142 = vmax.f32 %v2227, %v3098
    %v3143 = vmax.f32 %v2228, %v3103
    %v3144 = vmax.f32 %v2229, %v3108
    %v3145 = vmax.f32 %v2230, %v3113
    %v3146 = vmax.f32 %v2231, %v3118
    %v3147 = vmax.f32 %v2232, %v3123
    %v3148 = vmax.f32 %v2233, %v3128
    %v3149 = vmax.f32 %v2234, %v3133
    %s3150 = scalar_lea.vmem %s0, 48
    %v3151 = vld [vmem:[%s3150] sm:$0x77]
    %v3152 = vld [vmem:[%s3150 + $0x8] sm:$0x77]
    %v3155 = vlaneseq
    %v3156 = vshrl.u32 %v3155, 7
    %v3157 = vsub.s32 0, %v3156
    %v3158 = vrot.slane %v3151, %v3157
    %v3159 = vlaneseq
    %v3160 = vshrl.u32 %v3159, 7
    %v3161 = vsub.s32 4, %v3160
    %v3162 = vrot.slane %v3151, %v3161
    %v3163 = vlaneseq
    %v3164 = vshrl.u32 %v3163, 7
    %v3165 = vsub.s32 0, %v3164
    %v3166 = vrot.slane %v3152, %v3165
    %v3167 = vlaneseq
    %v3168 = vshrl.u32 %v3167, 7
    %v3169 = vsub.s32 4, %v3168
    %v3170 = vrot.slane %v3152, %v3169
    %v3175 = vlaneseq
    %v3176 = vshrl.u32 %v3175, 7
    %v3177 = vsub.s32 0, %v3176
    %v3178 = vrot.slane %v3158, %v3177
    %v3179 = vlaneseq
    %v3180 = vshrl.u32 %v3179, 7
    %v3181 = vsub.s32 0, %v3180
    %v3182 = vrot.slane %v3162, %v3181
    %v3183 = vlaneseq
    %v3184 = vshrl.u32 %v3183, 7
    %v3185 = vsub.s32 0, %v3184
    %v3186 = vrot.slane %v3166, %v3185
    %v3187 = vlaneseq
    %v3188 = vshrl.u32 %v3187, 7
    %v3189 = vsub.s32 0, %v3188
    %v3190 = vrot.slane %v3170, %v3189
    %v3191 = vmul.f32 %v91, %v3178
    %v3192 = vmul.f32 %v91, %v3182
    %v3193 = vmul.f32 %v91, %v3186
    %v3194 = vmul.f32 %v91, %v3190
    %v3195 = vmul.f32 %v96, %v3178
    %v3196 = vmul.f32 %v96, %v3182
    %v3197 = vmul.f32 %v96, %v3186
    %v3198 = vmul.f32 %v96, %v3190
    %v3199 = vmul.f32 %v101, %v3178
    %v3200 = vmul.f32 %v101, %v3182
    %v3201 = vmul.f32 %v101, %v3186
    %v3202 = vmul.f32 %v101, %v3190
    %v3203 = vmul.f32 %v106, %v3178
    %v3204 = vmul.f32 %v106, %v3182
    %v3205 = vmul.f32 %v106, %v3186
    %v3206 = vmul.f32 %v106, %v3190
    %v3207 = vmul.f32 %v111, %v3178
    %v3208 = vmul.f32 %v111, %v3182
    %v3209 = vmul.f32 %v111, %v3186
    %v3210 = vmul.f32 %v111, %v3190
    %v3211 = vmul.f32 %v116, %v3178
    %v3212 = vmul.f32 %v116, %v3182
    %v3213 = vmul.f32 %v116, %v3186
    %v3214 = vmul.f32 %v116, %v3190
    %v3215 = vmul.f32 %v121, %v3178
    %v3216 = vmul.f32 %v121, %v3182
    %v3217 = vmul.f32 %v121, %v3186
    %v3218 = vmul.f32 %v121, %v3190
    %v3219 = vmul.f32 %v126, %v3178
    %v3220 = vmul.f32 %v126, %v3182
    %v3221 = vmul.f32 %v126, %v3186
    %v3222 = vmul.f32 %v126, %v3190
    %v3223 = vmul.f32 %v131, %v3178
    %v3224 = vmul.f32 %v131, %v3182
    %v3225 = vmul.f32 %v131, %v3186
    %v3226 = vmul.f32 %v131, %v3190
    %v3227 = vmul.f32 %v136, %v3178
    %v3228 = vmul.f32 %v136, %v3182
    %v3229 = vmul.f32 %v136, %v3186
    %v3230 = vmul.f32 %v136, %v3190
    %v3231 = vmul.f32 %v141, %v3178
    %v3232 = vmul.f32 %v141, %v3182
    %v3233 = vmul.f32 %v141, %v3186
    %v3234 = vmul.f32 %v141, %v3190
    %v3235 = vmul.f32 %v146, %v3178
    %v3236 = vmul.f32 %v146, %v3182
    %v3237 = vmul.f32 %v146, %v3186
    %v3238 = vmul.f32 %v146, %v3190
    %v3239 = vmul.f32 %v151, %v3178
    %v3240 = vmul.f32 %v151, %v3182
    %v3241 = vmul.f32 %v151, %v3186
    %v3242 = vmul.f32 %v151, %v3190
    %v3243 = vmul.f32 %v156, %v3178
    %v3244 = vmul.f32 %v156, %v3182
    %v3245 = vmul.f32 %v156, %v3186
    %v3246 = vmul.f32 %v156, %v3190
    %v3247 = vmul.f32 %v161, %v3178
    %v3248 = vmul.f32 %v161, %v3182
    %v3249 = vmul.f32 %v161, %v3186
    %v3250 = vmul.f32 %v161, %v3190
    %v3251 = vmul.f32 %v166, %v3178
    %v3252 = vmul.f32 %v166, %v3182
    %v3253 = vmul.f32 %v166, %v3186
    %v3254 = vmul.f32 %v166, %v3190
    %v3255 = vlaneseq
    %v3256 = vshrl.u32 %v3255, 7
    %v3257 = vsub.s32 1, %v3256
    %v3258 = vrot.slane %v3151, %v3257
    %v3259 = vlaneseq
    %v3260 = vshrl.u32 %v3259, 7
    %v3261 = vsub.s32 5, %v3260
    %v3262 = vrot.slane %v3151, %v3261
    %v3263 = vlaneseq
    %v3264 = vshrl.u32 %v3263, 7
    %v3265 = vsub.s32 1, %v3264
    %v3266 = vrot.slane %v3152, %v3265
    %v3267 = vlaneseq
    %v3268 = vshrl.u32 %v3267, 7
    %v3269 = vsub.s32 5, %v3268
    %v3270 = vrot.slane %v3152, %v3269
    %v3275 = vlaneseq
    %v3276 = vshrl.u32 %v3275, 7
    %v3277 = vsub.s32 1, %v3276
    %v3278 = vrot.slane %v3258, %v3277
    %v3279 = vlaneseq
    %v3280 = vshrl.u32 %v3279, 7
    %v3281 = vsub.s32 1, %v3280
    %v3282 = vrot.slane %v3262, %v3281
    %v3283 = vlaneseq
    %v3284 = vshrl.u32 %v3283, 7
    %v3285 = vsub.s32 1, %v3284
    %v3286 = vrot.slane %v3266, %v3285
    %v3287 = vlaneseq
    %v3288 = vshrl.u32 %v3287, 7
    %v3289 = vsub.s32 1, %v3288
    %v3290 = vrot.slane %v3270, %v3289
    %v3291 = vmul.f32 %v272, %v3278
    %v3292 = vmul.f32 %v272, %v3282
    %v3293 = vmul.f32 %v272, %v3286
    %v3294 = vmul.f32 %v272, %v3290
    %v3295 = vmul.f32 %v276, %v3278
    %v3296 = vmul.f32 %v276, %v3282
    %v3297 = vmul.f32 %v276, %v3286
    %v3298 = vmul.f32 %v276, %v3290
    %v3299 = vmul.f32 %v280, %v3278
    %v3300 = vmul.f32 %v280, %v3282
    %v3301 = vmul.f32 %v280, %v3286
    %v3302 = vmul.f32 %v280, %v3290
    %v3303 = vmul.f32 %v284, %v3278
    %v3304 = vmul.f32 %v284, %v3282
    %v3305 = vmul.f32 %v284, %v3286
    %v3306 = vmul.f32 %v284, %v3290
    %v3307 = vmul.f32 %v288, %v3278
    %v3308 = vmul.f32 %v288, %v3282
    %v3309 = vmul.f32 %v288, %v3286
    %v3310 = vmul.f32 %v288, %v3290
    %v3311 = vmul.f32 %v292, %v3278
    %v3312 = vmul.f32 %v292, %v3282
    %v3313 = vmul.f32 %v292, %v3286
    %v3314 = vmul.f32 %v292, %v3290
    %v3315 = vmul.f32 %v296, %v3278
    %v3316 = vmul.f32 %v296, %v3282
    %v3317 = vmul.f32 %v296, %v3286
    %v3318 = vmul.f32 %v296, %v3290
    %v3319 = vmul.f32 %v300, %v3278
    %v3320 = vmul.f32 %v300, %v3282
    %v3321 = vmul.f32 %v300, %v3286
    %v3322 = vmul.f32 %v300, %v3290
    %v3323 = vmul.f32 %v304, %v3278
    %v3324 = vmul.f32 %v304, %v3282
    %v3325 = vmul.f32 %v304, %v3286
    %v3326 = vmul.f32 %v304, %v3290
    %v3327 = vmul.f32 %v308, %v3278
    %v3328 = vmul.f32 %v308, %v3282
    %v3329 = vmul.f32 %v308, %v3286
    %v3330 = vmul.f32 %v308, %v3290
    %v3331 = vmul.f32 %v312, %v3278
    %v3332 = vmul.f32 %v312, %v3282
    %v3333 = vmul.f32 %v312, %v3286
    %v3334 = vmul.f32 %v312, %v3290
    %v3335 = vmul.f32 %v316, %v3278
    %v3336 = vmul.f32 %v316, %v3282
    %v3337 = vmul.f32 %v316, %v3286
    %v3338 = vmul.f32 %v316, %v3290
    %v3339 = vmul.f32 %v320, %v3278
    %v3340 = vmul.f32 %v320, %v3282
    %v3341 = vmul.f32 %v320, %v3286
    %v3342 = vmul.f32 %v320, %v3290
    %v3343 = vmul.f32 %v324, %v3278
    %v3344 = vmul.f32 %v324, %v3282
    %v3345 = vmul.f32 %v324, %v3286
    %v3346 = vmul.f32 %v324, %v3290
    %v3347 = vmul.f32 %v328, %v3278
    %v3348 = vmul.f32 %v328, %v3282
    %v3349 = vmul.f32 %v328, %v3286
    %v3350 = vmul.f32 %v328, %v3290
    %v3351 = vmul.f32 %v332, %v3278
    %v3352 = vmul.f32 %v332, %v3282
    %v3353 = vmul.f32 %v332, %v3286
    %v3354 = vmul.f32 %v332, %v3290
    %v3355 = vadd.f32 %v3191, %v3291
    %v3356 = vadd.f32 %v3192, %v3292
    %v3357 = vadd.f32 %v3193, %v3293
    %v3358 = vadd.f32 %v3194, %v3294
    %v3359 = vadd.f32 %v3195, %v3295
    %v3360 = vadd.f32 %v3196, %v3296
    %v3361 = vadd.f32 %v3197, %v3297
    %v3362 = vadd.f32 %v3198, %v3298
    %v3363 = vadd.f32 %v3199, %v3299
    %v3364 = vadd.f32 %v3200, %v3300
    %v3365 = vadd.f32 %v3201, %v3301
    %v3366 = vadd.f32 %v3202, %v3302
    %v3367 = vadd.f32 %v3203, %v3303
    %v3368 = vadd.f32 %v3204, %v3304
    %v3369 = vadd.f32 %v3205, %v3305
    %v3370 = vadd.f32 %v3206, %v3306
    %v3371 = vadd.f32 %v3207, %v3307
    %v3372 = vadd.f32 %v3208, %v3308
    %v3373 = vadd.f32 %v3209, %v3309
    %v3374 = vadd.f32 %v3210, %v3310
    %v3375 = vadd.f32 %v3211, %v3311
    %v3376 = vadd.f32 %v3212, %v3312
    %v3377 = vadd.f32 %v3213, %v3313
    %v3378 = vadd.f32 %v3214, %v3314
    %v3379 = vadd.f32 %v3215, %v3315
    %v3380 = vadd.f32 %v3216, %v3316
    %v3381 = vadd.f32 %v3217, %v3317
    %v3382 = vadd.f32 %v3218, %v3318
    %v3383 = vadd.f32 %v3219, %v3319
    %v3384 = vadd.f32 %v3220, %v3320
    %v3385 = vadd.f32 %v3221, %v3321
    %v3386 = vadd.f32 %v3222, %v3322
    %v3387 = vadd.f32 %v3223, %v3323
    %v3388 = vadd.f32 %v3224, %v3324
    %v3389 = vadd.f32 %v3225, %v3325
    %v3390 = vadd.f32 %v3226, %v3326
    %v3391 = vadd.f32 %v3227, %v3327
    %v3392 = vadd.f32 %v3228, %v3328
    %v3393 = vadd.f32 %v3229, %v3329
    %v3394 = vadd.f32 %v3230, %v3330
    %v3395 = vadd.f32 %v3231, %v3331
    %v3396 = vadd.f32 %v3232, %v3332
    %v3397 = vadd.f32 %v3233, %v3333
    %v3398 = vadd.f32 %v3234, %v3334
    %v3399 = vadd.f32 %v3235, %v3335
    %v3400 = vadd.f32 %v3236, %v3336
    %v3401 = vadd.f32 %v3237, %v3337
    %v3402 = vadd.f32 %v3238, %v3338
    %v3403 = vadd.f32 %v3239, %v3339
    %v3404 = vadd.f32 %v3240, %v3340
    %v3405 = vadd.f32 %v3241, %v3341
    %v3406 = vadd.f32 %v3242, %v3342
    %v3407 = vadd.f32 %v3243, %v3343
    %v3408 = vadd.f32 %v3244, %v3344
    %v3409 = vadd.f32 %v3245, %v3345
    %v3410 = vadd.f32 %v3246, %v3346
    %v3411 = vadd.f32 %v3247, %v3347
    %v3412 = vadd.f32 %v3248, %v3348
    %v3413 = vadd.f32 %v3249, %v3349
    %v3414 = vadd.f32 %v3250, %v3350
    %v3415 = vadd.f32 %v3251, %v3351
    %v3416 = vadd.f32 %v3252, %v3352
    %v3417 = vadd.f32 %v3253, %v3353
    %v3418 = vadd.f32 %v3254, %v3354
    %v3419 = vlaneseq
    %v3420 = vshrl.u32 %v3419, 7
    %v3421 = vsub.s32 2, %v3420
    %v3422 = vrot.slane %v3151, %v3421
    %v3423 = vlaneseq
    %v3424 = vshrl.u32 %v3423, 7
    %v3425 = vsub.s32 6, %v3424
    %v3426 = vrot.slane %v3151, %v3425
    %v3427 = vlaneseq
    %v3428 = vshrl.u32 %v3427, 7
    %v3429 = vsub.s32 2, %v3428
    %v3430 = vrot.slane %v3152, %v3429
    %v3431 = vlaneseq
    %v3432 = vshrl.u32 %v3431, 7
    %v3433 = vsub.s32 6, %v3432
    %v3434 = vrot.slane %v3152, %v3433
    %v3439 = vlaneseq
    %v3440 = vshrl.u32 %v3439, 7
    %v3441 = vsub.s32 2, %v3440
    %v3442 = vrot.slane %v3422, %v3441
    %v3443 = vlaneseq
    %v3444 = vshrl.u32 %v3443, 7
    %v3445 = vsub.s32 2, %v3444
    %v3446 = vrot.slane %v3426, %v3445
    %v3447 = vlaneseq
    %v3448 = vshrl.u32 %v3447, 7
    %v3449 = vsub.s32 2, %v3448
    %v3450 = vrot.slane %v3430, %v3449
    %v3451 = vlaneseq
    %v3452 = vshrl.u32 %v3451, 7
    %v3453 = vsub.s32 2, %v3452
    %v3454 = vrot.slane %v3434, %v3453
    %v3455 = vmul.f32 %v500, %v3442
    %v3456 = vmul.f32 %v500, %v3446
    %v3457 = vmul.f32 %v500, %v3450
    %v3458 = vmul.f32 %v500, %v3454
    %v3459 = vmul.f32 %v504, %v3442
    %v3460 = vmul.f32 %v504, %v3446
    %v3461 = vmul.f32 %v504, %v3450
    %v3462 = vmul.f32 %v504, %v3454
    %v3463 = vmul.f32 %v508, %v3442
    %v3464 = vmul.f32 %v508, %v3446
    %v3465 = vmul.f32 %v508, %v3450
    %v3466 = vmul.f32 %v508, %v3454
    %v3467 = vmul.f32 %v512, %v3442
    %v3468 = vmul.f32 %v512, %v3446
    %v3469 = vmul.f32 %v512, %v3450
    %v3470 = vmul.f32 %v512, %v3454
    %v3471 = vmul.f32 %v516, %v3442
    %v3472 = vmul.f32 %v516, %v3446
    %v3473 = vmul.f32 %v516, %v3450
    %v3474 = vmul.f32 %v516, %v3454
    %v3475 = vmul.f32 %v520, %v3442
    %v3476 = vmul.f32 %v520, %v3446
    %v3477 = vmul.f32 %v520, %v3450
    %v3478 = vmul.f32 %v520, %v3454
    %v3479 = vmul.f32 %v524, %v3442
    %v3480 = vmul.f32 %v524, %v3446
    %v3481 = vmul.f32 %v524, %v3450
    %v3482 = vmul.f32 %v524, %v3454
    %v3483 = vmul.f32 %v528, %v3442
    %v3484 = vmul.f32 %v528, %v3446
    %v3485 = vmul.f32 %v528, %v3450
    %v3486 = vmul.f32 %v528, %v3454
    %v3487 = vmul.f32 %v532, %v3442
    %v3488 = vmul.f32 %v532, %v3446
    %v3489 = vmul.f32 %v532, %v3450
    %v3490 = vmul.f32 %v532, %v3454
    %v3491 = vmul.f32 %v536, %v3442
    %v3492 = vmul.f32 %v536, %v3446
    %v3493 = vmul.f32 %v536, %v3450
    %v3494 = vmul.f32 %v536, %v3454
    %v3495 = vmul.f32 %v540, %v3442
    %v3496 = vmul.f32 %v540, %v3446
    %v3497 = vmul.f32 %v540, %v3450
    %v3498 = vmul.f32 %v540, %v3454
    %v3499 = vmul.f32 %v544, %v3442
    %v3500 = vmul.f32 %v544, %v3446
    %v3501 = vmul.f32 %v544, %v3450
    %v3502 = vmul.f32 %v544, %v3454
    %v3503 = vmul.f32 %v548, %v3442
    %v3504 = vmul.f32 %v548, %v3446
    %v3505 = vmul.f32 %v548, %v3450
    %v3506 = vmul.f32 %v548, %v3454
    %v3507 = vmul.f32 %v552, %v3442
    %v3508 = vmul.f32 %v552, %v3446
    %v3509 = vmul.f32 %v552, %v3450
    %v3510 = vmul.f32 %v552, %v3454
    %v3511 = vmul.f32 %v556, %v3442
    %v3512 = vmul.f32 %v556, %v3446
    %v3513 = vmul.f32 %v556, %v3450
    %v3514 = vmul.f32 %v556, %v3454
    %v3515 = vmul.f32 %v560, %v3442
    %v3516 = vmul.f32 %v560, %v3446
    %v3517 = vmul.f32 %v560, %v3450
    %v3518 = vmul.f32 %v560, %v3454
    %v3519 = vadd.f32 %v3355, %v3455
    %v3520 = vadd.f32 %v3356, %v3456
    %v3521 = vadd.f32 %v3357, %v3457
    %v3522 = vadd.f32 %v3358, %v3458
    %v3523 = vadd.f32 %v3359, %v3459
    %v3524 = vadd.f32 %v3360, %v3460
    %v3525 = vadd.f32 %v3361, %v3461
    %v3526 = vadd.f32 %v3362, %v3462
    %v3527 = vadd.f32 %v3363, %v3463
    %v3528 = vadd.f32 %v3364, %v3464
    %v3529 = vadd.f32 %v3365, %v3465
    %v3530 = vadd.f32 %v3366, %v3466
    %v3531 = vadd.f32 %v3367, %v3467
    %v3532 = vadd.f32 %v3368, %v3468
    %v3533 = vadd.f32 %v3369, %v3469
    %v3534 = vadd.f32 %v3370, %v3470
    %v3535 = vadd.f32 %v3371, %v3471
    %v3536 = vadd.f32 %v3372, %v3472
    %v3537 = vadd.f32 %v3373, %v3473
    %v3538 = vadd.f32 %v3374, %v3474
    %v3539 = vadd.f32 %v3375, %v3475
    %v3540 = vadd.f32 %v3376, %v3476
    %v3541 = vadd.f32 %v3377, %v3477
    %v3542 = vadd.f32 %v3378, %v3478
    %v3543 = vadd.f32 %v3379, %v3479
    %v3544 = vadd.f32 %v3380, %v3480
    %v3545 = vadd.f32 %v3381, %v3481
    %v3546 = vadd.f32 %v3382, %v3482
    %v3547 = vadd.f32 %v3383, %v3483
    %v3548 = vadd.f32 %v3384, %v3484
    %v3549 = vadd.f32 %v3385, %v3485
    %v3550 = vadd.f32 %v3386, %v3486
    %v3551 = vadd.f32 %v3387, %v3487
    %v3552 = vadd.f32 %v3388, %v3488
    %v3553 = vadd.f32 %v3389, %v3489
    %v3554 = vadd.f32 %v3390, %v3490
    %v3555 = vadd.f32 %v3391, %v3491
    %v3556 = vadd.f32 %v3392, %v3492
    %v3557 = vadd.f32 %v3393, %v3493
    %v3558 = vadd.f32 %v3394, %v3494
    %v3559 = vadd.f32 %v3395, %v3495
    %v3560 = vadd.f32 %v3396, %v3496
    %v3561 = vadd.f32 %v3397, %v3497
    %v3562 = vadd.f32 %v3398, %v3498
    %v3563 = vadd.f32 %v3399, %v3499
    %v3564 = vadd.f32 %v3400, %v3500
    %v3565 = vadd.f32 %v3401, %v3501
    %v3566 = vadd.f32 %v3402, %v3502
    %v3567 = vadd.f32 %v3403, %v3503
    %v3568 = vadd.f32 %v3404, %v3504
    %v3569 = vadd.f32 %v3405, %v3505
    %v3570 = vadd.f32 %v3406, %v3506
    %v3571 = vadd.f32 %v3407, %v3507
    %v3572 = vadd.f32 %v3408, %v3508
    %v3573 = vadd.f32 %v3409, %v3509
    %v3574 = vadd.f32 %v3410, %v3510
    %v3575 = vadd.f32 %v3411, %v3511
    %v3576 = vadd.f32 %v3412, %v3512
    %v3577 = vadd.f32 %v3413, %v3513
    %v3578 = vadd.f32 %v3414, %v3514
    %v3579 = vadd.f32 %v3415, %v3515
    %v3580 = vadd.f32 %v3416, %v3516
    %v3581 = vadd.f32 %v3417, %v3517
    %v3582 = vadd.f32 %v3418, %v3518
    %v3583 = vadd.f32 %v3519, %v729
    %v3584 = vadd.f32 %v3520, %v729
    %v3585 = vadd.f32 %v3521, %v729
    %v3586 = vadd.f32 %v3522, %v729
    %v3587 = vadd.f32 %v3523, %v734
    %v3588 = vadd.f32 %v3524, %v734
    %v3589 = vadd.f32 %v3525, %v734
    %v3590 = vadd.f32 %v3526, %v734
    %v3591 = vadd.f32 %v3527, %v739
    %v3592 = vadd.f32 %v3528, %v739
    %v3593 = vadd.f32 %v3529, %v739
    %v3594 = vadd.f32 %v3530, %v739
    %v3595 = vadd.f32 %v3531, %v744
    %v3596 = vadd.f32 %v3532, %v744
    %v3597 = vadd.f32 %v3533, %v744
    %v3598 = vadd.f32 %v3534, %v744
    %v3599 = vadd.f32 %v3535, %v749
    %v3600 = vadd.f32 %v3536, %v749
    %v3601 = vadd.f32 %v3537, %v749
    %v3602 = vadd.f32 %v3538, %v749
    %v3603 = vadd.f32 %v3539, %v754
    %v3604 = vadd.f32 %v3540, %v754
    %v3605 = vadd.f32 %v3541, %v754
    %v3606 = vadd.f32 %v3542, %v754
    %v3607 = vadd.f32 %v3543, %v759
    %v3608 = vadd.f32 %v3544, %v759
    %v3609 = vadd.f32 %v3545, %v759
    %v3610 = vadd.f32 %v3546, %v759
    %v3611 = vadd.f32 %v3547, %v764
    %v3612 = vadd.f32 %v3548, %v764
    %v3613 = vadd.f32 %v3549, %v764
    %v3614 = vadd.f32 %v3550, %v764
    %v3615 = vadd.f32 %v3551, %v769
    %v3616 = vadd.f32 %v3552, %v769
    %v3617 = vadd.f32 %v3553, %v769
    %v3618 = vadd.f32 %v3554, %v769
    %v3619 = vadd.f32 %v3555, %v774
    %v3620 = vadd.f32 %v3556, %v774
    %v3621 = vadd.f32 %v3557, %v774
    %v3622 = vadd.f32 %v3558, %v774
    %v3623 = vadd.f32 %v3559, %v779
    %v3624 = vadd.f32 %v3560, %v779
    %v3625 = vadd.f32 %v3561, %v779
    %v3626 = vadd.f32 %v3562, %v779
    %v3627 = vadd.f32 %v3563, %v784
    %v3628 = vadd.f32 %v3564, %v784
    %v3629 = vadd.f32 %v3565, %v784
    %v3630 = vadd.f32 %v3566, %v784
    %v3631 = vadd.f32 %v3567, %v789
    %v3632 = vadd.f32 %v3568, %v789
    %v3633 = vadd.f32 %v3569, %v789
    %v3634 = vadd.f32 %v3570, %v789
    %v3635 = vadd.f32 %v3571, %v794
    %v3636 = vadd.f32 %v3572, %v794
    %v3637 = vadd.f32 %v3573, %v794
    %v3638 = vadd.f32 %v3574, %v794
    %v3639 = vadd.f32 %v3575, %v799
    %v3640 = vadd.f32 %v3576, %v799
    %v3641 = vadd.f32 %v3577, %v799
    %v3642 = vadd.f32 %v3578, %v799
    %v3643 = vadd.f32 %v3579, %v804
    %v3644 = vadd.f32 %v3580, %v804
    %v3645 = vadd.f32 %v3581, %v804
    %v3646 = vadd.f32 %v3582, %v804
    %v3647 = vmax.f32 %v3583, 0.0
    %v3648 = vmax.f32 %v3584, 0.0
    %v3649 = vmax.f32 %v3585, 0.0
    %v3650 = vmax.f32 %v3586, 0.0
    %v3651 = vmax.f32 %v3587, 0.0
    %v3652 = vmax.f32 %v3588, 0.0
    %v3653 = vmax.f32 %v3589, 0.0
    %v3654 = vmax.f32 %v3590, 0.0
    %v3655 = vmax.f32 %v3591, 0.0
    %v3656 = vmax.f32 %v3592, 0.0
    %v3657 = vmax.f32 %v3593, 0.0
    %v3658 = vmax.f32 %v3594, 0.0
    %v3659 = vmax.f32 %v3595, 0.0
    %v3660 = vmax.f32 %v3596, 0.0
    %v3661 = vmax.f32 %v3597, 0.0
    %v3662 = vmax.f32 %v3598, 0.0
    %v3663 = vmax.f32 %v3599, 0.0
    %v3664 = vmax.f32 %v3600, 0.0
    %v3665 = vmax.f32 %v3601, 0.0
    %v3666 = vmax.f32 %v3602, 0.0
    %v3667 = vmax.f32 %v3603, 0.0
    %v3668 = vmax.f32 %v3604, 0.0
    %v3669 = vmax.f32 %v3605, 0.0
    %v3670 = vmax.f32 %v3606, 0.0
    %v3671 = vmax.f32 %v3607, 0.0
    %v3672 = vmax.f32 %v3608, 0.0
    %v3673 = vmax.f32 %v3609, 0.0
    %v3674 = vmax.f32 %v3610, 0.0
    %v3675 = vmax.f32 %v3611, 0.0
    %v3676 = vmax.f32 %v3612, 0.0
    %v3677 = vmax.f32 %v3613, 0.0
    %v3678 = vmax.f32 %v3614, 0.0
    %v3679 = vmax.f32 %v3615, 0.0
    %v3680 = vmax.f32 %v3616, 0.0
    %v3681 = vmax.f32 %v3617, 0.0
    %v3682 = vmax.f32 %v3618, 0.0
    %v3683 = vmax.f32 %v3619, 0.0
    %v3684 = vmax.f32 %v3620, 0.0
    %v3685 = vmax.f32 %v3621, 0.0
    %v3686 = vmax.f32 %v3622, 0.0
    %v3687 = vmax.f32 %v3623, 0.0
    %v3688 = vmax.f32 %v3624, 0.0
    %v3689 = vmax.f32 %v3625, 0.0
    %v3690 = vmax.f32 %v3626, 0.0
    %v3691 = vmax.f32 %v3627, 0.0
    %v3692 = vmax.f32 %v3628, 0.0
    %v3693 = vmax.f32 %v3629, 0.0
    %v3694 = vmax.f32 %v3630, 0.0
    %v3695 = vmax.f32 %v3631, 0.0
    %v3696 = vmax.f32 %v3632, 0.0
    %v3697 = vmax.f32 %v3633, 0.0
    %v3698 = vmax.f32 %v3634, 0.0
    %v3699 = vmax.f32 %v3635, 0.0
    %v3700 = vmax.f32 %v3636, 0.0
    %v3701 = vmax.f32 %v3637, 0.0
    %v3702 = vmax.f32 %v3638, 0.0
    %v3703 = vmax.f32 %v3639, 0.0
    %v3704 = vmax.f32 %v3640, 0.0
    %v3705 = vmax.f32 %v3641, 0.0
    %v3706 = vmax.f32 %v3642, 0.0
    %v3707 = vmax.f32 %v3643, 0.0
    %v3708 = vmax.f32 %v3644, 0.0
    %v3709 = vmax.f32 %v3645, 0.0
    %v3710 = vmax.f32 %v3646, 0.0
    %v3711 = vpack.c.bf16 %v3651, %v3647
    %v3712 = vpack.c.bf16 %v3652, %v3648
    %v3713 = vpack.c.bf16 %v3653, %v3649
    %v3714 = vpack.c.bf16 %v3654, %v3650
    %v3715 = vpack.c.bf16 %v3659, %v3655
    %v3716 = vpack.c.bf16 %v3660, %v3656
    %v3717 = vpack.c.bf16 %v3661, %v3657
    %v3718 = vpack.c.bf16 %v3662, %v3658
    %v3719 = vpack.c.bf16 %v3667, %v3663
    %v3720 = vpack.c.bf16 %v3668, %v3664
    %v3721 = vpack.c.bf16 %v3669, %v3665
    %v3722 = vpack.c.bf16 %v3670, %v3666
    %v3723 = vpack.c.bf16 %v3675, %v3671
    %v3724 = vpack.c.bf16 %v3676, %v3672
    %v3725 = vpack.c.bf16 %v3677, %v3673
    %v3726 = vpack.c.bf16 %v3678, %v3674
    %v3727 = vpack.c.bf16 %v3683, %v3679
    %v3728 = vpack.c.bf16 %v3684, %v3680
    %v3729 = vpack.c.bf16 %v3685, %v3681
    %v3730 = vpack.c.bf16 %v3686, %v3682
    %v3731 = vpack.c.bf16 %v3691, %v3687
    %v3732 = vpack.c.bf16 %v3692, %v3688
    %v3733 = vpack.c.bf16 %v3693, %v3689
    %v3734 = vpack.c.bf16 %v3694, %v3690
    %v3735 = vpack.c.bf16 %v3699, %v3695
    %v3736 = vpack.c.bf16 %v3700, %v3696
    %v3737 = vpack.c.bf16 %v3701, %v3697
    %v3738 = vpack.c.bf16 %v3702, %v3698
    %v3739 = vpack.c.bf16 %v3707, %v3703
    %v3740 = vpack.c.bf16 %v3708, %v3704
    %v3741 = vpack.c.bf16 %v3709, %v3705
    %v3742 = vpack.c.bf16 %v3710, %v3706
    %3743 = vmatprep.subr.bf16.mxu0 %v3712
    %3744 = vmatpush1.bf16.msra.mxu0 %v3711
    %3745 = vmatprep.subr.bf16.mxu0 %v3716
    %3746 = vmatpush1.bf16.msra.mxu0 %v3715
    %3747 = vmatprep.subr.bf16.mxu0 %v3720
    %3748 = vmatpush1.bf16.msra.mxu0 %v3719
    %3749 = vmatprep.subr.bf16.mxu0 %v3724
    %3750 = vmatpush1.bf16.msra.mxu0 %v3723
    %3751 = vmatprep.subr.bf16.mxu0 %v3728
    %3752 = vmatpush1.bf16.msra.mxu0 %v3727
    %3753 = vmatprep.subr.bf16.mxu0 %v3732
    %3754 = vmatpush1.bf16.msra.mxu0 %v3731
    %3755 = vmatprep.subr.bf16.mxu0 %v3736
    %3756 = vmatpush1.bf16.msra.mxu0 %v3735
    %3757 = vmatprep.subr.bf16.mxu0 %v3740
    %3758 = vmatpush1.bf16.msra.mxu0 %v3739
    %3759 = vmatprep.subr.bf16.mxu0 0
    %3760 = vmatpush1.bf16.msra.mxu0 0
    %3761 = vmatprep.subr.bf16.mxu0 0
    %3762 = vmatpush1.bf16.msra.mxu0 0
    %3763 = vmatprep.subr.bf16.mxu0 0
    %3764 = vmatpush1.bf16.msra.mxu0 0
    %3765 = vmatprep.subr.bf16.mxu0 0
    %3766 = vmatpush1.bf16.msra.mxu0 0
    %3767 = vmatprep.subr.bf16.mxu0 0
    %3768 = vmatpush1.bf16.msra.mxu0 0
    %3769 = vmatprep.subr.bf16.mxu0 0
    %3770 = vmatpush1.bf16.msra.mxu0 0
    %3771 = vmatprep.subr.bf16.mxu0 0
    %3772 = vmatpush1.bf16.msra.mxu0 0
    %3773 = vmatprep.subr.bf16.mxu0 0
    %3774 = vmatpush1.bf16.msra.mxu0 0
    %3775 = vmatprep.mubr.bf16.mxu0 0
    %3776 = vmatmul.mubr.bf16.gmra.mrb[0].mxu0 %v998
    %v3777 = vpop.f32.mrb[0].mxu0
    %v3778 = vadd.f32 0.0, %v3777
    %v3779 = vpop.f32.mrb[0].mxu0
    %v3780 = vadd.f32 0.0, %v3779
    %v3781 = vpop.f32.mrb[0].mxu0
    %v3782 = vadd.f32 0.0, %v3781
    %v3783 = vpop.f32.mrb[0].mxu0
    %v3784 = vadd.f32 0.0, %v3783
    %3785 = vmatprep.mubr.bf16.mxu0 0
    %3786 = vmatmul.mubr.bf16.gmra.mrb[0].mxu0 %v999
    %v3787 = vpop.f32.mrb[0].mxu0
    %v3788 = vadd.f32 0.0, %v3787
    %v3789 = vpop.f32.mrb[0].mxu0
    %v3790 = vadd.f32 0.0, %v3789
    %v3791 = vpop.f32.mrb[0].mxu0
    %v3792 = vadd.f32 0.0, %v3791
    %v3793 = vpop.f32.mrb[0].mxu0
    %v3794 = vadd.f32 0.0, %v3793
    %3795 = vmatprep.mubr.bf16.mxu0 0
    %3796 = vmatmul.mubr.bf16.gmra.mrb[0].mxu0 %v1000
    %v3797 = vpop.f32.mrb[0].mxu0
    %v3798 = vadd.f32 0.0, %v3797
    %v3799 = vpop.f32.mrb[0].mxu0
    %v3800 = vadd.f32 0.0, %v3799
    %v3801 = vpop.f32.mrb[0].mxu0
    %v3802 = vadd.f32 0.0, %v3801
    %v3803 = vpop.f32.mrb[0].mxu0
    %v3804 = vadd.f32 0.0, %v3803
    %3805 = vmatprep.mubr.bf16.mxu0 0
    %3806 = vmatmul.mubr.bf16.gmra.mrb[0].mxu0 %v1001
    %v3807 = vpop.f32.mrb[0].mxu0
    %v3808 = vadd.f32 0.0, %v3807
    %v3809 = vpop.f32.mrb[0].mxu0
    %v3810 = vadd.f32 0.0, %v3809
    %v3811 = vpop.f32.mrb[0].mxu0
    %v3812 = vadd.f32 0.0, %v3811
    %v3813 = vpop.f32.mrb[0].mxu0
    %v3814 = vadd.f32 0.0, %v3813
    %3815 = vmatprep.mubr.bf16.mxu0 0
    %3816 = vmatmul.mubr.bf16.gmra.mrb[0].mxu0 %v1002
    %v3817 = vpop.f32.mrb[0].mxu0
    %v3818 = vadd.f32 0.0, %v3817
    %v3819 = vpop.f32.mrb[0].mxu0
    %v3820 = vadd.f32 0.0, %v3819
    %v3821 = vpop.f32.mrb[0].mxu0
    %v3822 = vadd.f32 0.0, %v3821
    %v3823 = vpop.f32.mrb[0].mxu0
    %v3824 = vadd.f32 0.0, %v3823
    %3825 = vmatprep.mubr.bf16.mxu0 0
    %3826 = vmatmul.mubr.bf16.gmra.mrb[0].mxu0 %v1003
    %v3827 = vpop.f32.mrb[0].mxu0
    %v3828 = vadd.f32 0.0, %v3827
    %v3829 = vpop.f32.mrb[0].mxu0
    %v3830 = vadd.f32 0.0, %v3829
    %v3831 = vpop.f32.mrb[0].mxu0
    %v3832 = vadd.f32 0.0, %v3831
    %v3833 = vpop.f32.mrb[0].mxu0
    %v3834 = vadd.f32 0.0, %v3833
    %3835 = vmatprep.mubr.bf16.mxu0 0
    %3836 = vmatmul.mubr.bf16.gmra.mrb[0].mxu0 %v1004
    %v3837 = vpop.f32.mrb[0].mxu0
    %v3838 = vadd.f32 0.0, %v3837
    %v3839 = vpop.f32.mrb[0].mxu0
    %v3840 = vadd.f32 0.0, %v3839
    %v3841 = vpop.f32.mrb[0].mxu0
    %v3842 = vadd.f32 0.0, %v3841
    %v3843 = vpop.f32.mrb[0].mxu0
    %v3844 = vadd.f32 0.0, %v3843
    %3845 = vmatprep.mubr.bf16.mxu0 0
    %3846 = vmatmul.mubr.bf16.gmra.mrb[0].mxu0 %v1005
    %v3847 = vpop.f32.mrb[0].mxu0
    %v3848 = vadd.f32 0.0, %v3847
    %v3849 = vpop.f32.mrb[0].mxu0
    %v3850 = vadd.f32 0.0, %v3849
    %v3851 = vpop.f32.mrb[0].mxu0
    %v3852 = vadd.f32 0.0, %v3851
    %v3853 = vpop.f32.mrb[0].mxu0
    %v3854 = vadd.f32 0.0, %v3853
    %3855 = vdwg.mxu0
    %3856 = vmatprep.subr.bf16.mxu0 %v3714
    %3857 = vmatpush1.bf16.msra.mxu0 %v3713
    %3858 = vmatprep.subr.bf16.mxu0 %v3718
    %3859 = vmatpush1.bf16.msra.mxu0 %v3717
    %3860 = vmatprep.subr.bf16.mxu0 %v3722
    %3861 = vmatpush1.bf16.msra.mxu0 %v3721
    %3862 = vmatprep.subr.bf16.mxu0 %v3726
    %3863 = vmatpush1.bf16.msra.mxu0 %v3725
    %3864 = vmatprep.subr.bf16.mxu0 %v3730
    %3865 = vmatpush1.bf16.msra.mxu0 %v3729
    %3866 = vmatprep.subr.bf16.mxu0 %v3734
    %3867 = vmatpush1.bf16.msra.mxu0 %v3733
    %3868 = vmatprep.subr.bf16.mxu0 %v3738
    %3869 = vmatpush1.bf16.msra.mxu0 %v3737
    %3870 = vmatprep.subr.bf16.mxu0 %v3742
    %3871 = vmatpush1.bf16.msra.mxu0 %v3741
    %3872 = vmatprep.subr.bf16.mxu0 0
    %3873 = vmatpush1.bf16.msra.mxu0 0
    %3874 = vmatprep.subr.bf16.mxu0 0
    %3875 = vmatpush1.bf16.msra.mxu0 0
    %3876 = vmatprep.subr.bf16.mxu0 0
    %3877 = vmatpush1.bf16.msra.mxu0 0
    %3878 = vmatprep.subr.bf16.mxu0 0
    %3879 = vmatpush1.bf16.msra.mxu0 0
    %3880 = vmatprep.subr.bf16.mxu0 0
    %3881 = vmatpush1.bf16.msra.mxu0 0
    %3882 = vmatprep.subr.bf16.mxu0 0
    %3883 = vmatpush1.bf16.msra.mxu0 0
    %3884 = vmatprep.subr.bf16.mxu0 0
    %3885 = vmatpush1.bf16.msra.mxu0 0
    %3886 = vmatprep.subr.bf16.mxu0 0
    %3887 = vmatpush1.bf16.msra.mxu0 0
    %3888 = vmatprep.mubr.bf16.mxu0 0
    %3889 = vmatmul.mubr.bf16.gmra.mrb[0].mxu0 %v998
    %v3890 = vpop.f32.mrb[0].mxu0
    %v3891 = vadd.f32 0.0, %v3890
    %v3892 = vpop.f32.mrb[0].mxu0
    %v3893 = vadd.f32 0.0, %v3892
    %v3894 = vpop.f32.mrb[0].mxu0
    %v3895 = vadd.f32 0.0, %v3894
    %v3896 = vpop.f32.mrb[0].mxu0
    %v3897 = vadd.f32 0.0, %v3896
    %3898 = vmatprep.mubr.bf16.mxu0 0
    %3899 = vmatmul.mubr.bf16.gmra.mrb[0].mxu0 %v999
    %v3900 = vpop.f32.mrb[0].mxu0
    %v3901 = vadd.f32 0.0, %v3900
    %v3902 = vpop.f32.mrb[0].mxu0
    %v3903 = vadd.f32 0.0, %v3902
    %v3904 = vpop.f32.mrb[0].mxu0
    %v3905 = vadd.f32 0.0, %v3904
    %v3906 = vpop.f32.mrb[0].mxu0
    %v3907 = vadd.f32 0.0, %v3906
    %3908 = vmatprep.mubr.bf16.mxu0 0
    %3909 = vmatmul.mubr.bf16.gmra.mrb[0].mxu0 %v1000
    %v3910 = vpop.f32.mrb[0].mxu0
    %v3911 = vadd.f32 0.0, %v3910
    %v3912 = vpop.f32.mrb[0].mxu0
    %v3913 = vadd.f32 0.0, %v3912
    %v3914 = vpop.f32.mrb[0].mxu0
    %v3915 = vadd.f32 0.0, %v3914
    %v3916 = vpop.f32.mrb[0].mxu0
    %v3917 = vadd.f32 0.0, %v3916
    %3918 = vmatprep.mubr.bf16.mxu0 0
    %3919 = vmatmul.mubr.bf16.gmra.mrb[0].mxu0 %v1001
    %v3920 = vpop.f32.mrb[0].mxu0
    %v3921 = vadd.f32 0.0, %v3920
    %v3922 = vpop.f32.mrb[0].mxu0
    %v3923 = vadd.f32 0.0, %v3922
    %v3924 = vpop.f32.mrb[0].mxu0
    %v3925 = vadd.f32 0.0, %v3924
    %v3926 = vpop.f32.mrb[0].mxu0
    %v3927 = vadd.f32 0.0, %v3926
    %3928 = vmatprep.mubr.bf16.mxu0 0
    %3929 = vmatmul.mubr.bf16.gmra.mrb[0].mxu0 %v1002
    %v3930 = vpop.f32.mrb[0].mxu0
    %v3931 = vadd.f32 0.0, %v3930
    %v3932 = vpop.f32.mrb[0].mxu0
    %v3933 = vadd.f32 0.0, %v3932
    %v3934 = vpop.f32.mrb[0].mxu0
    %v3935 = vadd.f32 0.0, %v3934
    %v3936 = vpop.f32.mrb[0].mxu0
    %v3937 = vadd.f32 0.0, %v3936
    %3938 = vmatprep.mubr.bf16.mxu0 0
    %3939 = vmatmul.mubr.bf16.gmra.mrb[0].mxu0 %v1003
    %v3940 = vpop.f32.mrb[0].mxu0
    %v3941 = vadd.f32 0.0, %v3940
    %v3942 = vpop.f32.mrb[0].mxu0
    %v3943 = vadd.f32 0.0, %v3942
    %v3944 = vpop.f32.mrb[0].mxu0
    %v3945 = vadd.f32 0.0, %v3944
    %v3946 = vpop.f32.mrb[0].mxu0
    %v3947 = vadd.f32 0.0, %v3946
    %3948 = vmatprep.mubr.bf16.mxu0 0
    %3949 = vmatmul.mubr.bf16.gmra.mrb[0].mxu0 %v1004
    %v3950 = vpop.f32.mrb[0].mxu0
    %v3951 = vadd.f32 0.0, %v3950
    %v3952 = vpop.f32.mrb[0].mxu0
    %v3953 = vadd.f32 0.0, %v3952
    %v3954 = vpop.f32.mrb[0].mxu0
    %v3955 = vadd.f32 0.0, %v3954
    %v3956 = vpop.f32.mrb[0].mxu0
    %v3957 = vadd.f32 0.0, %v3956
    %3958 = vmatprep.mubr.bf16.mxu0 0
    %3959 = vmatmul.mubr.bf16.gmra.mrb[0].mxu0 %v1005
    %v3960 = vpop.f32.mrb[0].mxu0
    %v3961 = vadd.f32 0.0, %v3960
    %v3962 = vpop.f32.mrb[0].mxu0
    %v3963 = vadd.f32 0.0, %v3962
    %v3964 = vpop.f32.mrb[0].mxu0
    %v3965 = vadd.f32 0.0, %v3964
    %v3966 = vpop.f32.mrb[0].mxu0
    %v3967 = vadd.f32 0.0, %v3966
    %3968 = vdwg.mxu0
    %v3969 = vmax.f32 %v3778, %v3780
    %v3970 = vmax.f32 %v3969, %v3891
    %v3971 = vmax.f32 %v3970, %v3893
    %3972 = vmax.xlane.f32.xlu0 %v3971
    %v3973 = vpop.xlane.xlu0 %3972
    %v3974 = vmax.f32 %v3782, %v3784
    %v3975 = vmax.f32 %v3974, %v3895
    %v3976 = vmax.f32 %v3975, %v3897
    %3977 = vmax.xlane.f32.xlu0 %v3976
    %v3978 = vpop.xlane.xlu0 %3977
    %v3979 = vmax.f32 %v3788, %v3790
    %v3980 = vmax.f32 %v3979, %v3901
    %v3981 = vmax.f32 %v3980, %v3903
    %3982 = vmax.xlane.f32.xlu0 %v3981
    %v3983 = vpop.xlane.xlu0 %3982
    %v3984 = vmax.f32 %v3792, %v3794
    %v3985 = vmax.f32 %v3984, %v3905
    %v3986 = vmax.f32 %v3985, %v3907
    %3987 = vmax.xlane.f32.xlu0 %v3986
    %v3988 = vpop.xlane.xlu0 %3987
    %v3989 = vmax.f32 %v3798, %v3800
    %v3990 = vmax.f32 %v3989, %v3911
    %v3991 = vmax.f32 %v3990, %v3913
    %3992 = vmax.xlane.f32.xlu0 %v3991
    %v3993 = vpop.xlane.xlu0 %3992
    %v3994 = vmax.f32 %v3802, %v3804
    %v3995 = vmax.f32 %v3994, %v3915
    %v3996 = vmax.f32 %v3995, %v3917
    %3997 = vmax.xlane.f32.xlu0 %v3996
    %v3998 = vpop.xlane.xlu0 %3997
    %v3999 = vmax.f32 %v3808, %v3810
    %v4000 = vmax.f32 %v3999, %v3921
    %v4001 = vmax.f32 %v4000, %v3923
    %4002 = vmax.xlane.f32.xlu0 %v4001
    %v4003 = vpop.xlane.xlu0 %4002
    %v4004 = vmax.f32 %v3812, %v3814
    %v4005 = vmax.f32 %v4004, %v3925
    %v4006 = vmax.f32 %v4005, %v3927
    %4007 = vmax.xlane.f32.xlu0 %v4006
    %v4008 = vpop.xlane.xlu0 %4007
    %v4009 = vmax.f32 %v3818, %v3820
    %v4010 = vmax.f32 %v4009, %v3931
    %v4011 = vmax.f32 %v4010, %v3933
    %4012 = vmax.xlane.f32.xlu0 %v4011
    %v4013 = vpop.xlane.xlu0 %4012
    %v4014 = vmax.f32 %v3822, %v3824
    %v4015 = vmax.f32 %v4014, %v3935
    %v4016 = vmax.f32 %v4015, %v3937
    %4017 = vmax.xlane.f32.xlu0 %v4016
    %v4018 = vpop.xlane.xlu0 %4017
    %v4019 = vmax.f32 %v3828, %v3830
    %v4020 = vmax.f32 %v4019, %v3941
    %v4021 = vmax.f32 %v4020, %v3943
    %4022 = vmax.xlane.f32.xlu0 %v4021
    %v4023 = vpop.xlane.xlu0 %4022
    %v4024 = vmax.f32 %v3832, %v3834
    %v4025 = vmax.f32 %v4024, %v3945
    %v4026 = vmax.f32 %v4025, %v3947
    %4027 = vmax.xlane.f32.xlu0 %v4026
    %v4028 = vpop.xlane.xlu0 %4027
    %v4029 = vmax.f32 %v3838, %v3840
    %v4030 = vmax.f32 %v4029, %v3951
    %v4031 = vmax.f32 %v4030, %v3953
    %4032 = vmax.xlane.f32.xlu0 %v4031
    %v4033 = vpop.xlane.xlu0 %4032
    %v4034 = vmax.f32 %v3842, %v3844
    %v4035 = vmax.f32 %v4034, %v3955
    %v4036 = vmax.f32 %v4035, %v3957
    %4037 = vmax.xlane.f32.xlu0 %v4036
    %v4038 = vpop.xlane.xlu0 %4037
    %v4039 = vmax.f32 %v3848, %v3850
    %v4040 = vmax.f32 %v4039, %v3961
    %v4041 = vmax.f32 %v4040, %v3963
    %4042 = vmax.xlane.f32.xlu0 %v4041
    %v4043 = vpop.xlane.xlu0 %4042
    %v4044 = vmax.f32 %v3852, %v3854
    %v4045 = vmax.f32 %v4044, %v3965
    %v4046 = vmax.f32 %v4045, %v3967
    %4047 = vmax.xlane.f32.xlu0 %v4046
    %v4048 = vpop.xlane.xlu0 %4047
    %v4049 = vmax.f32 %v3134, %v3973
    %v4050 = vmax.f32 %v3135, %v3978
    %v4051 = vmax.f32 %v3136, %v3983
    %v4052 = vmax.f32 %v3137, %v3988
    %v4053 = vmax.f32 %v3138, %v3993
    %v4054 = vmax.f32 %v3139, %v3998
    %v4055 = vmax.f32 %v3140, %v4003
    %v4056 = vmax.f32 %v3141, %v4008
    %v4057 = vmax.f32 %v3142, %v4013
    %v4058 = vmax.f32 %v3143, %v4018
    %v4059 = vmax.f32 %v3144, %v4023
    %v4060 = vmax.f32 %v3145, %v4028
    %v4061 = vmax.f32 %v3146, %v4033
    %v4062 = vmax.f32 %v3147, %v4038
    %v4063 = vmax.f32 %v3148, %v4043
    %v4064 = vmax.f32 %v3149, %v4048
    %v4065 = vadd.f32 %v4049, %v70
    %v4066 = vadd.f32 %v4050, %v71
    %v4067 = vadd.f32 %v4051, %v72
    %v4068 = vadd.f32 %v4052, %v73
    %v4069 = vadd.f32 %v4053, %v74
    %v4070 = vadd.f32 %v4054, %v75
    %v4071 = vadd.f32 %v4055, %v76
    %v4072 = vadd.f32 %v4056, %v77
    %v4073 = vadd.f32 %v4057, %v78
    %v4074 = vadd.f32 %v4058, %v79
    %v4075 = vadd.f32 %v4059, %v80
    %v4076 = vadd.f32 %v4060, %v81
    %v4077 = vadd.f32 %v4061, %v82
    %v4078 = vadd.f32 %v4062, %v83
    %v4079 = vadd.f32 %v4063, %v84
    %v4080 = vadd.f32 %v4064, %v85
    %s4081 = sadd.s32 0, 16
    %s4082 = smul.addr %s4081, 4
    %s4083 = scalar_lea.vmem %s0, %s4082
    %v4084 = vld [vmem:[%s4083] sm:$0x77]
    %v4085 = vld [vmem:[%s4083 + $0x8] sm:$0x77]
    %v4088 = vlaneseq
    %v4089 = vshrl.u32 %v4088, 7
    %v4090 = vsub.s32 0, %v4089
    %v4091 = vrot.slane %v4084, %v4090
    %v4092 = vlaneseq
    %v4093 = vshrl.u32 %v4092, 7
    %v4094 = vsub.s32 4, %v4093
    %v4095 = vrot.slane %v4084, %v4094
    %v4096 = vlaneseq
    %v4097 = vshrl.u32 %v4096, 7
    %v4098 = vsub.s32 0, %v4097
    %v4099 = vrot.slane %v4085, %v4098
    %v4100 = vlaneseq
    %v4101 = vshrl.u32 %v4100, 7
    %v4102 = vsub.s32 4, %v4101
    %v4103 = vrot.slane %v4085, %v4102
    %v4108 = vlaneseq
    %v4109 = vshrl.u32 %v4108, 7
    %v4110 = vsub.s32 0, %v4109
    %v4111 = vrot.slane %v4091, %v4110
    %v4112 = vlaneseq
    %v4113 = vshrl.u32 %v4112, 7
    %v4114 = vsub.s32 0, %v4113
    %v4115 = vrot.slane %v4095, %v4114
    %v4116 = vlaneseq
    %v4117 = vshrl.u32 %v4116, 7
    %v4118 = vsub.s32 0, %v4117
    %v4119 = vrot.slane %v4099, %v4118
    %v4120 = vlaneseq
    %v4121 = vshrl.u32 %v4120, 7
    %v4122 = vsub.s32 0, %v4121
    %v4123 = vrot.slane %v4103, %v4122
    %v4124 = vmul.f32 %v91, %v4111
    %v4125 = vmul.f32 %v91, %v4115
    %v4126 = vmul.f32 %v91, %v4119
    %v4127 = vmul.f32 %v91, %v4123
    %v4128 = vmul.f32 %v96, %v4111
    %v4129 = vmul.f32 %v96, %v4115
    %v4130 = vmul.f32 %v96, %v4119
    %v4131 = vmul.f32 %v96, %v4123
    %v4132 = vmul.f32 %v101, %v4111
    %v4133 = vmul.f32 %v101, %v4115
    %v4134 = vmul.f32 %v101, %v4119
    %v4135 = vmul.f32 %v101, %v4123
    %v4136 = vmul.f32 %v106, %v4111
    %v4137 = vmul.f32 %v106, %v4115
    %v4138 = vmul.f32 %v106, %v4119
    %v4139 = vmul.f32 %v106, %v4123
    %v4140 = vmul.f32 %v111, %v4111
    %v4141 = vmul.f32 %v111, %v4115
    %v4142 = vmul.f32 %v111, %v4119
    %v4143 = vmul.f32 %v111, %v4123
    %v4144 = vmul.f32 %v116, %v4111
    %v4145 = vmul.f32 %v116, %v4115
    %v4146 = vmul.f32 %v116, %v4119
    %v4147 = vmul.f32 %v116, %v4123
    %v4148 = vmul.f32 %v121, %v4111
    %v4149 = vmul.f32 %v121, %v4115
    %v4150 = vmul.f32 %v121, %v4119
    %v4151 = vmul.f32 %v121, %v4123
    %v4152 = vmul.f32 %v126, %v4111
    %v4153 = vmul.f32 %v126, %v4115
    %v4154 = vmul.f32 %v126, %v4119
    %v4155 = vmul.f32 %v126, %v4123
    %v4156 = vmul.f32 %v131, %v4111
    %v4157 = vmul.f32 %v131, %v4115
    %v4158 = vmul.f32 %v131, %v4119
    %v4159 = vmul.f32 %v131, %v4123
    %v4160 = vmul.f32 %v136, %v4111
    %v4161 = vmul.f32 %v136, %v4115
    %v4162 = vmul.f32 %v136, %v4119
    %v4163 = vmul.f32 %v136, %v4123
    %v4164 = vmul.f32 %v141, %v4111
    %v4165 = vmul.f32 %v141, %v4115
    %v4166 = vmul.f32 %v141, %v4119
    %v4167 = vmul.f32 %v141, %v4123
    %v4168 = vmul.f32 %v146, %v4111
    %v4169 = vmul.f32 %v146, %v4115
    %v4170 = vmul.f32 %v146, %v4119
    %v4171 = vmul.f32 %v146, %v4123
    %v4172 = vmul.f32 %v151, %v4111
    %v4173 = vmul.f32 %v151, %v4115
    %v4174 = vmul.f32 %v151, %v4119
    %v4175 = vmul.f32 %v151, %v4123
    %v4176 = vmul.f32 %v156, %v4111
    %v4177 = vmul.f32 %v156, %v4115
    %v4178 = vmul.f32 %v156, %v4119
    %v4179 = vmul.f32 %v156, %v4123
    %v4180 = vmul.f32 %v161, %v4111
    %v4181 = vmul.f32 %v161, %v4115
    %v4182 = vmul.f32 %v161, %v4119
    %v4183 = vmul.f32 %v161, %v4123
    %v4184 = vmul.f32 %v166, %v4111
    %v4185 = vmul.f32 %v166, %v4115
    %v4186 = vmul.f32 %v166, %v4119
    %v4187 = vmul.f32 %v166, %v4123
    %v4188 = vlaneseq
    %v4189 = vshrl.u32 %v4188, 7
    %v4190 = vsub.s32 1, %v4189
    %v4191 = vrot.slane %v4084, %v4190
    %v4192 = vlaneseq
    %v4193 = vshrl.u32 %v4192, 7
    %v4194 = vsub.s32 5, %v4193
    %v4195 = vrot.slane %v4084, %v4194
    %v4196 = vlaneseq
    %v4197 = vshrl.u32 %v4196, 7
    %v4198 = vsub.s32 1, %v4197
    %v4199 = vrot.slane %v4085, %v4198
    %v4200 = vlaneseq
    %v4201 = vshrl.u32 %v4200, 7
    %v4202 = vsub.s32 5, %v4201
    %v4203 = vrot.slane %v4085, %v4202
    %v4208 = vlaneseq
    %v4209 = vshrl.u32 %v4208, 7
    %v4210 = vsub.s32 1, %v4209
    %v4211 = vrot.slane %v4191, %v4210
    %v4212 = vlaneseq
    %v4213 = vshrl.u32 %v4212, 7
    %v4214 = vsub.s32 1, %v4213
    %v4215 = vrot.slane %v4195, %v4214
    %v4216 = vlaneseq
    %v4217 = vshrl.u32 %v4216, 7
    %v4218 = vsub.s32 1, %v4217
    %v4219 = vrot.slane %v4199, %v4218
    %v4220 = vlaneseq
    %v4221 = vshrl.u32 %v4220, 7
    %v4222 = vsub.s32 1, %v4221
    %v4223 = vrot.slane %v4203, %v4222
    %v4224 = vmul.f32 %v272, %v4211
    %v4225 = vmul.f32 %v272, %v4215
    %v4226 = vmul.f32 %v272, %v4219
    %v4227 = vmul.f32 %v272, %v4223
    %v4228 = vmul.f32 %v276, %v4211
    %v4229 = vmul.f32 %v276, %v4215
    %v4230 = vmul.f32 %v276, %v4219
    %v4231 = vmul.f32 %v276, %v4223
    %v4232 = vmul.f32 %v280, %v4211
    %v4233 = vmul.f32 %v280, %v4215
    %v4234 = vmul.f32 %v280, %v4219
    %v4235 = vmul.f32 %v280, %v4223
    %v4236 = vmul.f32 %v284, %v4211
    %v4237 = vmul.f32 %v284, %v4215
    %v4238 = vmul.f32 %v284, %v4219
    %v4239 = vmul.f32 %v284, %v4223
    %v4240 = vmul.f32 %v288, %v4211
    %v4241 = vmul.f32 %v288, %v4215
    %v4242 = vmul.f32 %v288, %v4219
    %v4243 = vmul.f32 %v288, %v4223
    %v4244 = vmul.f32 %v292, %v4211
    %v4245 = vmul.f32 %v292, %v4215
    %v4246 = vmul.f32 %v292, %v4219
    %v4247 = vmul.f32 %v292, %v4223
    %v4248 = vmul.f32 %v296, %v4211
    %v4249 = vmul.f32 %v296, %v4215
    %v4250 = vmul.f32 %v296, %v4219
    %v4251 = vmul.f32 %v296, %v4223
    %v4252 = vmul.f32 %v300, %v4211
    %v4253 = vmul.f32 %v300, %v4215
    %v4254 = vmul.f32 %v300, %v4219
    %v4255 = vmul.f32 %v300, %v4223
    %v4256 = vmul.f32 %v304, %v4211
    %v4257 = vmul.f32 %v304, %v4215
    %v4258 = vmul.f32 %v304, %v4219
    %v4259 = vmul.f32 %v304, %v4223
    %v4260 = vmul.f32 %v308, %v4211
    %v4261 = vmul.f32 %v308, %v4215
    %v4262 = vmul.f32 %v308, %v4219
    %v4263 = vmul.f32 %v308, %v4223
    %v4264 = vmul.f32 %v312, %v4211
    %v4265 = vmul.f32 %v312, %v4215
    %v4266 = vmul.f32 %v312, %v4219
    %v4267 = vmul.f32 %v312, %v4223
    %v4268 = vmul.f32 %v316, %v4211
    %v4269 = vmul.f32 %v316, %v4215
    %v4270 = vmul.f32 %v316, %v4219
    %v4271 = vmul.f32 %v316, %v4223
    %v4272 = vmul.f32 %v320, %v4211
    %v4273 = vmul.f32 %v320, %v4215
    %v4274 = vmul.f32 %v320, %v4219
    %v4275 = vmul.f32 %v320, %v4223
    %v4276 = vmul.f32 %v324, %v4211
    %v4277 = vmul.f32 %v324, %v4215
    %v4278 = vmul.f32 %v324, %v4219
    %v4279 = vmul.f32 %v324, %v4223
    %v4280 = vmul.f32 %v328, %v4211
    %v4281 = vmul.f32 %v328, %v4215
    %v4282 = vmul.f32 %v328, %v4219
    %v4283 = vmul.f32 %v328, %v4223
    %v4284 = vmul.f32 %v332, %v4211
    %v4285 = vmul.f32 %v332, %v4215
    %v4286 = vmul.f32 %v332, %v4219
    %v4287 = vmul.f32 %v332, %v4223
    %v4288 = vadd.f32 %v4124, %v4224
    %v4289 = vadd.f32 %v4125, %v4225
    %v4290 = vadd.f32 %v4126, %v4226
    %v4291 = vadd.f32 %v4127, %v4227
    %v4292 = vadd.f32 %v4128, %v4228
    %v4293 = vadd.f32 %v4129, %v4229
    %v4294 = vadd.f32 %v4130, %v4230
    %v4295 = vadd.f32 %v4131, %v4231
    %v4296 = vadd.f32 %v4132, %v4232
    %v4297 = vadd.f32 %v4133, %v4233
    %v4298 = vadd.f32 %v4134, %v4234
    %v4299 = vadd.f32 %v4135, %v4235
    %v4300 = vadd.f32 %v4136, %v4236
    %v4301 = vadd.f32 %v4137, %v4237
    %v4302 = vadd.f32 %v4138, %v4238
    %v4303 = vadd.f32 %v4139, %v4239
    %v4304 = vadd.f32 %v4140, %v4240
    %v4305 = vadd.f32 %v4141, %v4241
    %v4306 = vadd.f32 %v4142, %v4242
    %v4307 = vadd.f32 %v4143, %v4243
    %v4308 = vadd.f32 %v4144, %v4244
    %v4309 = vadd.f32 %v4145, %v4245
    %v4310 = vadd.f32 %v4146, %v4246
    %v4311 = vadd.f32 %v4147, %v4247
    %v4312 = vadd.f32 %v4148, %v4248
    %v4313 = vadd.f32 %v4149, %v4249
    %v4314 = vadd.f32 %v4150, %v4250
    %v4315 = vadd.f32 %v4151, %v4251
    %v4316 = vadd.f32 %v4152, %v4252
    %v4317 = vadd.f32 %v4153, %v4253
    %v4318 = vadd.f32 %v4154, %v4254
    %v4319 = vadd.f32 %v4155, %v4255
    %v4320 = vadd.f32 %v4156, %v4256
    %v4321 = vadd.f32 %v4157, %v4257
    %v4322 = vadd.f32 %v4158, %v4258
    %v4323 = vadd.f32 %v4159, %v4259
    %v4324 = vadd.f32 %v4160, %v4260
    %v4325 = vadd.f32 %v4161, %v4261
    %v4326 = vadd.f32 %v4162, %v4262
    %v4327 = vadd.f32 %v4163, %v4263
    %v4328 = vadd.f32 %v4164, %v4264
    %v4329 = vadd.f32 %v4165, %v4265
    %v4330 = vadd.f32 %v4166, %v4266
    %v4331 = vadd.f32 %v4167, %v4267
    %v4332 = vadd.f32 %v4168, %v4268
    %v4333 = vadd.f32 %v4169, %v4269
    %v4334 = vadd.f32 %v4170, %v4270
    %v4335 = vadd.f32 %v4171, %v4271
    %v4336 = vadd.f32 %v4172, %v4272
    %v4337 = vadd.f32 %v4173, %v4273
    %v4338 = vadd.f32 %v4174, %v4274
    %v4339 = vadd.f32 %v4175, %v4275
    %v4340 = vadd.f32 %v4176, %v4276
    %v4341 = vadd.f32 %v4177, %v4277
    %v4342 = vadd.f32 %v4178, %v4278
    %v4343 = vadd.f32 %v4179, %v4279
    %v4344 = vadd.f32 %v4180, %v4280
    %v4345 = vadd.f32 %v4181, %v4281
    %v4346 = vadd.f32 %v4182, %v4282
    %v4347 = vadd.f32 %v4183, %v4283
    %v4348 = vadd.f32 %v4184, %v4284
    %v4349 = vadd.f32 %v4185, %v4285
    %v4350 = vadd.f32 %v4186, %v4286
    %v4351 = vadd.f32 %v4187, %v4287
    %v4352 = vlaneseq
    %v4353 = vshrl.u32 %v4352, 7
    %v4354 = vsub.s32 2, %v4353
    %v4355 = vrot.slane %v4084, %v4354
    %v4356 = vlaneseq
    %v4357 = vshrl.u32 %v4356, 7
    %v4358 = vsub.s32 6, %v4357
    %v4359 = vrot.slane %v4084, %v4358
    %v4360 = vlaneseq
    %v4361 = vshrl.u32 %v4360, 7
    %v4362 = vsub.s32 2, %v4361
    %v4363 = vrot.slane %v4085, %v4362
    %v4364 = vlaneseq
    %v4365 = vshrl.u32 %v4364, 7
    %v4366 = vsub.s32 6, %v4365
    %v4367 = vrot.slane %v4085, %v4366
    %v4372 = vlaneseq
    %v4373 = vshrl.u32 %v4372, 7
    %v4374 = vsub.s32 2, %v4373
    %v4375 = vrot.slane %v4355, %v4374
    %v4376 = vlaneseq
    %v4377 = vshrl.u32 %v4376, 7
    %v4378 = vsub.s32 2, %v4377
    %v4379 = vrot.slane %v4359, %v4378
    %v4380 = vlaneseq
    %v4381 = vshrl.u32 %v4380, 7
    %v4382 = vsub.s32 2, %v4381
    %v4383 = vrot.slane %v4363, %v4382
    %v4384 = vlaneseq
    %v4385 = vshrl.u32 %v4384, 7
    %v4386 = vsub.s32 2, %v4385
    %v4387 = vrot.slane %v4367, %v4386
    %v4388 = vmul.f32 %v500, %v4375
    %v4389 = vmul.f32 %v500, %v4379
    %v4390 = vmul.f32 %v500, %v4383
    %v4391 = vmul.f32 %v500, %v4387
    %v4392 = vmul.f32 %v504, %v4375
    %v4393 = vmul.f32 %v504, %v4379
    %v4394 = vmul.f32 %v504, %v4383
    %v4395 = vmul.f32 %v504, %v4387
    %v4396 = vmul.f32 %v508, %v4375
    %v4397 = vmul.f32 %v508, %v4379
    %v4398 = vmul.f32 %v508, %v4383
    %v4399 = vmul.f32 %v508, %v4387
    %v4400 = vmul.f32 %v512, %v4375
    %v4401 = vmul.f32 %v512, %v4379
    %v4402 = vmul.f32 %v512, %v4383
    %v4403 = vmul.f32 %v512, %v4387
    %v4404 = vmul.f32 %v516, %v4375
    %v4405 = vmul.f32 %v516, %v4379
    %v4406 = vmul.f32 %v516, %v4383
    %v4407 = vmul.f32 %v516, %v4387
    %v4408 = vmul.f32 %v520, %v4375
    %v4409 = vmul.f32 %v520, %v4379
    %v4410 = vmul.f32 %v520, %v4383
    %v4411 = vmul.f32 %v520, %v4387
    %v4412 = vmul.f32 %v524, %v4375
    %v4413 = vmul.f32 %v524, %v4379
    %v4414 = vmul.f32 %v524, %v4383
    %v4415 = vmul.f32 %v524, %v4387
    %v4416 = vmul.f32 %v528, %v4375
    %v4417 = vmul.f32 %v528, %v4379
    %v4418 = vmul.f32 %v528, %v4383
    %v4419 = vmul.f32 %v528, %v4387
    %v4420 = vmul.f32 %v532, %v4375
    %v4421 = vmul.f32 %v532, %v4379
    %v4422 = vmul.f32 %v532, %v4383
    %v4423 = vmul.f32 %v532, %v4387
    %v4424 = vmul.f32 %v536, %v4375
    %v4425 = vmul.f32 %v536, %v4379
    %v4426 = vmul.f32 %v536, %v4383
    %v4427 = vmul.f32 %v536, %v4387
    %v4428 = vmul.f32 %v540, %v4375
    %v4429 = vmul.f32 %v540, %v4379
    %v4430 = vmul.f32 %v540, %v4383
    %v4431 = vmul.f32 %v540, %v4387
    %v4432 = vmul.f32 %v544, %v4375
    %v4433 = vmul.f32 %v544, %v4379
    %v4434 = vmul.f32 %v544, %v4383
    %v4435 = vmul.f32 %v544, %v4387
    %v4436 = vmul.f32 %v548, %v4375
    %v4437 = vmul.f32 %v548, %v4379
    %v4438 = vmul.f32 %v548, %v4383
    %v4439 = vmul.f32 %v548, %v4387
    %v4440 = vmul.f32 %v552, %v4375
    %v4441 = vmul.f32 %v552, %v4379
    %v4442 = vmul.f32 %v552, %v4383
    %v4443 = vmul.f32 %v552, %v4387
    %v4444 = vmul.f32 %v556, %v4375
    %v4445 = vmul.f32 %v556, %v4379
    %v4446 = vmul.f32 %v556, %v4383
    %v4447 = vmul.f32 %v556, %v4387
    %v4448 = vmul.f32 %v560, %v4375
    %v4449 = vmul.f32 %v560, %v4379
    %v4450 = vmul.f32 %v560, %v4383
    %v4451 = vmul.f32 %v560, %v4387
    %v4452 = vadd.f32 %v4288, %v4388
    %v4453 = vadd.f32 %v4289, %v4389
    %v4454 = vadd.f32 %v4290, %v4390
    %v4455 = vadd.f32 %v4291, %v4391
    %v4456 = vadd.f32 %v4292, %v4392
    %v4457 = vadd.f32 %v4293, %v4393
    %v4458 = vadd.f32 %v4294, %v4394
    %v4459 = vadd.f32 %v4295, %v4395
    %v4460 = vadd.f32 %v4296, %v4396
    %v4461 = vadd.f32 %v4297, %v4397
    %v4462 = vadd.f32 %v4298, %v4398
    %v4463 = vadd.f32 %v4299, %v4399
    %v4464 = vadd.f32 %v4300, %v4400
    %v4465 = vadd.f32 %v4301, %v4401
    %v4466 = vadd.f32 %v4302, %v4402
    %v4467 = vadd.f32 %v4303, %v4403
    %v4468 = vadd.f32 %v4304, %v4404
    %v4469 = vadd.f32 %v4305, %v4405
    %v4470 = vadd.f32 %v4306, %v4406
    %v4471 = vadd.f32 %v4307, %v4407
    %v4472 = vadd.f32 %v4308, %v4408
    %v4473 = vadd.f32 %v4309, %v4409
    %v4474 = vadd.f32 %v4310, %v4410
    %v4475 = vadd.f32 %v4311, %v4411
    %v4476 = vadd.f32 %v4312, %v4412
    %v4477 = vadd.f32 %v4313, %v4413
    %v4478 = vadd.f32 %v4314, %v4414
    %v4479 = vadd.f32 %v4315, %v4415
    %v4480 = vadd.f32 %v4316, %v4416
    %v4481 = vadd.f32 %v4317, %v4417
    %v4482 = vadd.f32 %v4318, %v4418
    %v4483 = vadd.f32 %v4319, %v4419
    %v4484 = vadd.f32 %v4320, %v4420
    %v4485 = vadd.f32 %v4321, %v4421
    %v4486 = vadd.f32 %v4322, %v4422
    %v4487 = vadd.f32 %v4323, %v4423
    %v4488 = vadd.f32 %v4324, %v4424
    %v4489 = vadd.f32 %v4325, %v4425
    %v4490 = vadd.f32 %v4326, %v4426
    %v4491 = vadd.f32 %v4327, %v4427
    %v4492 = vadd.f32 %v4328, %v4428
    %v4493 = vadd.f32 %v4329, %v4429
    %v4494 = vadd.f32 %v4330, %v4430
    %v4495 = vadd.f32 %v4331, %v4431
    %v4496 = vadd.f32 %v4332, %v4432
    %v4497 = vadd.f32 %v4333, %v4433
    %v4498 = vadd.f32 %v4334, %v4434
    %v4499 = vadd.f32 %v4335, %v4435
    %v4500 = vadd.f32 %v4336, %v4436
    %v4501 = vadd.f32 %v4337, %v4437
    %v4502 = vadd.f32 %v4338, %v4438
    %v4503 = vadd.f32 %v4339, %v4439
    %v4504 = vadd.f32 %v4340, %v4440
    %v4505 = vadd.f32 %v4341, %v4441
    %v4506 = vadd.f32 %v4342, %v4442
    %v4507 = vadd.f32 %v4343, %v4443
    %v4508 = vadd.f32 %v4344, %v4444
    %v4509 = vadd.f32 %v4345, %v4445
    %v4510 = vadd.f32 %v4346, %v4446
    %v4511 = vadd.f32 %v4347, %v4447
    %v4512 = vadd.f32 %v4348, %v4448
    %v4513 = vadd.f32 %v4349, %v4449
    %v4514 = vadd.f32 %v4350, %v4450
    %v4515 = vadd.f32 %v4351, %v4451
    %v4516 = vadd.f32 %v4452, %v729
    %v4517 = vadd.f32 %v4453, %v729
    %v4518 = vadd.f32 %v4454, %v729
    %v4519 = vadd.f32 %v4455, %v729
    %v4520 = vadd.f32 %v4456, %v734
    %v4521 = vadd.f32 %v4457, %v734
    %v4522 = vadd.f32 %v4458, %v734
    %v4523 = vadd.f32 %v4459, %v734
    %v4524 = vadd.f32 %v4460, %v739
    %v4525 = vadd.f32 %v4461, %v739
    %v4526 = vadd.f32 %v4462, %v739
    %v4527 = vadd.f32 %v4463, %v739
    %v4528 = vadd.f32 %v4464, %v744
    %v4529 = vadd.f32 %v4465, %v744
    %v4530 = vadd.f32 %v4466, %v744
    %v4531 = vadd.f32 %v4467, %v744
    %v4532 = vadd.f32 %v4468, %v749
    %v4533 = vadd.f32 %v4469, %v749
    %v4534 = vadd.f32 %v4470, %v749
    %v4535 = vadd.f32 %v4471, %v749
    %v4536 = vadd.f32 %v4472, %v754
    %v4537 = vadd.f32 %v4473, %v754
    %v4538 = vadd.f32 %v4474, %v754
    %v4539 = vadd.f32 %v4475, %v754
    %v4540 = vadd.f32 %v4476, %v759
    %v4541 = vadd.f32 %v4477, %v759
    %v4542 = vadd.f32 %v4478, %v759
    %v4543 = vadd.f32 %v4479, %v759
    %v4544 = vadd.f32 %v4480, %v764
    %v4545 = vadd.f32 %v4481, %v764
    %v4546 = vadd.f32 %v4482, %v764
    %v4547 = vadd.f32 %v4483, %v764
    %v4548 = vadd.f32 %v4484, %v769
    %v4549 = vadd.f32 %v4485, %v769
    %v4550 = vadd.f32 %v4486, %v769
    %v4551 = vadd.f32 %v4487, %v769
    %v4552 = vadd.f32 %v4488, %v774
    %v4553 = vadd.f32 %v4489, %v774
    %v4554 = vadd.f32 %v4490, %v774
    %v4555 = vadd.f32 %v4491, %v774
    %v4556 = vadd.f32 %v4492, %v779
    %v4557 = vadd.f32 %v4493, %v779
    %v4558 = vadd.f32 %v4494, %v779
    %v4559 = vadd.f32 %v4495, %v779
    %v4560 = vadd.f32 %v4496, %v784
    %v4561 = vadd.f32 %v4497, %v784
    %v4562 = vadd.f32 %v4498, %v784
    %v4563 = vadd.f32 %v4499, %v784
    %v4564 = vadd.f32 %v4500, %v789
    %v4565 = vadd.f32 %v4501, %v789
    %v4566 = vadd.f32 %v4502, %v789
    %v4567 = vadd.f32 %v4503, %v789
    %v4568 = vadd.f32 %v4504, %v794
    %v4569 = vadd.f32 %v4505, %v794
    %v4570 = vadd.f32 %v4506, %v794
    %v4571 = vadd.f32 %v4507, %v794
    %v4572 = vadd.f32 %v4508, %v799
    %v4573 = vadd.f32 %v4509, %v799
    %v4574 = vadd.f32 %v4510, %v799
    %v4575 = vadd.f32 %v4511, %v799
    %v4576 = vadd.f32 %v4512, %v804
    %v4577 = vadd.f32 %v4513, %v804
    %v4578 = vadd.f32 %v4514, %v804
    %v4579 = vadd.f32 %v4515, %v804
    %v4580 = vmax.f32 %v4516, 0.0
    %v4581 = vmax.f32 %v4517, 0.0
    %v4582 = vmax.f32 %v4518, 0.0
    %v4583 = vmax.f32 %v4519, 0.0
    %v4584 = vmax.f32 %v4520, 0.0
    %v4585 = vmax.f32 %v4521, 0.0
    %v4586 = vmax.f32 %v4522, 0.0
    %v4587 = vmax.f32 %v4523, 0.0
    %v4588 = vmax.f32 %v4524, 0.0
    %v4589 = vmax.f32 %v4525, 0.0
    %v4590 = vmax.f32 %v4526, 0.0
    %v4591 = vmax.f32 %v4527, 0.0
    %v4592 = vmax.f32 %v4528, 0.0
    %v4593 = vmax.f32 %v4529, 0.0
    %v4594 = vmax.f32 %v4530, 0.0
    %v4595 = vmax.f32 %v4531, 0.0
    %v4596 = vmax.f32 %v4532, 0.0
    %v4597 = vmax.f32 %v4533, 0.0
    %v4598 = vmax.f32 %v4534, 0.0
    %v4599 = vmax.f32 %v4535, 0.0
    %v4600 = vmax.f32 %v4536, 0.0
    %v4601 = vmax.f32 %v4537, 0.0
    %v4602 = vmax.f32 %v4538, 0.0
    %v4603 = vmax.f32 %v4539, 0.0
    %v4604 = vmax.f32 %v4540, 0.0
    %v4605 = vmax.f32 %v4541, 0.0
    %v4606 = vmax.f32 %v4542, 0.0
    %v4607 = vmax.f32 %v4543, 0.0
    %v4608 = vmax.f32 %v4544, 0.0
    %v4609 = vmax.f32 %v4545, 0.0
    %v4610 = vmax.f32 %v4546, 0.0
    %v4611 = vmax.f32 %v4547, 0.0
    %v4612 = vmax.f32 %v4548, 0.0
    %v4613 = vmax.f32 %v4549, 0.0
    %v4614 = vmax.f32 %v4550, 0.0
    %v4615 = vmax.f32 %v4551, 0.0
    %v4616 = vmax.f32 %v4552, 0.0
    %v4617 = vmax.f32 %v4553, 0.0
    %v4618 = vmax.f32 %v4554, 0.0
    %v4619 = vmax.f32 %v4555, 0.0
    %v4620 = vmax.f32 %v4556, 0.0
    %v4621 = vmax.f32 %v4557, 0.0
    %v4622 = vmax.f32 %v4558, 0.0
    %v4623 = vmax.f32 %v4559, 0.0
    %v4624 = vmax.f32 %v4560, 0.0
    %v4625 = vmax.f32 %v4561, 0.0
    %v4626 = vmax.f32 %v4562, 0.0
    %v4627 = vmax.f32 %v4563, 0.0
    %v4628 = vmax.f32 %v4564, 0.0
    %v4629 = vmax.f32 %v4565, 0.0
    %v4630 = vmax.f32 %v4566, 0.0
    %v4631 = vmax.f32 %v4567, 0.0
    %v4632 = vmax.f32 %v4568, 0.0
    %v4633 = vmax.f32 %v4569, 0.0
    %v4634 = vmax.f32 %v4570, 0.0
    %v4635 = vmax.f32 %v4571, 0.0
    %v4636 = vmax.f32 %v4572, 0.0
    %v4637 = vmax.f32 %v4573, 0.0
    %v4638 = vmax.f32 %v4574, 0.0
    %v4639 = vmax.f32 %v4575, 0.0
    %v4640 = vmax.f32 %v4576, 0.0
    %v4641 = vmax.f32 %v4577, 0.0
    %v4642 = vmax.f32 %v4578, 0.0
    %v4643 = vmax.f32 %v4579, 0.0
    %v4644 = vpack.c.bf16 %v4584, %v4580
    %v4645 = vpack.c.bf16 %v4585, %v4581
    %v4646 = vpack.c.bf16 %v4586, %v4582
    %v4647 = vpack.c.bf16 %v4587, %v4583
    %v4648 = vpack.c.bf16 %v4592, %v4588
    %v4649 = vpack.c.bf16 %v4593, %v4589
    %v4650 = vpack.c.bf16 %v4594, %v4590
    %v4651 = vpack.c.bf16 %v4595, %v4591
    %v4652 = vpack.c.bf16 %v4600, %v4596
    %v4653 = vpack.c.bf16 %v4601, %v4597
    %v4654 = vpack.c.bf16 %v4602, %v4598
    %v4655 = vpack.c.bf16 %v4603, %v4599
    %v4656 = vpack.c.bf16 %v4608, %v4604
    %v4657 = vpack.c.bf16 %v4609, %v4605
    %v4658 = vpack.c.bf16 %v4610, %v4606
    %v4659 = vpack.c.bf16 %v4611, %v4607
    %v4660 = vpack.c.bf16 %v4616, %v4612
    %v4661 = vpack.c.bf16 %v4617, %v4613
    %v4662 = vpack.c.bf16 %v4618, %v4614
    %v4663 = vpack.c.bf16 %v4619, %v4615
    %v4664 = vpack.c.bf16 %v4624, %v4620
    %v4665 = vpack.c.bf16 %v4625, %v4621
    %v4666 = vpack.c.bf16 %v4626, %v4622
    %v4667 = vpack.c.bf16 %v4627, %v4623
    %v4668 = vpack.c.bf16 %v4632, %v4628
    %v4669 = vpack.c.bf16 %v4633, %v4629
    %v4670 = vpack.c.bf16 %v4634, %v4630
    %v4671 = vpack.c.bf16 %v4635, %v4631
    %v4672 = vpack.c.bf16 %v4640, %v4636
    %v4673 = vpack.c.bf16 %v4641, %v4637
    %v4674 = vpack.c.bf16 %v4642, %v4638
    %v4675 = vpack.c.bf16 %v4643, %v4639
    %4676 = vmatprep.subr.bf16.mxu0 %v4645
    %4677 = vmatpush1.bf16.msra.mxu0 %v4644
    %4678 = vmatprep.subr.bf16.mxu0 %v4649
    %4679 = vmatpush1.bf16.msra.mxu0 %v4648
    %4680 = vmatprep.subr.bf16.mxu0 %v4653
    %4681 = vmatpush1.bf16.msra.mxu0 %v4652
    %4682 = vmatprep.subr.bf16.mxu0 %v4657
    %4683 = vmatpush1.bf16.msra.mxu0 %v4656
    %4684 = vmatprep.subr.bf16.mxu0 %v4661
    %4685 = vmatpush1.bf16.msra.mxu0 %v4660
    %4686 = vmatprep.subr.bf16.mxu0 %v4665
    %4687 = vmatpush1.bf16.msra.mxu0 %v4664
    %4688 = vmatprep.subr.bf16.mxu0 %v4669
    %4689 = vmatpush1.bf16.msra.mxu0 %v4668
    %4690 = vmatprep.subr.bf16.mxu0 %v4673
    %4691 = vmatpush1.bf16.msra.mxu0 %v4672
    %4692 = vmatprep.subr.bf16.mxu0 0
    %4693 = vmatpush1.bf16.msra.mxu0 0
    %4694 = vmatprep.subr.bf16.mxu0 0
    %4695 = vmatpush1.bf16.msra.mxu0 0
    %4696 = vmatprep.subr.bf16.mxu0 0
    %4697 = vmatpush1.bf16.msra.mxu0 0
    %4698 = vmatprep.subr.bf16.mxu0 0
    %4699 = vmatpush1.bf16.msra.mxu0 0
    %4700 = vmatprep.subr.bf16.mxu0 0
    %4701 = vmatpush1.bf16.msra.mxu0 0
    %4702 = vmatprep.subr.bf16.mxu0 0
    %4703 = vmatpush1.bf16.msra.mxu0 0
    %4704 = vmatprep.subr.bf16.mxu0 0
    %4705 = vmatpush1.bf16.msra.mxu0 0
    %4706 = vmatprep.subr.bf16.mxu0 0
    %4707 = vmatpush1.bf16.msra.mxu0 0
    %4708 = vmatprep.mubr.bf16.mxu0 0
    %4709 = vmatmul.mubr.bf16.gmra.mrb[0].mxu0 %v998
    %v4710 = vpop.f32.mrb[0].mxu0
    %v4711 = vadd.f32 0.0, %v4710
    %v4712 = vpop.f32.mrb[0].mxu0
    %v4713 = vadd.f32 0.0, %v4712
    %v4714 = vpop.f32.mrb[0].mxu0
    %v4715 = vadd.f32 0.0, %v4714
    %v4716 = vpop.f32.mrb[0].mxu0
    %v4717 = vadd.f32 0.0, %v4716
    %4718 = vmatprep.mubr.bf16.mxu0 0
    %4719 = vmatmul.mubr.bf16.gmra.mrb[0].mxu0 %v999
    %v4720 = vpop.f32.mrb[0].mxu0
    %v4721 = vadd.f32 0.0, %v4720
    %v4722 = vpop.f32.mrb[0].mxu0
    %v4723 = vadd.f32 0.0, %v4722
    %v4724 = vpop.f32.mrb[0].mxu0
    %v4725 = vadd.f32 0.0, %v4724
    %v4726 = vpop.f32.mrb[0].mxu0
    %v4727 = vadd.f32 0.0, %v4726
    %4728 = vmatprep.mubr.bf16.mxu0 0
    %4729 = vmatmul.mubr.bf16.gmra.mrb[0].mxu0 %v1000
    %v4730 = vpop.f32.mrb[0].mxu0
    %v4731 = vadd.f32 0.0, %v4730
    %v4732 = vpop.f32.mrb[0].mxu0
    %v4733 = vadd.f32 0.0, %v4732
    %v4734 = vpop.f32.mrb[0].mxu0
    %v4735 = vadd.f32 0.0, %v4734
    %v4736 = vpop.f32.mrb[0].mxu0
    %v4737 = vadd.f32 0.0, %v4736
    %4738 = vmatprep.mubr.bf16.mxu0 0
    %4739 = vmatmul.mubr.bf16.gmra.mrb[0].mxu0 %v1001
    %v4740 = vpop.f32.mrb[0].mxu0
    %v4741 = vadd.f32 0.0, %v4740
    %v4742 = vpop.f32.mrb[0].mxu0
    %v4743 = vadd.f32 0.0, %v4742
    %v4744 = vpop.f32.mrb[0].mxu0
    %v4745 = vadd.f32 0.0, %v4744
    %v4746 = vpop.f32.mrb[0].mxu0
    %v4747 = vadd.f32 0.0, %v4746
    %4748 = vmatprep.mubr.bf16.mxu0 0
    %4749 = vmatmul.mubr.bf16.gmra.mrb[0].mxu0 %v1002
    %v4750 = vpop.f32.mrb[0].mxu0
    %v4751 = vadd.f32 0.0, %v4750
    %v4752 = vpop.f32.mrb[0].mxu0
    %v4753 = vadd.f32 0.0, %v4752
    %v4754 = vpop.f32.mrb[0].mxu0
    %v4755 = vadd.f32 0.0, %v4754
    %v4756 = vpop.f32.mrb[0].mxu0
    %v4757 = vadd.f32 0.0, %v4756
    %4758 = vmatprep.mubr.bf16.mxu0 0
    %4759 = vmatmul.mubr.bf16.gmra.mrb[0].mxu0 %v1003
    %v4760 = vpop.f32.mrb[0].mxu0
    %v4761 = vadd.f32 0.0, %v4760
    %v4762 = vpop.f32.mrb[0].mxu0
    %v4763 = vadd.f32 0.0, %v4762
    %v4764 = vpop.f32.mrb[0].mxu0
    %v4765 = vadd.f32 0.0, %v4764
    %v4766 = vpop.f32.mrb[0].mxu0
    %v4767 = vadd.f32 0.0, %v4766
    %4768 = vmatprep.mubr.bf16.mxu0 0
    %4769 = vmatmul.mubr.bf16.gmra.mrb[0].mxu0 %v1004
    %v4770 = vpop.f32.mrb[0].mxu0
    %v4771 = vadd.f32 0.0, %v4770
    %v4772 = vpop.f32.mrb[0].mxu0
    %v4773 = vadd.f32 0.0, %v4772
    %v4774 = vpop.f32.mrb[0].mxu0
    %v4775 = vadd.f32 0.0, %v4774
    %v4776 = vpop.f32.mrb[0].mxu0
    %v4777 = vadd.f32 0.0, %v4776
    %4778 = vmatprep.mubr.bf16.mxu0 0
    %4779 = vmatmul.mubr.bf16.gmra.mrb[0].mxu0 %v1005
    %v4780 = vpop.f32.mrb[0].mxu0
    %v4781 = vadd.f32 0.0, %v4780
    %v4782 = vpop.f32.mrb[0].mxu0
    %v4783 = vadd.f32 0.0, %v4782
    %v4784 = vpop.f32.mrb[0].mxu0
    %v4785 = vadd.f32 0.0, %v4784
    %v4786 = vpop.f32.mrb[0].mxu0
    %v4787 = vadd.f32 0.0, %v4786
    %4788 = vdwg.mxu0
    %4789 = vmatprep.subr.bf16.mxu0 %v4647
    %4790 = vmatpush1.bf16.msra.mxu0 %v4646
    %4791 = vmatprep.subr.bf16.mxu0 %v4651
    %4792 = vmatpush1.bf16.msra.mxu0 %v4650
    %4793 = vmatprep.subr.bf16.mxu0 %v4655
    %4794 = vmatpush1.bf16.msra.mxu0 %v4654
    %4795 = vmatprep.subr.bf16.mxu0 %v4659
    %4796 = vmatpush1.bf16.msra.mxu0 %v4658
    %4797 = vmatprep.subr.bf16.mxu0 %v4663
    %4798 = vmatpush1.bf16.msra.mxu0 %v4662
    %4799 = vmatprep.subr.bf16.mxu0 %v4667
    %4800 = vmatpush1.bf16.msra.mxu0 %v4666
    %4801 = vmatprep.subr.bf16.mxu0 %v4671
    %4802 = vmatpush1.bf16.msra.mxu0 %v4670
    %4803 = vmatprep.subr.bf16.mxu0 %v4675
    %4804 = vmatpush1.bf16.msra.mxu0 %v4674
    %4805 = vmatprep.subr.bf16.mxu0 0
    %4806 = vmatpush1.bf16.msra.mxu0 0
    %4807 = vmatprep.subr.bf16.mxu0 0
    %4808 = vmatpush1.bf16.msra.mxu0 0
    %4809 = vmatprep.subr.bf16.mxu0 0
    %4810 = vmatpush1.bf16.msra.mxu0 0
    %4811 = vmatprep.subr.bf16.mxu0 0
    %4812 = vmatpush1.bf16.msra.mxu0 0
    %4813 = vmatprep.subr.bf16.mxu0 0
    %4814 = vmatpush1.bf16.msra.mxu0 0
    %4815 = vmatprep.subr.bf16.mxu0 0
    %4816 = vmatpush1.bf16.msra.mxu0 0
    %4817 = vmatprep.subr.bf16.mxu0 0
    %4818 = vmatpush1.bf16.msra.mxu0 0
    %4819 = vmatprep.subr.bf16.mxu0 0
    %4820 = vmatpush1.bf16.msra.mxu0 0
    %4821 = vmatprep.mubr.bf16.mxu0 0
    %4822 = vmatmul.mubr.bf16.gmra.mrb[0].mxu0 %v998
    %v4823 = vpop.f32.mrb[0].mxu0
    %v4824 = vadd.f32 0.0, %v4823
    %v4825 = vpop.f32.mrb[0].mxu0
    %v4826 = vadd.f32 0.0, %v4825
    %v4827 = vpop.f32.mrb[0].mxu0
    %v4828 = vadd.f32 0.0, %v4827
    %v4829 = vpop.f32.mrb[0].mxu0
    %v4830 = vadd.f32 0.0, %v4829
    %4831 = vmatprep.mubr.bf16.mxu0 0
    %4832 = vmatmul.mubr.bf16.gmra.mrb[0].mxu0 %v999
    %v4833 = vpop.f32.mrb[0].mxu0
    %v4834 = vadd.f32 0.0, %v4833
    %v4835 = vpop.f32.mrb[0].mxu0
    %v4836 = vadd.f32 0.0, %v4835
    %v4837 = vpop.f32.mrb[0].mxu0
    %v4838 = vadd.f32 0.0, %v4837
    %v4839 = vpop.f32.mrb[0].mxu0
    %v4840 = vadd.f32 0.0, %v4839
    %4841 = vmatprep.mubr.bf16.mxu0 0
    %4842 = vmatmul.mubr.bf16.gmra.mrb[0].mxu0 %v1000
    %v4843 = vpop.f32.mrb[0].mxu0
    %v4844 = vadd.f32 0.0, %v4843
    %v4845 = vpop.f32.mrb[0].mxu0
    %v4846 = vadd.f32 0.0, %v4845
    %v4847 = vpop.f32.mrb[0].mxu0
    %v4848 = vadd.f32 0.0, %v4847
    %v4849 = vpop.f32.mrb[0].mxu0
    %v4850 = vadd.f32 0.0, %v4849
    %4851 = vmatprep.mubr.bf16.mxu0 0
    %4852 = vmatmul.mubr.bf16.gmra.mrb[0].mxu0 %v1001
    %v4853 = vpop.f32.mrb[0].mxu0
    %v4854 = vadd.f32 0.0, %v4853
    %v4855 = vpop.f32.mrb[0].mxu0
    %v4856 = vadd.f32 0.0, %v4855
    %v4857 = vpop.f32.mrb[0].mxu0
    %v4858 = vadd.f32 0.0, %v4857
    %v4859 = vpop.f32.mrb[0].mxu0
    %v4860 = vadd.f32 0.0, %v4859
    %4861 = vmatprep.mubr.bf16.mxu0 0
    %4862 = vmatmul.mubr.bf16.gmra.mrb[0].mxu0 %v1002
    %v4863 = vpop.f32.mrb[0].mxu0
    %v4864 = vadd.f32 0.0, %v4863
    %v4865 = vpop.f32.mrb[0].mxu0
    %v4866 = vadd.f32 0.0, %v4865
    %v4867 = vpop.f32.mrb[0].mxu0
    %v4868 = vadd.f32 0.0, %v4867
    %v4869 = vpop.f32.mrb[0].mxu0
    %v4870 = vadd.f32 0.0, %v4869
    %4871 = vmatprep.mubr.bf16.mxu0 0
    %4872 = vmatmul.mubr.bf16.gmra.mrb[0].mxu0 %v1003
    %v4873 = vpop.f32.mrb[0].mxu0
    %v4874 = vadd.f32 0.0, %v4873
    %v4875 = vpop.f32.mrb[0].mxu0
    %v4876 = vadd.f32 0.0, %v4875
    %v4877 = vpop.f32.mrb[0].mxu0
    %v4878 = vadd.f32 0.0, %v4877
    %v4879 = vpop.f32.mrb[0].mxu0
    %v4880 = vadd.f32 0.0, %v4879
    %4881 = vmatprep.mubr.bf16.mxu0 0
    %4882 = vmatmul.mubr.bf16.gmra.mrb[0].mxu0 %v1004
    %v4883 = vpop.f32.mrb[0].mxu0
    %v4884 = vadd.f32 0.0, %v4883
    %v4885 = vpop.f32.mrb[0].mxu0
    %v4886 = vadd.f32 0.0, %v4885
    %v4887 = vpop.f32.mrb[0].mxu0
    %v4888 = vadd.f32 0.0, %v4887
    %v4889 = vpop.f32.mrb[0].mxu0
    %v4890 = vadd.f32 0.0, %v4889
    %4891 = vmatprep.mubr.bf16.mxu0 0
    %4892 = vmatmul.mubr.bf16.gmra.mrb[0].mxu0 %v1005
    %v4893 = vpop.f32.mrb[0].mxu0
    %v4894 = vadd.f32 0.0, %v4893
    %v4895 = vpop.f32.mrb[0].mxu0
    %v4896 = vadd.f32 0.0, %v4895
    %v4897 = vpop.f32.mrb[0].mxu0
    %v4898 = vadd.f32 0.0, %v4897
    %v4899 = vpop.f32.mrb[0].mxu0
    %v4900 = vadd.f32 0.0, %v4899
    %4901 = vdwg.mxu0
    %v4902 = vmax.f32 %v4711, %v4713
    %v4903 = vmax.f32 %v4902, %v4824
    %v4904 = vmax.f32 %v4903, %v4826
    %4905 = vmax.xlane.f32.xlu0 %v4904
    %v4906 = vpop.xlane.xlu0 %4905
    %v4907 = vmax.f32 %v4715, %v4717
    %v4908 = vmax.f32 %v4907, %v4828
    %v4909 = vmax.f32 %v4908, %v4830
    %4910 = vmax.xlane.f32.xlu0 %v4909
    %v4911 = vpop.xlane.xlu0 %4910
    %v4912 = vmax.f32 %v4721, %v4723
    %v4913 = vmax.f32 %v4912, %v4834
    %v4914 = vmax.f32 %v4913, %v4836
    %4915 = vmax.xlane.f32.xlu0 %v4914
    %v4916 = vpop.xlane.xlu0 %4915
    %v4917 = vmax.f32 %v4725, %v4727
    %v4918 = vmax.f32 %v4917, %v4838
    %v4919 = vmax.f32 %v4918, %v4840
    %4920 = vmax.xlane.f32.xlu0 %v4919
    %v4921 = vpop.xlane.xlu0 %4920
    %v4922 = vmax.f32 %v4731, %v4733
    %v4923 = vmax.f32 %v4922, %v4844
    %v4924 = vmax.f32 %v4923, %v4846
    %4925 = vmax.xlane.f32.xlu0 %v4924
    %v4926 = vpop.xlane.xlu0 %4925
    %v4927 = vmax.f32 %v4735, %v4737
    %v4928 = vmax.f32 %v4927, %v4848
    %v4929 = vmax.f32 %v4928, %v4850
    %4930 = vmax.xlane.f32.xlu0 %v4929
    %v4931 = vpop.xlane.xlu0 %4930
    %v4932 = vmax.f32 %v4741, %v4743
    %v4933 = vmax.f32 %v4932, %v4854
    %v4934 = vmax.f32 %v4933, %v4856
    %4935 = vmax.xlane.f32.xlu0 %v4934
    %v4936 = vpop.xlane.xlu0 %4935
    %v4937 = vmax.f32 %v4745, %v4747
    %v4938 = vmax.f32 %v4937, %v4858
    %v4939 = vmax.f32 %v4938, %v4860
    %4940 = vmax.xlane.f32.xlu0 %v4939
    %v4941 = vpop.xlane.xlu0 %4940
    %v4942 = vmax.f32 %v4751, %v4753
    %v4943 = vmax.f32 %v4942, %v4864
    %v4944 = vmax.f32 %v4943, %v4866
    %4945 = vmax.xlane.f32.xlu0 %v4944
    %v4946 = vpop.xlane.xlu0 %4945
    %v4947 = vmax.f32 %v4755, %v4757
    %v4948 = vmax.f32 %v4947, %v4868
    %v4949 = vmax.f32 %v4948, %v4870
    %4950 = vmax.xlane.f32.xlu0 %v4949
    %v4951 = vpop.xlane.xlu0 %4950
    %v4952 = vmax.f32 %v4761, %v4763
    %v4953 = vmax.f32 %v4952, %v4874
    %v4954 = vmax.f32 %v4953, %v4876
    %4955 = vmax.xlane.f32.xlu0 %v4954
    %v4956 = vpop.xlane.xlu0 %4955
    %v4957 = vmax.f32 %v4765, %v4767
    %v4958 = vmax.f32 %v4957, %v4878
    %v4959 = vmax.f32 %v4958, %v4880
    %4960 = vmax.xlane.f32.xlu0 %v4959
    %v4961 = vpop.xlane.xlu0 %4960
    %v4962 = vmax.f32 %v4771, %v4773
    %v4963 = vmax.f32 %v4962, %v4884
    %v4964 = vmax.f32 %v4963, %v4886
    %4965 = vmax.xlane.f32.xlu0 %v4964
    %v4966 = vpop.xlane.xlu0 %4965
    %v4967 = vmax.f32 %v4775, %v4777
    %v4968 = vmax.f32 %v4967, %v4888
    %v4969 = vmax.f32 %v4968, %v4890
    %4970 = vmax.xlane.f32.xlu0 %v4969
    %v4971 = vpop.xlane.xlu0 %4970
    %v4972 = vmax.f32 %v4781, %v4783
    %v4973 = vmax.f32 %v4972, %v4894
    %v4974 = vmax.f32 %v4973, %v4896
    %4975 = vmax.xlane.f32.xlu0 %v4974
    %v4976 = vpop.xlane.xlu0 %4975
    %v4977 = vmax.f32 %v4785, %v4787
    %v4978 = vmax.f32 %v4977, %v4898
    %v4979 = vmax.f32 %v4978, %v4900
    %4980 = vmax.xlane.f32.xlu0 %v4979
    %v4981 = vpop.xlane.xlu0 %4980
    %s4982 = sadd.s32 4, 16
    %s4983 = smul.addr %s4982, 4
    %s4984 = scalar_lea.vmem %s0, %s4983
    %v4985 = vld [vmem:[%s4984] sm:$0x77]
    %v4986 = vld [vmem:[%s4984 + $0x8] sm:$0x77]
    %v4989 = vlaneseq
    %v4990 = vshrl.u32 %v4989, 7
    %v4991 = vsub.s32 0, %v4990
    %v4992 = vrot.slane %v4985, %v4991
    %v4993 = vlaneseq
    %v4994 = vshrl.u32 %v4993, 7
    %v4995 = vsub.s32 4, %v4994
    %v4996 = vrot.slane %v4985, %v4995
    %v4997 = vlaneseq
    %v4998 = vshrl.u32 %v4997, 7
    %v4999 = vsub.s32 0, %v4998
    %v5000 = vrot.slane %v4986, %v4999
    %v5001 = vlaneseq
    %v5002 = vshrl.u32 %v5001, 7
    %v5003 = vsub.s32 4, %v5002
    %v5004 = vrot.slane %v4986, %v5003
    %v5009 = vlaneseq
    %v5010 = vshrl.u32 %v5009, 7
    %v5011 = vsub.s32 0, %v5010
    %v5012 = vrot.slane %v4992, %v5011
    %v5013 = vlaneseq
    %v5014 = vshrl.u32 %v5013, 7
    %v5015 = vsub.s32 0, %v5014
    %v5016 = vrot.slane %v4996, %v5015
    %v5017 = vlaneseq
    %v5018 = vshrl.u32 %v5017, 7
    %v5019 = vsub.s32 0, %v5018
    %v5020 = vrot.slane %v5000, %v5019
    %v5021 = vlaneseq
    %v5022 = vshrl.u32 %v5021, 7
    %v5023 = vsub.s32 0, %v5022
    %v5024 = vrot.slane %v5004, %v5023
    %v5025 = vmul.f32 %v91, %v5012
    %v5026 = vmul.f32 %v91, %v5016
    %v5027 = vmul.f32 %v91, %v5020
    %v5028 = vmul.f32 %v91, %v5024
    %v5029 = vmul.f32 %v96, %v5012
    %v5030 = vmul.f32 %v96, %v5016
    %v5031 = vmul.f32 %v96, %v5020
    %v5032 = vmul.f32 %v96, %v5024
    %v5033 = vmul.f32 %v101, %v5012
    %v5034 = vmul.f32 %v101, %v5016
    %v5035 = vmul.f32 %v101, %v5020
    %v5036 = vmul.f32 %v101, %v5024
    %v5037 = vmul.f32 %v106, %v5012
    %v5038 = vmul.f32 %v106, %v5016
    %v5039 = vmul.f32 %v106, %v5020
    %v5040 = vmul.f32 %v106, %v5024
    %v5041 = vmul.f32 %v111, %v5012
    %v5042 = vmul.f32 %v111, %v5016
    %v5043 = vmul.f32 %v111, %v5020
    %v5044 = vmul.f32 %v111, %v5024
    %v5045 = vmul.f32 %v116, %v5012
    %v5046 = vmul.f32 %v116, %v5016
    %v5047 = vmul.f32 %v116, %v5020
    %v5048 = vmul.f32 %v116, %v5024
    %v5049 = vmul.f32 %v121, %v5012
    %v5050 = vmul.f32 %v121, %v5016
    %v5051 = vmul.f32 %v121, %v5020
    %v5052 = vmul.f32 %v121, %v5024
    %v5053 = vmul.f32 %v126, %v5012
    %v5054 = vmul.f32 %v126, %v5016
    %v5055 = vmul.f32 %v126, %v5020
    %v5056 = vmul.f32 %v126, %v5024
    %v5057 = vmul.f32 %v131, %v5012
    %v5058 = vmul.f32 %v131, %v5016
    %v5059 = vmul.f32 %v131, %v5020
    %v5060 = vmul.f32 %v131, %v5024
    %v5061 = vmul.f32 %v136, %v5012
    %v5062 = vmul.f32 %v136, %v5016
    %v5063 = vmul.f32 %v136, %v5020
    %v5064 = vmul.f32 %v136, %v5024
    %v5065 = vmul.f32 %v141, %v5012
    %v5066 = vmul.f32 %v141, %v5016
    %v5067 = vmul.f32 %v141, %v5020
    %v5068 = vmul.f32 %v141, %v5024
    %v5069 = vmul.f32 %v146, %v5012
    %v5070 = vmul.f32 %v146, %v5016
    %v5071 = vmul.f32 %v146, %v5020
    %v5072 = vmul.f32 %v146, %v5024
    %v5073 = vmul.f32 %v151, %v5012
    %v5074 = vmul.f32 %v151, %v5016
    %v5075 = vmul.f32 %v151, %v5020
    %v5076 = vmul.f32 %v151, %v5024
    %v5077 = vmul.f32 %v156, %v5012
    %v5078 = vmul.f32 %v156, %v5016
    %v5079 = vmul.f32 %v156, %v5020
    %v5080 = vmul.f32 %v156, %v5024
    %v5081 = vmul.f32 %v161, %v5012
    %v5082 = vmul.f32 %v161, %v5016
    %v5083 = vmul.f32 %v161, %v5020
    %v5084 = vmul.f32 %v161, %v5024
    %v5085 = vmul.f32 %v166, %v5012
    %v5086 = vmul.f32 %v166, %v5016
    %v5087 = vmul.f32 %v166, %v5020
    %v5088 = vmul.f32 %v166, %v5024
    %v5089 = vlaneseq
    %v5090 = vshrl.u32 %v5089, 7
    %v5091 = vsub.s32 1, %v5090
    %v5092 = vrot.slane %v4985, %v5091
    %v5093 = vlaneseq
    %v5094 = vshrl.u32 %v5093, 7
    %v5095 = vsub.s32 5, %v5094
    %v5096 = vrot.slane %v4985, %v5095
    %v5097 = vlaneseq
    %v5098 = vshrl.u32 %v5097, 7
    %v5099 = vsub.s32 1, %v5098
    %v5100 = vrot.slane %v4986, %v5099
    %v5101 = vlaneseq
    %v5102 = vshrl.u32 %v5101, 7
    %v5103 = vsub.s32 5, %v5102
    %v5104 = vrot.slane %v4986, %v5103
    %v5109 = vlaneseq
    %v5110 = vshrl.u32 %v5109, 7
    %v5111 = vsub.s32 1, %v5110
    %v5112 = vrot.slane %v5092, %v5111
    %v5113 = vlaneseq
    %v5114 = vshrl.u32 %v5113, 7
    %v5115 = vsub.s32 1, %v5114
    %v5116 = vrot.slane %v5096, %v5115
    %v5117 = vlaneseq
    %v5118 = vshrl.u32 %v5117, 7
    %v5119 = vsub.s32 1, %v5118
    %v5120 = vrot.slane %v5100, %v5119
    %v5121 = vlaneseq
    %v5122 = vshrl.u32 %v5121, 7
    %v5123 = vsub.s32 1, %v5122
    %v5124 = vrot.slane %v5104, %v5123
    %v5125 = vmul.f32 %v272, %v5112
    %v5126 = vmul.f32 %v272, %v5116
    %v5127 = vmul.f32 %v272, %v5120
    %v5128 = vmul.f32 %v272, %v5124
    %v5129 = vmul.f32 %v276, %v5112
    %v5130 = vmul.f32 %v276, %v5116
    %v5131 = vmul.f32 %v276, %v5120
    %v5132 = vmul.f32 %v276, %v5124
    %v5133 = vmul.f32 %v280, %v5112
    %v5134 = vmul.f32 %v280, %v5116
    %v5135 = vmul.f32 %v280, %v5120
    %v5136 = vmul.f32 %v280, %v5124
    %v5137 = vmul.f32 %v284, %v5112
    %v5138 = vmul.f32 %v284, %v5116
    %v5139 = vmul.f32 %v284, %v5120
    %v5140 = vmul.f32 %v284, %v5124
    %v5141 = vmul.f32 %v288, %v5112
    %v5142 = vmul.f32 %v288, %v5116
    %v5143 = vmul.f32 %v288, %v5120
    %v5144 = vmul.f32 %v288, %v5124
    %v5145 = vmul.f32 %v292, %v5112
    %v5146 = vmul.f32 %v292, %v5116
    %v5147 = vmul.f32 %v292, %v5120
    %v5148 = vmul.f32 %v292, %v5124
    %v5149 = vmul.f32 %v296, %v5112
    %v5150 = vmul.f32 %v296, %v5116
    %v5151 = vmul.f32 %v296, %v5120
    %v5152 = vmul.f32 %v296, %v5124
    %v5153 = vmul.f32 %v300, %v5112
    %v5154 = vmul.f32 %v300, %v5116
    %v5155 = vmul.f32 %v300, %v5120
    %v5156 = vmul.f32 %v300, %v5124
    %v5157 = vmul.f32 %v304, %v5112
    %v5158 = vmul.f32 %v304, %v5116
    %v5159 = vmul.f32 %v304, %v5120
    %v5160 = vmul.f32 %v304, %v5124
    %v5161 = vmul.f32 %v308, %v5112
    %v5162 = vmul.f32 %v308, %v5116
    %v5163 = vmul.f32 %v308, %v5120
    %v5164 = vmul.f32 %v308, %v5124
    %v5165 = vmul.f32 %v312, %v5112
    %v5166 = vmul.f32 %v312, %v5116
    %v5167 = vmul.f32 %v312, %v5120
    %v5168 = vmul.f32 %v312, %v5124
    %v5169 = vmul.f32 %v316, %v5112
    %v5170 = vmul.f32 %v316, %v5116
    %v5171 = vmul.f32 %v316, %v5120
    %v5172 = vmul.f32 %v316, %v5124
    %v5173 = vmul.f32 %v320, %v5112
    %v5174 = vmul.f32 %v320, %v5116
    %v5175 = vmul.f32 %v320, %v5120
    %v5176 = vmul.f32 %v320, %v5124
    %v5177 = vmul.f32 %v324, %v5112
    %v5178 = vmul.f32 %v324, %v5116
    %v5179 = vmul.f32 %v324, %v5120
    %v5180 = vmul.f32 %v324, %v5124
    %v5181 = vmul.f32 %v328, %v5112
    %v5182 = vmul.f32 %v328, %v5116
    %v5183 = vmul.f32 %v328, %v5120
    %v5184 = vmul.f32 %v328, %v5124
    %v5185 = vmul.f32 %v332, %v5112
    %v5186 = vmul.f32 %v332, %v5116
    %v5187 = vmul.f32 %v332, %v5120
    %v5188 = vmul.f32 %v332, %v5124
    %v5189 = vadd.f32 %v5025, %v5125
    %v5190 = vadd.f32 %v5026, %v5126
    %v5191 = vadd.f32 %v5027, %v5127
    %v5192 = vadd.f32 %v5028, %v5128
    %v5193 = vadd.f32 %v5029, %v5129
    %v5194 = vadd.f32 %v5030, %v5130
    %v5195 = vadd.f32 %v5031, %v5131
    %v5196 = vadd.f32 %v5032, %v5132
    %v5197 = vadd.f32 %v5033, %v5133
    %v5198 = vadd.f32 %v5034, %v5134
    %v5199 = vadd.f32 %v5035, %v5135
    %v5200 = vadd.f32 %v5036, %v5136
    %v5201 = vadd.f32 %v5037, %v5137
    %v5202 = vadd.f32 %v5038, %v5138
    %v5203 = vadd.f32 %v5039, %v5139
    %v5204 = vadd.f32 %v5040, %v5140
    %v5205 = vadd.f32 %v5041, %v5141
    %v5206 = vadd.f32 %v5042, %v5142
    %v5207 = vadd.f32 %v5043, %v5143
    %v5208 = vadd.f32 %v5044, %v5144
    %v5209 = vadd.f32 %v5045, %v5145
    %v5210 = vadd.f32 %v5046, %v5146
    %v5211 = vadd.f32 %v5047, %v5147
    %v5212 = vadd.f32 %v5048, %v5148
    %v5213 = vadd.f32 %v5049, %v5149
    %v5214 = vadd.f32 %v5050, %v5150
    %v5215 = vadd.f32 %v5051, %v5151
    %v5216 = vadd.f32 %v5052, %v5152
    %v5217 = vadd.f32 %v5053, %v5153
    %v5218 = vadd.f32 %v5054, %v5154
    %v5219 = vadd.f32 %v5055, %v5155
    %v5220 = vadd.f32 %v5056, %v5156
    %v5221 = vadd.f32 %v5057, %v5157
    %v5222 = vadd.f32 %v5058, %v5158
    %v5223 = vadd.f32 %v5059, %v5159
    %v5224 = vadd.f32 %v5060, %v5160
    %v5225 = vadd.f32 %v5061, %v5161
    %v5226 = vadd.f32 %v5062, %v5162
    %v5227 = vadd.f32 %v5063, %v5163
    %v5228 = vadd.f32 %v5064, %v5164
    %v5229 = vadd.f32 %v5065, %v5165
    %v5230 = vadd.f32 %v5066, %v5166
    %v5231 = vadd.f32 %v5067, %v5167
    %v5232 = vadd.f32 %v5068, %v5168
    %v5233 = vadd.f32 %v5069, %v5169
    %v5234 = vadd.f32 %v5070, %v5170
    %v5235 = vadd.f32 %v5071, %v5171
    %v5236 = vadd.f32 %v5072, %v5172
    %v5237 = vadd.f32 %v5073, %v5173
    %v5238 = vadd.f32 %v5074, %v5174
    %v5239 = vadd.f32 %v5075, %v5175
    %v5240 = vadd.f32 %v5076, %v5176
    %v5241 = vadd.f32 %v5077, %v5177
    %v5242 = vadd.f32 %v5078, %v5178
    %v5243 = vadd.f32 %v5079, %v5179
    %v5244 = vadd.f32 %v5080, %v5180
    %v5245 = vadd.f32 %v5081, %v5181
    %v5246 = vadd.f32 %v5082, %v5182
    %v5247 = vadd.f32 %v5083, %v5183
    %v5248 = vadd.f32 %v5084, %v5184
    %v5249 = vadd.f32 %v5085, %v5185
    %v5250 = vadd.f32 %v5086, %v5186
    %v5251 = vadd.f32 %v5087, %v5187
    %v5252 = vadd.f32 %v5088, %v5188
    %v5253 = vlaneseq
    %v5254 = vshrl.u32 %v5253, 7
    %v5255 = vsub.s32 2, %v5254
    %v5256 = vrot.slane %v4985, %v5255
    %v5257 = vlaneseq
    %v5258 = vshrl.u32 %v5257, 7
    %v5259 = vsub.s32 6, %v5258
    %v5260 = vrot.slane %v4985, %v5259
    %v5261 = vlaneseq
    %v5262 = vshrl.u32 %v5261, 7
    %v5263 = vsub.s32 2, %v5262
    %v5264 = vrot.slane %v4986, %v5263
    %v5265 = vlaneseq
    %v5266 = vshrl.u32 %v5265, 7
    %v5267 = vsub.s32 6, %v5266
    %v5268 = vrot.slane %v4986, %v5267
    %v5273 = vlaneseq
    %v5274 = vshrl.u32 %v5273, 7
    %v5275 = vsub.s32 2, %v5274
    %v5276 = vrot.slane %v5256, %v5275
    %v5277 = vlaneseq
    %v5278 = vshrl.u32 %v5277, 7
    %v5279 = vsub.s32 2, %v5278
    %v5280 = vrot.slane %v5260, %v5279
    %v5281 = vlaneseq
    %v5282 = vshrl.u32 %v5281, 7
    %v5283 = vsub.s32 2, %v5282
    %v5284 = vrot.slane %v5264, %v5283
    %v5285 = vlaneseq
    %v5286 = vshrl.u32 %v5285, 7
    %v5287 = vsub.s32 2, %v5286
    %v5288 = vrot.slane %v5268, %v5287
    %v5289 = vmul.f32 %v500, %v5276
    %v5290 = vmul.f32 %v500, %v5280
    %v5291 = vmul.f32 %v500, %v5284
    %v5292 = vmul.f32 %v500, %v5288
    %v5293 = vmul.f32 %v504, %v5276
    %v5294 = vmul.f32 %v504, %v5280
    %v5295 = vmul.f32 %v504, %v5284
    %v5296 = vmul.f32 %v504, %v5288
    %v5297 = vmul.f32 %v508, %v5276
    %v5298 = vmul.f32 %v508, %v5280
    %v5299 = vmul.f32 %v508, %v5284
    %v5300 = vmul.f32 %v508, %v5288
    %v5301 = vmul.f32 %v512, %v5276
    %v5302 = vmul.f32 %v512, %v5280
    %v5303 = vmul.f32 %v512, %v5284
    %v5304 = vmul.f32 %v512, %v5288
    %v5305 = vmul.f32 %v516, %v5276
    %v5306 = vmul.f32 %v516, %v5280
    %v5307 = vmul.f32 %v516, %v5284
    %v5308 = vmul.f32 %v516, %v5288
    %v5309 = vmul.f32 %v520, %v5276
    %v5310 = vmul.f32 %v520, %v5280
    %v5311 = vmul.f32 %v520, %v5284
    %v5312 = vmul.f32 %v520, %v5288
    %v5313 = vmul.f32 %v524, %v5276
    %v5314 = vmul.f32 %v524, %v5280
    %v5315 = vmul.f32 %v524, %v5284
    %v5316 = vmul.f32 %v524, %v5288
    %v5317 = vmul.f32 %v528, %v5276
    %v5318 = vmul.f32 %v528, %v5280
    %v5319 = vmul.f32 %v528, %v5284
    %v5320 = vmul.f32 %v528, %v5288
    %v5321 = vmul.f32 %v532, %v5276
    %v5322 = vmul.f32 %v532, %v5280
    %v5323 = vmul.f32 %v532, %v5284
    %v5324 = vmul.f32 %v532, %v5288
    %v5325 = vmul.f32 %v536, %v5276
    %v5326 = vmul.f32 %v536, %v5280
    %v5327 = vmul.f32 %v536, %v5284
    %v5328 = vmul.f32 %v536, %v5288
    %v5329 = vmul.f32 %v540, %v5276
    %v5330 = vmul.f32 %v540, %v5280
    %v5331 = vmul.f32 %v540, %v5284
    %v5332 = vmul.f32 %v540, %v5288
    %v5333 = vmul.f32 %v544, %v5276
    %v5334 = vmul.f32 %v544, %v5280
    %v5335 = vmul.f32 %v544, %v5284
    %v5336 = vmul.f32 %v544, %v5288
    %v5337 = vmul.f32 %v548, %v5276
    %v5338 = vmul.f32 %v548, %v5280
    %v5339 = vmul.f32 %v548, %v5284
    %v5340 = vmul.f32 %v548, %v5288
    %v5341 = vmul.f32 %v552, %v5276
    %v5342 = vmul.f32 %v552, %v5280
    %v5343 = vmul.f32 %v552, %v5284
    %v5344 = vmul.f32 %v552, %v5288
    %v5345 = vmul.f32 %v556, %v5276
    %v5346 = vmul.f32 %v556, %v5280
    %v5347 = vmul.f32 %v556, %v5284
    %v5348 = vmul.f32 %v556, %v5288
    %v5349 = vmul.f32 %v560, %v5276
    %v5350 = vmul.f32 %v560, %v5280
    %v5351 = vmul.f32 %v560, %v5284
    %v5352 = vmul.f32 %v560, %v5288
    %v5353 = vadd.f32 %v5189, %v5289
    %v5354 = vadd.f32 %v5190, %v5290
    %v5355 = vadd.f32 %v5191, %v5291
    %v5356 = vadd.f32 %v5192, %v5292
    %v5357 = vadd.f32 %v5193, %v5293
    %v5358 = vadd.f32 %v5194, %v5294
    %v5359 = vadd.f32 %v5195, %v5295
    %v5360 = vadd.f32 %v5196, %v5296
    %v5361 = vadd.f32 %v5197, %v5297
    %v5362 = vadd.f32 %v5198, %v5298
    %v5363 = vadd.f32 %v5199, %v5299
    %v5364 = vadd.f32 %v5200, %v5300
    %v5365 = vadd.f32 %v5201, %v5301
    %v5366 = vadd.f32 %v5202, %v5302
    %v5367 = vadd.f32 %v5203, %v5303
    %v5368 = vadd.f32 %v5204, %v5304
    %v5369 = vadd.f32 %v5205, %v5305
    %v5370 = vadd.f32 %v5206, %v5306
    %v5371 = vadd.f32 %v5207, %v5307
    %v5372 = vadd.f32 %v5208, %v5308
    %v5373 = vadd.f32 %v5209, %v5309
    %v5374 = vadd.f32 %v5210, %v5310
    %v5375 = vadd.f32 %v5211, %v5311
    %v5376 = vadd.f32 %v5212, %v5312
    %v5377 = vadd.f32 %v5213, %v5313
    %v5378 = vadd.f32 %v5214, %v5314
    %v5379 = vadd.f32 %v5215, %v5315
    %v5380 = vadd.f32 %v5216, %v5316
    %v5381 = vadd.f32 %v5217, %v5317
    %v5382 = vadd.f32 %v5218, %v5318
    %v5383 = vadd.f32 %v5219, %v5319
    %v5384 = vadd.f32 %v5220, %v5320
    %v5385 = vadd.f32 %v5221, %v5321
    %v5386 = vadd.f32 %v5222, %v5322
    %v5387 = vadd.f32 %v5223, %v5323
    %v5388 = vadd.f32 %v5224, %v5324
    %v5389 = vadd.f32 %v5225, %v5325
    %v5390 = vadd.f32 %v5226, %v5326
    %v5391 = vadd.f32 %v5227, %v5327
    %v5392 = vadd.f32 %v5228, %v5328
    %v5393 = vadd.f32 %v5229, %v5329
    %v5394 = vadd.f32 %v5230, %v5330
    %v5395 = vadd.f32 %v5231, %v5331
    %v5396 = vadd.f32 %v5232, %v5332
    %v5397 = vadd.f32 %v5233, %v5333
    %v5398 = vadd.f32 %v5234, %v5334
    %v5399 = vadd.f32 %v5235, %v5335
    %v5400 = vadd.f32 %v5236, %v5336
    %v5401 = vadd.f32 %v5237, %v5337
    %v5402 = vadd.f32 %v5238, %v5338
    %v5403 = vadd.f32 %v5239, %v5339
    %v5404 = vadd.f32 %v5240, %v5340
    %v5405 = vadd.f32 %v5241, %v5341
    %v5406 = vadd.f32 %v5242, %v5342
    %v5407 = vadd.f32 %v5243, %v5343
    %v5408 = vadd.f32 %v5244, %v5344
    %v5409 = vadd.f32 %v5245, %v5345
    %v5410 = vadd.f32 %v5246, %v5346
    %v5411 = vadd.f32 %v5247, %v5347
    %v5412 = vadd.f32 %v5248, %v5348
    %v5413 = vadd.f32 %v5249, %v5349
    %v5414 = vadd.f32 %v5250, %v5350
    %v5415 = vadd.f32 %v5251, %v5351
    %v5416 = vadd.f32 %v5252, %v5352
    %v5417 = vadd.f32 %v5353, %v729
    %v5418 = vadd.f32 %v5354, %v729
    %v5419 = vadd.f32 %v5355, %v729
    %v5420 = vadd.f32 %v5356, %v729
    %v5421 = vadd.f32 %v5357, %v734
    %v5422 = vadd.f32 %v5358, %v734
    %v5423 = vadd.f32 %v5359, %v734
    %v5424 = vadd.f32 %v5360, %v734
    %v5425 = vadd.f32 %v5361, %v739
    %v5426 = vadd.f32 %v5362, %v739
    %v5427 = vadd.f32 %v5363, %v739
    %v5428 = vadd.f32 %v5364, %v739
    %v5429 = vadd.f32 %v5365, %v744
    %v5430 = vadd.f32 %v5366, %v744
    %v5431 = vadd.f32 %v5367, %v744
    %v5432 = vadd.f32 %v5368, %v744
    %v5433 = vadd.f32 %v5369, %v749
    %v5434 = vadd.f32 %v5370, %v749
    %v5435 = vadd.f32 %v5371, %v749
    %v5436 = vadd.f32 %v5372, %v749
    %v5437 = vadd.f32 %v5373, %v754
    %v5438 = vadd.f32 %v5374, %v754
    %v5439 = vadd.f32 %v5375, %v754
    %v5440 = vadd.f32 %v5376, %v754
    %v5441 = vadd.f32 %v5377, %v759
    %v5442 = vadd.f32 %v5378, %v759
    %v5443 = vadd.f32 %v5379, %v759
    %v5444 = vadd.f32 %v5380, %v759
    %v5445 = vadd.f32 %v5381, %v764
    %v5446 = vadd.f32 %v5382, %v764
    %v5447 = vadd.f32 %v5383, %v764
    %v5448 = vadd.f32 %v5384, %v764
    %v5449 = vadd.f32 %v5385, %v769
    %v5450 = vadd.f32 %v5386, %v769
    %v5451 = vadd.f32 %v5387, %v769
    %v5452 = vadd.f32 %v5388, %v769
    %v5453 = vadd.f32 %v5389, %v774
    %v5454 = vadd.f32 %v5390, %v774
    %v5455 = vadd.f32 %v5391, %v774
    %v5456 = vadd.f32 %v5392, %v774
    %v5457 = vadd.f32 %v5393, %v779
    %v5458 = vadd.f32 %v5394, %v779
    %v5459 = vadd.f32 %v5395, %v779
    %v5460 = vadd.f32 %v5396, %v779
    %v5461 = vadd.f32 %v5397, %v784
    %v5462 = vadd.f32 %v5398, %v784
    %v5463 = vadd.f32 %v5399, %v784
    %v5464 = vadd.f32 %v5400, %v784
    %v5465 = vadd.f32 %v5401, %v789
    %v5466 = vadd.f32 %v5402, %v789
    %v5467 = vadd.f32 %v5403, %v789
    %v5468 = vadd.f32 %v5404, %v789
    %v5469 = vadd.f32 %v5405, %v794
    %v5470 = vadd.f32 %v5406, %v794
    %v5471 = vadd.f32 %v5407, %v794
    %v5472 = vadd.f32 %v5408, %v794
    %v5473 = vadd.f32 %v5409, %v799
    %v5474 = vadd.f32 %v5410, %v799
    %v5475 = vadd.f32 %v5411, %v799
    %v5476 = vadd.f32 %v5412, %v799
    %v5477 = vadd.f32 %v5413, %v804
    %v5478 = vadd.f32 %v5414, %v804
    %v5479 = vadd.f32 %v5415, %v804
    %v5480 = vadd.f32 %v5416, %v804
    %v5481 = vmax.f32 %v5417, 0.0
    %v5482 = vmax.f32 %v5418, 0.0
    %v5483 = vmax.f32 %v5419, 0.0
    %v5484 = vmax.f32 %v5420, 0.0
    %v5485 = vmax.f32 %v5421, 0.0
    %v5486 = vmax.f32 %v5422, 0.0
    %v5487 = vmax.f32 %v5423, 0.0
    %v5488 = vmax.f32 %v5424, 0.0
    %v5489 = vmax.f32 %v5425, 0.0
    %v5490 = vmax.f32 %v5426, 0.0
    %v5491 = vmax.f32 %v5427, 0.0
    %v5492 = vmax.f32 %v5428, 0.0
    %v5493 = vmax.f32 %v5429, 0.0
    %v5494 = vmax.f32 %v5430, 0.0
    %v5495 = vmax.f32 %v5431, 0.0
    %v5496 = vmax.f32 %v5432, 0.0
    %v5497 = vmax.f32 %v5433, 0.0
    %v5498 = vmax.f32 %v5434, 0.0
    %v5499 = vmax.f32 %v5435, 0.0
    %v5500 = vmax.f32 %v5436, 0.0
    %v5501 = vmax.f32 %v5437, 0.0
    %v5502 = vmax.f32 %v5438, 0.0
    %v5503 = vmax.f32 %v5439, 0.0
    %v5504 = vmax.f32 %v5440, 0.0
    %v5505 = vmax.f32 %v5441, 0.0
    %v5506 = vmax.f32 %v5442, 0.0
    %v5507 = vmax.f32 %v5443, 0.0
    %v5508 = vmax.f32 %v5444, 0.0
    %v5509 = vmax.f32 %v5445, 0.0
    %v5510 = vmax.f32 %v5446, 0.0
    %v5511 = vmax.f32 %v5447, 0.0
    %v5512 = vmax.f32 %v5448, 0.0
    %v5513 = vmax.f32 %v5449, 0.0
    %v5514 = vmax.f32 %v5450, 0.0
    %v5515 = vmax.f32 %v5451, 0.0
    %v5516 = vmax.f32 %v5452, 0.0
    %v5517 = vmax.f32 %v5453, 0.0
    %v5518 = vmax.f32 %v5454, 0.0
    %v5519 = vmax.f32 %v5455, 0.0
    %v5520 = vmax.f32 %v5456, 0.0
    %v5521 = vmax.f32 %v5457, 0.0
    %v5522 = vmax.f32 %v5458, 0.0
    %v5523 = vmax.f32 %v5459, 0.0
    %v5524 = vmax.f32 %v5460, 0.0
    %v5525 = vmax.f32 %v5461, 0.0
    %v5526 = vmax.f32 %v5462, 0.0
    %v5527 = vmax.f32 %v5463, 0.0
    %v5528 = vmax.f32 %v5464, 0.0
    %v5529 = vmax.f32 %v5465, 0.0
    %v5530 = vmax.f32 %v5466, 0.0
    %v5531 = vmax.f32 %v5467, 0.0
    %v5532 = vmax.f32 %v5468, 0.0
    %v5533 = vmax.f32 %v5469, 0.0
    %v5534 = vmax.f32 %v5470, 0.0
    %v5535 = vmax.f32 %v5471, 0.0
    %v5536 = vmax.f32 %v5472, 0.0
    %v5537 = vmax.f32 %v5473, 0.0
    %v5538 = vmax.f32 %v5474, 0.0
    %v5539 = vmax.f32 %v5475, 0.0
    %v5540 = vmax.f32 %v5476, 0.0
    %v5541 = vmax.f32 %v5477, 0.0
    %v5542 = vmax.f32 %v5478, 0.0
    %v5543 = vmax.f32 %v5479, 0.0
    %v5544 = vmax.f32 %v5480, 0.0
    %v5545 = vpack.c.bf16 %v5485, %v5481
    %v5546 = vpack.c.bf16 %v5486, %v5482
    %v5547 = vpack.c.bf16 %v5487, %v5483
    %v5548 = vpack.c.bf16 %v5488, %v5484
    %v5549 = vpack.c.bf16 %v5493, %v5489
    %v5550 = vpack.c.bf16 %v5494, %v5490
    %v5551 = vpack.c.bf16 %v5495, %v5491
    %v5552 = vpack.c.bf16 %v5496, %v5492
    %v5553 = vpack.c.bf16 %v5501, %v5497
    %v5554 = vpack.c.bf16 %v5502, %v5498
    %v5555 = vpack.c.bf16 %v5503, %v5499
    %v5556 = vpack.c.bf16 %v5504, %v5500
    %v5557 = vpack.c.bf16 %v5509, %v5505
    %v5558 = vpack.c.bf16 %v5510, %v5506
    %v5559 = vpack.c.bf16 %v5511, %v5507
    %v5560 = vpack.c.bf16 %v5512, %v5508
    %v5561 = vpack.c.bf16 %v5517, %v5513
    %v5562 = vpack.c.bf16 %v5518, %v5514
    %v5563 = vpack.c.bf16 %v5519, %v5515
    %v5564 = vpack.c.bf16 %v5520, %v5516
    %v5565 = vpack.c.bf16 %v5525, %v5521
    %v5566 = vpack.c.bf16 %v5526, %v5522
    %v5567 = vpack.c.bf16 %v5527, %v5523
    %v5568 = vpack.c.bf16 %v5528, %v5524
    %v5569 = vpack.c.bf16 %v5533, %v5529
    %v5570 = vpack.c.bf16 %v5534, %v5530
    %v5571 = vpack.c.bf16 %v5535, %v5531
    %v5572 = vpack.c.bf16 %v5536, %v5532
    %v5573 = vpack.c.bf16 %v5541, %v5537
    %v5574 = vpack.c.bf16 %v5542, %v5538
    %v5575 = vpack.c.bf16 %v5543, %v5539
    %v5576 = vpack.c.bf16 %v5544, %v5540
    %5577 = vmatprep.subr.bf16.mxu0 %v5546
    %5578 = vmatpush1.bf16.msra.mxu0 %v5545
    %5579 = vmatprep.subr.bf16.mxu0 %v5550
    %5580 = vmatpush1.bf16.msra.mxu0 %v5549
    %5581 = vmatprep.subr.bf16.mxu0 %v5554
    %5582 = vmatpush1.bf16.msra.mxu0 %v5553
    %5583 = vmatprep.subr.bf16.mxu0 %v5558
    %5584 = vmatpush1.bf16.msra.mxu0 %v5557
    %5585 = vmatprep.subr.bf16.mxu0 %v5562
    %5586 = vmatpush1.bf16.msra.mxu0 %v5561
    %5587 = vmatprep.subr.bf16.mxu0 %v5566
    %5588 = vmatpush1.bf16.msra.mxu0 %v5565
    %5589 = vmatprep.subr.bf16.mxu0 %v5570
    %5590 = vmatpush1.bf16.msra.mxu0 %v5569
    %5591 = vmatprep.subr.bf16.mxu0 %v5574
    %5592 = vmatpush1.bf16.msra.mxu0 %v5573
    %5593 = vmatprep.subr.bf16.mxu0 0
    %5594 = vmatpush1.bf16.msra.mxu0 0
    %5595 = vmatprep.subr.bf16.mxu0 0
    %5596 = vmatpush1.bf16.msra.mxu0 0
    %5597 = vmatprep.subr.bf16.mxu0 0
    %5598 = vmatpush1.bf16.msra.mxu0 0
    %5599 = vmatprep.subr.bf16.mxu0 0
    %5600 = vmatpush1.bf16.msra.mxu0 0
    %5601 = vmatprep.subr.bf16.mxu0 0
    %5602 = vmatpush1.bf16.msra.mxu0 0
    %5603 = vmatprep.subr.bf16.mxu0 0
    %5604 = vmatpush1.bf16.msra.mxu0 0
    %5605 = vmatprep.subr.bf16.mxu0 0
    %5606 = vmatpush1.bf16.msra.mxu0 0
    %5607 = vmatprep.subr.bf16.mxu0 0
    %5608 = vmatpush1.bf16.msra.mxu0 0
    %5609 = vmatprep.mubr.bf16.mxu0 0
    %5610 = vmatmul.mubr.bf16.gmra.mrb[0].mxu0 %v998
    %v5611 = vpop.f32.mrb[0].mxu0
    %v5612 = vadd.f32 0.0, %v5611
    %v5613 = vpop.f32.mrb[0].mxu0
    %v5614 = vadd.f32 0.0, %v5613
    %v5615 = vpop.f32.mrb[0].mxu0
    %v5616 = vadd.f32 0.0, %v5615
    %v5617 = vpop.f32.mrb[0].mxu0
    %v5618 = vadd.f32 0.0, %v5617
    %5619 = vmatprep.mubr.bf16.mxu0 0
    %5620 = vmatmul.mubr.bf16.gmra.mrb[0].mxu0 %v999
    %v5621 = vpop.f32.mrb[0].mxu0
    %v5622 = vadd.f32 0.0, %v5621
    %v5623 = vpop.f32.mrb[0].mxu0
    %v5624 = vadd.f32 0.0, %v5623
    %v5625 = vpop.f32.mrb[0].mxu0
    %v5626 = vadd.f32 0.0, %v5625
    %v5627 = vpop.f32.mrb[0].mxu0
    %v5628 = vadd.f32 0.0, %v5627
    %5629 = vmatprep.mubr.bf16.mxu0 0
    %5630 = vmatmul.mubr.bf16.gmra.mrb[0].mxu0 %v1000
    %v5631 = vpop.f32.mrb[0].mxu0
    %v5632 = vadd.f32 0.0, %v5631
    %v5633 = vpop.f32.mrb[0].mxu0
    %v5634 = vadd.f32 0.0, %v5633
    %v5635 = vpop.f32.mrb[0].mxu0
    %v5636 = vadd.f32 0.0, %v5635
    %v5637 = vpop.f32.mrb[0].mxu0
    %v5638 = vadd.f32 0.0, %v5637
    %5639 = vmatprep.mubr.bf16.mxu0 0
    %5640 = vmatmul.mubr.bf16.gmra.mrb[0].mxu0 %v1001
    %v5641 = vpop.f32.mrb[0].mxu0
    %v5642 = vadd.f32 0.0, %v5641
    %v5643 = vpop.f32.mrb[0].mxu0
    %v5644 = vadd.f32 0.0, %v5643
    %v5645 = vpop.f32.mrb[0].mxu0
    %v5646 = vadd.f32 0.0, %v5645
    %v5647 = vpop.f32.mrb[0].mxu0
    %v5648 = vadd.f32 0.0, %v5647
    %5649 = vmatprep.mubr.bf16.mxu0 0
    %5650 = vmatmul.mubr.bf16.gmra.mrb[0].mxu0 %v1002
    %v5651 = vpop.f32.mrb[0].mxu0
    %v5652 = vadd.f32 0.0, %v5651
    %v5653 = vpop.f32.mrb[0].mxu0
    %v5654 = vadd.f32 0.0, %v5653
    %v5655 = vpop.f32.mrb[0].mxu0
    %v5656 = vadd.f32 0.0, %v5655
    %v5657 = vpop.f32.mrb[0].mxu0
    %v5658 = vadd.f32 0.0, %v5657
    %5659 = vmatprep.mubr.bf16.mxu0 0
    %5660 = vmatmul.mubr.bf16.gmra.mrb[0].mxu0 %v1003
    %v5661 = vpop.f32.mrb[0].mxu0
    %v5662 = vadd.f32 0.0, %v5661
    %v5663 = vpop.f32.mrb[0].mxu0
    %v5664 = vadd.f32 0.0, %v5663
    %v5665 = vpop.f32.mrb[0].mxu0
    %v5666 = vadd.f32 0.0, %v5665
    %v5667 = vpop.f32.mrb[0].mxu0
    %v5668 = vadd.f32 0.0, %v5667
    %5669 = vmatprep.mubr.bf16.mxu0 0
    %5670 = vmatmul.mubr.bf16.gmra.mrb[0].mxu0 %v1004
    %v5671 = vpop.f32.mrb[0].mxu0
    %v5672 = vadd.f32 0.0, %v5671
    %v5673 = vpop.f32.mrb[0].mxu0
    %v5674 = vadd.f32 0.0, %v5673
    %v5675 = vpop.f32.mrb[0].mxu0
    %v5676 = vadd.f32 0.0, %v5675
    %v5677 = vpop.f32.mrb[0].mxu0
    %v5678 = vadd.f32 0.0, %v5677
    %5679 = vmatprep.mubr.bf16.mxu0 0
    %5680 = vmatmul.mubr.bf16.gmra.mrb[0].mxu0 %v1005
    %v5681 = vpop.f32.mrb[0].mxu0
    %v5682 = vadd.f32 0.0, %v5681
    %v5683 = vpop.f32.mrb[0].mxu0
    %v5684 = vadd.f32 0.0, %v5683
    %v5685 = vpop.f32.mrb[0].mxu0
    %v5686 = vadd.f32 0.0, %v5685
    %v5687 = vpop.f32.mrb[0].mxu0
    %v5688 = vadd.f32 0.0, %v5687
    %5689 = vdwg.mxu0
    %5690 = vmatprep.subr.bf16.mxu0 %v5548
    %5691 = vmatpush1.bf16.msra.mxu0 %v5547
    %5692 = vmatprep.subr.bf16.mxu0 %v5552
    %5693 = vmatpush1.bf16.msra.mxu0 %v5551
    %5694 = vmatprep.subr.bf16.mxu0 %v5556
    %5695 = vmatpush1.bf16.msra.mxu0 %v5555
    %5696 = vmatprep.subr.bf16.mxu0 %v5560
    %5697 = vmatpush1.bf16.msra.mxu0 %v5559
    %5698 = vmatprep.subr.bf16.mxu0 %v5564
    %5699 = vmatpush1.bf16.msra.mxu0 %v5563
    %5700 = vmatprep.subr.bf16.mxu0 %v5568
    %5701 = vmatpush1.bf16.msra.mxu0 %v5567
    %5702 = vmatprep.subr.bf16.mxu0 %v5572
    %5703 = vmatpush1.bf16.msra.mxu0 %v5571
    %5704 = vmatprep.subr.bf16.mxu0 %v5576
    %5705 = vmatpush1.bf16.msra.mxu0 %v5575
    %5706 = vmatprep.subr.bf16.mxu0 0
    %5707 = vmatpush1.bf16.msra.mxu0 0
    %5708 = vmatprep.subr.bf16.mxu0 0
    %5709 = vmatpush1.bf16.msra.mxu0 0
    %5710 = vmatprep.subr.bf16.mxu0 0
    %5711 = vmatpush1.bf16.msra.mxu0 0
    %5712 = vmatprep.subr.bf16.mxu0 0
    %5713 = vmatpush1.bf16.msra.mxu0 0
    %5714 = vmatprep.subr.bf16.mxu0 0
    %5715 = vmatpush1.bf16.msra.mxu0 0
    %5716 = vmatprep.subr.bf16.mxu0 0
    %5717 = vmatpush1.bf16.msra.mxu0 0
    %5718 = vmatprep.subr.bf16.mxu0 0
    %5719 = vmatpush1.bf16.msra.mxu0 0
    %5720 = vmatprep.subr.bf16.mxu0 0
    %5721 = vmatpush1.bf16.msra.mxu0 0
    %5722 = vmatprep.mubr.bf16.mxu0 0
    %5723 = vmatmul.mubr.bf16.gmra.mrb[0].mxu0 %v998
    %v5724 = vpop.f32.mrb[0].mxu0
    %v5725 = vadd.f32 0.0, %v5724
    %v5726 = vpop.f32.mrb[0].mxu0
    %v5727 = vadd.f32 0.0, %v5726
    %v5728 = vpop.f32.mrb[0].mxu0
    %v5729 = vadd.f32 0.0, %v5728
    %v5730 = vpop.f32.mrb[0].mxu0
    %v5731 = vadd.f32 0.0, %v5730
    %5732 = vmatprep.mubr.bf16.mxu0 0
    %5733 = vmatmul.mubr.bf16.gmra.mrb[0].mxu0 %v999
    %v5734 = vpop.f32.mrb[0].mxu0
    %v5735 = vadd.f32 0.0, %v5734
    %v5736 = vpop.f32.mrb[0].mxu0
    %v5737 = vadd.f32 0.0, %v5736
    %v5738 = vpop.f32.mrb[0].mxu0
    %v5739 = vadd.f32 0.0, %v5738
    %v5740 = vpop.f32.mrb[0].mxu0
    %v5741 = vadd.f32 0.0, %v5740
    %5742 = vmatprep.mubr.bf16.mxu0 0
    %5743 = vmatmul.mubr.bf16.gmra.mrb[0].mxu0 %v1000
    %v5744 = vpop.f32.mrb[0].mxu0
    %v5745 = vadd.f32 0.0, %v5744
    %v5746 = vpop.f32.mrb[0].mxu0
    %v5747 = vadd.f32 0.0, %v5746
    %v5748 = vpop.f32.mrb[0].mxu0
    %v5749 = vadd.f32 0.0, %v5748
    %v5750 = vpop.f32.mrb[0].mxu0
    %v5751 = vadd.f32 0.0, %v5750
    %5752 = vmatprep.mubr.bf16.mxu0 0
    %5753 = vmatmul.mubr.bf16.gmra.mrb[0].mxu0 %v1001
    %v5754 = vpop.f32.mrb[0].mxu0
    %v5755 = vadd.f32 0.0, %v5754
    %v5756 = vpop.f32.mrb[0].mxu0
    %v5757 = vadd.f32 0.0, %v5756
    %v5758 = vpop.f32.mrb[0].mxu0
    %v5759 = vadd.f32 0.0, %v5758
    %v5760 = vpop.f32.mrb[0].mxu0
    %v5761 = vadd.f32 0.0, %v5760
    %5762 = vmatprep.mubr.bf16.mxu0 0
    %5763 = vmatmul.mubr.bf16.gmra.mrb[0].mxu0 %v1002
    %v5764 = vpop.f32.mrb[0].mxu0
    %v5765 = vadd.f32 0.0, %v5764
    %v5766 = vpop.f32.mrb[0].mxu0
    %v5767 = vadd.f32 0.0, %v5766
    %v5768 = vpop.f32.mrb[0].mxu0
    %v5769 = vadd.f32 0.0, %v5768
    %v5770 = vpop.f32.mrb[0].mxu0
    %v5771 = vadd.f32 0.0, %v5770
    %5772 = vmatprep.mubr.bf16.mxu0 0
    %5773 = vmatmul.mubr.bf16.gmra.mrb[0].mxu0 %v1003
    %v5774 = vpop.f32.mrb[0].mxu0
    %v5775 = vadd.f32 0.0, %v5774
    %v5776 = vpop.f32.mrb[0].mxu0
    %v5777 = vadd.f32 0.0, %v5776
    %v5778 = vpop.f32.mrb[0].mxu0
    %v5779 = vadd.f32 0.0, %v5778
    %v5780 = vpop.f32.mrb[0].mxu0
    %v5781 = vadd.f32 0.0, %v5780
    %5782 = vmatprep.mubr.bf16.mxu0 0
    %5783 = vmatmul.mubr.bf16.gmra.mrb[0].mxu0 %v1004
    %v5784 = vpop.f32.mrb[0].mxu0
    %v5785 = vadd.f32 0.0, %v5784
    %v5786 = vpop.f32.mrb[0].mxu0
    %v5787 = vadd.f32 0.0, %v5786
    %v5788 = vpop.f32.mrb[0].mxu0
    %v5789 = vadd.f32 0.0, %v5788
    %v5790 = vpop.f32.mrb[0].mxu0
    %v5791 = vadd.f32 0.0, %v5790
    %5792 = vmatprep.mubr.bf16.mxu0 0
    %5793 = vmatmul.mubr.bf16.gmra.mrb[0].mxu0 %v1005
    %v5794 = vpop.f32.mrb[0].mxu0
    %v5795 = vadd.f32 0.0, %v5794
    %v5796 = vpop.f32.mrb[0].mxu0
    %v5797 = vadd.f32 0.0, %v5796
    %v5798 = vpop.f32.mrb[0].mxu0
    %v5799 = vadd.f32 0.0, %v5798
    %v5800 = vpop.f32.mrb[0].mxu0
    %v5801 = vadd.f32 0.0, %v5800
    %5802 = vdwg.mxu0
    %v5803 = vmax.f32 %v5612, %v5614
    %v5804 = vmax.f32 %v5803, %v5725
    %v5805 = vmax.f32 %v5804, %v5727
    %5806 = vmax.xlane.f32.xlu0 %v5805
    %v5807 = vpop.xlane.xlu0 %5806
    %v5808 = vmax.f32 %v5616, %v5618
    %v5809 = vmax.f32 %v5808, %v5729
    %v5810 = vmax.f32 %v5809, %v5731
    %5811 = vmax.xlane.f32.xlu0 %v5810
    %v5812 = vpop.xlane.xlu0 %5811
    %v5813 = vmax.f32 %v5622, %v5624
    %v5814 = vmax.f32 %v5813, %v5735
    %v5815 = vmax.f32 %v5814, %v5737
    %5816 = vmax.xlane.f32.xlu0 %v5815
    %v5817 = vpop.xlane.xlu0 %5816
    %v5818 = vmax.f32 %v5626, %v5628
    %v5819 = vmax.f32 %v5818, %v5739
    %v5820 = vmax.f32 %v5819, %v5741
    %5821 = vmax.xlane.f32.xlu0 %v5820
    %v5822 = vpop.xlane.xlu0 %5821
    %v5823 = vmax.f32 %v5632, %v5634
    %v5824 = vmax.f32 %v5823, %v5745
    %v5825 = vmax.f32 %v5824, %v5747
    %5826 = vmax.xlane.f32.xlu0 %v5825
    %v5827 = vpop.xlane.xlu0 %5826
    %v5828 = vmax.f32 %v5636, %v5638
    %v5829 = vmax.f32 %v5828, %v5749
    %v5830 = vmax.f32 %v5829, %v5751
    %5831 = vmax.xlane.f32.xlu0 %v5830
    %v5832 = vpop.xlane.xlu0 %5831
    %v5833 = vmax.f32 %v5642, %v5644
    %v5834 = vmax.f32 %v5833, %v5755
    %v5835 = vmax.f32 %v5834, %v5757
    %5836 = vmax.xlane.f32.xlu0 %v5835
    %v5837 = vpop.xlane.xlu0 %5836
    %v5838 = vmax.f32 %v5646, %v5648
    %v5839 = vmax.f32 %v5838, %v5759
    %v5840 = vmax.f32 %v5839, %v5761
    %5841 = vmax.xlane.f32.xlu0 %v5840
    %v5842 = vpop.xlane.xlu0 %5841
    %v5843 = vmax.f32 %v5652, %v5654
    %v5844 = vmax.f32 %v5843, %v5765
    %v5845 = vmax.f32 %v5844, %v5767
    %5846 = vmax.xlane.f32.xlu0 %v5845
    %v5847 = vpop.xlane.xlu0 %5846
    %v5848 = vmax.f32 %v5656, %v5658
    %v5849 = vmax.f32 %v5848, %v5769
    %v5850 = vmax.f32 %v5849, %v5771
    %5851 = vmax.xlane.f32.xlu0 %v5850
    %v5852 = vpop.xlane.xlu0 %5851
    %v5853 = vmax.f32 %v5662, %v5664
    %v5854 = vmax.f32 %v5853, %v5775
    %v5855 = vmax.f32 %v5854, %v5777
    %5856 = vmax.xlane.f32.xlu0 %v5855
    %v5857 = vpop.xlane.xlu0 %5856
    %v5858 = vmax.f32 %v5666, %v5668
    %v5859 = vmax.f32 %v5858, %v5779
    %v5860 = vmax.f32 %v5859, %v5781
    %5861 = vmax.xlane.f32.xlu0 %v5860
    %v5862 = vpop.xlane.xlu0 %5861
    %v5863 = vmax.f32 %v5672, %v5674
    %v5864 = vmax.f32 %v5863, %v5785
    %v5865 = vmax.f32 %v5864, %v5787
    %5866 = vmax.xlane.f32.xlu0 %v5865
    %v5867 = vpop.xlane.xlu0 %5866
    %v5868 = vmax.f32 %v5676, %v5678
    %v5869 = vmax.f32 %v5868, %v5789
    %v5870 = vmax.f32 %v5869, %v5791
    %5871 = vmax.xlane.f32.xlu0 %v5870
    %v5872 = vpop.xlane.xlu0 %5871
    %v5873 = vmax.f32 %v5682, %v5684
    %v5874 = vmax.f32 %v5873, %v5795
    %v5875 = vmax.f32 %v5874, %v5797
    %5876 = vmax.xlane.f32.xlu0 %v5875
    %v5877 = vpop.xlane.xlu0 %5876
    %v5878 = vmax.f32 %v5686, %v5688
    %v5879 = vmax.f32 %v5878, %v5799
    %v5880 = vmax.f32 %v5879, %v5801
    %5881 = vmax.xlane.f32.xlu0 %v5880
    %v5882 = vpop.xlane.xlu0 %5881
    %v5883 = vmax.f32 %v4906, %v5807
    %v5884 = vmax.f32 %v4911, %v5812
    %v5885 = vmax.f32 %v4916, %v5817
    %v5886 = vmax.f32 %v4921, %v5822
    %v5887 = vmax.f32 %v4926, %v5827
    %v5888 = vmax.f32 %v4931, %v5832
    %v5889 = vmax.f32 %v4936, %v5837
    %v5890 = vmax.f32 %v4941, %v5842
    %v5891 = vmax.f32 %v4946, %v5847
    %v5892 = vmax.f32 %v4951, %v5852
    %v5893 = vmax.f32 %v4956, %v5857
    %v5894 = vmax.f32 %v4961, %v5862
    %v5895 = vmax.f32 %v4966, %v5867
    %v5896 = vmax.f32 %v4971, %v5872
    %v5897 = vmax.f32 %v4976, %v5877
    %v5898 = vmax.f32 %v4981, %v5882
    %s5899 = sadd.s32 8, 16
    %s5900 = smul.addr %s5899, 4
    %s5901 = scalar_lea.vmem %s0, %s5900
    %v5902 = vld [vmem:[%s5901] sm:$0x77]
    %v5903 = vld [vmem:[%s5901 + $0x8] sm:$0x77]
    %v5906 = vlaneseq
    %v5907 = vshrl.u32 %v5906, 7
    %v5908 = vsub.s32 0, %v5907
    %v5909 = vrot.slane %v5902, %v5908
    %v5910 = vlaneseq
    %v5911 = vshrl.u32 %v5910, 7
    %v5912 = vsub.s32 4, %v5911
    %v5913 = vrot.slane %v5902, %v5912
    %v5914 = vlaneseq
    %v5915 = vshrl.u32 %v5914, 7
    %v5916 = vsub.s32 0, %v5915
    %v5917 = vrot.slane %v5903, %v5916
    %v5918 = vlaneseq
    %v5919 = vshrl.u32 %v5918, 7
    %v5920 = vsub.s32 4, %v5919
    %v5921 = vrot.slane %v5903, %v5920
    %v5926 = vlaneseq
    %v5927 = vshrl.u32 %v5926, 7
    %v5928 = vsub.s32 0, %v5927
    %v5929 = vrot.slane %v5909, %v5928
    %v5930 = vlaneseq
    %v5931 = vshrl.u32 %v5930, 7
    %v5932 = vsub.s32 0, %v5931
    %v5933 = vrot.slane %v5913, %v5932
    %v5934 = vlaneseq
    %v5935 = vshrl.u32 %v5934, 7
    %v5936 = vsub.s32 0, %v5935
    %v5937 = vrot.slane %v5917, %v5936
    %v5938 = vlaneseq
    %v5939 = vshrl.u32 %v5938, 7
    %v5940 = vsub.s32 0, %v5939
    %v5941 = vrot.slane %v5921, %v5940
    %v5942 = vmul.f32 %v91, %v5929
    %v5943 = vmul.f32 %v91, %v5933
    %v5944 = vmul.f32 %v91, %v5937
    %v5945 = vmul.f32 %v91, %v5941
    %v5946 = vmul.f32 %v96, %v5929
    %v5947 = vmul.f32 %v96, %v5933
    %v5948 = vmul.f32 %v96, %v5937
    %v5949 = vmul.f32 %v96, %v5941
    %v5950 = vmul.f32 %v101, %v5929
    %v5951 = vmul.f32 %v101, %v5933
    %v5952 = vmul.f32 %v101, %v5937
    %v5953 = vmul.f32 %v101, %v5941
    %v5954 = vmul.f32 %v106, %v5929
    %v5955 = vmul.f32 %v106, %v5933
    %v5956 = vmul.f32 %v106, %v5937
    %v5957 = vmul.f32 %v106, %v5941
    %v5958 = vmul.f32 %v111, %v5929
    %v5959 = vmul.f32 %v111, %v5933
    %v5960 = vmul.f32 %v111, %v5937
    %v5961 = vmul.f32 %v111, %v5941
    %v5962 = vmul.f32 %v116, %v5929
    %v5963 = vmul.f32 %v116, %v5933
    %v5964 = vmul.f32 %v116, %v5937
    %v5965 = vmul.f32 %v116, %v5941
    %v5966 = vmul.f32 %v121, %v5929
    %v5967 = vmul.f32 %v121, %v5933
    %v5968 = vmul.f32 %v121, %v5937
    %v5969 = vmul.f32 %v121, %v5941
    %v5970 = vmul.f32 %v126, %v5929
    %v5971 = vmul.f32 %v126, %v5933
    %v5972 = vmul.f32 %v126, %v5937
    %v5973 = vmul.f32 %v126, %v5941
    %v5974 = vmul.f32 %v131, %v5929
    %v5975 = vmul.f32 %v131, %v5933
    %v5976 = vmul.f32 %v131, %v5937
    %v5977 = vmul.f32 %v131, %v5941
    %v5978 = vmul.f32 %v136, %v5929
    %v5979 = vmul.f32 %v136, %v5933
    %v5980 = vmul.f32 %v136, %v5937
    %v5981 = vmul.f32 %v136, %v5941
    %v5982 = vmul.f32 %v141, %v5929
    %v5983 = vmul.f32 %v141, %v5933
    %v5984 = vmul.f32 %v141, %v5937
    %v5985 = vmul.f32 %v141, %v5941
    %v5986 = vmul.f32 %v146, %v5929
    %v5987 = vmul.f32 %v146, %v5933
    %v5988 = vmul.f32 %v146, %v5937
    %v5989 = vmul.f32 %v146, %v5941
    %v5990 = vmul.f32 %v151, %v5929
    %v5991 = vmul.f32 %v151, %v5933
    %v5992 = vmul.f32 %v151, %v5937
    %v5993 = vmul.f32 %v151, %v5941
    %v5994 = vmul.f32 %v156, %v5929
    %v5995 = vmul.f32 %v156, %v5933
    %v5996 = vmul.f32 %v156, %v5937
    %v5997 = vmul.f32 %v156, %v5941
    %v5998 = vmul.f32 %v161, %v5929
    %v5999 = vmul.f32 %v161, %v5933
    %v6000 = vmul.f32 %v161, %v5937
    %v6001 = vmul.f32 %v161, %v5941
    %v6002 = vmul.f32 %v166, %v5929
    %v6003 = vmul.f32 %v166, %v5933
    %v6004 = vmul.f32 %v166, %v5937
    %v6005 = vmul.f32 %v166, %v5941
    %v6006 = vlaneseq
    %v6007 = vshrl.u32 %v6006, 7
    %v6008 = vsub.s32 1, %v6007
    %v6009 = vrot.slane %v5902, %v6008
    %v6010 = vlaneseq
    %v6011 = vshrl.u32 %v6010, 7
    %v6012 = vsub.s32 5, %v6011
    %v6013 = vrot.slane %v5902, %v6012
    %v6014 = vlaneseq
    %v6015 = vshrl.u32 %v6014, 7
    %v6016 = vsub.s32 1, %v6015
    %v6017 = vrot.slane %v5903, %v6016
    %v6018 = vlaneseq
    %v6019 = vshrl.u32 %v6018, 7
    %v6020 = vsub.s32 5, %v6019
    %v6021 = vrot.slane %v5903, %v6020
    %v6026 = vlaneseq
    %v6027 = vshrl.u32 %v6026, 7
    %v6028 = vsub.s32 1, %v6027
    %v6029 = vrot.slane %v6009, %v6028
    %v6030 = vlaneseq
    %v6031 = vshrl.u32 %v6030, 7
    %v6032 = vsub.s32 1, %v6031
    %v6033 = vrot.slane %v6013, %v6032
    %v6034 = vlaneseq
    %v6035 = vshrl.u32 %v6034, 7
    %v6036 = vsub.s32 1, %v6035
    %v6037 = vrot.slane %v6017, %v6036
    %v6038 = vlaneseq
    %v6039 = vshrl.u32 %v6038, 7
    %v6040 = vsub.s32 1, %v6039
    %v6041 = vrot.slane %v6021, %v6040
    %v6042 = vmul.f32 %v272, %v6029
    %v6043 = vmul.f32 %v272, %v6033
    %v6044 = vmul.f32 %v272, %v6037
    %v6045 = vmul.f32 %v272, %v6041
    %v6046 = vmul.f32 %v276, %v6029
    %v6047 = vmul.f32 %v276, %v6033
    %v6048 = vmul.f32 %v276, %v6037
    %v6049 = vmul.f32 %v276, %v6041
    %v6050 = vmul.f32 %v280, %v6029
    %v6051 = vmul.f32 %v280, %v6033
    %v6052 = vmul.f32 %v280, %v6037
    %v6053 = vmul.f32 %v280, %v6041
    %v6054 = vmul.f32 %v284, %v6029
    %v6055 = vmul.f32 %v284, %v6033
    %v6056 = vmul.f32 %v284, %v6037
    %v6057 = vmul.f32 %v284, %v6041
    %v6058 = vmul.f32 %v288, %v6029
    %v6059 = vmul.f32 %v288, %v6033
    %v6060 = vmul.f32 %v288, %v6037
    %v6061 = vmul.f32 %v288, %v6041
    %v6062 = vmul.f32 %v292, %v6029
    %v6063 = vmul.f32 %v292, %v6033
    %v6064 = vmul.f32 %v292, %v6037
    %v6065 = vmul.f32 %v292, %v6041
    %v6066 = vmul.f32 %v296, %v6029
    %v6067 = vmul.f32 %v296, %v6033
    %v6068 = vmul.f32 %v296, %v6037
    %v6069 = vmul.f32 %v296, %v6041
    %v6070 = vmul.f32 %v300, %v6029
    %v6071 = vmul.f32 %v300, %v6033
    %v6072 = vmul.f32 %v300, %v6037
    %v6073 = vmul.f32 %v300, %v6041
    %v6074 = vmul.f32 %v304, %v6029
    %v6075 = vmul.f32 %v304, %v6033
    %v6076 = vmul.f32 %v304, %v6037
    %v6077 = vmul.f32 %v304, %v6041
    %v6078 = vmul.f32 %v308, %v6029
    %v6079 = vmul.f32 %v308, %v6033
    %v6080 = vmul.f32 %v308, %v6037
    %v6081 = vmul.f32 %v308, %v6041
    %v6082 = vmul.f32 %v312, %v6029
    %v6083 = vmul.f32 %v312, %v6033
    %v6084 = vmul.f32 %v312, %v6037
    %v6085 = vmul.f32 %v312, %v6041
    %v6086 = vmul.f32 %v316, %v6029
    %v6087 = vmul.f32 %v316, %v6033
    %v6088 = vmul.f32 %v316, %v6037
    %v6089 = vmul.f32 %v316, %v6041
    %v6090 = vmul.f32 %v320, %v6029
    %v6091 = vmul.f32 %v320, %v6033
    %v6092 = vmul.f32 %v320, %v6037
    %v6093 = vmul.f32 %v320, %v6041
    %v6094 = vmul.f32 %v324, %v6029
    %v6095 = vmul.f32 %v324, %v6033
    %v6096 = vmul.f32 %v324, %v6037
    %v6097 = vmul.f32 %v324, %v6041
    %v6098 = vmul.f32 %v328, %v6029
    %v6099 = vmul.f32 %v328, %v6033
    %v6100 = vmul.f32 %v328, %v6037
    %v6101 = vmul.f32 %v328, %v6041
    %v6102 = vmul.f32 %v332, %v6029
    %v6103 = vmul.f32 %v332, %v6033
    %v6104 = vmul.f32 %v332, %v6037
    %v6105 = vmul.f32 %v332, %v6041
    %v6106 = vadd.f32 %v5942, %v6042
    %v6107 = vadd.f32 %v5943, %v6043
    %v6108 = vadd.f32 %v5944, %v6044
    %v6109 = vadd.f32 %v5945, %v6045
    %v6110 = vadd.f32 %v5946, %v6046
    %v6111 = vadd.f32 %v5947, %v6047
    %v6112 = vadd.f32 %v5948, %v6048
    %v6113 = vadd.f32 %v5949, %v6049
    %v6114 = vadd.f32 %v5950, %v6050
    %v6115 = vadd.f32 %v5951, %v6051
    %v6116 = vadd.f32 %v5952, %v6052
    %v6117 = vadd.f32 %v5953, %v6053
    %v6118 = vadd.f32 %v5954, %v6054
    %v6119 = vadd.f32 %v5955, %v6055
    %v6120 = vadd.f32 %v5956, %v6056
    %v6121 = vadd.f32 %v5957, %v6057
    %v6122 = vadd.f32 %v5958, %v6058
    %v6123 = vadd.f32 %v5959, %v6059
    %v6124 = vadd.f32 %v5960, %v6060
    %v6125 = vadd.f32 %v5961, %v6061
    %v6126 = vadd.f32 %v5962, %v6062
    %v6127 = vadd.f32 %v5963, %v6063
    %v6128 = vadd.f32 %v5964, %v6064
    %v6129 = vadd.f32 %v5965, %v6065
    %v6130 = vadd.f32 %v5966, %v6066
    %v6131 = vadd.f32 %v5967, %v6067
    %v6132 = vadd.f32 %v5968, %v6068
    %v6133 = vadd.f32 %v5969, %v6069
    %v6134 = vadd.f32 %v5970, %v6070
    %v6135 = vadd.f32 %v5971, %v6071
    %v6136 = vadd.f32 %v5972, %v6072
    %v6137 = vadd.f32 %v5973, %v6073
    %v6138 = vadd.f32 %v5974, %v6074
    %v6139 = vadd.f32 %v5975, %v6075
    %v6140 = vadd.f32 %v5976, %v6076
    %v6141 = vadd.f32 %v5977, %v6077
    %v6142 = vadd.f32 %v5978, %v6078
    %v6143 = vadd.f32 %v5979, %v6079
    %v6144 = vadd.f32 %v5980, %v6080
    %v6145 = vadd.f32 %v5981, %v6081
    %v6146 = vadd.f32 %v5982, %v6082
    %v6147 = vadd.f32 %v5983, %v6083
    %v6148 = vadd.f32 %v5984, %v6084
    %v6149 = vadd.f32 %v5985, %v6085
    %v6150 = vadd.f32 %v5986, %v6086
    %v6151 = vadd.f32 %v5987, %v6087
    %v6152 = vadd.f32 %v5988, %v6088
    %v6153 = vadd.f32 %v5989, %v6089
    %v6154 = vadd.f32 %v5990, %v6090
    %v6155 = vadd.f32 %v5991, %v6091
    %v6156 = vadd.f32 %v5992, %v6092
    %v6157 = vadd.f32 %v5993, %v6093
    %v6158 = vadd.f32 %v5994, %v6094
    %v6159 = vadd.f32 %v5995, %v6095
    %v6160 = vadd.f32 %v5996, %v6096
    %v6161 = vadd.f32 %v5997, %v6097
    %v6162 = vadd.f32 %v5998, %v6098
    %v6163 = vadd.f32 %v5999, %v6099
    %v6164 = vadd.f32 %v6000, %v6100
    %v6165 = vadd.f32 %v6001, %v6101
    %v6166 = vadd.f32 %v6002, %v6102
    %v6167 = vadd.f32 %v6003, %v6103
    %v6168 = vadd.f32 %v6004, %v6104
    %v6169 = vadd.f32 %v6005, %v6105
    %v6170 = vlaneseq
    %v6171 = vshrl.u32 %v6170, 7
    %v6172 = vsub.s32 2, %v6171
    %v6173 = vrot.slane %v5902, %v6172
    %v6174 = vlaneseq
    %v6175 = vshrl.u32 %v6174, 7
    %v6176 = vsub.s32 6, %v6175
    %v6177 = vrot.slane %v5902, %v6176
    %v6178 = vlaneseq
    %v6179 = vshrl.u32 %v6178, 7
    %v6180 = vsub.s32 2, %v6179
    %v6181 = vrot.slane %v5903, %v6180
    %v6182 = vlaneseq
    %v6183 = vshrl.u32 %v6182, 7
    %v6184 = vsub.s32 6, %v6183
    %v6185 = vrot.slane %v5903, %v6184
    %v6190 = vlaneseq
    %v6191 = vshrl.u32 %v6190, 7
    %v6192 = vsub.s32 2, %v6191
    %v6193 = vrot.slane %v6173, %v6192
    %v6194 = vlaneseq
    %v6195 = vshrl.u32 %v6194, 7
    %v6196 = vsub.s32 2, %v6195
    %v6197 = vrot.slane %v6177, %v6196
    %v6198 = vlaneseq
    %v6199 = vshrl.u32 %v6198, 7
    %v6200 = vsub.s32 2, %v6199
    %v6201 = vrot.slane %v6181, %v6200
    %v6202 = vlaneseq
    %v6203 = vshrl.u32 %v6202, 7
    %v6204 = vsub.s32 2, %v6203
    %v6205 = vrot.slane %v6185, %v6204
    %v6206 = vmul.f32 %v500, %v6193
    %v6207 = vmul.f32 %v500, %v6197
    %v6208 = vmul.f32 %v500, %v6201
    %v6209 = vmul.f32 %v500, %v6205
    %v6210 = vmul.f32 %v504, %v6193
    %v6211 = vmul.f32 %v504, %v6197
    %v6212 = vmul.f32 %v504, %v6201
    %v6213 = vmul.f32 %v504, %v6205
    %v6214 = vmul.f32 %v508, %v6193
    %v6215 = vmul.f32 %v508, %v6197
    %v6216 = vmul.f32 %v508, %v6201
    %v6217 = vmul.f32 %v508, %v6205
    %v6218 = vmul.f32 %v512, %v6193
    %v6219 = vmul.f32 %v512, %v6197
    %v6220 = vmul.f32 %v512, %v6201
    %v6221 = vmul.f32 %v512, %v6205
    %v6222 = vmul.f32 %v516, %v6193
    %v6223 = vmul.f32 %v516, %v6197
    %v6224 = vmul.f32 %v516, %v6201
    %v6225 = vmul.f32 %v516, %v6205
    %v6226 = vmul.f32 %v520, %v6193
    %v6227 = vmul.f32 %v520, %v6197
    %v6228 = vmul.f32 %v520, %v6201
    %v6229 = vmul.f32 %v520, %v6205
    %v6230 = vmul.f32 %v524, %v6193
    %v6231 = vmul.f32 %v524, %v6197
    %v6232 = vmul.f32 %v524, %v6201
    %v6233 = vmul.f32 %v524, %v6205
    %v6234 = vmul.f32 %v528, %v6193
    %v6235 = vmul.f32 %v528, %v6197
    %v6236 = vmul.f32 %v528, %v6201
    %v6237 = vmul.f32 %v528, %v6205
    %v6238 = vmul.f32 %v532, %v6193
    %v6239 = vmul.f32 %v532, %v6197
    %v6240 = vmul.f32 %v532, %v6201
    %v6241 = vmul.f32 %v532, %v6205
    %v6242 = vmul.f32 %v536, %v6193
    %v6243 = vmul.f32 %v536, %v6197
    %v6244 = vmul.f32 %v536, %v6201
    %v6245 = vmul.f32 %v536, %v6205
    %v6246 = vmul.f32 %v540, %v6193
    %v6247 = vmul.f32 %v540, %v6197
    %v6248 = vmul.f32 %v540, %v6201
    %v6249 = vmul.f32 %v540, %v6205
    %v6250 = vmul.f32 %v544, %v6193
    %v6251 = vmul.f32 %v544, %v6197
    %v6252 = vmul.f32 %v544, %v6201
    %v6253 = vmul.f32 %v544, %v6205
    %v6254 = vmul.f32 %v548, %v6193
    %v6255 = vmul.f32 %v548, %v6197
    %v6256 = vmul.f32 %v548, %v6201
    %v6257 = vmul.f32 %v548, %v6205
    %v6258 = vmul.f32 %v552, %v6193
    %v6259 = vmul.f32 %v552, %v6197
    %v6260 = vmul.f32 %v552, %v6201
    %v6261 = vmul.f32 %v552, %v6205
    %v6262 = vmul.f32 %v556, %v6193
    %v6263 = vmul.f32 %v556, %v6197
    %v6264 = vmul.f32 %v556, %v6201
    %v6265 = vmul.f32 %v556, %v6205
    %v6266 = vmul.f32 %v560, %v6193
    %v6267 = vmul.f32 %v560, %v6197
    %v6268 = vmul.f32 %v560, %v6201
    %v6269 = vmul.f32 %v560, %v6205
    %v6270 = vadd.f32 %v6106, %v6206
    %v6271 = vadd.f32 %v6107, %v6207
    %v6272 = vadd.f32 %v6108, %v6208
    %v6273 = vadd.f32 %v6109, %v6209
    %v6274 = vadd.f32 %v6110, %v6210
    %v6275 = vadd.f32 %v6111, %v6211
    %v6276 = vadd.f32 %v6112, %v6212
    %v6277 = vadd.f32 %v6113, %v6213
    %v6278 = vadd.f32 %v6114, %v6214
    %v6279 = vadd.f32 %v6115, %v6215
    %v6280 = vadd.f32 %v6116, %v6216
    %v6281 = vadd.f32 %v6117, %v6217
    %v6282 = vadd.f32 %v6118, %v6218
    %v6283 = vadd.f32 %v6119, %v6219
    %v6284 = vadd.f32 %v6120, %v6220
    %v6285 = vadd.f32 %v6121, %v6221
    %v6286 = vadd.f32 %v6122, %v6222
    %v6287 = vadd.f32 %v6123, %v6223
    %v6288 = vadd.f32 %v6124, %v6224
    %v6289 = vadd.f32 %v6125, %v6225
    %v6290 = vadd.f32 %v6126, %v6226
    %v6291 = vadd.f32 %v6127, %v6227
    %v6292 = vadd.f32 %v6128, %v6228
    %v6293 = vadd.f32 %v6129, %v6229
    %v6294 = vadd.f32 %v6130, %v6230
    %v6295 = vadd.f32 %v6131, %v6231
    %v6296 = vadd.f32 %v6132, %v6232
    %v6297 = vadd.f32 %v6133, %v6233
    %v6298 = vadd.f32 %v6134, %v6234
    %v6299 = vadd.f32 %v6135, %v6235
    %v6300 = vadd.f32 %v6136, %v6236
    %v6301 = vadd.f32 %v6137, %v6237
    %v6302 = vadd.f32 %v6138, %v6238
    %v6303 = vadd.f32 %v6139, %v6239
    %v6304 = vadd.f32 %v6140, %v6240
    %v6305 = vadd.f32 %v6141, %v6241
    %v6306 = vadd.f32 %v6142, %v6242
    %v6307 = vadd.f32 %v6143, %v6243
    %v6308 = vadd.f32 %v6144, %v6244
    %v6309 = vadd.f32 %v6145, %v6245
    %v6310 = vadd.f32 %v6146, %v6246
    %v6311 = vadd.f32 %v6147, %v6247
    %v6312 = vadd.f32 %v6148, %v6248
    %v6313 = vadd.f32 %v6149, %v6249
    %v6314 = vadd.f32 %v6150, %v6250
    %v6315 = vadd.f32 %v6151, %v6251
    %v6316 = vadd.f32 %v6152, %v6252
    %v6317 = vadd.f32 %v6153, %v6253
    %v6318 = vadd.f32 %v6154, %v6254
    %v6319 = vadd.f32 %v6155, %v6255
    %v6320 = vadd.f32 %v6156, %v6256
    %v6321 = vadd.f32 %v6157, %v6257
    %v6322 = vadd.f32 %v6158, %v6258
    %v6323 = vadd.f32 %v6159, %v6259
    %v6324 = vadd.f32 %v6160, %v6260
    %v6325 = vadd.f32 %v6161, %v6261
    %v6326 = vadd.f32 %v6162, %v6262
    %v6327 = vadd.f32 %v6163, %v6263
    %v6328 = vadd.f32 %v6164, %v6264
    %v6329 = vadd.f32 %v6165, %v6265
    %v6330 = vadd.f32 %v6166, %v6266
    %v6331 = vadd.f32 %v6167, %v6267
    %v6332 = vadd.f32 %v6168, %v6268
    %v6333 = vadd.f32 %v6169, %v6269
    %v6334 = vadd.f32 %v6270, %v729
    %v6335 = vadd.f32 %v6271, %v729
    %v6336 = vadd.f32 %v6272, %v729
    %v6337 = vadd.f32 %v6273, %v729
    %v6338 = vadd.f32 %v6274, %v734
    %v6339 = vadd.f32 %v6275, %v734
    %v6340 = vadd.f32 %v6276, %v734
    %v6341 = vadd.f32 %v6277, %v734
    %v6342 = vadd.f32 %v6278, %v739
    %v6343 = vadd.f32 %v6279, %v739
    %v6344 = vadd.f32 %v6280, %v739
    %v6345 = vadd.f32 %v6281, %v739
    %v6346 = vadd.f32 %v6282, %v744
    %v6347 = vadd.f32 %v6283, %v744
    %v6348 = vadd.f32 %v6284, %v744
    %v6349 = vadd.f32 %v6285, %v744
    %v6350 = vadd.f32 %v6286, %v749
    %v6351 = vadd.f32 %v6287, %v749
    %v6352 = vadd.f32 %v6288, %v749
    %v6353 = vadd.f32 %v6289, %v749
    %v6354 = vadd.f32 %v6290, %v754
    %v6355 = vadd.f32 %v6291, %v754
    %v6356 = vadd.f32 %v6292, %v754
    %v6357 = vadd.f32 %v6293, %v754
    %v6358 = vadd.f32 %v6294, %v759
    %v6359 = vadd.f32 %v6295, %v759
    %v6360 = vadd.f32 %v6296, %v759
    %v6361 = vadd.f32 %v6297, %v759
    %v6362 = vadd.f32 %v6298, %v764
    %v6363 = vadd.f32 %v6299, %v764
    %v6364 = vadd.f32 %v6300, %v764
    %v6365 = vadd.f32 %v6301, %v764
    %v6366 = vadd.f32 %v6302, %v769
    %v6367 = vadd.f32 %v6303, %v769
    %v6368 = vadd.f32 %v6304, %v769
    %v6369 = vadd.f32 %v6305, %v769
    %v6370 = vadd.f32 %v6306, %v774
    %v6371 = vadd.f32 %v6307, %v774
    %v6372 = vadd.f32 %v6308, %v774
    %v6373 = vadd.f32 %v6309, %v774
    %v6374 = vadd.f32 %v6310, %v779
    %v6375 = vadd.f32 %v6311, %v779
    %v6376 = vadd.f32 %v6312, %v779
    %v6377 = vadd.f32 %v6313, %v779
    %v6378 = vadd.f32 %v6314, %v784
    %v6379 = vadd.f32 %v6315, %v784
    %v6380 = vadd.f32 %v6316, %v784
    %v6381 = vadd.f32 %v6317, %v784
    %v6382 = vadd.f32 %v6318, %v789
    %v6383 = vadd.f32 %v6319, %v789
    %v6384 = vadd.f32 %v6320, %v789
    %v6385 = vadd.f32 %v6321, %v789
    %v6386 = vadd.f32 %v6322, %v794
    %v6387 = vadd.f32 %v6323, %v794
    %v6388 = vadd.f32 %v6324, %v794
    %v6389 = vadd.f32 %v6325, %v794
    %v6390 = vadd.f32 %v6326, %v799
    %v6391 = vadd.f32 %v6327, %v799
    %v6392 = vadd.f32 %v6328, %v799
    %v6393 = vadd.f32 %v6329, %v799
    %v6394 = vadd.f32 %v6330, %v804
    %v6395 = vadd.f32 %v6331, %v804
    %v6396 = vadd.f32 %v6332, %v804
    %v6397 = vadd.f32 %v6333, %v804
    %v6398 = vmax.f32 %v6334, 0.0
    %v6399 = vmax.f32 %v6335, 0.0
    %v6400 = vmax.f32 %v6336, 0.0
    %v6401 = vmax.f32 %v6337, 0.0
    %v6402 = vmax.f32 %v6338, 0.0
    %v6403 = vmax.f32 %v6339, 0.0
    %v6404 = vmax.f32 %v6340, 0.0
    %v6405 = vmax.f32 %v6341, 0.0
    %v6406 = vmax.f32 %v6342, 0.0
    %v6407 = vmax.f32 %v6343, 0.0
    %v6408 = vmax.f32 %v6344, 0.0
    %v6409 = vmax.f32 %v6345, 0.0
    %v6410 = vmax.f32 %v6346, 0.0
    %v6411 = vmax.f32 %v6347, 0.0
    %v6412 = vmax.f32 %v6348, 0.0
    %v6413 = vmax.f32 %v6349, 0.0
    %v6414 = vmax.f32 %v6350, 0.0
    %v6415 = vmax.f32 %v6351, 0.0
    %v6416 = vmax.f32 %v6352, 0.0
    %v6417 = vmax.f32 %v6353, 0.0
    %v6418 = vmax.f32 %v6354, 0.0
    %v6419 = vmax.f32 %v6355, 0.0
    %v6420 = vmax.f32 %v6356, 0.0
    %v6421 = vmax.f32 %v6357, 0.0
    %v6422 = vmax.f32 %v6358, 0.0
    %v6423 = vmax.f32 %v6359, 0.0
    %v6424 = vmax.f32 %v6360, 0.0
    %v6425 = vmax.f32 %v6361, 0.0
    %v6426 = vmax.f32 %v6362, 0.0
    %v6427 = vmax.f32 %v6363, 0.0
    %v6428 = vmax.f32 %v6364, 0.0
    %v6429 = vmax.f32 %v6365, 0.0
    %v6430 = vmax.f32 %v6366, 0.0
    %v6431 = vmax.f32 %v6367, 0.0
    %v6432 = vmax.f32 %v6368, 0.0
    %v6433 = vmax.f32 %v6369, 0.0
    %v6434 = vmax.f32 %v6370, 0.0
    %v6435 = vmax.f32 %v6371, 0.0
    %v6436 = vmax.f32 %v6372, 0.0
    %v6437 = vmax.f32 %v6373, 0.0
    %v6438 = vmax.f32 %v6374, 0.0
    %v6439 = vmax.f32 %v6375, 0.0
    %v6440 = vmax.f32 %v6376, 0.0
    %v6441 = vmax.f32 %v6377, 0.0
    %v6442 = vmax.f32 %v6378, 0.0
    %v6443 = vmax.f32 %v6379, 0.0
    %v6444 = vmax.f32 %v6380, 0.0
    %v6445 = vmax.f32 %v6381, 0.0
    %v6446 = vmax.f32 %v6382, 0.0
    %v6447 = vmax.f32 %v6383, 0.0
    %v6448 = vmax.f32 %v6384, 0.0
    %v6449 = vmax.f32 %v6385, 0.0
    %v6450 = vmax.f32 %v6386, 0.0
    %v6451 = vmax.f32 %v6387, 0.0
    %v6452 = vmax.f32 %v6388, 0.0
    %v6453 = vmax.f32 %v6389, 0.0
    %v6454 = vmax.f32 %v6390, 0.0
    %v6455 = vmax.f32 %v6391, 0.0
    %v6456 = vmax.f32 %v6392, 0.0
    %v6457 = vmax.f32 %v6393, 0.0
    %v6458 = vmax.f32 %v6394, 0.0
    %v6459 = vmax.f32 %v6395, 0.0
    %v6460 = vmax.f32 %v6396, 0.0
    %v6461 = vmax.f32 %v6397, 0.0
    %v6462 = vpack.c.bf16 %v6402, %v6398
    %v6463 = vpack.c.bf16 %v6403, %v6399
    %v6464 = vpack.c.bf16 %v6404, %v6400
    %v6465 = vpack.c.bf16 %v6405, %v6401
    %v6466 = vpack.c.bf16 %v6410, %v6406
    %v6467 = vpack.c.bf16 %v6411, %v6407
    %v6468 = vpack.c.bf16 %v6412, %v6408
    %v6469 = vpack.c.bf16 %v6413, %v6409
    %v6470 = vpack.c.bf16 %v6418, %v6414
    %v6471 = vpack.c.bf16 %v6419, %v6415
    %v6472 = vpack.c.bf16 %v6420, %v6416
    %v6473 = vpack.c.bf16 %v6421, %v6417
    %v6474 = vpack.c.bf16 %v6426, %v6422
    %v6475 = vpack.c.bf16 %v6427, %v6423
    %v6476 = vpack.c.bf16 %v6428, %v6424
    %v6477 = vpack.c.bf16 %v6429, %v6425
    %v6478 = vpack.c.bf16 %v6434, %v6430
    %v6479 = vpack.c.bf16 %v6435, %v6431
    %v6480 = vpack.c.bf16 %v6436, %v6432
    %v6481 = vpack.c.bf16 %v6437, %v6433
    %v6482 = vpack.c.bf16 %v6442, %v6438
    %v6483 = vpack.c.bf16 %v6443, %v6439
    %v6484 = vpack.c.bf16 %v6444, %v6440
    %v6485 = vpack.c.bf16 %v6445, %v6441
    %v6486 = vpack.c.bf16 %v6450, %v6446
    %v6487 = vpack.c.bf16 %v6451, %v6447
    %v6488 = vpack.c.bf16 %v6452, %v6448
    %v6489 = vpack.c.bf16 %v6453, %v6449
    %v6490 = vpack.c.bf16 %v6458, %v6454
    %v6491 = vpack.c.bf16 %v6459, %v6455
    %v6492 = vpack.c.bf16 %v6460, %v6456
    %v6493 = vpack.c.bf16 %v6461, %v6457
    %6494 = vmatprep.subr.bf16.mxu0 %v6463
    %6495 = vmatpush1.bf16.msra.mxu0 %v6462
    %6496 = vmatprep.subr.bf16.mxu0 %v6467
    %6497 = vmatpush1.bf16.msra.mxu0 %v6466
    %6498 = vmatprep.subr.bf16.mxu0 %v6471
    %6499 = vmatpush1.bf16.msra.mxu0 %v6470
    %6500 = vmatprep.subr.bf16.mxu0 %v6475
    %6501 = vmatpush1.bf16.msra.mxu0 %v6474
    %6502 = vmatprep.subr.bf16.mxu0 %v6479
    %6503 = vmatpush1.bf16.msra.mxu0 %v6478
    %6504 = vmatprep.subr.bf16.mxu0 %v6483
    %6505 = vmatpush1.bf16.msra.mxu0 %v6482
    %6506 = vmatprep.subr.bf16.mxu0 %v6487
    %6507 = vmatpush1.bf16.msra.mxu0 %v6486
    %6508 = vmatprep.subr.bf16.mxu0 %v6491
    %6509 = vmatpush1.bf16.msra.mxu0 %v6490
    %6510 = vmatprep.subr.bf16.mxu0 0
    %6511 = vmatpush1.bf16.msra.mxu0 0
    %6512 = vmatprep.subr.bf16.mxu0 0
    %6513 = vmatpush1.bf16.msra.mxu0 0
    %6514 = vmatprep.subr.bf16.mxu0 0
    %6515 = vmatpush1.bf16.msra.mxu0 0
    %6516 = vmatprep.subr.bf16.mxu0 0
    %6517 = vmatpush1.bf16.msra.mxu0 0
    %6518 = vmatprep.subr.bf16.mxu0 0
    %6519 = vmatpush1.bf16.msra.mxu0 0
    %6520 = vmatprep.subr.bf16.mxu0 0
    %6521 = vmatpush1.bf16.msra.mxu0 0
    %6522 = vmatprep.subr.bf16.mxu0 0
    %6523 = vmatpush1.bf16.msra.mxu0 0
    %6524 = vmatprep.subr.bf16.mxu0 0
    %6525 = vmatpush1.bf16.msra.mxu0 0
    %6526 = vmatprep.mubr.bf16.mxu0 0
    %6527 = vmatmul.mubr.bf16.gmra.mrb[0].mxu0 %v998
    %v6528 = vpop.f32.mrb[0].mxu0
    %v6529 = vadd.f32 0.0, %v6528
    %v6530 = vpop.f32.mrb[0].mxu0
    %v6531 = vadd.f32 0.0, %v6530
    %v6532 = vpop.f32.mrb[0].mxu0
    %v6533 = vadd.f32 0.0, %v6532
    %v6534 = vpop.f32.mrb[0].mxu0
    %v6535 = vadd.f32 0.0, %v6534
    %6536 = vmatprep.mubr.bf16.mxu0 0
    %6537 = vmatmul.mubr.bf16.gmra.mrb[0].mxu0 %v999
    %v6538 = vpop.f32.mrb[0].mxu0
    %v6539 = vadd.f32 0.0, %v6538
    %v6540 = vpop.f32.mrb[0].mxu0
    %v6541 = vadd.f32 0.0, %v6540
    %v6542 = vpop.f32.mrb[0].mxu0
    %v6543 = vadd.f32 0.0, %v6542
    %v6544 = vpop.f32.mrb[0].mxu0
    %v6545 = vadd.f32 0.0, %v6544
    %6546 = vmatprep.mubr.bf16.mxu0 0
    %6547 = vmatmul.mubr.bf16.gmra.mrb[0].mxu0 %v1000
    %v6548 = vpop.f32.mrb[0].mxu0
    %v6549 = vadd.f32 0.0, %v6548
    %v6550 = vpop.f32.mrb[0].mxu0
    %v6551 = vadd.f32 0.0, %v6550
    %v6552 = vpop.f32.mrb[0].mxu0
    %v6553 = vadd.f32 0.0, %v6552
    %v6554 = vpop.f32.mrb[0].mxu0
    %v6555 = vadd.f32 0.0, %v6554
    %6556 = vmatprep.mubr.bf16.mxu0 0
    %6557 = vmatmul.mubr.bf16.gmra.mrb[0].mxu0 %v1001
    %v6558 = vpop.f32.mrb[0].mxu0
    %v6559 = vadd.f32 0.0, %v6558
    %v6560 = vpop.f32.mrb[0].mxu0
    %v6561 = vadd.f32 0.0, %v6560
    %v6562 = vpop.f32.mrb[0].mxu0
    %v6563 = vadd.f32 0.0, %v6562
    %v6564 = vpop.f32.mrb[0].mxu0
    %v6565 = vadd.f32 0.0, %v6564
    %6566 = vmatprep.mubr.bf16.mxu0 0
    %6567 = vmatmul.mubr.bf16.gmra.mrb[0].mxu0 %v1002
    %v6568 = vpop.f32.mrb[0].mxu0
    %v6569 = vadd.f32 0.0, %v6568
    %v6570 = vpop.f32.mrb[0].mxu0
    %v6571 = vadd.f32 0.0, %v6570
    %v6572 = vpop.f32.mrb[0].mxu0
    %v6573 = vadd.f32 0.0, %v6572
    %v6574 = vpop.f32.mrb[0].mxu0
    %v6575 = vadd.f32 0.0, %v6574
    %6576 = vmatprep.mubr.bf16.mxu0 0
    %6577 = vmatmul.mubr.bf16.gmra.mrb[0].mxu0 %v1003
    %v6578 = vpop.f32.mrb[0].mxu0
    %v6579 = vadd.f32 0.0, %v6578
    %v6580 = vpop.f32.mrb[0].mxu0
    %v6581 = vadd.f32 0.0, %v6580
    %v6582 = vpop.f32.mrb[0].mxu0
    %v6583 = vadd.f32 0.0, %v6582
    %v6584 = vpop.f32.mrb[0].mxu0
    %v6585 = vadd.f32 0.0, %v6584
    %6586 = vmatprep.mubr.bf16.mxu0 0
    %6587 = vmatmul.mubr.bf16.gmra.mrb[0].mxu0 %v1004
    %v6588 = vpop.f32.mrb[0].mxu0
    %v6589 = vadd.f32 0.0, %v6588
    %v6590 = vpop.f32.mrb[0].mxu0
    %v6591 = vadd.f32 0.0, %v6590
    %v6592 = vpop.f32.mrb[0].mxu0
    %v6593 = vadd.f32 0.0, %v6592
    %v6594 = vpop.f32.mrb[0].mxu0
    %v6595 = vadd.f32 0.0, %v6594
    %6596 = vmatprep.mubr.bf16.mxu0 0
    %6597 = vmatmul.mubr.bf16.gmra.mrb[0].mxu0 %v1005
    %v6598 = vpop.f32.mrb[0].mxu0
    %v6599 = vadd.f32 0.0, %v6598
    %v6600 = vpop.f32.mrb[0].mxu0
    %v6601 = vadd.f32 0.0, %v6600
    %v6602 = vpop.f32.mrb[0].mxu0
    %v6603 = vadd.f32 0.0, %v6602
    %v6604 = vpop.f32.mrb[0].mxu0
    %v6605 = vadd.f32 0.0, %v6604
    %6606 = vdwg.mxu0
    %6607 = vmatprep.subr.bf16.mxu0 %v6465
    %6608 = vmatpush1.bf16.msra.mxu0 %v6464
    %6609 = vmatprep.subr.bf16.mxu0 %v6469
    %6610 = vmatpush1.bf16.msra.mxu0 %v6468
    %6611 = vmatprep.subr.bf16.mxu0 %v6473
    %6612 = vmatpush1.bf16.msra.mxu0 %v6472
    %6613 = vmatprep.subr.bf16.mxu0 %v6477
    %6614 = vmatpush1.bf16.msra.mxu0 %v6476
    %6615 = vmatprep.subr.bf16.mxu0 %v6481
    %6616 = vmatpush1.bf16.msra.mxu0 %v6480
    %6617 = vmatprep.subr.bf16.mxu0 %v6485
    %6618 = vmatpush1.bf16.msra.mxu0 %v6484
    %6619 = vmatprep.subr.bf16.mxu0 %v6489
    %6620 = vmatpush1.bf16.msra.mxu0 %v6488
    %6621 = vmatprep.subr.bf16.mxu0 %v6493
    %6622 = vmatpush1.bf16.msra.mxu0 %v6492
    %6623 = vmatprep.subr.bf16.mxu0 0
    %6624 = vmatpush1.bf16.msra.mxu0 0
    %6625 = vmatprep.subr.bf16.mxu0 0
    %6626 = vmatpush1.bf16.msra.mxu0 0
    %6627 = vmatprep.subr.bf16.mxu0 0
    %6628 = vmatpush1.bf16.msra.mxu0 0
    %6629 = vmatprep.subr.bf16.mxu0 0
    %6630 = vmatpush1.bf16.msra.mxu0 0
    %6631 = vmatprep.subr.bf16.mxu0 0
    %6632 = vmatpush1.bf16.msra.mxu0 0
    %6633 = vmatprep.subr.bf16.mxu0 0
    %6634 = vmatpush1.bf16.msra.mxu0 0
    %6635 = vmatprep.subr.bf16.mxu0 0
    %6636 = vmatpush1.bf16.msra.mxu0 0
    %6637 = vmatprep.subr.bf16.mxu0 0
    %6638 = vmatpush1.bf16.msra.mxu0 0
    %6639 = vmatprep.mubr.bf16.mxu0 0
    %6640 = vmatmul.mubr.bf16.gmra.mrb[0].mxu0 %v998
    %v6641 = vpop.f32.mrb[0].mxu0
    %v6642 = vadd.f32 0.0, %v6641
    %v6643 = vpop.f32.mrb[0].mxu0
    %v6644 = vadd.f32 0.0, %v6643
    %v6645 = vpop.f32.mrb[0].mxu0
    %v6646 = vadd.f32 0.0, %v6645
    %v6647 = vpop.f32.mrb[0].mxu0
    %v6648 = vadd.f32 0.0, %v6647
    %6649 = vmatprep.mubr.bf16.mxu0 0
    %6650 = vmatmul.mubr.bf16.gmra.mrb[0].mxu0 %v999
    %v6651 = vpop.f32.mrb[0].mxu0
    %v6652 = vadd.f32 0.0, %v6651
    %v6653 = vpop.f32.mrb[0].mxu0
    %v6654 = vadd.f32 0.0, %v6653
    %v6655 = vpop.f32.mrb[0].mxu0
    %v6656 = vadd.f32 0.0, %v6655
    %v6657 = vpop.f32.mrb[0].mxu0
    %v6658 = vadd.f32 0.0, %v6657
    %6659 = vmatprep.mubr.bf16.mxu0 0
    %6660 = vmatmul.mubr.bf16.gmra.mrb[0].mxu0 %v1000
    %v6661 = vpop.f32.mrb[0].mxu0
    %v6662 = vadd.f32 0.0, %v6661
    %v6663 = vpop.f32.mrb[0].mxu0
    %v6664 = vadd.f32 0.0, %v6663
    %v6665 = vpop.f32.mrb[0].mxu0
    %v6666 = vadd.f32 0.0, %v6665
    %v6667 = vpop.f32.mrb[0].mxu0
    %v6668 = vadd.f32 0.0, %v6667
    %6669 = vmatprep.mubr.bf16.mxu0 0
    %6670 = vmatmul.mubr.bf16.gmra.mrb[0].mxu0 %v1001
    %v6671 = vpop.f32.mrb[0].mxu0
    %v6672 = vadd.f32 0.0, %v6671
    %v6673 = vpop.f32.mrb[0].mxu0
    %v6674 = vadd.f32 0.0, %v6673
    %v6675 = vpop.f32.mrb[0].mxu0
    %v6676 = vadd.f32 0.0, %v6675
    %v6677 = vpop.f32.mrb[0].mxu0
    %v6678 = vadd.f32 0.0, %v6677
    %6679 = vmatprep.mubr.bf16.mxu0 0
    %6680 = vmatmul.mubr.bf16.gmra.mrb[0].mxu0 %v1002
    %v6681 = vpop.f32.mrb[0].mxu0
    %v6682 = vadd.f32 0.0, %v6681
    %v6683 = vpop.f32.mrb[0].mxu0
    %v6684 = vadd.f32 0.0, %v6683
    %v6685 = vpop.f32.mrb[0].mxu0
    %v6686 = vadd.f32 0.0, %v6685
    %v6687 = vpop.f32.mrb[0].mxu0
    %v6688 = vadd.f32 0.0, %v6687
    %6689 = vmatprep.mubr.bf16.mxu0 0
    %6690 = vmatmul.mubr.bf16.gmra.mrb[0].mxu0 %v1003
    %v6691 = vpop.f32.mrb[0].mxu0
    %v6692 = vadd.f32 0.0, %v6691
    %v6693 = vpop.f32.mrb[0].mxu0
    %v6694 = vadd.f32 0.0, %v6693
    %v6695 = vpop.f32.mrb[0].mxu0
    %v6696 = vadd.f32 0.0, %v6695
    %v6697 = vpop.f32.mrb[0].mxu0
    %v6698 = vadd.f32 0.0, %v6697
    %6699 = vmatprep.mubr.bf16.mxu0 0
    %6700 = vmatmul.mubr.bf16.gmra.mrb[0].mxu0 %v1004
    %v6701 = vpop.f32.mrb[0].mxu0
    %v6702 = vadd.f32 0.0, %v6701
    %v6703 = vpop.f32.mrb[0].mxu0
    %v6704 = vadd.f32 0.0, %v6703
    %v6705 = vpop.f32.mrb[0].mxu0
    %v6706 = vadd.f32 0.0, %v6705
    %v6707 = vpop.f32.mrb[0].mxu0
    %v6708 = vadd.f32 0.0, %v6707
    %6709 = vmatprep.mubr.bf16.mxu0 0
    %6710 = vmatmul.mubr.bf16.gmra.mrb[0].mxu0 %v1005
    %v6711 = vpop.f32.mrb[0].mxu0
    %v6712 = vadd.f32 0.0, %v6711
    %v6713 = vpop.f32.mrb[0].mxu0
    %v6714 = vadd.f32 0.0, %v6713
    %v6715 = vpop.f32.mrb[0].mxu0
    %v6716 = vadd.f32 0.0, %v6715
    %v6717 = vpop.f32.mrb[0].mxu0
    %v6718 = vadd.f32 0.0, %v6717
    %6719 = vdwg.mxu0
    %v6720 = vmax.f32 %v6529, %v6531
    %v6721 = vmax.f32 %v6720, %v6642
    %v6722 = vmax.f32 %v6721, %v6644
    %6723 = vmax.xlane.f32.xlu0 %v6722
    %v6724 = vpop.xlane.xlu0 %6723
    %v6725 = vmax.f32 %v6533, %v6535
    %v6726 = vmax.f32 %v6725, %v6646
    %v6727 = vmax.f32 %v6726, %v6648
    %6728 = vmax.xlane.f32.xlu0 %v6727
    %v6729 = vpop.xlane.xlu0 %6728
    %v6730 = vmax.f32 %v6539, %v6541
    %v6731 = vmax.f32 %v6730, %v6652
    %v6732 = vmax.f32 %v6731, %v6654
    %6733 = vmax.xlane.f32.xlu0 %v6732
    %v6734 = vpop.xlane.xlu0 %6733
    %v6735 = vmax.f32 %v6543, %v6545
    %v6736 = vmax.f32 %v6735, %v6656
    %v6737 = vmax.f32 %v6736, %v6658
    %6738 = vmax.xlane.f32.xlu0 %v6737
    %v6739 = vpop.xlane.xlu0 %6738
    %v6740 = vmax.f32 %v6549, %v6551
    %v6741 = vmax.f32 %v6740, %v6662
    %v6742 = vmax.f32 %v6741, %v6664
    %6743 = vmax.xlane.f32.xlu0 %v6742
    %v6744 = vpop.xlane.xlu0 %6743
    %v6745 = vmax.f32 %v6553, %v6555
    %v6746 = vmax.f32 %v6745, %v6666
    %v6747 = vmax.f32 %v6746, %v6668
    %6748 = vmax.xlane.f32.xlu0 %v6747
    %v6749 = vpop.xlane.xlu0 %6748
    %v6750 = vmax.f32 %v6559, %v6561
    %v6751 = vmax.f32 %v6750, %v6672
    %v6752 = vmax.f32 %v6751, %v6674
    %6753 = vmax.xlane.f32.xlu0 %v6752
    %v6754 = vpop.xlane.xlu0 %6753
    %v6755 = vmax.f32 %v6563, %v6565
    %v6756 = vmax.f32 %v6755, %v6676
    %v6757 = vmax.f32 %v6756, %v6678
    %6758 = vmax.xlane.f32.xlu0 %v6757
    %v6759 = vpop.xlane.xlu0 %6758
    %v6760 = vmax.f32 %v6569, %v6571
    %v6761 = vmax.f32 %v6760, %v6682
    %v6762 = vmax.f32 %v6761, %v6684
    %6763 = vmax.xlane.f32.xlu0 %v6762
    %v6764 = vpop.xlane.xlu0 %6763
    %v6765 = vmax.f32 %v6573, %v6575
    %v6766 = vmax.f32 %v6765, %v6686
    %v6767 = vmax.f32 %v6766, %v6688
    %6768 = vmax.xlane.f32.xlu0 %v6767
    %v6769 = vpop.xlane.xlu0 %6768
    %v6770 = vmax.f32 %v6579, %v6581
    %v6771 = vmax.f32 %v6770, %v6692
    %v6772 = vmax.f32 %v6771, %v6694
    %6773 = vmax.xlane.f32.xlu0 %v6772
    %v6774 = vpop.xlane.xlu0 %6773
    %v6775 = vmax.f32 %v6583, %v6585
    %v6776 = vmax.f32 %v6775, %v6696
    %v6777 = vmax.f32 %v6776, %v6698
    %6778 = vmax.xlane.f32.xlu0 %v6777
    %v6779 = vpop.xlane.xlu0 %6778
    %v6780 = vmax.f32 %v6589, %v6591
    %v6781 = vmax.f32 %v6780, %v6702
    %v6782 = vmax.f32 %v6781, %v6704
    %6783 = vmax.xlane.f32.xlu0 %v6782
    %v6784 = vpop.xlane.xlu0 %6783
    %v6785 = vmax.f32 %v6593, %v6595
    %v6786 = vmax.f32 %v6785, %v6706
    %v6787 = vmax.f32 %v6786, %v6708
    %6788 = vmax.xlane.f32.xlu0 %v6787
    %v6789 = vpop.xlane.xlu0 %6788
    %v6790 = vmax.f32 %v6599, %v6601
    %v6791 = vmax.f32 %v6790, %v6712
    %v6792 = vmax.f32 %v6791, %v6714
    %6793 = vmax.xlane.f32.xlu0 %v6792
    %v6794 = vpop.xlane.xlu0 %6793
    %v6795 = vmax.f32 %v6603, %v6605
    %v6796 = vmax.f32 %v6795, %v6716
    %v6797 = vmax.f32 %v6796, %v6718
    %6798 = vmax.xlane.f32.xlu0 %v6797
    %v6799 = vpop.xlane.xlu0 %6798
    %v6800 = vmax.f32 %v5883, %v6724
    %v6801 = vmax.f32 %v5884, %v6729
    %v6802 = vmax.f32 %v5885, %v6734
    %v6803 = vmax.f32 %v5886, %v6739
    %v6804 = vmax.f32 %v5887, %v6744
    %v6805 = vmax.f32 %v5888, %v6749
    %v6806 = vmax.f32 %v5889, %v6754
    %v6807 = vmax.f32 %v5890, %v6759
    %v6808 = vmax.f32 %v5891, %v6764
    %v6809 = vmax.f32 %v5892, %v6769
    %v6810 = vmax.f32 %v5893, %v6774
    %v6811 = vmax.f32 %v5894, %v6779
    %v6812 = vmax.f32 %v5895, %v6784
    %v6813 = vmax.f32 %v5896, %v6789
    %v6814 = vmax.f32 %v5897, %v6794
    %v6815 = vmax.f32 %v5898, %v6799
    %s6816 = sadd.s32 12, 16
    %s6817 = smul.addr %s6816, 4
    %s6818 = scalar_lea.vmem %s0, %s6817
    %v6819 = vld [vmem:[%s6818] sm:$0x77]
    %v6820 = vld [vmem:[%s6818 + $0x8] sm:$0x77]
    %v6823 = vlaneseq
    %v6824 = vshrl.u32 %v6823, 7
    %v6825 = vsub.s32 0, %v6824
    %v6826 = vrot.slane %v6819, %v6825
    %v6827 = vlaneseq
    %v6828 = vshrl.u32 %v6827, 7
    %v6829 = vsub.s32 4, %v6828
    %v6830 = vrot.slane %v6819, %v6829
    %v6831 = vlaneseq
    %v6832 = vshrl.u32 %v6831, 7
    %v6833 = vsub.s32 0, %v6832
    %v6834 = vrot.slane %v6820, %v6833
    %v6835 = vlaneseq
    %v6836 = vshrl.u32 %v6835, 7
    %v6837 = vsub.s32 4, %v6836
    %v6838 = vrot.slane %v6820, %v6837
    %v6843 = vlaneseq
    %v6844 = vshrl.u32 %v6843, 7
    %v6845 = vsub.s32 0, %v6844
    %v6846 = vrot.slane %v6826, %v6845
    %v6847 = vlaneseq
    %v6848 = vshrl.u32 %v6847, 7
    %v6849 = vsub.s32 0, %v6848
    %v6850 = vrot.slane %v6830, %v6849
    %v6851 = vlaneseq
    %v6852 = vshrl.u32 %v6851, 7
    %v6853 = vsub.s32 0, %v6852
    %v6854 = vrot.slane %v6834, %v6853
    %v6855 = vlaneseq
    %v6856 = vshrl.u32 %v6855, 7
    %v6857 = vsub.s32 0, %v6856
    %v6858 = vrot.slane %v6838, %v6857
    %v6859 = vmul.f32 %v91, %v6846
    %v6860 = vmul.f32 %v91, %v6850
    %v6861 = vmul.f32 %v91, %v6854
    %v6862 = vmul.f32 %v91, %v6858
    %v6863 = vmul.f32 %v96, %v6846
    %v6864 = vmul.f32 %v96, %v6850
    %v6865 = vmul.f32 %v96, %v6854
    %v6866 = vmul.f32 %v96, %v6858
    %v6867 = vmul.f32 %v101, %v6846
    %v6868 = vmul.f32 %v101, %v6850
    %v6869 = vmul.f32 %v101, %v6854
    %v6870 = vmul.f32 %v101, %v6858
    %v6871 = vmul.f32 %v106, %v6846
    %v6872 = vmul.f32 %v106, %v6850
    %v6873 = vmul.f32 %v106, %v6854
    %v6874 = vmul.f32 %v106, %v6858
    %v6875 = vmul.f32 %v111, %v6846
    %v6876 = vmul.f32 %v111, %v6850
    %v6877 = vmul.f32 %v111, %v6854
    %v6878 = vmul.f32 %v111, %v6858
    %v6879 = vmul.f32 %v116, %v6846
    %v6880 = vmul.f32 %v116, %v6850
    %v6881 = vmul.f32 %v116, %v6854
    %v6882 = vmul.f32 %v116, %v6858
    %v6883 = vmul.f32 %v121, %v6846
    %v6884 = vmul.f32 %v121, %v6850
    %v6885 = vmul.f32 %v121, %v6854
    %v6886 = vmul.f32 %v121, %v6858
    %v6887 = vmul.f32 %v126, %v6846
    %v6888 = vmul.f32 %v126, %v6850
    %v6889 = vmul.f32 %v126, %v6854
    %v6890 = vmul.f32 %v126, %v6858
    %v6891 = vmul.f32 %v131, %v6846
    %v6892 = vmul.f32 %v131, %v6850
    %v6893 = vmul.f32 %v131, %v6854
    %v6894 = vmul.f32 %v131, %v6858
    %v6895 = vmul.f32 %v136, %v6846
    %v6896 = vmul.f32 %v136, %v6850
    %v6897 = vmul.f32 %v136, %v6854
    %v6898 = vmul.f32 %v136, %v6858
    %v6899 = vmul.f32 %v141, %v6846
    %v6900 = vmul.f32 %v141, %v6850
    %v6901 = vmul.f32 %v141, %v6854
    %v6902 = vmul.f32 %v141, %v6858
    %v6903 = vmul.f32 %v146, %v6846
    %v6904 = vmul.f32 %v146, %v6850
    %v6905 = vmul.f32 %v146, %v6854
    %v6906 = vmul.f32 %v146, %v6858
    %v6907 = vmul.f32 %v151, %v6846
    %v6908 = vmul.f32 %v151, %v6850
    %v6909 = vmul.f32 %v151, %v6854
    %v6910 = vmul.f32 %v151, %v6858
    %v6911 = vmul.f32 %v156, %v6846
    %v6912 = vmul.f32 %v156, %v6850
    %v6913 = vmul.f32 %v156, %v6854
    %v6914 = vmul.f32 %v156, %v6858
    %v6915 = vmul.f32 %v161, %v6846
    %v6916 = vmul.f32 %v161, %v6850
    %v6917 = vmul.f32 %v161, %v6854
    %v6918 = vmul.f32 %v161, %v6858
    %v6919 = vmul.f32 %v166, %v6846
    %v6920 = vmul.f32 %v166, %v6850
    %v6921 = vmul.f32 %v166, %v6854
    %v6922 = vmul.f32 %v166, %v6858
    %v6923 = vlaneseq
    %v6924 = vshrl.u32 %v6923, 7
    %v6925 = vsub.s32 1, %v6924
    %v6926 = vrot.slane %v6819, %v6925
    %v6927 = vlaneseq
    %v6928 = vshrl.u32 %v6927, 7
    %v6929 = vsub.s32 5, %v6928
    %v6930 = vrot.slane %v6819, %v6929
    %v6931 = vlaneseq
    %v6932 = vshrl.u32 %v6931, 7
    %v6933 = vsub.s32 1, %v6932
    %v6934 = vrot.slane %v6820, %v6933
    %v6935 = vlaneseq
    %v6936 = vshrl.u32 %v6935, 7
    %v6937 = vsub.s32 5, %v6936
    %v6938 = vrot.slane %v6820, %v6937
    %v6943 = vlaneseq
    %v6944 = vshrl.u32 %v6943, 7
    %v6945 = vsub.s32 1, %v6944
    %v6946 = vrot.slane %v6926, %v6945
    %v6947 = vlaneseq
    %v6948 = vshrl.u32 %v6947, 7
    %v6949 = vsub.s32 1, %v6948
    %v6950 = vrot.slane %v6930, %v6949
    %v6951 = vlaneseq
    %v6952 = vshrl.u32 %v6951, 7
    %v6953 = vsub.s32 1, %v6952
    %v6954 = vrot.slane %v6934, %v6953
    %v6955 = vlaneseq
    %v6956 = vshrl.u32 %v6955, 7
    %v6957 = vsub.s32 1, %v6956
    %v6958 = vrot.slane %v6938, %v6957
    %v6959 = vmul.f32 %v272, %v6946
    %v6960 = vmul.f32 %v272, %v6950
    %v6961 = vmul.f32 %v272, %v6954
    %v6962 = vmul.f32 %v272, %v6958
    %v6963 = vmul.f32 %v276, %v6946
    %v6964 = vmul.f32 %v276, %v6950
    %v6965 = vmul.f32 %v276, %v6954
    %v6966 = vmul.f32 %v276, %v6958
    %v6967 = vmul.f32 %v280, %v6946
    %v6968 = vmul.f32 %v280, %v6950
    %v6969 = vmul.f32 %v280, %v6954
    %v6970 = vmul.f32 %v280, %v6958
    %v6971 = vmul.f32 %v284, %v6946
    %v6972 = vmul.f32 %v284, %v6950
    %v6973 = vmul.f32 %v284, %v6954
    %v6974 = vmul.f32 %v284, %v6958
    %v6975 = vmul.f32 %v288, %v6946
    %v6976 = vmul.f32 %v288, %v6950
    %v6977 = vmul.f32 %v288, %v6954
    %v6978 = vmul.f32 %v288, %v6958
    %v6979 = vmul.f32 %v292, %v6946
    %v6980 = vmul.f32 %v292, %v6950
    %v6981 = vmul.f32 %v292, %v6954
    %v6982 = vmul.f32 %v292, %v6958
    %v6983 = vmul.f32 %v296, %v6946
    %v6984 = vmul.f32 %v296, %v6950
    %v6985 = vmul.f32 %v296, %v6954
    %v6986 = vmul.f32 %v296, %v6958
    %v6987 = vmul.f32 %v300, %v6946
    %v6988 = vmul.f32 %v300, %v6950
    %v6989 = vmul.f32 %v300, %v6954
    %v6990 = vmul.f32 %v300, %v6958
    %v6991 = vmul.f32 %v304, %v6946
    %v6992 = vmul.f32 %v304, %v6950
    %v6993 = vmul.f32 %v304, %v6954
    %v6994 = vmul.f32 %v304, %v6958
    %v6995 = vmul.f32 %v308, %v6946
    %v6996 = vmul.f32 %v308, %v6950
    %v6997 = vmul.f32 %v308, %v6954
    %v6998 = vmul.f32 %v308, %v6958
    %v6999 = vmul.f32 %v312, %v6946
    %v7000 = vmul.f32 %v312, %v6950
    %v7001 = vmul.f32 %v312, %v6954
    %v7002 = vmul.f32 %v312, %v6958
    %v7003 = vmul.f32 %v316, %v6946
    %v7004 = vmul.f32 %v316, %v6950
    %v7005 = vmul.f32 %v316, %v6954
    %v7006 = vmul.f32 %v316, %v6958
    %v7007 = vmul.f32 %v320, %v6946
    %v7008 = vmul.f32 %v320, %v6950
    %v7009 = vmul.f32 %v320, %v6954
    %v7010 = vmul.f32 %v320, %v6958
    %v7011 = vmul.f32 %v324, %v6946
    %v7012 = vmul.f32 %v324, %v6950
    %v7013 = vmul.f32 %v324, %v6954
    %v7014 = vmul.f32 %v324, %v6958
    %v7015 = vmul.f32 %v328, %v6946
    %v7016 = vmul.f32 %v328, %v6950
    %v7017 = vmul.f32 %v328, %v6954
    %v7018 = vmul.f32 %v328, %v6958
    %v7019 = vmul.f32 %v332, %v6946
    %v7020 = vmul.f32 %v332, %v6950
    %v7021 = vmul.f32 %v332, %v6954
    %v7022 = vmul.f32 %v332, %v6958
    %v7023 = vadd.f32 %v6859, %v6959
    %v7024 = vadd.f32 %v6860, %v6960
    %v7025 = vadd.f32 %v6861, %v6961
    %v7026 = vadd.f32 %v6862, %v6962
    %v7027 = vadd.f32 %v6863, %v6963
    %v7028 = vadd.f32 %v6864, %v6964
    %v7029 = vadd.f32 %v6865, %v6965
    %v7030 = vadd.f32 %v6866, %v6966
    %v7031 = vadd.f32 %v6867, %v6967
    %v7032 = vadd.f32 %v6868, %v6968
    %v7033 = vadd.f32 %v6869, %v6969
    %v7034 = vadd.f32 %v6870, %v6970
    %v7035 = vadd.f32 %v6871, %v6971
    %v7036 = vadd.f32 %v6872, %v6972
    %v7037 = vadd.f32 %v6873, %v6973
    %v7038 = vadd.f32 %v6874, %v6974
    %v7039 = vadd.f32 %v6875, %v6975
    %v7040 = vadd.f32 %v6876, %v6976
    %v7041 = vadd.f32 %v6877, %v6977
    %v7042 = vadd.f32 %v6878, %v6978
    %v7043 = vadd.f32 %v6879, %v6979
    %v7044 = vadd.f32 %v6880, %v6980
    %v7045 = vadd.f32 %v6881, %v6981
    %v7046 = vadd.f32 %v6882, %v6982
    %v7047 = vadd.f32 %v6883, %v6983
    %v7048 = vadd.f32 %v6884, %v6984
    %v7049 = vadd.f32 %v6885, %v6985
    %v7050 = vadd.f32 %v6886, %v6986
    %v7051 = vadd.f32 %v6887, %v6987
    %v7052 = vadd.f32 %v6888, %v6988
    %v7053 = vadd.f32 %v6889, %v6989
    %v7054 = vadd.f32 %v6890, %v6990
    %v7055 = vadd.f32 %v6891, %v6991
    %v7056 = vadd.f32 %v6892, %v6992
    %v7057 = vadd.f32 %v6893, %v6993
    %v7058 = vadd.f32 %v6894, %v6994
    %v7059 = vadd.f32 %v6895, %v6995
    %v7060 = vadd.f32 %v6896, %v6996
    %v7061 = vadd.f32 %v6897, %v6997
    %v7062 = vadd.f32 %v6898, %v6998
    %v7063 = vadd.f32 %v6899, %v6999
    %v7064 = vadd.f32 %v6900, %v7000
    %v7065 = vadd.f32 %v6901, %v7001
    %v7066 = vadd.f32 %v6902, %v7002
    %v7067 = vadd.f32 %v6903, %v7003
    %v7068 = vadd.f32 %v6904, %v7004
    %v7069 = vadd.f32 %v6905, %v7005
    %v7070 = vadd.f32 %v6906, %v7006
    %v7071 = vadd.f32 %v6907, %v7007
    %v7072 = vadd.f32 %v6908, %v7008
    %v7073 = vadd.f32 %v6909, %v7009
    %v7074 = vadd.f32 %v6910, %v7010
    %v7075 = vadd.f32 %v6911, %v7011
    %v7076 = vadd.f32 %v6912, %v7012
    %v7077 = vadd.f32 %v6913, %v7013
    %v7078 = vadd.f32 %v6914, %v7014
    %v7079 = vadd.f32 %v6915, %v7015
    %v7080 = vadd.f32 %v6916, %v7016
    %v7081 = vadd.f32 %v6917, %v7017
    %v7082 = vadd.f32 %v6918, %v7018
    %v7083 = vadd.f32 %v6919, %v7019
    %v7084 = vadd.f32 %v6920, %v7020
    %v7085 = vadd.f32 %v6921, %v7021
    %v7086 = vadd.f32 %v6922, %v7022
    %v7087 = vlaneseq
    %v7088 = vshrl.u32 %v7087, 7
    %v7089 = vsub.s32 2, %v7088
    %v7090 = vrot.slane %v6819, %v7089
    %v7091 = vlaneseq
    %v7092 = vshrl.u32 %v7091, 7
    %v7093 = vsub.s32 6, %v7092
    %v7094 = vrot.slane %v6819, %v7093
    %v7095 = vlaneseq
    %v7096 = vshrl.u32 %v7095, 7
    %v7097 = vsub.s32 2, %v7096
    %v7098 = vrot.slane %v6820, %v7097
    %v7099 = vlaneseq
    %v7100 = vshrl.u32 %v7099, 7
    %v7101 = vsub.s32 6, %v7100
    %v7102 = vrot.slane %v6820, %v7101
    %v7107 = vlaneseq
    %v7108 = vshrl.u32 %v7107, 7
    %v7109 = vsub.s32 2, %v7108
    %v7110 = vrot.slane %v7090, %v7109
    %v7111 = vlaneseq
    %v7112 = vshrl.u32 %v7111, 7
    %v7113 = vsub.s32 2, %v7112
    %v7114 = vrot.slane %v7094, %v7113
    %v7115 = vlaneseq
    %v7116 = vshrl.u32 %v7115, 7
    %v7117 = vsub.s32 2, %v7116
    %v7118 = vrot.slane %v7098, %v7117
    %v7119 = vlaneseq
    %v7120 = vshrl.u32 %v7119, 7
    %v7121 = vsub.s32 2, %v7120
    %v7122 = vrot.slane %v7102, %v7121
    %v7123 = vmul.f32 %v500, %v7110
    %v7124 = vmul.f32 %v500, %v7114
    %v7125 = vmul.f32 %v500, %v7118
    %v7126 = vmul.f32 %v500, %v7122
    %v7127 = vmul.f32 %v504, %v7110
    %v7128 = vmul.f32 %v504, %v7114
    %v7129 = vmul.f32 %v504, %v7118
    %v7130 = vmul.f32 %v504, %v7122
    %v7131 = vmul.f32 %v508, %v7110
    %v7132 = vmul.f32 %v508, %v7114
    %v7133 = vmul.f32 %v508, %v7118
    %v7134 = vmul.f32 %v508, %v7122
    %v7135 = vmul.f32 %v512, %v7110
    %v7136 = vmul.f32 %v512, %v7114
    %v7137 = vmul.f32 %v512, %v7118
    %v7138 = vmul.f32 %v512, %v7122
    %v7139 = vmul.f32 %v516, %v7110
    %v7140 = vmul.f32 %v516, %v7114
    %v7141 = vmul.f32 %v516, %v7118
    %v7142 = vmul.f32 %v516, %v7122
    %v7143 = vmul.f32 %v520, %v7110
    %v7144 = vmul.f32 %v520, %v7114
    %v7145 = vmul.f32 %v520, %v7118
    %v7146 = vmul.f32 %v520, %v7122
    %v7147 = vmul.f32 %v524, %v7110
    %v7148 = vmul.f32 %v524, %v7114
    %v7149 = vmul.f32 %v524, %v7118
    %v7150 = vmul.f32 %v524, %v7122
    %v7151 = vmul.f32 %v528, %v7110
    %v7152 = vmul.f32 %v528, %v7114
    %v7153 = vmul.f32 %v528, %v7118
    %v7154 = vmul.f32 %v528, %v7122
    %v7155 = vmul.f32 %v532, %v7110
    %v7156 = vmul.f32 %v532, %v7114
    %v7157 = vmul.f32 %v532, %v7118
    %v7158 = vmul.f32 %v532, %v7122
    %v7159 = vmul.f32 %v536, %v7110
    %v7160 = vmul.f32 %v536, %v7114
    %v7161 = vmul.f32 %v536, %v7118
    %v7162 = vmul.f32 %v536, %v7122
    %v7163 = vmul.f32 %v540, %v7110
    %v7164 = vmul.f32 %v540, %v7114
    %v7165 = vmul.f32 %v540, %v7118
    %v7166 = vmul.f32 %v540, %v7122
    %v7167 = vmul.f32 %v544, %v7110
    %v7168 = vmul.f32 %v544, %v7114
    %v7169 = vmul.f32 %v544, %v7118
    %v7170 = vmul.f32 %v544, %v7122
    %v7171 = vmul.f32 %v548, %v7110
    %v7172 = vmul.f32 %v548, %v7114
    %v7173 = vmul.f32 %v548, %v7118
    %v7174 = vmul.f32 %v548, %v7122
    %v7175 = vmul.f32 %v552, %v7110
    %v7176 = vmul.f32 %v552, %v7114
    %v7177 = vmul.f32 %v552, %v7118
    %v7178 = vmul.f32 %v552, %v7122
    %v7179 = vmul.f32 %v556, %v7110
    %v7180 = vmul.f32 %v556, %v7114
    %v7181 = vmul.f32 %v556, %v7118
    %v7182 = vmul.f32 %v556, %v7122
    %v7183 = vmul.f32 %v560, %v7110
    %v7184 = vmul.f32 %v560, %v7114
    %v7185 = vmul.f32 %v560, %v7118
    %v7186 = vmul.f32 %v560, %v7122
    %v7187 = vadd.f32 %v7023, %v7123
    %v7188 = vadd.f32 %v7024, %v7124
    %v7189 = vadd.f32 %v7025, %v7125
    %v7190 = vadd.f32 %v7026, %v7126
    %v7191 = vadd.f32 %v7027, %v7127
    %v7192 = vadd.f32 %v7028, %v7128
    %v7193 = vadd.f32 %v7029, %v7129
    %v7194 = vadd.f32 %v7030, %v7130
    %v7195 = vadd.f32 %v7031, %v7131
    %v7196 = vadd.f32 %v7032, %v7132
    %v7197 = vadd.f32 %v7033, %v7133
    %v7198 = vadd.f32 %v7034, %v7134
    %v7199 = vadd.f32 %v7035, %v7135
    %v7200 = vadd.f32 %v7036, %v7136
    %v7201 = vadd.f32 %v7037, %v7137
    %v7202 = vadd.f32 %v7038, %v7138
    %v7203 = vadd.f32 %v7039, %v7139
    %v7204 = vadd.f32 %v7040, %v7140
    %v7205 = vadd.f32 %v7041, %v7141
    %v7206 = vadd.f32 %v7042, %v7142
    %v7207 = vadd.f32 %v7043, %v7143
    %v7208 = vadd.f32 %v7044, %v7144
    %v7209 = vadd.f32 %v7045, %v7145
    %v7210 = vadd.f32 %v7046, %v7146
    %v7211 = vadd.f32 %v7047, %v7147
    %v7212 = vadd.f32 %v7048, %v7148
    %v7213 = vadd.f32 %v7049, %v7149
    %v7214 = vadd.f32 %v7050, %v7150
    %v7215 = vadd.f32 %v7051, %v7151
    %v7216 = vadd.f32 %v7052, %v7152
    %v7217 = vadd.f32 %v7053, %v7153
    %v7218 = vadd.f32 %v7054, %v7154
    %v7219 = vadd.f32 %v7055, %v7155
    %v7220 = vadd.f32 %v7056, %v7156
    %v7221 = vadd.f32 %v7057, %v7157
    %v7222 = vadd.f32 %v7058, %v7158
    %v7223 = vadd.f32 %v7059, %v7159
    %v7224 = vadd.f32 %v7060, %v7160
    %v7225 = vadd.f32 %v7061, %v7161
    %v7226 = vadd.f32 %v7062, %v7162
    %v7227 = vadd.f32 %v7063, %v7163
    %v7228 = vadd.f32 %v7064, %v7164
    %v7229 = vadd.f32 %v7065, %v7165
    %v7230 = vadd.f32 %v7066, %v7166
    %v7231 = vadd.f32 %v7067, %v7167
    %v7232 = vadd.f32 %v7068, %v7168
    %v7233 = vadd.f32 %v7069, %v7169
    %v7234 = vadd.f32 %v7070, %v7170
    %v7235 = vadd.f32 %v7071, %v7171
    %v7236 = vadd.f32 %v7072, %v7172
    %v7237 = vadd.f32 %v7073, %v7173
    %v7238 = vadd.f32 %v7074, %v7174
    %v7239 = vadd.f32 %v7075, %v7175
    %v7240 = vadd.f32 %v7076, %v7176
    %v7241 = vadd.f32 %v7077, %v7177
    %v7242 = vadd.f32 %v7078, %v7178
    %v7243 = vadd.f32 %v7079, %v7179
    %v7244 = vadd.f32 %v7080, %v7180
    %v7245 = vadd.f32 %v7081, %v7181
    %v7246 = vadd.f32 %v7082, %v7182
    %v7247 = vadd.f32 %v7083, %v7183
    %v7248 = vadd.f32 %v7084, %v7184
    %v7249 = vadd.f32 %v7085, %v7185
    %v7250 = vadd.f32 %v7086, %v7186
    %v7251 = vadd.f32 %v7187, %v729
    %v7252 = vadd.f32 %v7188, %v729
    %v7253 = vadd.f32 %v7189, %v729
    %v7254 = vadd.f32 %v7190, %v729
    %v7255 = vadd.f32 %v7191, %v734
    %v7256 = vadd.f32 %v7192, %v734
    %v7257 = vadd.f32 %v7193, %v734
    %v7258 = vadd.f32 %v7194, %v734
    %v7259 = vadd.f32 %v7195, %v739
    %v7260 = vadd.f32 %v7196, %v739
    %v7261 = vadd.f32 %v7197, %v739
    %v7262 = vadd.f32 %v7198, %v739
    %v7263 = vadd.f32 %v7199, %v744
    %v7264 = vadd.f32 %v7200, %v744
    %v7265 = vadd.f32 %v7201, %v744
    %v7266 = vadd.f32 %v7202, %v744
    %v7267 = vadd.f32 %v7203, %v749
    %v7268 = vadd.f32 %v7204, %v749
    %v7269 = vadd.f32 %v7205, %v749
    %v7270 = vadd.f32 %v7206, %v749
    %v7271 = vadd.f32 %v7207, %v754
    %v7272 = vadd.f32 %v7208, %v754
    %v7273 = vadd.f32 %v7209, %v754
    %v7274 = vadd.f32 %v7210, %v754
    %v7275 = vadd.f32 %v7211, %v759
    %v7276 = vadd.f32 %v7212, %v759
    %v7277 = vadd.f32 %v7213, %v759
    %v7278 = vadd.f32 %v7214, %v759
    %v7279 = vadd.f32 %v7215, %v764
    %v7280 = vadd.f32 %v7216, %v764
    %v7281 = vadd.f32 %v7217, %v764
    %v7282 = vadd.f32 %v7218, %v764
    %v7283 = vadd.f32 %v7219, %v769
    %v7284 = vadd.f32 %v7220, %v769
    %v7285 = vadd.f32 %v7221, %v769
    %v7286 = vadd.f32 %v7222, %v769
    %v7287 = vadd.f32 %v7223, %v774
    %v7288 = vadd.f32 %v7224, %v774
    %v7289 = vadd.f32 %v7225, %v774
    %v7290 = vadd.f32 %v7226, %v774
    %v7291 = vadd.f32 %v7227, %v779
    %v7292 = vadd.f32 %v7228, %v779
    %v7293 = vadd.f32 %v7229, %v779
    %v7294 = vadd.f32 %v7230, %v779
    %v7295 = vadd.f32 %v7231, %v784
    %v7296 = vadd.f32 %v7232, %v784
    %v7297 = vadd.f32 %v7233, %v784
    %v7298 = vadd.f32 %v7234, %v784
    %v7299 = vadd.f32 %v7235, %v789
    %v7300 = vadd.f32 %v7236, %v789
    %v7301 = vadd.f32 %v7237, %v789
    %v7302 = vadd.f32 %v7238, %v789
    %v7303 = vadd.f32 %v7239, %v794
    %v7304 = vadd.f32 %v7240, %v794
    %v7305 = vadd.f32 %v7241, %v794
    %v7306 = vadd.f32 %v7242, %v794
    %v7307 = vadd.f32 %v7243, %v799
    %v7308 = vadd.f32 %v7244, %v799
    %v7309 = vadd.f32 %v7245, %v799
    %v7310 = vadd.f32 %v7246, %v799
    %v7311 = vadd.f32 %v7247, %v804
    %v7312 = vadd.f32 %v7248, %v804
    %v7313 = vadd.f32 %v7249, %v804
    %v7314 = vadd.f32 %v7250, %v804
    %v7315 = vmax.f32 %v7251, 0.0
    %v7316 = vmax.f32 %v7252, 0.0
    %v7317 = vmax.f32 %v7253, 0.0
    %v7318 = vmax.f32 %v7254, 0.0
    %v7319 = vmax.f32 %v7255, 0.0
    %v7320 = vmax.f32 %v7256, 0.0
    %v7321 = vmax.f32 %v7257, 0.0
    %v7322 = vmax.f32 %v7258, 0.0
    %v7323 = vmax.f32 %v7259, 0.0
    %v7324 = vmax.f32 %v7260, 0.0
    %v7325 = vmax.f32 %v7261, 0.0
    %v7326 = vmax.f32 %v7262, 0.0
    %v7327 = vmax.f32 %v7263, 0.0
    %v7328 = vmax.f32 %v7264, 0.0
    %v7329 = vmax.f32 %v7265, 0.0
    %v7330 = vmax.f32 %v7266, 0.0
    %v7331 = vmax.f32 %v7267, 0.0
    %v7332 = vmax.f32 %v7268, 0.0
    %v7333 = vmax.f32 %v7269, 0.0
    %v7334 = vmax.f32 %v7270, 0.0
    %v7335 = vmax.f32 %v7271, 0.0
    %v7336 = vmax.f32 %v7272, 0.0
    %v7337 = vmax.f32 %v7273, 0.0
    %v7338 = vmax.f32 %v7274, 0.0
    %v7339 = vmax.f32 %v7275, 0.0
    %v7340 = vmax.f32 %v7276, 0.0
    %v7341 = vmax.f32 %v7277, 0.0
    %v7342 = vmax.f32 %v7278, 0.0
    %v7343 = vmax.f32 %v7279, 0.0
    %v7344 = vmax.f32 %v7280, 0.0
    %v7345 = vmax.f32 %v7281, 0.0
    %v7346 = vmax.f32 %v7282, 0.0
    %v7347 = vmax.f32 %v7283, 0.0
    %v7348 = vmax.f32 %v7284, 0.0
    %v7349 = vmax.f32 %v7285, 0.0
    %v7350 = vmax.f32 %v7286, 0.0
    %v7351 = vmax.f32 %v7287, 0.0
    %v7352 = vmax.f32 %v7288, 0.0
    %v7353 = vmax.f32 %v7289, 0.0
    %v7354 = vmax.f32 %v7290, 0.0
    %v7355 = vmax.f32 %v7291, 0.0
    %v7356 = vmax.f32 %v7292, 0.0
    %v7357 = vmax.f32 %v7293, 0.0
    %v7358 = vmax.f32 %v7294, 0.0
    %v7359 = vmax.f32 %v7295, 0.0
    %v7360 = vmax.f32 %v7296, 0.0
    %v7361 = vmax.f32 %v7297, 0.0
    %v7362 = vmax.f32 %v7298, 0.0
    %v7363 = vmax.f32 %v7299, 0.0
    %v7364 = vmax.f32 %v7300, 0.0
    %v7365 = vmax.f32 %v7301, 0.0
    %v7366 = vmax.f32 %v7302, 0.0
    %v7367 = vmax.f32 %v7303, 0.0
    %v7368 = vmax.f32 %v7304, 0.0
    %v7369 = vmax.f32 %v7305, 0.0
    %v7370 = vmax.f32 %v7306, 0.0
    %v7371 = vmax.f32 %v7307, 0.0
    %v7372 = vmax.f32 %v7308, 0.0
    %v7373 = vmax.f32 %v7309, 0.0
    %v7374 = vmax.f32 %v7310, 0.0
    %v7375 = vmax.f32 %v7311, 0.0
    %v7376 = vmax.f32 %v7312, 0.0
    %v7377 = vmax.f32 %v7313, 0.0
    %v7378 = vmax.f32 %v7314, 0.0
    %v7379 = vpack.c.bf16 %v7319, %v7315
    %v7380 = vpack.c.bf16 %v7320, %v7316
    %v7381 = vpack.c.bf16 %v7321, %v7317
    %v7382 = vpack.c.bf16 %v7322, %v7318
    %v7383 = vpack.c.bf16 %v7327, %v7323
    %v7384 = vpack.c.bf16 %v7328, %v7324
    %v7385 = vpack.c.bf16 %v7329, %v7325
    %v7386 = vpack.c.bf16 %v7330, %v7326
    %v7387 = vpack.c.bf16 %v7335, %v7331
    %v7388 = vpack.c.bf16 %v7336, %v7332
    %v7389 = vpack.c.bf16 %v7337, %v7333
    %v7390 = vpack.c.bf16 %v7338, %v7334
    %v7391 = vpack.c.bf16 %v7343, %v7339
    %v7392 = vpack.c.bf16 %v7344, %v7340
    %v7393 = vpack.c.bf16 %v7345, %v7341
    %v7394 = vpack.c.bf16 %v7346, %v7342
    %v7395 = vpack.c.bf16 %v7351, %v7347
    %v7396 = vpack.c.bf16 %v7352, %v7348
    %v7397 = vpack.c.bf16 %v7353, %v7349
    %v7398 = vpack.c.bf16 %v7354, %v7350
    %v7399 = vpack.c.bf16 %v7359, %v7355
    %v7400 = vpack.c.bf16 %v7360, %v7356
    %v7401 = vpack.c.bf16 %v7361, %v7357
    %v7402 = vpack.c.bf16 %v7362, %v7358
    %v7403 = vpack.c.bf16 %v7367, %v7363
    %v7404 = vpack.c.bf16 %v7368, %v7364
    %v7405 = vpack.c.bf16 %v7369, %v7365
    %v7406 = vpack.c.bf16 %v7370, %v7366
    %v7407 = vpack.c.bf16 %v7375, %v7371
    %v7408 = vpack.c.bf16 %v7376, %v7372
    %v7409 = vpack.c.bf16 %v7377, %v7373
    %v7410 = vpack.c.bf16 %v7378, %v7374
    %7411 = vmatprep.subr.bf16.mxu0 %v7380
    %7412 = vmatpush1.bf16.msra.mxu0 %v7379
    %7413 = vmatprep.subr.bf16.mxu0 %v7384
    %7414 = vmatpush1.bf16.msra.mxu0 %v7383
    %7415 = vmatprep.subr.bf16.mxu0 %v7388
    %7416 = vmatpush1.bf16.msra.mxu0 %v7387
    %7417 = vmatprep.subr.bf16.mxu0 %v7392
    %7418 = vmatpush1.bf16.msra.mxu0 %v7391
    %7419 = vmatprep.subr.bf16.mxu0 %v7396
    %7420 = vmatpush1.bf16.msra.mxu0 %v7395
    %7421 = vmatprep.subr.bf16.mxu0 %v7400
    %7422 = vmatpush1.bf16.msra.mxu0 %v7399
    %7423 = vmatprep.subr.bf16.mxu0 %v7404
    %7424 = vmatpush1.bf16.msra.mxu0 %v7403
    %7425 = vmatprep.subr.bf16.mxu0 %v7408
    %7426 = vmatpush1.bf16.msra.mxu0 %v7407
    %7427 = vmatprep.subr.bf16.mxu0 0
    %7428 = vmatpush1.bf16.msra.mxu0 0
    %7429 = vmatprep.subr.bf16.mxu0 0
    %7430 = vmatpush1.bf16.msra.mxu0 0
    %7431 = vmatprep.subr.bf16.mxu0 0
    %7432 = vmatpush1.bf16.msra.mxu0 0
    %7433 = vmatprep.subr.bf16.mxu0 0
    %7434 = vmatpush1.bf16.msra.mxu0 0
    %7435 = vmatprep.subr.bf16.mxu0 0
    %7436 = vmatpush1.bf16.msra.mxu0 0
    %7437 = vmatprep.subr.bf16.mxu0 0
    %7438 = vmatpush1.bf16.msra.mxu0 0
    %7439 = vmatprep.subr.bf16.mxu0 0
    %7440 = vmatpush1.bf16.msra.mxu0 0
    %7441 = vmatprep.subr.bf16.mxu0 0
    %7442 = vmatpush1.bf16.msra.mxu0 0
    %7443 = vmatprep.mubr.bf16.mxu0 0
    %7444 = vmatmul.mubr.bf16.gmra.mrb[0].mxu0 %v998
    %v7445 = vpop.f32.mrb[0].mxu0
    %v7446 = vadd.f32 0.0, %v7445
    %v7447 = vpop.f32.mrb[0].mxu0
    %v7448 = vadd.f32 0.0, %v7447
    %v7449 = vpop.f32.mrb[0].mxu0
    %v7450 = vadd.f32 0.0, %v7449
    %v7451 = vpop.f32.mrb[0].mxu0
    %v7452 = vadd.f32 0.0, %v7451
    %7453 = vmatprep.mubr.bf16.mxu0 0
    %7454 = vmatmul.mubr.bf16.gmra.mrb[0].mxu0 %v999
    %v7455 = vpop.f32.mrb[0].mxu0
    %v7456 = vadd.f32 0.0, %v7455
    %v7457 = vpop.f32.mrb[0].mxu0
    %v7458 = vadd.f32 0.0, %v7457
    %v7459 = vpop.f32.mrb[0].mxu0
    %v7460 = vadd.f32 0.0, %v7459
    %v7461 = vpop.f32.mrb[0].mxu0
    %v7462 = vadd.f32 0.0, %v7461
    %7463 = vmatprep.mubr.bf16.mxu0 0
    %7464 = vmatmul.mubr.bf16.gmra.mrb[0].mxu0 %v1000
    %v7465 = vpop.f32.mrb[0].mxu0
    %v7466 = vadd.f32 0.0, %v7465
    %v7467 = vpop.f32.mrb[0].mxu0
    %v7468 = vadd.f32 0.0, %v7467
    %v7469 = vpop.f32.mrb[0].mxu0
    %v7470 = vadd.f32 0.0, %v7469
    %v7471 = vpop.f32.mrb[0].mxu0
    %v7472 = vadd.f32 0.0, %v7471
    %7473 = vmatprep.mubr.bf16.mxu0 0
    %7474 = vmatmul.mubr.bf16.gmra.mrb[0].mxu0 %v1001
    %v7475 = vpop.f32.mrb[0].mxu0
    %v7476 = vadd.f32 0.0, %v7475
    %v7477 = vpop.f32.mrb[0].mxu0
    %v7478 = vadd.f32 0.0, %v7477
    %v7479 = vpop.f32.mrb[0].mxu0
    %v7480 = vadd.f32 0.0, %v7479
    %v7481 = vpop.f32.mrb[0].mxu0
    %v7482 = vadd.f32 0.0, %v7481
    %7483 = vmatprep.mubr.bf16.mxu0 0
    %7484 = vmatmul.mubr.bf16.gmra.mrb[0].mxu0 %v1002
    %v7485 = vpop.f32.mrb[0].mxu0
    %v7486 = vadd.f32 0.0, %v7485
    %v7487 = vpop.f32.mrb[0].mxu0
    %v7488 = vadd.f32 0.0, %v7487
    %v7489 = vpop.f32.mrb[0].mxu0
    %v7490 = vadd.f32 0.0, %v7489
    %v7491 = vpop.f32.mrb[0].mxu0
    %v7492 = vadd.f32 0.0, %v7491
    %7493 = vmatprep.mubr.bf16.mxu0 0
    %7494 = vmatmul.mubr.bf16.gmra.mrb[0].mxu0 %v1003
    %v7495 = vpop.f32.mrb[0].mxu0
    %v7496 = vadd.f32 0.0, %v7495
    %v7497 = vpop.f32.mrb[0].mxu0
    %v7498 = vadd.f32 0.0, %v7497
    %v7499 = vpop.f32.mrb[0].mxu0
    %v7500 = vadd.f32 0.0, %v7499
    %v7501 = vpop.f32.mrb[0].mxu0
    %v7502 = vadd.f32 0.0, %v7501
    %7503 = vmatprep.mubr.bf16.mxu0 0
    %7504 = vmatmul.mubr.bf16.gmra.mrb[0].mxu0 %v1004
    %v7505 = vpop.f32.mrb[0].mxu0
    %v7506 = vadd.f32 0.0, %v7505
    %v7507 = vpop.f32.mrb[0].mxu0
    %v7508 = vadd.f32 0.0, %v7507
    %v7509 = vpop.f32.mrb[0].mxu0
    %v7510 = vadd.f32 0.0, %v7509
    %v7511 = vpop.f32.mrb[0].mxu0
    %v7512 = vadd.f32 0.0, %v7511
    %7513 = vmatprep.mubr.bf16.mxu0 0
    %7514 = vmatmul.mubr.bf16.gmra.mrb[0].mxu0 %v1005
    %v7515 = vpop.f32.mrb[0].mxu0
    %v7516 = vadd.f32 0.0, %v7515
    %v7517 = vpop.f32.mrb[0].mxu0
    %v7518 = vadd.f32 0.0, %v7517
    %v7519 = vpop.f32.mrb[0].mxu0
    %v7520 = vadd.f32 0.0, %v7519
    %v7521 = vpop.f32.mrb[0].mxu0
    %v7522 = vadd.f32 0.0, %v7521
    %7523 = vdwg.mxu0
    %7524 = vmatprep.subr.bf16.mxu0 %v7382
    %7525 = vmatpush1.bf16.msra.mxu0 %v7381
    %7526 = vmatprep.subr.bf16.mxu0 %v7386
    %7527 = vmatpush1.bf16.msra.mxu0 %v7385
    %7528 = vmatprep.subr.bf16.mxu0 %v7390
    %7529 = vmatpush1.bf16.msra.mxu0 %v7389
    %7530 = vmatprep.subr.bf16.mxu0 %v7394
    %7531 = vmatpush1.bf16.msra.mxu0 %v7393
    %7532 = vmatprep.subr.bf16.mxu0 %v7398
    %7533 = vmatpush1.bf16.msra.mxu0 %v7397
    %7534 = vmatprep.subr.bf16.mxu0 %v7402
    %7535 = vmatpush1.bf16.msra.mxu0 %v7401
    %7536 = vmatprep.subr.bf16.mxu0 %v7406
    %7537 = vmatpush1.bf16.msra.mxu0 %v7405
    %7538 = vmatprep.subr.bf16.mxu0 %v7410
    %7539 = vmatpush1.bf16.msra.mxu0 %v7409
    %7540 = vmatprep.subr.bf16.mxu0 0
    %7541 = vmatpush1.bf16.msra.mxu0 0
    %7542 = vmatprep.subr.bf16.mxu0 0
    %7543 = vmatpush1.bf16.msra.mxu0 0
    %7544 = vmatprep.subr.bf16.mxu0 0
    %7545 = vmatpush1.bf16.msra.mxu0 0
    %7546 = vmatprep.subr.bf16.mxu0 0
    %7547 = vmatpush1.bf16.msra.mxu0 0
    %7548 = vmatprep.subr.bf16.mxu0 0
    %7549 = vmatpush1.bf16.msra.mxu0 0
    %7550 = vmatprep.subr.bf16.mxu0 0
    %7551 = vmatpush1.bf16.msra.mxu0 0
    %7552 = vmatprep.subr.bf16.mxu0 0
    %7553 = vmatpush1.bf16.msra.mxu0 0
    %7554 = vmatprep.subr.bf16.mxu0 0
    %7555 = vmatpush1.bf16.msra.mxu0 0
    %7556 = vmatprep.mubr.bf16.mxu0 0
    %7557 = vmatmul.mubr.bf16.gmra.mrb[0].mxu0 %v998
    %v7558 = vpop.f32.mrb[0].mxu0
    %v7559 = vadd.f32 0.0, %v7558
    %v7560 = vpop.f32.mrb[0].mxu0
    %v7561 = vadd.f32 0.0, %v7560
    %v7562 = vpop.f32.mrb[0].mxu0
    %v7563 = vadd.f32 0.0, %v7562
    %v7564 = vpop.f32.mrb[0].mxu0
    %v7565 = vadd.f32 0.0, %v7564
    %7566 = vmatprep.mubr.bf16.mxu0 0
    %7567 = vmatmul.mubr.bf16.gmra.mrb[0].mxu0 %v999
    %v7568 = vpop.f32.mrb[0].mxu0
    %v7569 = vadd.f32 0.0, %v7568
    %v7570 = vpop.f32.mrb[0].mxu0
    %v7571 = vadd.f32 0.0, %v7570
    %v7572 = vpop.f32.mrb[0].mxu0
    %v7573 = vadd.f32 0.0, %v7572
    %v7574 = vpop.f32.mrb[0].mxu0
    %v7575 = vadd.f32 0.0, %v7574
    %7576 = vmatprep.mubr.bf16.mxu0 0
    %7577 = vmatmul.mubr.bf16.gmra.mrb[0].mxu0 %v1000
    %v7578 = vpop.f32.mrb[0].mxu0
    %v7579 = vadd.f32 0.0, %v7578
    %v7580 = vpop.f32.mrb[0].mxu0
    %v7581 = vadd.f32 0.0, %v7580
    %v7582 = vpop.f32.mrb[0].mxu0
    %v7583 = vadd.f32 0.0, %v7582
    %v7584 = vpop.f32.mrb[0].mxu0
    %v7585 = vadd.f32 0.0, %v7584
    %7586 = vmatprep.mubr.bf16.mxu0 0
    %7587 = vmatmul.mubr.bf16.gmra.mrb[0].mxu0 %v1001
    %v7588 = vpop.f32.mrb[0].mxu0
    %v7589 = vadd.f32 0.0, %v7588
    %v7590 = vpop.f32.mrb[0].mxu0
    %v7591 = vadd.f32 0.0, %v7590
    %v7592 = vpop.f32.mrb[0].mxu0
    %v7593 = vadd.f32 0.0, %v7592
    %v7594 = vpop.f32.mrb[0].mxu0
    %v7595 = vadd.f32 0.0, %v7594
    %7596 = vmatprep.mubr.bf16.mxu0 0
    %7597 = vmatmul.mubr.bf16.gmra.mrb[0].mxu0 %v1002
    %v7598 = vpop.f32.mrb[0].mxu0
    %v7599 = vadd.f32 0.0, %v7598
    %v7600 = vpop.f32.mrb[0].mxu0
    %v7601 = vadd.f32 0.0, %v7600
    %v7602 = vpop.f32.mrb[0].mxu0
    %v7603 = vadd.f32 0.0, %v7602
    %v7604 = vpop.f32.mrb[0].mxu0
    %v7605 = vadd.f32 0.0, %v7604
    %7606 = vmatprep.mubr.bf16.mxu0 0
    %7607 = vmatmul.mubr.bf16.gmra.mrb[0].mxu0 %v1003
    %v7608 = vpop.f32.mrb[0].mxu0
    %v7609 = vadd.f32 0.0, %v7608
    %v7610 = vpop.f32.mrb[0].mxu0
    %v7611 = vadd.f32 0.0, %v7610
    %v7612 = vpop.f32.mrb[0].mxu0
    %v7613 = vadd.f32 0.0, %v7612
    %v7614 = vpop.f32.mrb[0].mxu0
    %v7615 = vadd.f32 0.0, %v7614
    %7616 = vmatprep.mubr.bf16.mxu0 0
    %7617 = vmatmul.mubr.bf16.gmra.mrb[0].mxu0 %v1004
    %v7618 = vpop.f32.mrb[0].mxu0
    %v7619 = vadd.f32 0.0, %v7618
    %v7620 = vpop.f32.mrb[0].mxu0
    %v7621 = vadd.f32 0.0, %v7620
    %v7622 = vpop.f32.mrb[0].mxu0
    %v7623 = vadd.f32 0.0, %v7622
    %v7624 = vpop.f32.mrb[0].mxu0
    %v7625 = vadd.f32 0.0, %v7624
    %7626 = vmatprep.mubr.bf16.mxu0 0
    %7627 = vmatmul.mubr.bf16.gmra.mrb[0].mxu0 %v1005
    %v7628 = vpop.f32.mrb[0].mxu0
    %v7629 = vadd.f32 0.0, %v7628
    %v7630 = vpop.f32.mrb[0].mxu0
    %v7631 = vadd.f32 0.0, %v7630
    %v7632 = vpop.f32.mrb[0].mxu0
    %v7633 = vadd.f32 0.0, %v7632
    %v7634 = vpop.f32.mrb[0].mxu0
    %v7635 = vadd.f32 0.0, %v7634
    %7636 = vdwg.mxu0
    %v7637 = vmax.f32 %v7446, %v7448
    %v7638 = vmax.f32 %v7637, %v7559
    %v7639 = vmax.f32 %v7638, %v7561
    %7640 = vmax.xlane.f32.xlu0 %v7639
    %v7641 = vpop.xlane.xlu0 %7640
    %v7642 = vmax.f32 %v7450, %v7452
    %v7643 = vmax.f32 %v7642, %v7563
    %v7644 = vmax.f32 %v7643, %v7565
    %7645 = vmax.xlane.f32.xlu0 %v7644
    %v7646 = vpop.xlane.xlu0 %7645
    %v7647 = vmax.f32 %v7456, %v7458
    %v7648 = vmax.f32 %v7647, %v7569
    %v7649 = vmax.f32 %v7648, %v7571
    %7650 = vmax.xlane.f32.xlu0 %v7649
    %v7651 = vpop.xlane.xlu0 %7650
    %v7652 = vmax.f32 %v7460, %v7462
    %v7653 = vmax.f32 %v7652, %v7573
    %v7654 = vmax.f32 %v7653, %v7575
    %7655 = vmax.xlane.f32.xlu0 %v7654
    %v7656 = vpop.xlane.xlu0 %7655
    %v7657 = vmax.f32 %v7466, %v7468
    %v7658 = vmax.f32 %v7657, %v7579
    %v7659 = vmax.f32 %v7658, %v7581
    %7660 = vmax.xlane.f32.xlu0 %v7659
    %v7661 = vpop.xlane.xlu0 %7660
    %v7662 = vmax.f32 %v7470, %v7472
    %v7663 = vmax.f32 %v7662, %v7583
    %v7664 = vmax.f32 %v7663, %v7585
    %7665 = vmax.xlane.f32.xlu0 %v7664
    %v7666 = vpop.xlane.xlu0 %7665
    %v7667 = vmax.f32 %v7476, %v7478
    %v7668 = vmax.f32 %v7667, %v7589
    %v7669 = vmax.f32 %v7668, %v7591
    %7670 = vmax.xlane.f32.xlu0 %v7669
    %v7671 = vpop.xlane.xlu0 %7670
    %v7672 = vmax.f32 %v7480, %v7482
    %v7673 = vmax.f32 %v7672, %v7593
    %v7674 = vmax.f32 %v7673, %v7595
    %7675 = vmax.xlane.f32.xlu0 %v7674
    %v7676 = vpop.xlane.xlu0 %7675
    %v7677 = vmax.f32 %v7486, %v7488
    %v7678 = vmax.f32 %v7677, %v7599
    %v7679 = vmax.f32 %v7678, %v7601
    %7680 = vmax.xlane.f32.xlu0 %v7679
    %v7681 = vpop.xlane.xlu0 %7680
    %v7682 = vmax.f32 %v7490, %v7492
    %v7683 = vmax.f32 %v7682, %v7603
    %v7684 = vmax.f32 %v7683, %v7605
    %7685 = vmax.xlane.f32.xlu0 %v7684
    %v7686 = vpop.xlane.xlu0 %7685
    %v7687 = vmax.f32 %v7496, %v7498
    %v7688 = vmax.f32 %v7687, %v7609
    %v7689 = vmax.f32 %v7688, %v7611
    %7690 = vmax.xlane.f32.xlu0 %v7689
    %v7691 = vpop.xlane.xlu0 %7690
    %v7692 = vmax.f32 %v7500, %v7502
    %v7693 = vmax.f32 %v7692, %v7613
    %v7694 = vmax.f32 %v7693, %v7615
    %7695 = vmax.xlane.f32.xlu0 %v7694
    %v7696 = vpop.xlane.xlu0 %7695
    %v7697 = vmax.f32 %v7506, %v7508
    %v7698 = vmax.f32 %v7697, %v7619
    %v7699 = vmax.f32 %v7698, %v7621
    %7700 = vmax.xlane.f32.xlu0 %v7699
    %v7701 = vpop.xlane.xlu0 %7700
    %v7702 = vmax.f32 %v7510, %v7512
    %v7703 = vmax.f32 %v7702, %v7623
    %v7704 = vmax.f32 %v7703, %v7625
    %7705 = vmax.xlane.f32.xlu0 %v7704
    %v7706 = vpop.xlane.xlu0 %7705
    %v7707 = vmax.f32 %v7516, %v7518
    %v7708 = vmax.f32 %v7707, %v7629
    %v7709 = vmax.f32 %v7708, %v7631
    %7710 = vmax.xlane.f32.xlu0 %v7709
    %v7711 = vpop.xlane.xlu0 %7710
    %v7712 = vmax.f32 %v7520, %v7522
    %v7713 = vmax.f32 %v7712, %v7633
    %v7714 = vmax.f32 %v7713, %v7635
    %7715 = vmax.xlane.f32.xlu0 %v7714
    %v7716 = vpop.xlane.xlu0 %7715
    %v7717 = vmax.f32 %v6800, %v7641
    %v7718 = vmax.f32 %v6801, %v7646
    %v7719 = vmax.f32 %v6802, %v7651
    %v7720 = vmax.f32 %v6803, %v7656
    %v7721 = vmax.f32 %v6804, %v7661
    %v7722 = vmax.f32 %v6805, %v7666
    %v7723 = vmax.f32 %v6806, %v7671
    %v7724 = vmax.f32 %v6807, %v7676
    %v7725 = vmax.f32 %v6808, %v7681
    %v7726 = vmax.f32 %v6809, %v7686
    %v7727 = vmax.f32 %v6810, %v7691
    %v7728 = vmax.f32 %v6811, %v7696
    %v7729 = vmax.f32 %v6812, %v7701
    %v7730 = vmax.f32 %v6813, %v7706
    %v7731 = vmax.f32 %v6814, %v7711
    %v7732 = vmax.f32 %v6815, %v7716
    %v7733 = vadd.f32 %v7717, %v70
    %v7734 = vadd.f32 %v7718, %v71
    %v7735 = vadd.f32 %v7719, %v72
    %v7736 = vadd.f32 %v7720, %v73
    %v7737 = vadd.f32 %v7721, %v74
    %v7738 = vadd.f32 %v7722, %v75
    %v7739 = vadd.f32 %v7723, %v76
    %v7740 = vadd.f32 %v7724, %v77
    %v7741 = vadd.f32 %v7725, %v78
    %v7742 = vadd.f32 %v7726, %v79
    %v7743 = vadd.f32 %v7727, %v80
    %v7744 = vadd.f32 %v7728, %v81
    %v7745 = vadd.f32 %v7729, %v82
    %v7746 = vadd.f32 %v7730, %v83
    %v7747 = vadd.f32 %v7731, %v84
    %v7748 = vadd.f32 %v7732, %v85
    %7765 = vrot.lane.b32.xlu0 %v7733, 1
    %v7766 = vpop.permute.xlu0 %7765
    %7767 = vrot.lane.b32.xlu0 %v7734, 1
    %v7768 = vpop.permute.xlu0 %7767
    %7769 = vrot.lane.b32.xlu0 %v7735, 1
    %v7770 = vpop.permute.xlu0 %7769
    %7771 = vrot.lane.b32.xlu0 %v7736, 1
    %v7772 = vpop.permute.xlu0 %7771
    %7773 = vrot.lane.b32.xlu0 %v7737, 1
    %v7774 = vpop.permute.xlu0 %7773
    %7775 = vrot.lane.b32.xlu0 %v7738, 1
    %v7776 = vpop.permute.xlu0 %7775
    %7777 = vrot.lane.b32.xlu0 %v7739, 1
    %v7778 = vpop.permute.xlu0 %7777
    %7779 = vrot.lane.b32.xlu0 %v7740, 1
    %v7780 = vpop.permute.xlu0 %7779
    %7781 = vrot.lane.b32.xlu0 %v7741, 1
    %v7782 = vpop.permute.xlu0 %7781
    %7783 = vrot.lane.b32.xlu0 %v7742, 1
    %v7784 = vpop.permute.xlu0 %7783
    %7785 = vrot.lane.b32.xlu0 %v7743, 1
    %v7786 = vpop.permute.xlu0 %7785
    %7787 = vrot.lane.b32.xlu0 %v7744, 1
    %v7788 = vpop.permute.xlu0 %7787
    %7789 = vrot.lane.b32.xlu0 %v7745, 1
    %v7790 = vpop.permute.xlu0 %7789
    %7791 = vrot.lane.b32.xlu0 %v7746, 1
    %v7792 = vpop.permute.xlu0 %7791
    %7793 = vrot.lane.b32.xlu0 %v7747, 1
    %v7794 = vpop.permute.xlu0 %7793
    %7795 = vrot.lane.b32.xlu0 %v7748, 1
    %v7796 = vpop.permute.xlu0 %7795
    %vm7813 = vcmask 7168
    %v7814 = vsel %vm7813, %v4065, %v7766
    %v7815 = vsel %vm7813, %v4066, %v7768
    %v7816 = vsel %vm7813, %v4067, %v7770
    %v7817 = vsel %vm7813, %v4068, %v7772
    %v7818 = vsel %vm7813, %v4069, %v7774
    %v7819 = vsel %vm7813, %v4070, %v7776
    %v7820 = vsel %vm7813, %v4071, %v7778
    %v7821 = vsel %vm7813, %v4072, %v7780
    %v7822 = vsel %vm7813, %v4073, %v7782
    %v7823 = vsel %vm7813, %v4074, %v7784
    %v7824 = vsel %vm7813, %v4075, %v7786
    %v7825 = vsel %vm7813, %v4076, %v7788
    %v7826 = vsel %vm7813, %v4077, %v7790
    %v7827 = vsel %vm7813, %v4078, %v7792
    %v7828 = vsel %vm7813, %v4079, %v7794
    %v7829 = vsel %vm7813, %v4080, %v7796
    %7830 = vxpose.xlu0.b32.start [1/16] %v7814, 128
    %7831 = vxpose.xlu0.b32.cont [2/16] %v7815, 128
    %7832 = vxpose.xlu0.b32.cont [3/16] %v7816, 128
    %7833 = vxpose.xlu0.b32.cont [4/16] %v7817, 128
    %7834 = vxpose.xlu0.b32.cont [5/16] %v7818, 128
    %7835 = vxpose.xlu0.b32.cont [6/16] %v7819, 128
    %7836 = vxpose.xlu0.b32.cont [7/16] %v7820, 128
    %7837 = vxpose.xlu0.b32.cont [8/16] %v7821, 128
    %7838 = vxpose.xlu0.b32.cont [9/16] %v7822, 128
    %7839 = vxpose.xlu0.b32.cont [10/16] %v7823, 128
    %7840 = vxpose.xlu0.b32.cont [11/16] %v7824, 128
    %7841 = vxpose.xlu0.b32.cont [12/16] %v7825, 128
    %7842 = vxpose.xlu0.b32.cont [13/16] %v7826, 128
    %7843 = vxpose.xlu0.b32.cont [14/16] %v7827, 128
    %7844 = vxpose.xlu0.b32.cont [15/16] %v7828, 128
    %7845 = vxpose.xlu0.b32.end [16/16] %v7829, 128
    %v7846 = vpop.trf.xlu0
    %v7847 = vpop.trf.xlu0
    %v7848 = vpop.trf.xlu0
    %v7849 = vpop.trf.xlu0
    %v7850 = vpop.trf.xlu0
    %v7851 = vpop.trf.xlu0
    %v7852 = vpop.trf.xlu0
    %v7853 = vpop.trf.xlu0
    %v7854 = vpop.trf.xlu0
    %v7855 = vpop.trf.xlu0
    %v7856 = vpop.trf.xlu0
    %v7857 = vpop.trf.xlu0
    %v7858 = vpop.trf.xlu0
    %v7859 = vpop.trf.xlu0
    %v7860 = vpop.trf.xlu0
    %v7861 = vpop.trf.xlu0
    %7862 = vst [vmem:[#allocation2] sm:$0x3] %v7846
    // Predicated region
    $region22: #{point_uni3d_forward.1} parent=1 // pred_check
      _
    $region23: #{point_uni3d_forward.1} parent=1 // pred_check_branch
      %7864 = sbr.rel (0) target = $region25
    $region24: #{point_uni3d_forward.1} parent=1 // pred_region
      %s7866 = ssub.s32 32, 32
      %7867 = vsyncadd [#allocation3], %s7866
      %s7869 = sshll.u32 [#allocation2], 4
      %s7870 = int_to_ptr.vmem [resolvable:$true] %s7869
      %7872 = dma.vmem_to_hbm [thread:$0]  %s7870, 32, %s5, [#allocation3]
    $region25: #{point_uni3d_forward.1} parent=1 // pred_fallthru
      _
    // Predicated region
    $region26: #{point_uni3d_forward.1} parent=1 // pred_check
      _
    $region27: #{point_uni3d_forward.1} parent=1 // pred_check_branch
      %7874 = sbr.rel (0) target = $region29
    $region28: #{point_uni3d_forward.1} parent=1 // pred_region
      %7875 = dma.done [#allocation3], 32
    $region29: #{point_uni3d_forward.1} parent=1 // pred_fallthru
      _
    %7876 = vsyncpa [#allocation3], 1

</llo_original>
